<compile_context>
chip_gen: v6e
topology: v6e:2x2x1
jax: 0.10.0
libtpu: 0.0.40
codegen_flags: <defaults>
</compile_context>

<pallas_src>
import jax
import jax.numpy as jnp
from jax.experimental import pallas as pl
from jax.experimental.pallas import tpu as pltpu

MATMUL_DTYPE = jnp.bfloat16  # MXU operand dtype; accumulation/epilogue stay f32.
_FC_LANES = 128              # C5/F6/F7 outputs padded to one full vreg lane width.

# ---- static index plan for the flattened (s = 32*h + w) spatial layout --------------------
# conv1 out : valid at s = 32*i  + j       (i, j  in [0,28)), taps at +32*ki + kj
# pool1     : p1[s] = max(out1[s+{0,1,32,33}]); pooled value lives at s = 64*ip + 2*jp
# conv2 out : valid at s = 64*i2 + 2*j2    (i2,j2 in [0,10)), taps at +64*ki + 2*kj
# pool2     : p2[s] = max(out2[s+{0,2,64,66}]); pooled value lives at s = 128*ip + 4*jp
# conv5     : single output row gathers p2[128*ki + 4*kj], ki,kj in [0,5)
_L1 = 892  # out1 slab length (reads x    rows up to 891 + 4*32 + 4  = 1023 < 1024)
_L2 = 859  # p1   slab length (reads out1 rows up to 858 + 33        = 891  < 892)
_L3 = 595  # out2 slab length (reads p1   rows up to 594 + 4*64 + 8  = 858  < 859)
_L4 = 529  # p2   slab length (reads out2 rows up to 528 + 66        = 594  < 595)


# ----------------------------------- the fused kernel --------------------------------------

def _lenet5_kernel(x_ref, w1_ref, b1_ref, w2_ref, b2_ref, w5_ref, b5_ref,
                   w6_ref, b6_ref, w7_ref, b7_ref, out_ref):
    x = x_ref[0]  # (1024, 4) f32, row index = 32*h + w, channel in lanes (4th channel = 0)

    def dense(cols, w_ref_, b_ref_, relu=True):
        w = w_ref_[...]
        acc = jnp.dot(cols.astype(w.dtype), w, preferred_element_type=jnp.float32)
        acc = acc + b_ref_[...]                       # f32 epilogue (bias + ReLU)
        return jnp.maximum(acc, 0.0) if relu else acc

    def im2col(a, length, dh, dw):
        # Patch columns ordered (ki, kj, c) -- matches _pack_conv_weight in the wrapper.
        groups = []
        for ki in range(5):
            groups.append(jnp.concatenate(
                [a[ki * dh + kj * dw: ki * dh + kj * dw + length, :] for kj in range(5)],
                axis=-1))
        return jnp.concatenate(groups, axis=-1)

    def maxpool(a, length, dh, dw):
        # Undecimated 2x2 max pool: max of 4 shifted slices (offsets 0, dw, dh, dh+dw).
        return jnp.maximum(
            jnp.maximum(a[0:length, :], a[dw:dw + length, :]),
            jnp.maximum(a[dh:dh + length, :], a[dh + dw:dh + dw + length, :]))

    out1 = dense(im2col(x, _L1, 32, 1), w1_ref, b1_ref)       # C1 + ReLU   (892, 8)
    p1 = maxpool(out1, _L2, 32, 1)                            # S2          (859, 8)
    out2 = dense(im2col(p1, _L3, 64, 2), w2_ref, b2_ref)      # C3 + ReLU   (595, 16)
    p2 = maxpool(out2, _L4, 64, 2)                            # S4          (529, 16)
    cols5 = jnp.concatenate(
        [p2[128 * ki + 4 * kj: 128 * ki + 4 * kj + 1, :]
         for ki in range(5) for kj in range(5)], axis=-1)     #             (1, 400)
    feat = dense(cols5, w5_ref, b5_ref)                       # C5 + ReLU   (1, 128)  [120 real]
    feat = dense(feat, w6_ref, b6_ref)                        # F6 + ReLU   (1, 128)  [84 real]
    logits = dense(feat, w7_ref, b7_ref, relu=False)          # F7          (1, 128)  [10 real]
    out_ref[0] = logits                                       # lane-dense, unmasked store


# -------------------------------- wrapper / weight packing ---------------------------------

def _pack_conv_weight(w_oihw, cin_pad, cout_pad=None):
    """(O, I, kh, kw) PyTorch conv weight -> (kh*kw*cin_pad, cout_pad), rows = (ki, kj, c)."""
    o, i, kh, kw = w_oihw.shape
    cout_pad = o if cout_pad is None else cout_pad
    w = jnp.zeros((cout_pad, cin_pad, kh, kw), w_oihw.dtype).at[:o, :i].set(w_oihw)
    return jnp.transpose(w, (2, 3, 1, 0)).reshape(kh * kw * cin_pad, cout_pad)


def _pack_linear(w_kn, k_pad, n_pad):
    """(K, N) linear weight -> zero-padded (k_pad, n_pad)."""
    k, n = w_kn.shape
    return jnp.zeros((k_pad, n_pad), w_kn.dtype).at[:k, :n].set(w_kn)


def _pad_bias(b_vec, n_pad):
    return jnp.pad(b_vec, (0, n_pad - b_vec.shape[0])).reshape(1, n_pad).astype(jnp.float32)


def lenet5_forward(params, x_nchw):
    """x_nchw: (B, 3, 32, 32) float32 -> logits (B, 10). One fused Pallas call."""
    b = x_nchw.shape[0]
    assert x_nchw.shape[1:] == (3, 32, 32), x_nchw.shape

    # Input-only layout plumbing (tiny, fused by XLA): NCHW -> NHWC -> flatten spatial rows
    # (s = 32*h + w), pad channels 3 -> 4.
    xf = jnp.transpose(x_nchw, (0, 2, 3, 1)).astype(jnp.float32)
    xf = jnp.pad(xf, ((0, 0), (0, 0), (0, 0), (0, 1))).reshape(b, 32 * 32, 4)

    (w1, b1), (w2, b2), (w5, b5) = params["c1"], params["c3"], params["c5"]
    (w6, b6), (w7, b7) = params["f6"], params["f7"]

    # Conv weights: im2col layout. FC path padded to 128 output lanes (zeros are exact,
    # so padded lanes contribute nothing and logits[10:] are exactly 0).
    w1r = _pack_conv_weight(w1, cin_pad=4, cout_pad=8).astype(MATMUL_DTYPE)            # (100, 8)
    w2r = _pack_conv_weight(w2, cin_pad=8).astype(MATMUL_DTYPE)                        # (200, 16)
    w5r = _pack_conv_weight(w5, cin_pad=16, cout_pad=_FC_LANES).astype(MATMUL_DTYPE)   # (400, 128)
    w6r = _pack_linear(w6, _FC_LANES, _FC_LANES).astype(MATMUL_DTYPE)                  # (128, 128)
    w7r = _pack_linear(w7, _FC_LANES, _FC_LANES).astype(MATMUL_DTYPE)                  # (128, 128)
    b1r = _pad_bias(b1, 8)
    b2r = b2.reshape(1, 16).astype(jnp.float32)
    b5r = _pad_bias(b5, _FC_LANES)
    b6r = _pad_bias(b6, _FC_LANES)
    b7r = _pad_bias(b7, _FC_LANES)

    def resident(a):  # grid-invariant block: fetched once, stays resident in VMEM
        return pl.BlockSpec(a.shape, lambda i: (0, 0))

    out = pl.pallas_call(
        _lenet5_kernel,
        out_shape=jax.ShapeDtypeStruct((b, 1, _FC_LANES), jnp.float32),
        grid=(b,),
        in_specs=[
            pl.BlockSpec((1, 32 * 32, 4), lambda i: (i, 0, 0)),
            resident(w1r), resident(b1r), resident(w2r), resident(b2r),
            resident(w5r), resident(b5r), resident(w6r), resident(b6r),
            resident(w7r), resident(b7r),
        ],
        out_specs=pl.BlockSpec((1, 1, _FC_LANES), lambda i: (i, 0, 0)),
        compiler_params=pltpu.CompilerParams(
            dimension_semantics=("parallel",),      # shard the batch across v7x's 2 TCs
            vmem_limit_bytes=32 * 1024 * 1024,      # > v5e's 16 MiB default, < v7x's 64 MiB
        ),
    )(xf, w1r, b1r, w2r, b2r, w5r, b5r, w6r, b6r, w7r, b7r)
    return out.reshape(b, _FC_LANES)[:, :10]


# ------------------------------------ parameter init ---------------------------------------

def _init_conv(key, out_ch, in_ch, k):
    fan_in = in_ch * k * k
    bound = 1.0 / jnp.sqrt(fan_in)
    kw_, kb_ = jax.random.split(key)
    w = jax.random.uniform(kw_, (out_ch, in_ch, k, k), jnp.float32, -bound, bound)
    b = jax.random.uniform(kb_, (out_ch,), jnp.float32, -bound, bound)
    return w, b


def _init_linear(key, in_f, out_f):
    bound = 1.0 / jnp.sqrt(in_f)
    kw_, kb_ = jax.random.split(key)
    w = jax.random.uniform(kw_, (in_f, out_f), jnp.float32, -bound, bound)  # stored (K, N)
    b = jax.random.uniform(kb_, (out_f,), jnp.float32, -bound, bound)
    return w, b


def init_lenet5_params(key):
    keys = jax.random.split(key, 5)
    return {
        "c1": _init_conv(keys[0], 6, 3, 5),
        "c3": _init_conv(keys[1], 16, 6, 5),
        "c5": _init_conv(keys[2], 120, 16, 5),
        "f6": _init_linear(keys[3], 120, 84),
        "f7": _init_linear(keys[4], 84, 10),
    }


# ------------------------------ pure-XLA reference (for checking) --------------------------

def lenet5_reference(params, x_nchw):
    def conv_relu(x, w, bias):
        y = jax.lax.conv_general_dilated(
            x, w, window_strides=(1, 1), padding="VALID",
            dimension_numbers=("NCHW", "OIHW", "NCHW"))
        return jax.nn.relu(y + bias[None, :, None, None])

    def pool(x):
        return jax.lax.reduce_window(x, -jnp.inf, jax.lax.max,
                                     (1, 1, 2, 2), (1, 1, 2, 2), "VALID")

    w, bias = params["c1"]; x = pool(conv_relu(x_nchw, w, bias))
    w, bias = params["c3"]; x = pool(conv_relu(x, w, bias))
    w, bias = params["c5"]; x = conv_relu(x, w, bias)
    x = x.reshape(-1, 120)
    w, bias = params["f6"]; x = jax.nn.relu(x @ w + bias)
    w, bias = params["f7"]
    return x @ w + bias


# ------------------------------------------ main --------------------------------------------

if __name__ == "__main__":
    key = jax.random.PRNGKey(0)
    k_params, k_x = jax.random.split(key)

    params = init_lenet5_params(k_params)
    # LeNet5 requires 32x32 spatial input (C5 -> 1x1); SVHN has 3 channels.
    x = jax.random.normal(k_x, (2, 3, 32, 32), dtype=jnp.float32)

    logits = jax.jit(lenet5_forward)(params, x)
    jax.block_until_ready(logits)

    assert logits.shape == (2, 10), logits.shape
    assert logits.dtype == jnp.float32

    # Cross-check against a pure-XLA reference (loose tolerance: bf16 MXU operands).
    ref = jax.jit(lenet5_reference)(params, x)
    err = float(jnp.max(jnp.abs(logits - ref)))
    assert err < 5e-2, f"max |pallas - reference| = {err}"

    print("KERNEL_OK")
</pallas_src>

<mosaic_0001>
module attributes {stable_mosaic.version = 11 : i64} {
  func.func @_lenet5_kernel(%arg0: i32, %arg1: memref<1x1024x4xf32, #tpu.memory_space<vmem>>, %arg2: memref<100x8xbf16, #tpu.memory_space<vmem>>, %arg3: memref<1x8xf32, #tpu.memory_space<vmem>>, %arg4: memref<200x16xbf16, #tpu.memory_space<vmem>>, %arg5: memref<1x16xf32, #tpu.memory_space<vmem>>, %arg6: memref<400x128xbf16, #tpu.memory_space<vmem>>, %arg7: memref<1x128xf32, #tpu.memory_space<vmem>>, %arg8: memref<128x128xbf16, #tpu.memory_space<vmem>>, %arg9: memref<1x128xf32, #tpu.memory_space<vmem>>, %arg10: memref<128x128xbf16, #tpu.memory_space<vmem>>, %arg11: memref<1x128xf32, #tpu.memory_space<vmem>>, %arg12: memref<1x1x128xf32, #tpu.memory_space<vmem>>) attributes {dimension_semantics = [#tpu.dimension_semantics<parallel>], iteration_bounds = array<i64: 2>, scalar_prefetch = 0 : i64, scratch_operands = 0 : i64, tpu.core_type = #tpu.core_type<tc>, window_params = [{transform_indices = @transform_0, window_bounds = array<i64: 1, 1024, 4>}, {pipeline_mode = #tpu.pipeline_mode<synchronous>, transform_indices = @transform_1, window_bounds = array<i64: 100, 8>}, {pipeline_mode = #tpu.pipeline_mode<synchronous>, transform_indices = @transform_2, window_bounds = array<i64: 1, 8>}, {pipeline_mode = #tpu.pipeline_mode<synchronous>, transform_indices = @transform_3, window_bounds = array<i64: 200, 16>}, {pipeline_mode = #tpu.pipeline_mode<synchronous>, transform_indices = @transform_4, window_bounds = array<i64: 1, 16>}, {pipeline_mode = #tpu.pipeline_mode<synchronous>, transform_indices = @transform_5, window_bounds = array<i64: 400, 128>}, {pipeline_mode = #tpu.pipeline_mode<synchronous>, transform_indices = @transform_6, window_bounds = array<i64: 1, 128>}, {pipeline_mode = #tpu.pipeline_mode<synchronous>, transform_indices = @transform_7, window_bounds = array<i64: 128, 128>}, {pipeline_mode = #tpu.pipeline_mode<synchronous>, transform_indices = @transform_8, window_bounds = array<i64: 1, 128>}, {pipeline_mode = #tpu.pipeline_mode<synchronous>, transform_indices = @transform_9, window_bounds = array<i64: 128, 128>}, {pipeline_mode = #tpu.pipeline_mode<synchronous>, transform_indices = @transform_10, window_bounds = array<i64: 1, 128>}, {transform_indices = @transform_11, window_bounds = array<i64: 1, 1, 128>}]} {
    %c0 = arith.constant 0 : index
    %c0_0 = arith.constant 0 : index
    %c0_1 = arith.constant 0 : index
    %0 = vector.load %arg1[%c0, %c0_0, %c0_1] : memref<1x1024x4xf32, #tpu.memory_space<vmem>>, vector<1x1024x4xf32>
    %1 = vector.shape_cast %0 : vector<1x1024x4xf32> to vector<1024x4xf32>
    %2 = vector.extract_strided_slice %1 {offsets = [0, 0], sizes = [892, 4], strides = [1, 1]} : vector<1024x4xf32> to vector<892x4xf32>
    %3 = vector.extract_strided_slice %1 {offsets = [1, 0], sizes = [892, 4], strides = [1, 1]} : vector<1024x4xf32> to vector<892x4xf32>
    %4 = vector.extract_strided_slice %1 {offsets = [2, 0], sizes = [892, 4], strides = [1, 1]} : vector<1024x4xf32> to vector<892x4xf32>
    %5 = vector.extract_strided_slice %1 {offsets = [3, 0], sizes = [892, 4], strides = [1, 1]} : vector<1024x4xf32> to vector<892x4xf32>
    %6 = vector.extract_strided_slice %1 {offsets = [4, 0], sizes = [892, 4], strides = [1, 1]} : vector<1024x4xf32> to vector<892x4xf32>
    %7 = tpu.concatenate %2, %3, %4, %5, %6 in 1 : vector<892x4xf32>, vector<892x4xf32>, vector<892x4xf32>, vector<892x4xf32>, vector<892x4xf32> -> vector<892x20xf32>
    %8 = vector.extract_strided_slice %1 {offsets = [32, 0], sizes = [892, 4], strides = [1, 1]} : vector<1024x4xf32> to vector<892x4xf32>
    %9 = vector.extract_strided_slice %1 {offsets = [33, 0], sizes = [892, 4], strides = [1, 1]} : vector<1024x4xf32> to vector<892x4xf32>
    %10 = vector.extract_strided_slice %1 {offsets = [34, 0], sizes = [892, 4], strides = [1, 1]} : vector<1024x4xf32> to vector<892x4xf32>
    %11 = vector.extract_strided_slice %1 {offsets = [35, 0], sizes = [892, 4], strides = [1, 1]} : vector<1024x4xf32> to vector<892x4xf32>
    %12 = vector.extract_strided_slice %1 {offsets = [36, 0], sizes = [892, 4], strides = [1, 1]} : vector<1024x4xf32> to vector<892x4xf32>
    %13 = tpu.concatenate %8, %9, %10, %11, %12 in 1 : vector<892x4xf32>, vector<892x4xf32>, vector<892x4xf32>, vector<892x4xf32>, vector<892x4xf32> -> vector<892x20xf32>
    %14 = vector.extract_strided_slice %1 {offsets = [64, 0], sizes = [892, 4], strides = [1, 1]} : vector<1024x4xf32> to vector<892x4xf32>
    %15 = vector.extract_strided_slice %1 {offsets = [65, 0], sizes = [892, 4], strides = [1, 1]} : vector<1024x4xf32> to vector<892x4xf32>
    %16 = vector.extract_strided_slice %1 {offsets = [66, 0], sizes = [892, 4], strides = [1, 1]} : vector<1024x4xf32> to vector<892x4xf32>
    %17 = vector.extract_strided_slice %1 {offsets = [67, 0], sizes = [892, 4], strides = [1, 1]} : vector<1024x4xf32> to vector<892x4xf32>
    %18 = vector.extract_strided_slice %1 {offsets = [68, 0], sizes = [892, 4], strides = [1, 1]} : vector<1024x4xf32> to vector<892x4xf32>
    %19 = tpu.concatenate %14, %15, %16, %17, %18 in 1 : vector<892x4xf32>, vector<892x4xf32>, vector<892x4xf32>, vector<892x4xf32>, vector<892x4xf32> -> vector<892x20xf32>
    %20 = vector.extract_strided_slice %1 {offsets = [96, 0], sizes = [892, 4], strides = [1, 1]} : vector<1024x4xf32> to vector<892x4xf32>
    %21 = vector.extract_strided_slice %1 {offsets = [97, 0], sizes = [892, 4], strides = [1, 1]} : vector<1024x4xf32> to vector<892x4xf32>
    %22 = vector.extract_strided_slice %1 {offsets = [98, 0], sizes = [892, 4], strides = [1, 1]} : vector<1024x4xf32> to vector<892x4xf32>
    %23 = vector.extract_strided_slice %1 {offsets = [99, 0], sizes = [892, 4], strides = [1, 1]} : vector<1024x4xf32> to vector<892x4xf32>
    %24 = vector.extract_strided_slice %1 {offsets = [100, 0], sizes = [892, 4], strides = [1, 1]} : vector<1024x4xf32> to vector<892x4xf32>
    %25 = tpu.concatenate %20, %21, %22, %23, %24 in 1 : vector<892x4xf32>, vector<892x4xf32>, vector<892x4xf32>, vector<892x4xf32>, vector<892x4xf32> -> vector<892x20xf32>
    %26 = vector.extract_strided_slice %1 {offsets = [128, 0], sizes = [892, 4], strides = [1, 1]} : vector<1024x4xf32> to vector<892x4xf32>
    %27 = vector.extract_strided_slice %1 {offsets = [129, 0], sizes = [892, 4], strides = [1, 1]} : vector<1024x4xf32> to vector<892x4xf32>
    %28 = vector.extract_strided_slice %1 {offsets = [130, 0], sizes = [892, 4], strides = [1, 1]} : vector<1024x4xf32> to vector<892x4xf32>
    %29 = vector.extract_strided_slice %1 {offsets = [131, 0], sizes = [892, 4], strides = [1, 1]} : vector<1024x4xf32> to vector<892x4xf32>
    %30 = vector.extract_strided_slice %1 {offsets = [132, 0], sizes = [892, 4], strides = [1, 1]} : vector<1024x4xf32> to vector<892x4xf32>
    %31 = tpu.concatenate %26, %27, %28, %29, %30 in 1 : vector<892x4xf32>, vector<892x4xf32>, vector<892x4xf32>, vector<892x4xf32>, vector<892x4xf32> -> vector<892x20xf32>
    %32 = tpu.concatenate %7, %13, %19, %25, %31 in 1 : vector<892x20xf32>, vector<892x20xf32>, vector<892x20xf32>, vector<892x20xf32>, vector<892x20xf32> -> vector<892x100xf32>
    %c0_2 = arith.constant 0 : index
    %c0_3 = arith.constant 0 : index
    %33 = vector.load %arg2[%c0_2, %c0_3] : memref<100x8xbf16, #tpu.memory_space<vmem>>, vector<100x8xbf16>
    %34 = arith.truncf %32 : vector<892x100xf32> to vector<892x100xbf16>
    %cst = arith.constant dense<0.000000e+00> : vector<892x8xf32>
    %35 = tpu.matmul %34, %33, %cst {dimension_numbers = #tpu.dot_dimension_numbers<[1], [0], [0], [1], [0, 0, 1, 1], [], []>} : vector<892x100xbf16>, vector<100x8xbf16>, vector<892x8xf32> -> vector<892x8xf32>
    %c0_4 = arith.constant 0 : index
    %c0_5 = arith.constant 0 : index
    %36 = vector.load %arg3[%c0_4, %c0_5] : memref<1x8xf32, #tpu.memory_space<vmem>>, vector<1x8xf32>
    %37 = vector.broadcast %36 : vector<1x8xf32> to vector<892x8xf32>
    %38 = arith.addf %35, %37 : vector<892x8xf32>
    %cst_6 = arith.constant 0.000000e+00 : f32
    %39 = vector.broadcast %cst_6 : f32 to vector<892x8xf32>
    %40 = arith.maximumf %38, %39 : vector<892x8xf32>
    %41 = vector.extract_strided_slice %40 {offsets = [0, 0], sizes = [859, 8], strides = [1, 1]} : vector<892x8xf32> to vector<859x8xf32>
    %42 = vector.extract_strided_slice %40 {offsets = [1, 0], sizes = [859, 8], strides = [1, 1]} : vector<892x8xf32> to vector<859x8xf32>
    %43 = arith.maximumf %41, %42 : vector<859x8xf32>
    %44 = vector.extract_strided_slice %40 {offsets = [32, 0], sizes = [859, 8], strides = [1, 1]} : vector<892x8xf32> to vector<859x8xf32>
    %45 = vector.extract_strided_slice %40 {offsets = [33, 0], sizes = [859, 8], strides = [1, 1]} : vector<892x8xf32> to vector<859x8xf32>
    %46 = arith.maximumf %44, %45 : vector<859x8xf32>
    %47 = arith.maximumf %43, %46 : vector<859x8xf32>
    %48 = vector.extract_strided_slice %47 {offsets = [0, 0], sizes = [595, 8], strides = [1, 1]} : vector<859x8xf32> to vector<595x8xf32>
    %49 = vector.extract_strided_slice %47 {offsets = [2, 0], sizes = [595, 8], strides = [1, 1]} : vector<859x8xf32> to vector<595x8xf32>
    %50 = vector.extract_strided_slice %47 {offsets = [4, 0], sizes = [595, 8], strides = [1, 1]} : vector<859x8xf32> to vector<595x8xf32>
    %51 = vector.extract_strided_slice %47 {offsets = [6, 0], sizes = [595, 8], strides = [1, 1]} : vector<859x8xf32> to vector<595x8xf32>
    %52 = vector.extract_strided_slice %47 {offsets = [8, 0], sizes = [595, 8], strides = [1, 1]} : vector<859x8xf32> to vector<595x8xf32>
    %53 = tpu.concatenate %48, %49, %50, %51, %52 in 1 : vector<595x8xf32>, vector<595x8xf32>, vector<595x8xf32>, vector<595x8xf32>, vector<595x8xf32> -> vector<595x40xf32>
    %54 = vector.extract_strided_slice %47 {offsets = [64, 0], sizes = [595, 8], strides = [1, 1]} : vector<859x8xf32> to vector<595x8xf32>
    %55 = vector.extract_strided_slice %47 {offsets = [66, 0], sizes = [595, 8], strides = [1, 1]} : vector<859x8xf32> to vector<595x8xf32>
    %56 = vector.extract_strided_slice %47 {offsets = [68, 0], sizes = [595, 8], strides = [1, 1]} : vector<859x8xf32> to vector<595x8xf32>
    %57 = vector.extract_strided_slice %47 {offsets = [70, 0], sizes = [595, 8], strides = [1, 1]} : vector<859x8xf32> to vector<595x8xf32>
    %58 = vector.extract_strided_slice %47 {offsets = [72, 0], sizes = [595, 8], strides = [1, 1]} : vector<859x8xf32> to vector<595x8xf32>
    %59 = tpu.concatenate %54, %55, %56, %57, %58 in 1 : vector<595x8xf32>, vector<595x8xf32>, vector<595x8xf32>, vector<595x8xf32>, vector<595x8xf32> -> vector<595x40xf32>
    %60 = vector.extract_strided_slice %47 {offsets = [128, 0], sizes = [595, 8], strides = [1, 1]} : vector<859x8xf32> to vector<595x8xf32>
    %61 = vector.extract_strided_slice %47 {offsets = [130, 0], sizes = [595, 8], strides = [1, 1]} : vector<859x8xf32> to vector<595x8xf32>
    %62 = vector.extract_strided_slice %47 {offsets = [132, 0], sizes = [595, 8], strides = [1, 1]} : vector<859x8xf32> to vector<595x8xf32>
    %63 = vector.extract_strided_slice %47 {offsets = [134, 0], sizes = [595, 8], strides = [1, 1]} : vector<859x8xf32> to vector<595x8xf32>
    %64 = vector.extract_strided_slice %47 {offsets = [136, 0], sizes = [595, 8], strides = [1, 1]} : vector<859x8xf32> to vector<595x8xf32>
    %65 = tpu.concatenate %60, %61, %62, %63, %64 in 1 : vector<595x8xf32>, vector<595x8xf32>, vector<595x8xf32>, vector<595x8xf32>, vector<595x8xf32> -> vector<595x40xf32>
    %66 = vector.extract_strided_slice %47 {offsets = [192, 0], sizes = [595, 8], strides = [1, 1]} : vector<859x8xf32> to vector<595x8xf32>
    %67 = vector.extract_strided_slice %47 {offsets = [194, 0], sizes = [595, 8], strides = [1, 1]} : vector<859x8xf32> to vector<595x8xf32>
    %68 = vector.extract_strided_slice %47 {offsets = [196, 0], sizes = [595, 8], strides = [1, 1]} : vector<859x8xf32> to vector<595x8xf32>
    %69 = vector.extract_strided_slice %47 {offsets = [198, 0], sizes = [595, 8], strides = [1, 1]} : vector<859x8xf32> to vector<595x8xf32>
    %70 = vector.extract_strided_slice %47 {offsets = [200, 0], sizes = [595, 8], strides = [1, 1]} : vector<859x8xf32> to vector<595x8xf32>
    %71 = tpu.concatenate %66, %67, %68, %69, %70 in 1 : vector<595x8xf32>, vector<595x8xf32>, vector<595x8xf32>, vector<595x8xf32>, vector<595x8xf32> -> vector<595x40xf32>
    %72 = vector.extract_strided_slice %47 {offsets = [256, 0], sizes = [595, 8], strides = [1, 1]} : vector<859x8xf32> to vector<595x8xf32>
    %73 = vector.extract_strided_slice %47 {offsets = [258, 0], sizes = [595, 8], strides = [1, 1]} : vector<859x8xf32> to vector<595x8xf32>
    %74 = vector.extract_strided_slice %47 {offsets = [260, 0], sizes = [595, 8], strides = [1, 1]} : vector<859x8xf32> to vector<595x8xf32>
    %75 = vector.extract_strided_slice %47 {offsets = [262, 0], sizes = [595, 8], strides = [1, 1]} : vector<859x8xf32> to vector<595x8xf32>
    %76 = vector.extract_strided_slice %47 {offsets = [264, 0], sizes = [595, 8], strides = [1, 1]} : vector<859x8xf32> to vector<595x8xf32>
    %77 = tpu.concatenate %72, %73, %74, %75, %76 in 1 : vector<595x8xf32>, vector<595x8xf32>, vector<595x8xf32>, vector<595x8xf32>, vector<595x8xf32> -> vector<595x40xf32>
    %78 = tpu.concatenate %53, %59, %65, %71, %77 in 1 : vector<595x40xf32>, vector<595x40xf32>, vector<595x40xf32>, vector<595x40xf32>, vector<595x40xf32> -> vector<595x200xf32>
    %c0_7 = arith.constant 0 : index
    %c0_8 = arith.constant 0 : index
    %79 = vector.load %arg4[%c0_7, %c0_8] : memref<200x16xbf16, #tpu.memory_space<vmem>>, vector<200x16xbf16>
    %80 = arith.truncf %78 : vector<595x200xf32> to vector<595x200xbf16>
    %cst_9 = arith.constant dense<0.000000e+00> : vector<595x16xf32>
    %81 = tpu.matmul %80, %79, %cst_9 {dimension_numbers = #tpu.dot_dimension_numbers<[1], [0], [0], [1], [0, 0, 1, 1], [], []>} : vector<595x200xbf16>, vector<200x16xbf16>, vector<595x16xf32> -> vector<595x16xf32>
    %c0_10 = arith.constant 0 : index
    %c0_11 = arith.constant 0 : index
    %82 = vector.load %arg5[%c0_10, %c0_11] : memref<1x16xf32, #tpu.memory_space<vmem>>, vector<1x16xf32>
    %83 = vector.broadcast %82 : vector<1x16xf32> to vector<595x16xf32>
    %84 = arith.addf %81, %83 : vector<595x16xf32>
    %cst_12 = arith.constant 0.000000e+00 : f32
    %85 = vector.broadcast %cst_12 : f32 to vector<595x16xf32>
    %86 = arith.maximumf %84, %85 : vector<595x16xf32>
    %87 = vector.extract_strided_slice %86 {offsets = [0, 0], sizes = [529, 16], strides = [1, 1]} : vector<595x16xf32> to vector<529x16xf32>
    %88 = vector.extract_strided_slice %86 {offsets = [2, 0], sizes = [529, 16], strides = [1, 1]} : vector<595x16xf32> to vector<529x16xf32>
    %89 = arith.maximumf %87, %88 : vector<529x16xf32>
    %90 = vector.extract_strided_slice %86 {offsets = [64, 0], sizes = [529, 16], strides = [1, 1]} : vector<595x16xf32> to vector<529x16xf32>
    %91 = vector.extract_strided_slice %86 {offsets = [66, 0], sizes = [529, 16], strides = [1, 1]} : vector<595x16xf32> to vector<529x16xf32>
    %92 = arith.maximumf %90, %91 : vector<529x16xf32>
    %93 = arith.maximumf %89, %92 : vector<529x16xf32>
    %94 = vector.extract_strided_slice %93 {offsets = [0, 0], sizes = [1, 16], strides = [1, 1]} : vector<529x16xf32> to vector<1x16xf32>
    %95 = vector.extract_strided_slice %93 {offsets = [4, 0], sizes = [1, 16], strides = [1, 1]} : vector<529x16xf32> to vector<1x16xf32>
    %96 = vector.extract_strided_slice %93 {offsets = [8, 0], sizes = [1, 16], strides = [1, 1]} : vector<529x16xf32> to vector<1x16xf32>
    %97 = vector.extract_strided_slice %93 {offsets = [12, 0], sizes = [1, 16], strides = [1, 1]} : vector<529x16xf32> to vector<1x16xf32>
    %98 = vector.extract_strided_slice %93 {offsets = [16, 0], sizes = [1, 16], strides = [1, 1]} : vector<529x16xf32> to vector<1x16xf32>
    %99 = vector.extract_strided_slice %93 {offsets = [128, 0], sizes = [1, 16], strides = [1, 1]} : vector<529x16xf32> to vector<1x16xf32>
    %100 = vector.extract_strided_slice %93 {offsets = [132, 0], sizes = [1, 16], strides = [1, 1]} : vector<529x16xf32> to vector<1x16xf32>
    %101 = vector.extract_strided_slice %93 {offsets = [136, 0], sizes = [1, 16], strides = [1, 1]} : vector<529x16xf32> to vector<1x16xf32>
    %102 = vector.extract_strided_slice %93 {offsets = [140, 0], sizes = [1, 16], strides = [1, 1]} : vector<529x16xf32> to vector<1x16xf32>
    %103 = vector.extract_strided_slice %93 {offsets = [144, 0], sizes = [1, 16], strides = [1, 1]} : vector<529x16xf32> to vector<1x16xf32>
    %104 = vector.extract_strided_slice %93 {offsets = [256, 0], sizes = [1, 16], strides = [1, 1]} : vector<529x16xf32> to vector<1x16xf32>
    %105 = vector.extract_strided_slice %93 {offsets = [260, 0], sizes = [1, 16], strides = [1, 1]} : vector<529x16xf32> to vector<1x16xf32>
    %106 = vector.extract_strided_slice %93 {offsets = [264, 0], sizes = [1, 16], strides = [1, 1]} : vector<529x16xf32> to vector<1x16xf32>
    %107 = vector.extract_strided_slice %93 {offsets = [268, 0], sizes = [1, 16], strides = [1, 1]} : vector<529x16xf32> to vector<1x16xf32>
    %108 = vector.extract_strided_slice %93 {offsets = [272, 0], sizes = [1, 16], strides = [1, 1]} : vector<529x16xf32> to vector<1x16xf32>
    %109 = vector.extract_strided_slice %93 {offsets = [384, 0], sizes = [1, 16], strides = [1, 1]} : vector<529x16xf32> to vector<1x16xf32>
    %110 = vector.extract_strided_slice %93 {offsets = [388, 0], sizes = [1, 16], strides = [1, 1]} : vector<529x16xf32> to vector<1x16xf32>
    %111 = vector.extract_strided_slice %93 {offsets = [392, 0], sizes = [1, 16], strides = [1, 1]} : vector<529x16xf32> to vector<1x16xf32>
    %112 = vector.extract_strided_slice %93 {offsets = [396, 0], sizes = [1, 16], strides = [1, 1]} : vector<529x16xf32> to vector<1x16xf32>
    %113 = vector.extract_strided_slice %93 {offsets = [400, 0], sizes = [1, 16], strides = [1, 1]} : vector<529x16xf32> to vector<1x16xf32>
    %114 = vector.extract_strided_slice %93 {offsets = [512, 0], sizes = [1, 16], strides = [1, 1]} : vector<529x16xf32> to vector<1x16xf32>
    %115 = vector.extract_strided_slice %93 {offsets = [516, 0], sizes = [1, 16], strides = [1, 1]} : vector<529x16xf32> to vector<1x16xf32>
    %116 = vector.extract_strided_slice %93 {offsets = [520, 0], sizes = [1, 16], strides = [1, 1]} : vector<529x16xf32> to vector<1x16xf32>
    %117 = vector.extract_strided_slice %93 {offsets = [524, 0], sizes = [1, 16], strides = [1, 1]} : vector<529x16xf32> to vector<1x16xf32>
    %118 = vector.extract_strided_slice %93 {offsets = [528, 0], sizes = [1, 16], strides = [1, 1]} : vector<529x16xf32> to vector<1x16xf32>
    %119 = tpu.concatenate %94, %95, %96, %97, %98, %99, %100, %101, %102, %103, %104, %105, %106, %107, %108, %109 in 1 : vector<1x16xf32>, vector<1x16xf32>, vector<1x16xf32>, vector<1x16xf32>, vector<1x16xf32>, vector<1x16xf32>, vector<1x16xf32>, vector<1x16xf32>, vector<1x16xf32>, vector<1x16xf32>, vector<1x16xf32>, vector<1x16xf32>, vector<1x16xf32>, vector<1x16xf32>, vector<1x16xf32>, vector<1x16xf32> -> vector<1x256xf32>
    %120 = tpu.concatenate %110, %111, %112, %113, %114, %115, %116, %117, %118 in 1 : vector<1x16xf32>, vector<1x16xf32>, vector<1x16xf32>, vector<1x16xf32>, vector<1x16xf32>, vector<1x16xf32>, vector<1x16xf32>, vector<1x16xf32>, vector<1x16xf32> -> vector<1x144xf32>
    %121 = tpu.concatenate %119, %120 in 1 : vector<1x256xf32>, vector<1x144xf32> -> vector<1x400xf32>
    %c0_13 = arith.constant 0 : index
    %c0_14 = arith.constant 0 : index
    %122 = vector.load %arg6[%c0_13, %c0_14] : memref<400x128xbf16, #tpu.memory_space<vmem>>, vector<400x128xbf16>
    %123 = arith.truncf %121 : vector<1x400xf32> to vector<1x400xbf16>
    %cst_15 = arith.constant dense<0.000000e+00> : vector<1x128xf32>
    %124 = tpu.matmul %123, %122, %cst_15 {dimension_numbers = #tpu.dot_dimension_numbers<[1], [0], [0], [1], [0, 0, 1, 1], [], []>} : vector<1x400xbf16>, vector<400x128xbf16>, vector<1x128xf32> -> vector<1x128xf32>
    %c0_16 = arith.constant 0 : index
    %c0_17 = arith.constant 0 : index
    %125 = vector.load %arg7[%c0_16, %c0_17] : memref<1x128xf32, #tpu.memory_space<vmem>>, vector<1x128xf32>
    %126 = arith.addf %124, %125 : vector<1x128xf32>
    %cst_18 = arith.constant 0.000000e+00 : f32
    %127 = vector.broadcast %cst_18 : f32 to vector<1x128xf32>
    %128 = arith.maximumf %126, %127 : vector<1x128xf32>
    %c0_19 = arith.constant 0 : index
    %c0_20 = arith.constant 0 : index
    %129 = vector.load %arg8[%c0_19, %c0_20] : memref<128x128xbf16, #tpu.memory_space<vmem>>, vector<128x128xbf16>
    %130 = arith.truncf %128 : vector<1x128xf32> to vector<1x128xbf16>
    %cst_21 = arith.constant dense<0.000000e+00> : vector<1x128xf32>
    %131 = tpu.matmul %130, %129, %cst_21 {dimension_numbers = #tpu.dot_dimension_numbers<[1], [0], [0], [1], [0, 0, 1, 1], [], []>} : vector<1x128xbf16>, vector<128x128xbf16>, vector<1x128xf32> -> vector<1x128xf32>
    %c0_22 = arith.constant 0 : index
    %c0_23 = arith.constant 0 : index
    %132 = vector.load %arg9[%c0_22, %c0_23] : memref<1x128xf32, #tpu.memory_space<vmem>>, vector<1x128xf32>
    %133 = arith.addf %131, %132 : vector<1x128xf32>
    %cst_24 = arith.constant 0.000000e+00 : f32
    %134 = vector.broadcast %cst_24 : f32 to vector<1x128xf32>
    %135 = arith.maximumf %133, %134 : vector<1x128xf32>
    %c0_25 = arith.constant 0 : index
    %c0_26 = arith.constant 0 : index
    %136 = vector.load %arg10[%c0_25, %c0_26] : memref<128x128xbf16, #tpu.memory_space<vmem>>, vector<128x128xbf16>
    %137 = arith.truncf %135 : vector<1x128xf32> to vector<1x128xbf16>
    %cst_27 = arith.constant dense<0.000000e+00> : vector<1x128xf32>
    %138 = tpu.matmul %137, %136, %cst_27 {dimension_numbers = #tpu.dot_dimension_numbers<[1], [0], [0], [1], [0, 0, 1, 1], [], []>} : vector<1x128xbf16>, vector<128x128xbf16>, vector<1x128xf32> -> vector<1x128xf32>
    %c0_28 = arith.constant 0 : index
    %c0_29 = arith.constant 0 : index
    %139 = vector.load %arg11[%c0_28, %c0_29] : memref<1x128xf32, #tpu.memory_space<vmem>>, vector<1x128xf32>
    %140 = arith.addf %138, %139 : vector<1x128xf32>
    %c0_30 = arith.constant 0 : index
    %c0_31 = arith.constant 0 : index
    %c0_32 = arith.constant 0 : index
    %141 = vector.load %arg12[%c0_30, %c0_31, %c0_32] : memref<1x1x128xf32, #tpu.memory_space<vmem>>, vector<1x1x128xf32>
    %142 = vector.shape_cast %141 : vector<1x1x128xf32> to vector<1x128xf32>
    %143 = vector.shape_cast %140 : vector<1x128xf32> to vector<1x1x128xf32>
    tpu.vector_store %arg12[%c0_30, %c0_31, %c0_32], %143 {strides = array<i32>} : memref<1x1x128xf32, #tpu.memory_space<vmem>>, vector<1x1x128xf32>,
    return
  }
  func.func @transform_0(%arg0: i32) -> (i32, i32, i32) {
    %c0_i32 = arith.constant 0 : i32
    %c0_i32_0 = arith.constant 0 : i32
    %c0_i32_1 = arith.constant 0 : i32
    return %arg0, %c0_i32, %c0_i32_0 : i32, i32, i32
  }
  func.func @transform_1(%arg0: i32) -> (i32, i32) {
    %c0_i32 = arith.constant 0 : i32
    %c0_i32_0 = arith.constant 0 : i32
    %c0_i32_1 = arith.constant 0 : i32
    return %c0_i32, %c0_i32_0 : i32, i32
  }
  func.func @transform_2(%arg0: i32) -> (i32, i32) {
    %c0_i32 = arith.constant 0 : i32
    %c0_i32_0 = arith.constant 0 : i32
    %c0_i32_1 = arith.constant 0 : i32
    return %c0_i32, %c0_i32_0 : i32, i32
  }
  func.func @transform_3(%arg0: i32) -> (i32, i32) {
    %c0_i32 = arith.constant 0 : i32
    %c0_i32_0 = arith.constant 0 : i32
    %c0_i32_1 = arith.constant 0 : i32
    return %c0_i32, %c0_i32_0 : i32, i32
  }
  func.func @transform_4(%arg0: i32) -> (i32, i32) {
    %c0_i32 = arith.constant 0 : i32
    %c0_i32_0 = arith.constant 0 : i32
    %c0_i32_1 = arith.constant 0 : i32
    return %c0_i32, %c0_i32_0 : i32, i32
  }
  func.func @transform_5(%arg0: i32) -> (i32, i32) {
    %c0_i32 = arith.constant 0 : i32
    %c0_i32_0 = arith.constant 0 : i32
    %c0_i32_1 = arith.constant 0 : i32
    return %c0_i32, %c0_i32_0 : i32, i32
  }
  func.func @transform_6(%arg0: i32) -> (i32, i32) {
    %c0_i32 = arith.constant 0 : i32
    %c0_i32_0 = arith.constant 0 : i32
    %c0_i32_1 = arith.constant 0 : i32
    return %c0_i32, %c0_i32_0 : i32, i32
  }
  func.func @transform_7(%arg0: i32) -> (i32, i32) {
    %c0_i32 = arith.constant 0 : i32
    %c0_i32_0 = arith.constant 0 : i32
    %c0_i32_1 = arith.constant 0 : i32
    return %c0_i32, %c0_i32_0 : i32, i32
  }
  func.func @transform_8(%arg0: i32) -> (i32, i32) {
    %c0_i32 = arith.constant 0 : i32
    %c0_i32_0 = arith.constant 0 : i32
    %c0_i32_1 = arith.constant 0 : i32
    return %c0_i32, %c0_i32_0 : i32, i32
  }
  func.func @transform_9(%arg0: i32) -> (i32, i32) {
    %c0_i32 = arith.constant 0 : i32
    %c0_i32_0 = arith.constant 0 : i32
    %c0_i32_1 = arith.constant 0 : i32
    return %c0_i32, %c0_i32_0 : i32, i32
  }
  func.func @transform_10(%arg0: i32) -> (i32, i32) {
    %c0_i32 = arith.constant 0 : i32
    %c0_i32_0 = arith.constant 0 : i32
    %c0_i32_1 = arith.constant 0 : i32
    return %c0_i32, %c0_i32_0 : i32, i32
  }
  func.func @transform_11(%arg0: i32) -> (i32, i32, i32) {
    %c0_i32 = arith.constant 0 : i32
    %c0_i32_0 = arith.constant 0 : i32
    %c0_i32_1 = arith.constant 0 : i32
    return %arg0, %c0_i32, %c0_i32_0 : i32, i32, i32
  }
}

</mosaic_0001>

<llo_original>
// kernel: lenet5_forward.1
$region0: #{lenet5_forward.1}
  #allocation0 [shape = 'u32[]', space=smem, size = 0x4, offset = 0x4, fixed_abs, tag = 'smem constant byte address 0x4 - core index']
  #allocation1 [shape = 'u32[144,128]{1,0:T(1,128)}', space=vmem, size = 0x12000, scoped, tag = 'internal scratch']
  %s0 = inlined_call_operand.vmem [shape: f32[2,1024,4], index: 0, kind: input, shape index: {}]
  %s1 = inlined_call_operand.vmem [shape: bf16[100,8], index: 1, kind: input, shape index: {}]
  %s2 = inlined_call_operand.vmem [shape: f32[1,8], index: 2, kind: input, shape index: {}]
  %s3 = inlined_call_operand.vmem [shape: bf16[200,16], index: 3, kind: input, shape index: {}]
  %s4 = inlined_call_operand.vmem [shape: f32[1,16], index: 4, kind: input, shape index: {}]
  %s5 = inlined_call_operand.vmem [shape: bf16[400,128], index: 5, kind: input, shape index: {}]
  %s6 = inlined_call_operand.vmem [shape: f32[1,128], index: 6, kind: input, shape index: {}]
  %s7 = inlined_call_operand.vmem [shape: bf16[128,128], index: 7, kind: input, shape index: {}]
  %s8 = inlined_call_operand.vmem [shape: f32[1,128], index: 8, kind: input, shape index: {}]
  %s9 = inlined_call_operand.vmem [shape: bf16[128,128], index: 9, kind: input, shape index: {}]
  %s10 = inlined_call_operand.vmem [shape: f32[1,128], index: 10, kind: input, shape index: {}]
  %s11 = inlined_call_operand.hbm [shape: f32[2,1,128], index: 11, kind: output, shape index: {}]
  %s12 = sld [smem:[#allocation0]]
  $region77: #{lenet5_forward.1} parent=0
    _
  %s14 = ssub.s32 1, %s12
  %s15 = scalar_select 0, %s14, %s12
  $region1: #{lenet5_forward.1} parent=0
    #allocation2 [shape = 'u8[1024]{0}', space=vmem, size = 0x400, scoped, tag = 'output window, operand 0']
    #allocation3 [shape = 's32[2]{0}', space=sflag, size = 0x8, scoped, tag = 'scoped memory for lenet5_forward.1']
    %16 = vsyncpa [#allocation3], 0
    %s17 = scalar_lea.sflag [#allocation3], 1
    %18 = vsyncpa %s17, 0
    loop: start=0, step=1, limit=4
    $region2: #{lenet5_forward.1} parent=1 // loop_pre_header
      _
    $region3: #{lenet5_forward.1} parent=1 // loop_header
      %s20 = sphi 0, %s24
      %p21 = scmp.ge.s32.totalorder %s20, 4
      %s30 = sphi 0, %s32
      %s33 = sphi 0, %s30
      %s34 = sphi 0, %s33
      %s50 = sphi 0, %s34
      %s54 = sphi 0, %s54
      %s56 = sphi 0, %s54
      %s57 = sphi 0, %s56
      %s71 = sphi 0, %s57
      %s75 = sphi 0, %s75
      %s77 = sphi 0, %s75
      %s78 = sphi 0, %s77
      %s92 = sphi 0, %s78
      %s96 = sphi 0, %s96
      %s98 = sphi 0, %s96
      %s99 = sphi 0, %s98
      %s113 = sphi 0, %s99
      %s117 = sphi 0, %s117
      %s119 = sphi 0, %s117
      %s120 = sphi 0, %s119
      %s134 = sphi 0, %s120
      %s138 = sphi 0, %s138
      %s140 = sphi 0, %s138
      %s141 = sphi 0, %s140
      %s155 = sphi 0, %s141
      %s159 = sphi 0, %s159
      %s161 = sphi 0, %s159
      %s162 = sphi 0, %s161
      %s176 = sphi 0, %s162
      %s180 = sphi 0, %s180
      %s182 = sphi 0, %s180
      %s183 = sphi 0, %s182
      %s197 = sphi 0, %s183
      %s201 = sphi 0, %s201
      %s203 = sphi 0, %s201
      %s204 = sphi 0, %s203
      %s218 = sphi 0, %s204
      %s222 = sphi 0, %s222
      %s224 = sphi 0, %s222
      %s225 = sphi 0, %s224
      %s239 = sphi 0, %s225
      %s243 = sphi 0, %s243
      %s245 = sphi 0, %s243
      %s246 = sphi 0, %s245
      %s260 = sphi 0, %s246
      %s266 = sphi 0, %s268
      %s269 = sphi 0, %s266
      %s270 = sphi 0, %s269
      %s286 = sphi 0, %s270
    $region4: #{lenet5_forward.1} parent=1 // loop_header_branch
      %23 = sbr.rel (%p21) target = $region8
    $region5: #{lenet5_forward.1} parent=1 // loop_body
      %s25 = ssub.s32 %s20, 1
      %s26 = ssub.s32 %s20, 2
      %s27 = sadd.s32 %s20, 1
      %s28 = ssub.s32 %s20, %s27
      %p29 = scmp.eq.s32.totalorder %s28, 0
      %s31 = sadd.s32 %s30, 1
      %s32 = scalar_select %p29, %s30, %s31
      %p35 = pneg %p29
      %p36 = scmp.eq.s32.totalorder %s20, 1
      %p37 = por %p35, %p36
      %p38 = scmp.ne.s32.totalorder %s30, %s33
      %p39 = scmp.eq.s32.totalorder %s20, 0
      %p40 = por %p38, %p39
      %p41 = scmp.ne.s32.totalorder %s30, %s33
      %p42 = scmp.eq.s32.totalorder %s25, 1
      %p43 = por %p41, %p42
      %p44 = scmp.ne.s32.totalorder %s33, %s34
      %p45 = scmp.eq.s32.totalorder %s25, 0
      %p46 = por %p44, %p45
      %p47 = scmp.ne.s32.totalorder %s33, %s34
      %p48 = scmp.eq.s32.totalorder %s26, 1
      %p49 = por %p47, %p48
      %p51 = scmp.ne.s32.totalorder %s34, %s50
      %p52 = scmp.eq.s32.totalorder %s26, 0
      %p53 = por %p51, %p52
      %s55 = sadd.s32 %s54, 1
      %p58 = scmp.eq.s32.totalorder %s20, 1
      %p59 = scmp.ne.s32.totalorder %s54, %s56
      %p60 = scmp.eq.s32.totalorder %s20, 0
      %p61 = por %p59, %p60
      %p62 = scmp.ne.s32.totalorder %s54, %s56
      %p63 = scmp.eq.s32.totalorder %s25, 1
      %p64 = por %p62, %p63
      %p65 = scmp.ne.s32.totalorder %s56, %s57
      %p66 = scmp.eq.s32.totalorder %s25, 0
      %p67 = por %p65, %p66
      %p68 = scmp.ne.s32.totalorder %s56, %s57
      %p69 = scmp.eq.s32.totalorder %s26, 1
      %p70 = por %p68, %p69
      %p72 = scmp.ne.s32.totalorder %s57, %s71
      %p73 = scmp.eq.s32.totalorder %s26, 0
      %p74 = por %p72, %p73
      %s76 = sadd.s32 %s75, 1
      %p79 = scmp.eq.s32.totalorder %s20, 1
      %p80 = scmp.ne.s32.totalorder %s75, %s77
      %p81 = scmp.eq.s32.totalorder %s20, 0
      %p82 = por %p80, %p81
      %p83 = scmp.ne.s32.totalorder %s75, %s77
      %p84 = scmp.eq.s32.totalorder %s25, 1
      %p85 = por %p83, %p84
      %p86 = scmp.ne.s32.totalorder %s77, %s78
      %p87 = scmp.eq.s32.totalorder %s25, 0
      %p88 = por %p86, %p87
      %p89 = scmp.ne.s32.totalorder %s77, %s78
      %p90 = scmp.eq.s32.totalorder %s26, 1
      %p91 = por %p89, %p90
      %p93 = scmp.ne.s32.totalorder %s78, %s92
      %p94 = scmp.eq.s32.totalorder %s26, 0
      %p95 = por %p93, %p94
      %s97 = sadd.s32 %s96, 1
      %p100 = scmp.eq.s32.totalorder %s20, 1
      %p101 = scmp.ne.s32.totalorder %s96, %s98
      %p102 = scmp.eq.s32.totalorder %s20, 0
      %p103 = por %p101, %p102
      %p104 = scmp.ne.s32.totalorder %s96, %s98
      %p105 = scmp.eq.s32.totalorder %s25, 1
      %p106 = por %p104, %p105
      %p107 = scmp.ne.s32.totalorder %s98, %s99
      %p108 = scmp.eq.s32.totalorder %s25, 0
      %p109 = por %p107, %p108
      %p110 = scmp.ne.s32.totalorder %s98, %s99
      %p111 = scmp.eq.s32.totalorder %s26, 1
      %p112 = por %p110, %p111
      %p114 = scmp.ne.s32.totalorder %s99, %s113
      %p115 = scmp.eq.s32.totalorder %s26, 0
      %p116 = por %p114, %p115
      %s118 = sadd.s32 %s117, 1
      %p121 = scmp.eq.s32.totalorder %s20, 1
      %p122 = scmp.ne.s32.totalorder %s117, %s119
      %p123 = scmp.eq.s32.totalorder %s20, 0
      %p124 = por %p122, %p123
      %p125 = scmp.ne.s32.totalorder %s117, %s119
      %p126 = scmp.eq.s32.totalorder %s25, 1
      %p127 = por %p125, %p126
      %p128 = scmp.ne.s32.totalorder %s119, %s120
      %p129 = scmp.eq.s32.totalorder %s25, 0
      %p130 = por %p128, %p129
      %p131 = scmp.ne.s32.totalorder %s119, %s120
      %p132 = scmp.eq.s32.totalorder %s26, 1
      %p133 = por %p131, %p132
      %p135 = scmp.ne.s32.totalorder %s120, %s134
      %p136 = scmp.eq.s32.totalorder %s26, 0
      %p137 = por %p135, %p136
      %s139 = sadd.s32 %s138, 1
      %p142 = scmp.eq.s32.totalorder %s20, 1
      %p143 = scmp.ne.s32.totalorder %s138, %s140
      %p144 = scmp.eq.s32.totalorder %s20, 0
      %p145 = por %p143, %p144
      %p146 = scmp.ne.s32.totalorder %s138, %s140
      %p147 = scmp.eq.s32.totalorder %s25, 1
      %p148 = por %p146, %p147
      %p149 = scmp.ne.s32.totalorder %s140, %s141
      %p150 = scmp.eq.s32.totalorder %s25, 0
      %p151 = por %p149, %p150
      %p152 = scmp.ne.s32.totalorder %s140, %s141
      %p153 = scmp.eq.s32.totalorder %s26, 1
      %p154 = por %p152, %p153
      %p156 = scmp.ne.s32.totalorder %s141, %s155
      %p157 = scmp.eq.s32.totalorder %s26, 0
      %p158 = por %p156, %p157
      %s160 = sadd.s32 %s159, 1
      %p163 = scmp.eq.s32.totalorder %s20, 1
      %p164 = scmp.ne.s32.totalorder %s159, %s161
      %p165 = scmp.eq.s32.totalorder %s20, 0
      %p166 = por %p164, %p165
      %p167 = scmp.ne.s32.totalorder %s159, %s161
      %p168 = scmp.eq.s32.totalorder %s25, 1
      %p169 = por %p167, %p168
      %p170 = scmp.ne.s32.totalorder %s161, %s162
      %p171 = scmp.eq.s32.totalorder %s25, 0
      %p172 = por %p170, %p171
      %p173 = scmp.ne.s32.totalorder %s161, %s162
      %p174 = scmp.eq.s32.totalorder %s26, 1
      %p175 = por %p173, %p174
      %p177 = scmp.ne.s32.totalorder %s162, %s176
      %p178 = scmp.eq.s32.totalorder %s26, 0
      %p179 = por %p177, %p178
      %s181 = sadd.s32 %s180, 1
      %p184 = scmp.eq.s32.totalorder %s20, 1
      %p185 = scmp.ne.s32.totalorder %s180, %s182
      %p186 = scmp.eq.s32.totalorder %s20, 0
      %p187 = por %p185, %p186
      %p188 = scmp.ne.s32.totalorder %s180, %s182
      %p189 = scmp.eq.s32.totalorder %s25, 1
      %p190 = por %p188, %p189
      %p191 = scmp.ne.s32.totalorder %s182, %s183
      %p192 = scmp.eq.s32.totalorder %s25, 0
      %p193 = por %p191, %p192
      %p194 = scmp.ne.s32.totalorder %s182, %s183
      %p195 = scmp.eq.s32.totalorder %s26, 1
      %p196 = por %p194, %p195
      %p198 = scmp.ne.s32.totalorder %s183, %s197
      %p199 = scmp.eq.s32.totalorder %s26, 0
      %p200 = por %p198, %p199
      %s202 = sadd.s32 %s201, 1
      %p205 = scmp.eq.s32.totalorder %s20, 1
      %p206 = scmp.ne.s32.totalorder %s201, %s203
      %p207 = scmp.eq.s32.totalorder %s20, 0
      %p208 = por %p206, %p207
      %p209 = scmp.ne.s32.totalorder %s201, %s203
      %p210 = scmp.eq.s32.totalorder %s25, 1
      %p211 = por %p209, %p210
      %p212 = scmp.ne.s32.totalorder %s203, %s204
      %p213 = scmp.eq.s32.totalorder %s25, 0
      %p214 = por %p212, %p213
      %p215 = scmp.ne.s32.totalorder %s203, %s204
      %p216 = scmp.eq.s32.totalorder %s26, 1
      %p217 = por %p215, %p216
      %p219 = scmp.ne.s32.totalorder %s204, %s218
      %p220 = scmp.eq.s32.totalorder %s26, 0
      %p221 = por %p219, %p220
      %s223 = sadd.s32 %s222, 1
      %p226 = scmp.eq.s32.totalorder %s20, 1
      %p227 = scmp.ne.s32.totalorder %s222, %s224
      %p228 = scmp.eq.s32.totalorder %s20, 0
      %p229 = por %p227, %p228
      %p230 = scmp.ne.s32.totalorder %s222, %s224
      %p231 = scmp.eq.s32.totalorder %s25, 1
      %p232 = por %p230, %p231
      %p233 = scmp.ne.s32.totalorder %s224, %s225
      %p234 = scmp.eq.s32.totalorder %s25, 0
      %p235 = por %p233, %p234
      %p236 = scmp.ne.s32.totalorder %s224, %s225
      %p237 = scmp.eq.s32.totalorder %s26, 1
      %p238 = por %p236, %p237
      %p240 = scmp.ne.s32.totalorder %s225, %s239
      %p241 = scmp.eq.s32.totalorder %s26, 0
      %p242 = por %p240, %p241
      %s244 = sadd.s32 %s243, 1
      %p247 = scmp.eq.s32.totalorder %s20, 1
      %p248 = scmp.ne.s32.totalorder %s243, %s245
      %p249 = scmp.eq.s32.totalorder %s20, 0
      %p250 = por %p248, %p249
      %p251 = scmp.ne.s32.totalorder %s243, %s245
      %p252 = scmp.eq.s32.totalorder %s25, 1
      %p253 = por %p251, %p252
      %p254 = scmp.ne.s32.totalorder %s245, %s246
      %p255 = scmp.eq.s32.totalorder %s25, 0
      %p256 = por %p254, %p255
      %p257 = scmp.ne.s32.totalorder %s245, %s246
      %p258 = scmp.eq.s32.totalorder %s26, 1
      %p259 = por %p257, %p258
      %p261 = scmp.ne.s32.totalorder %s246, %s260
      %p262 = scmp.eq.s32.totalorder %s26, 0
      %p263 = por %p261, %p262
      %s264 = ssub.s32 %s20, %s27
      %p265 = scmp.eq.s32.totalorder %s264, 0
      %s267 = sadd.s32 %s266, 1
      %s268 = scalar_select %p265, %s266, %s267
      %p271 = pneg %p265
      %p272 = scmp.eq.s32.totalorder %s20, 1
      %p273 = por %p271, %p272
      %p274 = scmp.ne.s32.totalorder %s266, %s269
      %p275 = scmp.eq.s32.totalorder %s20, 0
      %p276 = por %p274, %p275
      %p277 = scmp.ne.s32.totalorder %s266, %s269
      %p278 = scmp.eq.s32.totalorder %s25, 1
      %p279 = por %p277, %p278
      %p280 = scmp.ne.s32.totalorder %s269, %s270
      %p281 = scmp.eq.s32.totalorder %s25, 0
      %p282 = por %p280, %p281
      %p283 = scmp.ne.s32.totalorder %s269, %s270
      %p284 = scmp.eq.s32.totalorder %s26, 1
      %p285 = por %p283, %p284
      %p287 = scmp.ne.s32.totalorder %s270, %s286
      %p288 = scmp.eq.s32.totalorder %s26, 0
      %p289 = por %p287, %p288
      %p290 = scmp.le.s32.totalorder 1, %s20
      %p291 = scmp.lt.s32.totalorder %s20, 3
      %p292 = pnand %p290, %p291
      %p293 = pneg %p292
      // Predicated region
      $region9: #{lenet5_forward.1} parent=5 // pred_check
        _
      $region10: #{lenet5_forward.1} parent=5 // pred_check_branch
        %295 = sbr.rel (%p292) target = $region12
      $region11: #{lenet5_forward.1} parent=5 // pred_region
        %s296 = ssub.s32 %s20, 1
        // Predicated region
        $region13: #{lenet5_forward.1} parent=11 // pred_check
          %p297 = pneg %p67
        $region14: #{lenet5_forward.1} parent=11 // pred_check_branch
          %299 = sbr.rel (%p297) target = $region16
        $region15: #{lenet5_forward.1} parent=11 // pred_region
          _
        $region16: #{lenet5_forward.1} parent=11 // pred_fallthru
          _
        // Predicated region
        $region17: #{lenet5_forward.1} parent=11 // pred_check
          %p300 = pneg %p88
        $region18: #{lenet5_forward.1} parent=11 // pred_check_branch
          %302 = sbr.rel (%p300) target = $region20
        $region19: #{lenet5_forward.1} parent=11 // pred_region
          _
        $region20: #{lenet5_forward.1} parent=11 // pred_fallthru
          _
        // Predicated region
        $region21: #{lenet5_forward.1} parent=11 // pred_check
          %p303 = pneg %p109
        $region22: #{lenet5_forward.1} parent=11 // pred_check_branch
          %305 = sbr.rel (%p303) target = $region24
        $region23: #{lenet5_forward.1} parent=11 // pred_region
          _
        $region24: #{lenet5_forward.1} parent=11 // pred_fallthru
          _
        // Predicated region
        $region25: #{lenet5_forward.1} parent=11 // pred_check
          %p306 = pneg %p130
        $region26: #{lenet5_forward.1} parent=11 // pred_check_branch
          %308 = sbr.rel (%p306) target = $region28
        $region27: #{lenet5_forward.1} parent=11 // pred_region
          _
        $region28: #{lenet5_forward.1} parent=11 // pred_fallthru
          _
        // Predicated region
        $region29: #{lenet5_forward.1} parent=11 // pred_check
          %p309 = pneg %p151
        $region30: #{lenet5_forward.1} parent=11 // pred_check_branch
          %311 = sbr.rel (%p309) target = $region32
        $region31: #{lenet5_forward.1} parent=11 // pred_region
          _
        $region32: #{lenet5_forward.1} parent=11 // pred_fallthru
          _
        // Predicated region
        $region33: #{lenet5_forward.1} parent=11 // pred_check
          %p312 = pneg %p172
        $region34: #{lenet5_forward.1} parent=11 // pred_check_branch
          %314 = sbr.rel (%p312) target = $region36
        $region35: #{lenet5_forward.1} parent=11 // pred_region
          _
        $region36: #{lenet5_forward.1} parent=11 // pred_fallthru
          _
        // Predicated region
        $region37: #{lenet5_forward.1} parent=11 // pred_check
          %p315 = pneg %p193
        $region38: #{lenet5_forward.1} parent=11 // pred_check_branch
          %317 = sbr.rel (%p315) target = $region40
        $region39: #{lenet5_forward.1} parent=11 // pred_region
          _
        $region40: #{lenet5_forward.1} parent=11 // pred_fallthru
          _
        // Predicated region
        $region41: #{lenet5_forward.1} parent=11 // pred_check
          %p318 = pneg %p214
        $region42: #{lenet5_forward.1} parent=11 // pred_check_branch
          %320 = sbr.rel (%p318) target = $region44
        $region43: #{lenet5_forward.1} parent=11 // pred_region
          _
        $region44: #{lenet5_forward.1} parent=11 // pred_fallthru
          _
        // Predicated region
        $region45: #{lenet5_forward.1} parent=11 // pred_check
          %p321 = pneg %p235
        $region46: #{lenet5_forward.1} parent=11 // pred_check_branch
          %323 = sbr.rel (%p321) target = $region48
        $region47: #{lenet5_forward.1} parent=11 // pred_region
          _
        $region48: #{lenet5_forward.1} parent=11 // pred_fallthru
          _
        // Predicated region
        $region49: #{lenet5_forward.1} parent=11 // pred_check
          %p324 = pneg %p256
        $region50: #{lenet5_forward.1} parent=11 // pred_check_branch
          %326 = sbr.rel (%p324) target = $region52
        $region51: #{lenet5_forward.1} parent=11 // pred_region
          _
        $region52: #{lenet5_forward.1} parent=11 // pred_fallthru
          _
      $region12: #{lenet5_forward.1} parent=5 // pred_fallthru
        _
      %p327 = scmp.lt.s32.totalorder %s20, 2
      // Predicated region
      $region53: #{lenet5_forward.1} parent=5 // pred_check
        %p328 = pneg %p327
      $region54: #{lenet5_forward.1} parent=5 // pred_check_branch
        %330 = sbr.rel (%p328) target = $region56
      $region55: #{lenet5_forward.1} parent=5 // pred_region
        // Predicated region
        $region57: #{lenet5_forward.1} parent=55 // pred_check
          %p331 = pneg %p40
        $region58: #{lenet5_forward.1} parent=55 // pred_check_branch
          %333 = sbr.rel (%p331) target = $region60
        $region59: #{lenet5_forward.1} parent=55 // pred_region
          %p334 = scmp.lt.s32.totalorder %s20, 1
          %s335 = scalar_select %p334, %s20, 1
          %s336 = smul.addr %s335, 128
          %s337 = smul.addr %s336, 8
          %s338 = scalar_lea.vmem %s0, %s337
        $region60: #{lenet5_forward.1} parent=55 // pred_fallthru
          _
      $region56: #{lenet5_forward.1} parent=5 // pred_fallthru
        _
      %p339 = scmp.le.s32.totalorder 1, %s20
      %p340 = scmp.lt.s32.totalorder %s20, 3
      %p341 = pnand %p339, %p340
      %p342 = pneg %p341
      // Predicated region
      $region61: #{lenet5_forward.1} parent=5 // pred_check
        _
      $region62: #{lenet5_forward.1} parent=5 // pred_check_branch
        %344 = sbr.rel (%p341) target = $region64
      $region63: #{lenet5_forward.1} parent=5 // pred_region
        %s345 = ssub.s32 %s20, 1
        %p346 = scmp.lt.s32.totalorder %s25, 1
        %s347 = scalar_select %p346, %s25, 1
        %s348 = smul.addr %s347, 128
        %s349 = smul.addr %s348, 8
        %s350 = scalar_lea.vmem %s0, %s349
        %p351 = pneg %p46
        %p352 = pneg %p43
        %p353 = pneg %p67
        %p354 = pneg %p64
        %p355 = pneg %p88
        %p356 = pneg %p85
        %p357 = pneg %p109
        %p358 = pneg %p106
        %p359 = pneg %p130
        %p360 = pneg %p127
        %p361 = pneg %p151
        %p362 = pneg %p148
        %p363 = pneg %p172
        %p364 = pneg %p169
        %p365 = pneg %p193
        %p366 = pneg %p190
        %p367 = pneg %p214
        %p368 = pneg %p211
        %p369 = pneg %p235
        %p370 = pneg %p232
        %p371 = pneg %p256
        %p372 = pneg %p253
        %p373 = pneg %p282
        %p374 = pneg %p279
        %s375 = sand.u32 %s269, 1
        %s376 = scalar_lea.sflag [#allocation3], %s375
        %s377 = sand.u32 %s269, 1
        %s378 = scalar_lea.vmem [#allocation2], %s377
        %p379 = scmp.lt.s32.totalorder %s25, 1
        %s380 = scalar_select %p379, %s25, 1
        %s381 = smul.addr %s380, 128
        %s382 = smul.addr %s381, 8
        %s383 = scalar_lea.vmem %s0, %s382
        %v385 = vld [vmem:[%s383] sm:$0xff]
        %v386 = vld [vmem:[%s383 + $0x8] sm:$0xff]
        %v387 = vld [vmem:[%s383 + $0x10] sm:$0xff]
        %v388 = vld [vmem:[%s383 + $0x18] sm:$0xff]
        %v389 = vld [vmem:[%s383 + $0x20] sm:$0xff]
        %v390 = vld [vmem:[%s383 + $0x28] sm:$0xff]
        %v391 = vld [vmem:[%s383 + $0x30] sm:$0xff]
        %v392 = vld [vmem:[%s383 + $0x38] sm:$0xff]
        %v393 = vld [vmem:[%s383 + $0x40] sm:$0xff]
        %v394 = vld [vmem:[%s383 + $0x48] sm:$0xff]
        %v395 = vld [vmem:[%s383 + $0x50] sm:$0xff]
        %v396 = vld [vmem:[%s383 + $0x58] sm:$0xff]
        %v397 = vld [vmem:[%s383 + $0x60] sm:$0xff]
        %v398 = vld [vmem:[%s383 + $0x68] sm:$0xff]
        %v399 = vld [vmem:[%s383 + $0x70] sm:$0xff]
        %v400 = vld [vmem:[%s383 + $0x78] sm:$0xff]
        %v401 = vld [vmem:[%s383 + $0x80] sm:$0xff]
        %v402 = vld [vmem:[%s383 + $0x88] sm:$0xff]
        %v403 = vld [vmem:[%s383 + $0x90] sm:$0xff]
        %v404 = vld [vmem:[%s383 + $0x98] sm:$0xff]
        %v405 = vld [vmem:[%s383 + $0xa0] sm:$0xff]
        %v406 = vld [vmem:[%s383 + $0xa8] sm:$0xff]
        %v407 = vld [vmem:[%s383 + $0xb0] sm:$0xff]
        %v408 = vld [vmem:[%s383 + $0xb8] sm:$0xff]
        %v409 = vld [vmem:[%s383 + $0xc0] sm:$0xff]
        %v410 = vld [vmem:[%s383 + $0xc8] sm:$0xff]
        %v411 = vld [vmem:[%s383 + $0xd0] sm:$0xff]
        %v412 = vld [vmem:[%s383 + $0xd8] sm:$0xff]
        %v413 = vld [vmem:[%s383 + $0xe0] sm:$0xff]
        %v414 = vld [vmem:[%s383 + $0xe8] sm:$0xff]
        %v415 = vld [vmem:[%s383 + $0xf0] sm:$0xff]
        %v416 = vld [vmem:[%s383 + $0xf8] sm:$0xff]
        %v417 = vld [vmem:[%s383 + $0x100] sm:$0xff]
        %v418 = vld [vmem:[%s383 + $0x108] sm:$0xff]
        %v419 = vld [vmem:[%s383 + $0x110] sm:$0xff]
        %v420 = vld [vmem:[%s383 + $0x118] sm:$0xff]
        %v421 = vld [vmem:[%s383 + $0x120] sm:$0xff]
        %v422 = vld [vmem:[%s383 + $0x128] sm:$0xff]
        %v423 = vld [vmem:[%s383 + $0x130] sm:$0xff]
        %v424 = vld [vmem:[%s383 + $0x138] sm:$0xff]
        %v425 = vld [vmem:[%s383 + $0x140] sm:$0xff]
        %v426 = vld [vmem:[%s383 + $0x148] sm:$0xff]
        %v427 = vld [vmem:[%s383 + $0x150] sm:$0xff]
        %v428 = vld [vmem:[%s383 + $0x158] sm:$0xff]
        %v429 = vld [vmem:[%s383 + $0x160] sm:$0xff]
        %v430 = vld [vmem:[%s383 + $0x168] sm:$0xff]
        %v431 = vld [vmem:[%s383 + $0x170] sm:$0xff]
        %v432 = vld [vmem:[%s383 + $0x178] sm:$0xff]
        %v433 = vld [vmem:[%s383 + $0x180] sm:$0xff]
        %v434 = vld [vmem:[%s383 + $0x188] sm:$0xff]
        %v435 = vld [vmem:[%s383 + $0x190] sm:$0xff]
        %v436 = vld [vmem:[%s383 + $0x198] sm:$0xff]
        %v437 = vld [vmem:[%s383 + $0x1a0] sm:$0xff]
        %v438 = vld [vmem:[%s383 + $0x1a8] sm:$0xff]
        %v439 = vld [vmem:[%s383 + $0x1b0] sm:$0xff]
        %v440 = vld [vmem:[%s383 + $0x1b8] sm:$0xff]
        %v441 = vld [vmem:[%s383 + $0x1c0] sm:$0xff]
        %v442 = vld [vmem:[%s383 + $0x1c8] sm:$0xff]
        %v443 = vld [vmem:[%s383 + $0x1d0] sm:$0xff]
        %v444 = vld [vmem:[%s383 + $0x1d8] sm:$0xff]
        %v445 = vld [vmem:[%s383 + $0x1e0] sm:$0xff]
        %v446 = vld [vmem:[%s383 + $0x1e8] sm:$0xff]
        %v447 = vld [vmem:[%s383 + $0x1f0] sm:$0xff]
        %v448 = vld [vmem:[%s383 + $0x1f8] sm:$0xff]
        %v449 = vld [vmem:[%s383 + $0x200] sm:$0xff]
        %v450 = vld [vmem:[%s383 + $0x208] sm:$0xff]
        %v451 = vld [vmem:[%s383 + $0x210] sm:$0xff]
        %v452 = vld [vmem:[%s383 + $0x218] sm:$0xff]
        %v453 = vld [vmem:[%s383 + $0x220] sm:$0xff]
        %v454 = vld [vmem:[%s383 + $0x228] sm:$0xff]
        %v455 = vld [vmem:[%s383 + $0x230] sm:$0xff]
        %v456 = vld [vmem:[%s383 + $0x238] sm:$0xff]
        %v457 = vld [vmem:[%s383 + $0x240] sm:$0xff]
        %v458 = vld [vmem:[%s383 + $0x248] sm:$0xff]
        %v459 = vld [vmem:[%s383 + $0x250] sm:$0xff]
        %v460 = vld [vmem:[%s383 + $0x258] sm:$0xff]
        %v461 = vld [vmem:[%s383 + $0x260] sm:$0xff]
        %v462 = vld [vmem:[%s383 + $0x268] sm:$0xff]
        %v463 = vld [vmem:[%s383 + $0x270] sm:$0xff]
        %v464 = vld [vmem:[%s383 + $0x278] sm:$0xff]
        %v465 = vld [vmem:[%s383 + $0x280] sm:$0xff]
        %v466 = vld [vmem:[%s383 + $0x288] sm:$0xff]
        %v467 = vld [vmem:[%s383 + $0x290] sm:$0xff]
        %v468 = vld [vmem:[%s383 + $0x298] sm:$0xff]
        %v469 = vld [vmem:[%s383 + $0x2a0] sm:$0xff]
        %v470 = vld [vmem:[%s383 + $0x2a8] sm:$0xff]
        %v471 = vld [vmem:[%s383 + $0x2b0] sm:$0xff]
        %v472 = vld [vmem:[%s383 + $0x2b8] sm:$0xff]
        %v473 = vld [vmem:[%s383 + $0x2c0] sm:$0xff]
        %v474 = vld [vmem:[%s383 + $0x2c8] sm:$0xff]
        %v475 = vld [vmem:[%s383 + $0x2d0] sm:$0xff]
        %v476 = vld [vmem:[%s383 + $0x2d8] sm:$0xff]
        %v477 = vld [vmem:[%s383 + $0x2e0] sm:$0xff]
        %v478 = vld [vmem:[%s383 + $0x2e8] sm:$0xff]
        %v479 = vld [vmem:[%s383 + $0x2f0] sm:$0xff]
        %v480 = vld [vmem:[%s383 + $0x2f8] sm:$0xff]
        %v481 = vld [vmem:[%s383 + $0x300] sm:$0xff]
        %v482 = vld [vmem:[%s383 + $0x308] sm:$0xff]
        %v483 = vld [vmem:[%s383 + $0x310] sm:$0xff]
        %v484 = vld [vmem:[%s383 + $0x318] sm:$0xff]
        %v485 = vld [vmem:[%s383 + $0x320] sm:$0xff]
        %v486 = vld [vmem:[%s383 + $0x328] sm:$0xff]
        %v487 = vld [vmem:[%s383 + $0x330] sm:$0xff]
        %v488 = vld [vmem:[%s383 + $0x338] sm:$0xff]
        %v489 = vld [vmem:[%s383 + $0x340] sm:$0xff]
        %v490 = vld [vmem:[%s383 + $0x348] sm:$0xff]
        %v491 = vld [vmem:[%s383 + $0x350] sm:$0xff]
        %v492 = vld [vmem:[%s383 + $0x358] sm:$0xff]
        %v493 = vld [vmem:[%s383 + $0x360] sm:$0xff]
        %v494 = vld [vmem:[%s383 + $0x368] sm:$0xff]
        %v495 = vld [vmem:[%s383 + $0x370] sm:$0xff]
        %v496 = vld [vmem:[%s383 + $0x378] sm:$0xff]
        %v497 = vld [vmem:[%s383 + $0x380] sm:$0xff]
        %v498 = vld [vmem:[%s383 + $0x388] sm:$0xff]
        %v499 = vld [vmem:[%s383 + $0x390] sm:$0xff]
        %v500 = vld [vmem:[%s383 + $0x398] sm:$0xff]
        %v501 = vld [vmem:[%s383 + $0x3a0] sm:$0xff]
        %v502 = vld [vmem:[%s383 + $0x3a8] sm:$0xff]
        %v503 = vld [vmem:[%s383 + $0x3b0] sm:$0xff]
        %v504 = vld [vmem:[%s383 + $0x3b8] sm:$0xff]
        %v505 = vld [vmem:[%s383 + $0x3c0] sm:$0xff]
        %v506 = vld [vmem:[%s383 + $0x3c8] sm:$0xff]
        %v507 = vld [vmem:[%s383 + $0x3d0] sm:$0xff]
        %v508 = vld [vmem:[%s383 + $0x3d8] sm:$0xff]
        %v509 = vld [vmem:[%s383 + $0x3e0] sm:$0xff]
        %v510 = vld [vmem:[%s383 + $0x3e8] sm:$0xff]
        %v511 = vld [vmem:[%s383 + $0x3f0] sm:$0xff]
        %v512 = vld [vmem:[%s383 + $0x3f8] sm:$0xff]
        %vm625 = vcmask 1046528
        %v626 = vrot.slane %v385, 1
        %v627 = vrot.slane %v386, 1
        %v628 = vsel %vm625, %v626, %v627
        %v629 = vrot.slane %v387, 1
        %v630 = vsel %vm625, %v627, %v629
        %v631 = vrot.slane %v388, 1
        %v632 = vsel %vm625, %v629, %v631
        %v633 = vrot.slane %v389, 1
        %v634 = vsel %vm625, %v631, %v633
        %v635 = vrot.slane %v390, 1
        %v636 = vsel %vm625, %v633, %v635
        %v637 = vrot.slane %v391, 1
        %v638 = vsel %vm625, %v635, %v637
        %v639 = vrot.slane %v392, 1
        %v640 = vsel %vm625, %v637, %v639
        %v641 = vrot.slane %v393, 1
        %v642 = vsel %vm625, %v639, %v641
        %v643 = vrot.slane %v394, 1
        %v644 = vsel %vm625, %v641, %v643
        %v645 = vrot.slane %v395, 1
        %v646 = vsel %vm625, %v643, %v645
        %v647 = vrot.slane %v396, 1
        %v648 = vsel %vm625, %v645, %v647
        %v649 = vrot.slane %v397, 1
        %v650 = vsel %vm625, %v647, %v649
        %v651 = vrot.slane %v398, 1
        %v652 = vsel %vm625, %v649, %v651
        %v653 = vrot.slane %v399, 1
        %v654 = vsel %vm625, %v651, %v653
        %v655 = vrot.slane %v400, 1
        %v656 = vsel %vm625, %v653, %v655
        %v657 = vrot.slane %v401, 1
        %v658 = vsel %vm625, %v655, %v657
        %v659 = vrot.slane %v402, 1
        %v660 = vsel %vm625, %v657, %v659
        %v661 = vrot.slane %v403, 1
        %v662 = vsel %vm625, %v659, %v661
        %v663 = vrot.slane %v404, 1
        %v664 = vsel %vm625, %v661, %v663
        %v665 = vrot.slane %v405, 1
        %v666 = vsel %vm625, %v663, %v665
        %v667 = vrot.slane %v406, 1
        %v668 = vsel %vm625, %v665, %v667
        %v669 = vrot.slane %v407, 1
        %v670 = vsel %vm625, %v667, %v669
        %v671 = vrot.slane %v408, 1
        %v672 = vsel %vm625, %v669, %v671
        %v673 = vrot.slane %v409, 1
        %v674 = vsel %vm625, %v671, %v673
        %v675 = vrot.slane %v410, 1
        %v676 = vsel %vm625, %v673, %v675
        %v677 = vrot.slane %v411, 1
        %v678 = vsel %vm625, %v675, %v677
        %v679 = vrot.slane %v412, 1
        %v680 = vsel %vm625, %v677, %v679
        %v681 = vrot.slane %v413, 1
        %v682 = vsel %vm625, %v679, %v681
        %v683 = vrot.slane %v414, 1
        %v684 = vsel %vm625, %v681, %v683
        %v685 = vrot.slane %v415, 1
        %v686 = vsel %vm625, %v683, %v685
        %v687 = vrot.slane %v416, 1
        %v688 = vsel %vm625, %v685, %v687
        %v689 = vrot.slane %v417, 1
        %v690 = vsel %vm625, %v687, %v689
        %v691 = vrot.slane %v418, 1
        %v692 = vsel %vm625, %v689, %v691
        %v693 = vrot.slane %v419, 1
        %v694 = vsel %vm625, %v691, %v693
        %v695 = vrot.slane %v420, 1
        %v696 = vsel %vm625, %v693, %v695
        %v697 = vrot.slane %v421, 1
        %v698 = vsel %vm625, %v695, %v697
        %v699 = vrot.slane %v422, 1
        %v700 = vsel %vm625, %v697, %v699
        %v701 = vrot.slane %v423, 1
        %v702 = vsel %vm625, %v699, %v701
        %v703 = vrot.slane %v424, 1
        %v704 = vsel %vm625, %v701, %v703
        %v705 = vrot.slane %v425, 1
        %v706 = vsel %vm625, %v703, %v705
        %v707 = vrot.slane %v426, 1
        %v708 = vsel %vm625, %v705, %v707
        %v709 = vrot.slane %v427, 1
        %v710 = vsel %vm625, %v707, %v709
        %v711 = vrot.slane %v428, 1
        %v712 = vsel %vm625, %v709, %v711
        %v713 = vrot.slane %v429, 1
        %v714 = vsel %vm625, %v711, %v713
        %v715 = vrot.slane %v430, 1
        %v716 = vsel %vm625, %v713, %v715
        %v717 = vrot.slane %v431, 1
        %v718 = vsel %vm625, %v715, %v717
        %v719 = vrot.slane %v432, 1
        %v720 = vsel %vm625, %v717, %v719
        %v721 = vrot.slane %v433, 1
        %v722 = vsel %vm625, %v719, %v721
        %v723 = vrot.slane %v434, 1
        %v724 = vsel %vm625, %v721, %v723
        %v725 = vrot.slane %v435, 1
        %v726 = vsel %vm625, %v723, %v725
        %v727 = vrot.slane %v436, 1
        %v728 = vsel %vm625, %v725, %v727
        %v729 = vrot.slane %v437, 1
        %v730 = vsel %vm625, %v727, %v729
        %v731 = vrot.slane %v438, 1
        %v732 = vsel %vm625, %v729, %v731
        %v733 = vrot.slane %v439, 1
        %v734 = vsel %vm625, %v731, %v733
        %v735 = vrot.slane %v440, 1
        %v736 = vsel %vm625, %v733, %v735
        %v737 = vrot.slane %v441, 1
        %v738 = vsel %vm625, %v735, %v737
        %v739 = vrot.slane %v442, 1
        %v740 = vsel %vm625, %v737, %v739
        %v741 = vrot.slane %v443, 1
        %v742 = vsel %vm625, %v739, %v741
        %v743 = vrot.slane %v444, 1
        %v744 = vsel %vm625, %v741, %v743
        %v745 = vrot.slane %v445, 1
        %v746 = vsel %vm625, %v743, %v745
        %v747 = vrot.slane %v446, 1
        %v748 = vsel %vm625, %v745, %v747
        %v749 = vrot.slane %v447, 1
        %v750 = vsel %vm625, %v747, %v749
        %v751 = vrot.slane %v448, 1
        %v752 = vsel %vm625, %v749, %v751
        %v753 = vrot.slane %v449, 1
        %v754 = vsel %vm625, %v751, %v753
        %v755 = vrot.slane %v450, 1
        %v756 = vsel %vm625, %v753, %v755
        %v757 = vrot.slane %v451, 1
        %v758 = vsel %vm625, %v755, %v757
        %v759 = vrot.slane %v452, 1
        %v760 = vsel %vm625, %v757, %v759
        %v761 = vrot.slane %v453, 1
        %v762 = vsel %vm625, %v759, %v761
        %v763 = vrot.slane %v454, 1
        %v764 = vsel %vm625, %v761, %v763
        %v765 = vrot.slane %v455, 1
        %v766 = vsel %vm625, %v763, %v765
        %v767 = vrot.slane %v456, 1
        %v768 = vsel %vm625, %v765, %v767
        %v769 = vrot.slane %v457, 1
        %v770 = vsel %vm625, %v767, %v769
        %v771 = vrot.slane %v458, 1
        %v772 = vsel %vm625, %v769, %v771
        %v773 = vrot.slane %v459, 1
        %v774 = vsel %vm625, %v771, %v773
        %v775 = vrot.slane %v460, 1
        %v776 = vsel %vm625, %v773, %v775
        %v777 = vrot.slane %v461, 1
        %v778 = vsel %vm625, %v775, %v777
        %v779 = vrot.slane %v462, 1
        %v780 = vsel %vm625, %v777, %v779
        %v781 = vrot.slane %v463, 1
        %v782 = vsel %vm625, %v779, %v781
        %v783 = vrot.slane %v464, 1
        %v784 = vsel %vm625, %v781, %v783
        %v785 = vrot.slane %v465, 1
        %v786 = vsel %vm625, %v783, %v785
        %v787 = vrot.slane %v466, 1
        %v788 = vsel %vm625, %v785, %v787
        %v789 = vrot.slane %v467, 1
        %v790 = vsel %vm625, %v787, %v789
        %v791 = vrot.slane %v468, 1
        %v792 = vsel %vm625, %v789, %v791
        %v793 = vrot.slane %v469, 1
        %v794 = vsel %vm625, %v791, %v793
        %v795 = vrot.slane %v470, 1
        %v796 = vsel %vm625, %v793, %v795
        %v797 = vrot.slane %v471, 1
        %v798 = vsel %vm625, %v795, %v797
        %v799 = vrot.slane %v472, 1
        %v800 = vsel %vm625, %v797, %v799
        %v801 = vrot.slane %v473, 1
        %v802 = vsel %vm625, %v799, %v801
        %v803 = vrot.slane %v474, 1
        %v804 = vsel %vm625, %v801, %v803
        %v805 = vrot.slane %v475, 1
        %v806 = vsel %vm625, %v803, %v805
        %v807 = vrot.slane %v476, 1
        %v808 = vsel %vm625, %v805, %v807
        %v809 = vrot.slane %v477, 1
        %v810 = vsel %vm625, %v807, %v809
        %v811 = vrot.slane %v478, 1
        %v812 = vsel %vm625, %v809, %v811
        %v813 = vrot.slane %v479, 1
        %v814 = vsel %vm625, %v811, %v813
        %v815 = vrot.slane %v480, 1
        %v816 = vsel %vm625, %v813, %v815
        %v817 = vrot.slane %v481, 1
        %v818 = vsel %vm625, %v815, %v817
        %v819 = vrot.slane %v482, 1
        %v820 = vsel %vm625, %v817, %v819
        %v821 = vrot.slane %v483, 1
        %v822 = vsel %vm625, %v819, %v821
        %v823 = vrot.slane %v484, 1
        %v824 = vsel %vm625, %v821, %v823
        %v825 = vrot.slane %v485, 1
        %v826 = vsel %vm625, %v823, %v825
        %v827 = vrot.slane %v486, 1
        %v828 = vsel %vm625, %v825, %v827
        %v829 = vrot.slane %v487, 1
        %v830 = vsel %vm625, %v827, %v829
        %v831 = vrot.slane %v488, 1
        %v832 = vsel %vm625, %v829, %v831
        %v833 = vrot.slane %v489, 1
        %v834 = vsel %vm625, %v831, %v833
        %v835 = vrot.slane %v490, 1
        %v836 = vsel %vm625, %v833, %v835
        %v837 = vrot.slane %v491, 1
        %v838 = vsel %vm625, %v835, %v837
        %v839 = vrot.slane %v492, 1
        %v840 = vsel %vm625, %v837, %v839
        %v841 = vrot.slane %v493, 1
        %v842 = vsel %vm625, %v839, %v841
        %v843 = vrot.slane %v494, 1
        %v844 = vsel %vm625, %v841, %v843
        %v845 = vrot.slane %v495, 1
        %v846 = vsel %vm625, %v843, %v845
        %v847 = vrot.slane %v496, 1
        %v848 = vsel %vm625, %v845, %v847
        %849 = vrot.lane.b32.xlu0 %v628, 4
        %v850 = vpop.permute.xlu0 %849
        %851 = vrot.lane.b32.xlu0 %v630, 4
        %v852 = vpop.permute.xlu0 %851
        %853 = vrot.lane.b32.xlu0 %v632, 4
        %v854 = vpop.permute.xlu0 %853
        %855 = vrot.lane.b32.xlu0 %v634, 4
        %v856 = vpop.permute.xlu0 %855
        %857 = vrot.lane.b32.xlu0 %v636, 4
        %v858 = vpop.permute.xlu0 %857
        %859 = vrot.lane.b32.xlu0 %v638, 4
        %v860 = vpop.permute.xlu0 %859
        %861 = vrot.lane.b32.xlu0 %v640, 4
        %v862 = vpop.permute.xlu0 %861
        %863 = vrot.lane.b32.xlu0 %v642, 4
        %v864 = vpop.permute.xlu0 %863
        %865 = vrot.lane.b32.xlu0 %v644, 4
        %v866 = vpop.permute.xlu0 %865
        %867 = vrot.lane.b32.xlu0 %v646, 4
        %v868 = vpop.permute.xlu0 %867
        %869 = vrot.lane.b32.xlu0 %v648, 4
        %v870 = vpop.permute.xlu0 %869
        %871 = vrot.lane.b32.xlu0 %v650, 4
        %v872 = vpop.permute.xlu0 %871
        %873 = vrot.lane.b32.xlu0 %v652, 4
        %v874 = vpop.permute.xlu0 %873
        %875 = vrot.lane.b32.xlu0 %v654, 4
        %v876 = vpop.permute.xlu0 %875
        %877 = vrot.lane.b32.xlu0 %v656, 4
        %v878 = vpop.permute.xlu0 %877
        %879 = vrot.lane.b32.xlu0 %v658, 4
        %v880 = vpop.permute.xlu0 %879
        %881 = vrot.lane.b32.xlu0 %v660, 4
        %v882 = vpop.permute.xlu0 %881
        %883 = vrot.lane.b32.xlu0 %v662, 4
        %v884 = vpop.permute.xlu0 %883
        %885 = vrot.lane.b32.xlu0 %v664, 4
        %v886 = vpop.permute.xlu0 %885
        %887 = vrot.lane.b32.xlu0 %v666, 4
        %v888 = vpop.permute.xlu0 %887
        %889 = vrot.lane.b32.xlu0 %v668, 4
        %v890 = vpop.permute.xlu0 %889
        %891 = vrot.lane.b32.xlu0 %v670, 4
        %v892 = vpop.permute.xlu0 %891
        %893 = vrot.lane.b32.xlu0 %v672, 4
        %v894 = vpop.permute.xlu0 %893
        %895 = vrot.lane.b32.xlu0 %v674, 4
        %v896 = vpop.permute.xlu0 %895
        %897 = vrot.lane.b32.xlu0 %v676, 4
        %v898 = vpop.permute.xlu0 %897
        %899 = vrot.lane.b32.xlu0 %v678, 4
        %v900 = vpop.permute.xlu0 %899
        %901 = vrot.lane.b32.xlu0 %v680, 4
        %v902 = vpop.permute.xlu0 %901
        %903 = vrot.lane.b32.xlu0 %v682, 4
        %v904 = vpop.permute.xlu0 %903
        %905 = vrot.lane.b32.xlu0 %v684, 4
        %v906 = vpop.permute.xlu0 %905
        %907 = vrot.lane.b32.xlu0 %v686, 4
        %v908 = vpop.permute.xlu0 %907
        %909 = vrot.lane.b32.xlu0 %v688, 4
        %v910 = vpop.permute.xlu0 %909
        %911 = vrot.lane.b32.xlu0 %v690, 4
        %v912 = vpop.permute.xlu0 %911
        %913 = vrot.lane.b32.xlu0 %v692, 4
        %v914 = vpop.permute.xlu0 %913
        %915 = vrot.lane.b32.xlu0 %v694, 4
        %v916 = vpop.permute.xlu0 %915
        %917 = vrot.lane.b32.xlu0 %v696, 4
        %v918 = vpop.permute.xlu0 %917
        %919 = vrot.lane.b32.xlu0 %v698, 4
        %v920 = vpop.permute.xlu0 %919
        %921 = vrot.lane.b32.xlu0 %v700, 4
        %v922 = vpop.permute.xlu0 %921
        %923 = vrot.lane.b32.xlu0 %v702, 4
        %v924 = vpop.permute.xlu0 %923
        %925 = vrot.lane.b32.xlu0 %v704, 4
        %v926 = vpop.permute.xlu0 %925
        %927 = vrot.lane.b32.xlu0 %v706, 4
        %v928 = vpop.permute.xlu0 %927
        %929 = vrot.lane.b32.xlu0 %v708, 4
        %v930 = vpop.permute.xlu0 %929
        %931 = vrot.lane.b32.xlu0 %v710, 4
        %v932 = vpop.permute.xlu0 %931
        %933 = vrot.lane.b32.xlu0 %v712, 4
        %v934 = vpop.permute.xlu0 %933
        %935 = vrot.lane.b32.xlu0 %v714, 4
        %v936 = vpop.permute.xlu0 %935
        %937 = vrot.lane.b32.xlu0 %v716, 4
        %v938 = vpop.permute.xlu0 %937
        %939 = vrot.lane.b32.xlu0 %v718, 4
        %v940 = vpop.permute.xlu0 %939
        %941 = vrot.lane.b32.xlu0 %v720, 4
        %v942 = vpop.permute.xlu0 %941
        %943 = vrot.lane.b32.xlu0 %v722, 4
        %v944 = vpop.permute.xlu0 %943
        %945 = vrot.lane.b32.xlu0 %v724, 4
        %v946 = vpop.permute.xlu0 %945
        %947 = vrot.lane.b32.xlu0 %v726, 4
        %v948 = vpop.permute.xlu0 %947
        %949 = vrot.lane.b32.xlu0 %v728, 4
        %v950 = vpop.permute.xlu0 %949
        %951 = vrot.lane.b32.xlu0 %v730, 4
        %v952 = vpop.permute.xlu0 %951
        %953 = vrot.lane.b32.xlu0 %v732, 4
        %v954 = vpop.permute.xlu0 %953
        %955 = vrot.lane.b32.xlu0 %v734, 4
        %v956 = vpop.permute.xlu0 %955
        %957 = vrot.lane.b32.xlu0 %v736, 4
        %v958 = vpop.permute.xlu0 %957
        %959 = vrot.lane.b32.xlu0 %v738, 4
        %v960 = vpop.permute.xlu0 %959
        %961 = vrot.lane.b32.xlu0 %v740, 4
        %v962 = vpop.permute.xlu0 %961
        %963 = vrot.lane.b32.xlu0 %v742, 4
        %v964 = vpop.permute.xlu0 %963
        %965 = vrot.lane.b32.xlu0 %v744, 4
        %v966 = vpop.permute.xlu0 %965
        %967 = vrot.lane.b32.xlu0 %v746, 4
        %v968 = vpop.permute.xlu0 %967
        %969 = vrot.lane.b32.xlu0 %v748, 4
        %v970 = vpop.permute.xlu0 %969
        %971 = vrot.lane.b32.xlu0 %v750, 4
        %v972 = vpop.permute.xlu0 %971
        %973 = vrot.lane.b32.xlu0 %v752, 4
        %v974 = vpop.permute.xlu0 %973
        %975 = vrot.lane.b32.xlu0 %v754, 4
        %v976 = vpop.permute.xlu0 %975
        %977 = vrot.lane.b32.xlu0 %v756, 4
        %v978 = vpop.permute.xlu0 %977
        %979 = vrot.lane.b32.xlu0 %v758, 4
        %v980 = vpop.permute.xlu0 %979
        %981 = vrot.lane.b32.xlu0 %v760, 4
        %v982 = vpop.permute.xlu0 %981
        %983 = vrot.lane.b32.xlu0 %v762, 4
        %v984 = vpop.permute.xlu0 %983
        %985 = vrot.lane.b32.xlu0 %v764, 4
        %v986 = vpop.permute.xlu0 %985
        %987 = vrot.lane.b32.xlu0 %v766, 4
        %v988 = vpop.permute.xlu0 %987
        %989 = vrot.lane.b32.xlu0 %v768, 4
        %v990 = vpop.permute.xlu0 %989
        %991 = vrot.lane.b32.xlu0 %v770, 4
        %v992 = vpop.permute.xlu0 %991
        %993 = vrot.lane.b32.xlu0 %v772, 4
        %v994 = vpop.permute.xlu0 %993
        %995 = vrot.lane.b32.xlu0 %v774, 4
        %v996 = vpop.permute.xlu0 %995
        %997 = vrot.lane.b32.xlu0 %v776, 4
        %v998 = vpop.permute.xlu0 %997
        %999 = vrot.lane.b32.xlu0 %v778, 4
        %v1000 = vpop.permute.xlu0 %999
        %1001 = vrot.lane.b32.xlu0 %v780, 4
        %v1002 = vpop.permute.xlu0 %1001
        %1003 = vrot.lane.b32.xlu0 %v782, 4
        %v1004 = vpop.permute.xlu0 %1003
        %1005 = vrot.lane.b32.xlu0 %v784, 4
        %v1006 = vpop.permute.xlu0 %1005
        %1007 = vrot.lane.b32.xlu0 %v786, 4
        %v1008 = vpop.permute.xlu0 %1007
        %1009 = vrot.lane.b32.xlu0 %v788, 4
        %v1010 = vpop.permute.xlu0 %1009
        %1011 = vrot.lane.b32.xlu0 %v790, 4
        %v1012 = vpop.permute.xlu0 %1011
        %1013 = vrot.lane.b32.xlu0 %v792, 4
        %v1014 = vpop.permute.xlu0 %1013
        %1015 = vrot.lane.b32.xlu0 %v794, 4
        %v1016 = vpop.permute.xlu0 %1015
        %1017 = vrot.lane.b32.xlu0 %v796, 4
        %v1018 = vpop.permute.xlu0 %1017
        %1019 = vrot.lane.b32.xlu0 %v798, 4
        %v1020 = vpop.permute.xlu0 %1019
        %1021 = vrot.lane.b32.xlu0 %v800, 4
        %v1022 = vpop.permute.xlu0 %1021
        %1023 = vrot.lane.b32.xlu0 %v802, 4
        %v1024 = vpop.permute.xlu0 %1023
        %1025 = vrot.lane.b32.xlu0 %v804, 4
        %v1026 = vpop.permute.xlu0 %1025
        %1027 = vrot.lane.b32.xlu0 %v806, 4
        %v1028 = vpop.permute.xlu0 %1027
        %1029 = vrot.lane.b32.xlu0 %v808, 4
        %v1030 = vpop.permute.xlu0 %1029
        %1031 = vrot.lane.b32.xlu0 %v810, 4
        %v1032 = vpop.permute.xlu0 %1031
        %1033 = vrot.lane.b32.xlu0 %v812, 4
        %v1034 = vpop.permute.xlu0 %1033
        %1035 = vrot.lane.b32.xlu0 %v814, 4
        %v1036 = vpop.permute.xlu0 %1035
        %1037 = vrot.lane.b32.xlu0 %v816, 4
        %v1038 = vpop.permute.xlu0 %1037
        %1039 = vrot.lane.b32.xlu0 %v818, 4
        %v1040 = vpop.permute.xlu0 %1039
        %1041 = vrot.lane.b32.xlu0 %v820, 4
        %v1042 = vpop.permute.xlu0 %1041
        %1043 = vrot.lane.b32.xlu0 %v822, 4
        %v1044 = vpop.permute.xlu0 %1043
        %1045 = vrot.lane.b32.xlu0 %v824, 4
        %v1046 = vpop.permute.xlu0 %1045
        %1047 = vrot.lane.b32.xlu0 %v826, 4
        %v1048 = vpop.permute.xlu0 %1047
        %1049 = vrot.lane.b32.xlu0 %v828, 4
        %v1050 = vpop.permute.xlu0 %1049
        %1051 = vrot.lane.b32.xlu0 %v830, 4
        %v1052 = vpop.permute.xlu0 %1051
        %1053 = vrot.lane.b32.xlu0 %v832, 4
        %v1054 = vpop.permute.xlu0 %1053
        %1055 = vrot.lane.b32.xlu0 %v834, 4
        %v1056 = vpop.permute.xlu0 %1055
        %1057 = vrot.lane.b32.xlu0 %v836, 4
        %v1058 = vpop.permute.xlu0 %1057
        %1059 = vrot.lane.b32.xlu0 %v838, 4
        %v1060 = vpop.permute.xlu0 %1059
        %1061 = vrot.lane.b32.xlu0 %v840, 4
        %v1062 = vpop.permute.xlu0 %1061
        %1063 = vrot.lane.b32.xlu0 %v842, 4
        %v1064 = vpop.permute.xlu0 %1063
        %1065 = vrot.lane.b32.xlu0 %v844, 4
        %v1066 = vpop.permute.xlu0 %1065
        %1067 = vrot.lane.b32.xlu0 %v846, 4
        %v1068 = vpop.permute.xlu0 %1067
        %1069 = vrot.lane.b32.xlu0 %v848, 4
        %v1070 = vpop.permute.xlu0 %1069
        %1071 = vrot.lane.b32.xlu0 %v847, 4
        %v1072 = vpop.permute.xlu0 %1071
        %vm1185 = vcmask 1045504
        %v1186 = vrot.slane %v385, 2
        %v1187 = vrot.slane %v386, 2
        %v1188 = vsel %vm1185, %v1186, %v1187
        %v1189 = vrot.slane %v387, 2
        %v1190 = vsel %vm1185, %v1187, %v1189
        %v1191 = vrot.slane %v388, 2
        %v1192 = vsel %vm1185, %v1189, %v1191
        %v1193 = vrot.slane %v389, 2
        %v1194 = vsel %vm1185, %v1191, %v1193
        %v1195 = vrot.slane %v390, 2
        %v1196 = vsel %vm1185, %v1193, %v1195
        %v1197 = vrot.slane %v391, 2
        %v1198 = vsel %vm1185, %v1195, %v1197
        %v1199 = vrot.slane %v392, 2
        %v1200 = vsel %vm1185, %v1197, %v1199
        %v1201 = vrot.slane %v393, 2
        %v1202 = vsel %vm1185, %v1199, %v1201
        %v1203 = vrot.slane %v394, 2
        %v1204 = vsel %vm1185, %v1201, %v1203
        %v1205 = vrot.slane %v395, 2
        %v1206 = vsel %vm1185, %v1203, %v1205
        %v1207 = vrot.slane %v396, 2
        %v1208 = vsel %vm1185, %v1205, %v1207
        %v1209 = vrot.slane %v397, 2
        %v1210 = vsel %vm1185, %v1207, %v1209
        %v1211 = vrot.slane %v398, 2
        %v1212 = vsel %vm1185, %v1209, %v1211
        %v1213 = vrot.slane %v399, 2
        %v1214 = vsel %vm1185, %v1211, %v1213
        %v1215 = vrot.slane %v400, 2
        %v1216 = vsel %vm1185, %v1213, %v1215
        %v1217 = vrot.slane %v401, 2
        %v1218 = vsel %vm1185, %v1215, %v1217
        %v1219 = vrot.slane %v402, 2
        %v1220 = vsel %vm1185, %v1217, %v1219
        %v1221 = vrot.slane %v403, 2
        %v1222 = vsel %vm1185, %v1219, %v1221
        %v1223 = vrot.slane %v404, 2
        %v1224 = vsel %vm1185, %v1221, %v1223
        %v1225 = vrot.slane %v405, 2
        %v1226 = vsel %vm1185, %v1223, %v1225
        %v1227 = vrot.slane %v406, 2
        %v1228 = vsel %vm1185, %v1225, %v1227
        %v1229 = vrot.slane %v407, 2
        %v1230 = vsel %vm1185, %v1227, %v1229
        %v1231 = vrot.slane %v408, 2
        %v1232 = vsel %vm1185, %v1229, %v1231
        %v1233 = vrot.slane %v409, 2
        %v1234 = vsel %vm1185, %v1231, %v1233
        %v1235 = vrot.slane %v410, 2
        %v1236 = vsel %vm1185, %v1233, %v1235
        %v1237 = vrot.slane %v411, 2
        %v1238 = vsel %vm1185, %v1235, %v1237
        %v1239 = vrot.slane %v412, 2
        %v1240 = vsel %vm1185, %v1237, %v1239
        %v1241 = vrot.slane %v413, 2
        %v1242 = vsel %vm1185, %v1239, %v1241
        %v1243 = vrot.slane %v414, 2
        %v1244 = vsel %vm1185, %v1241, %v1243
        %v1245 = vrot.slane %v415, 2
        %v1246 = vsel %vm1185, %v1243, %v1245
        %v1247 = vrot.slane %v416, 2
        %v1248 = vsel %vm1185, %v1245, %v1247
        %v1249 = vrot.slane %v417, 2
        %v1250 = vsel %vm1185, %v1247, %v1249
        %v1251 = vrot.slane %v418, 2
        %v1252 = vsel %vm1185, %v1249, %v1251
        %v1253 = vrot.slane %v419, 2
        %v1254 = vsel %vm1185, %v1251, %v1253
        %v1255 = vrot.slane %v420, 2
        %v1256 = vsel %vm1185, %v1253, %v1255
        %v1257 = vrot.slane %v421, 2
        %v1258 = vsel %vm1185, %v1255, %v1257
        %v1259 = vrot.slane %v422, 2
        %v1260 = vsel %vm1185, %v1257, %v1259
        %v1261 = vrot.slane %v423, 2
        %v1262 = vsel %vm1185, %v1259, %v1261
        %v1263 = vrot.slane %v424, 2
        %v1264 = vsel %vm1185, %v1261, %v1263
        %v1265 = vrot.slane %v425, 2
        %v1266 = vsel %vm1185, %v1263, %v1265
        %v1267 = vrot.slane %v426, 2
        %v1268 = vsel %vm1185, %v1265, %v1267
        %v1269 = vrot.slane %v427, 2
        %v1270 = vsel %vm1185, %v1267, %v1269
        %v1271 = vrot.slane %v428, 2
        %v1272 = vsel %vm1185, %v1269, %v1271
        %v1273 = vrot.slane %v429, 2
        %v1274 = vsel %vm1185, %v1271, %v1273
        %v1275 = vrot.slane %v430, 2
        %v1276 = vsel %vm1185, %v1273, %v1275
        %v1277 = vrot.slane %v431, 2
        %v1278 = vsel %vm1185, %v1275, %v1277
        %v1279 = vrot.slane %v432, 2
        %v1280 = vsel %vm1185, %v1277, %v1279
        %v1281 = vrot.slane %v433, 2
        %v1282 = vsel %vm1185, %v1279, %v1281
        %v1283 = vrot.slane %v434, 2
        %v1284 = vsel %vm1185, %v1281, %v1283
        %v1285 = vrot.slane %v435, 2
        %v1286 = vsel %vm1185, %v1283, %v1285
        %v1287 = vrot.slane %v436, 2
        %v1288 = vsel %vm1185, %v1285, %v1287
        %v1289 = vrot.slane %v437, 2
        %v1290 = vsel %vm1185, %v1287, %v1289
        %v1291 = vrot.slane %v438, 2
        %v1292 = vsel %vm1185, %v1289, %v1291
        %v1293 = vrot.slane %v439, 2
        %v1294 = vsel %vm1185, %v1291, %v1293
        %v1295 = vrot.slane %v440, 2
        %v1296 = vsel %vm1185, %v1293, %v1295
        %v1297 = vrot.slane %v441, 2
        %v1298 = vsel %vm1185, %v1295, %v1297
        %v1299 = vrot.slane %v442, 2
        %v1300 = vsel %vm1185, %v1297, %v1299
        %v1301 = vrot.slane %v443, 2
        %v1302 = vsel %vm1185, %v1299, %v1301
        %v1303 = vrot.slane %v444, 2
        %v1304 = vsel %vm1185, %v1301, %v1303
        %v1305 = vrot.slane %v445, 2
        %v1306 = vsel %vm1185, %v1303, %v1305
        %v1307 = vrot.slane %v446, 2
        %v1308 = vsel %vm1185, %v1305, %v1307
        %v1309 = vrot.slane %v447, 2
        %v1310 = vsel %vm1185, %v1307, %v1309
        %v1311 = vrot.slane %v448, 2
        %v1312 = vsel %vm1185, %v1309, %v1311
        %v1313 = vrot.slane %v449, 2
        %v1314 = vsel %vm1185, %v1311, %v1313
        %v1315 = vrot.slane %v450, 2
        %v1316 = vsel %vm1185, %v1313, %v1315
        %v1317 = vrot.slane %v451, 2
        %v1318 = vsel %vm1185, %v1315, %v1317
        %v1319 = vrot.slane %v452, 2
        %v1320 = vsel %vm1185, %v1317, %v1319
        %v1321 = vrot.slane %v453, 2
        %v1322 = vsel %vm1185, %v1319, %v1321
        %v1323 = vrot.slane %v454, 2
        %v1324 = vsel %vm1185, %v1321, %v1323
        %v1325 = vrot.slane %v455, 2
        %v1326 = vsel %vm1185, %v1323, %v1325
        %v1327 = vrot.slane %v456, 2
        %v1328 = vsel %vm1185, %v1325, %v1327
        %v1329 = vrot.slane %v457, 2
        %v1330 = vsel %vm1185, %v1327, %v1329
        %v1331 = vrot.slane %v458, 2
        %v1332 = vsel %vm1185, %v1329, %v1331
        %v1333 = vrot.slane %v459, 2
        %v1334 = vsel %vm1185, %v1331, %v1333
        %v1335 = vrot.slane %v460, 2
        %v1336 = vsel %vm1185, %v1333, %v1335
        %v1337 = vrot.slane %v461, 2
        %v1338 = vsel %vm1185, %v1335, %v1337
        %v1339 = vrot.slane %v462, 2
        %v1340 = vsel %vm1185, %v1337, %v1339
        %v1341 = vrot.slane %v463, 2
        %v1342 = vsel %vm1185, %v1339, %v1341
        %v1343 = vrot.slane %v464, 2
        %v1344 = vsel %vm1185, %v1341, %v1343
        %v1345 = vrot.slane %v465, 2
        %v1346 = vsel %vm1185, %v1343, %v1345
        %v1347 = vrot.slane %v466, 2
        %v1348 = vsel %vm1185, %v1345, %v1347
        %v1349 = vrot.slane %v467, 2
        %v1350 = vsel %vm1185, %v1347, %v1349
        %v1351 = vrot.slane %v468, 2
        %v1352 = vsel %vm1185, %v1349, %v1351
        %v1353 = vrot.slane %v469, 2
        %v1354 = vsel %vm1185, %v1351, %v1353
        %v1355 = vrot.slane %v470, 2
        %v1356 = vsel %vm1185, %v1353, %v1355
        %v1357 = vrot.slane %v471, 2
        %v1358 = vsel %vm1185, %v1355, %v1357
        %v1359 = vrot.slane %v472, 2
        %v1360 = vsel %vm1185, %v1357, %v1359
        %v1361 = vrot.slane %v473, 2
        %v1362 = vsel %vm1185, %v1359, %v1361
        %v1363 = vrot.slane %v474, 2
        %v1364 = vsel %vm1185, %v1361, %v1363
        %v1365 = vrot.slane %v475, 2
        %v1366 = vsel %vm1185, %v1363, %v1365
        %v1367 = vrot.slane %v476, 2
        %v1368 = vsel %vm1185, %v1365, %v1367
        %v1369 = vrot.slane %v477, 2
        %v1370 = vsel %vm1185, %v1367, %v1369
        %v1371 = vrot.slane %v478, 2
        %v1372 = vsel %vm1185, %v1369, %v1371
        %v1373 = vrot.slane %v479, 2
        %v1374 = vsel %vm1185, %v1371, %v1373
        %v1375 = vrot.slane %v480, 2
        %v1376 = vsel %vm1185, %v1373, %v1375
        %v1377 = vrot.slane %v481, 2
        %v1378 = vsel %vm1185, %v1375, %v1377
        %v1379 = vrot.slane %v482, 2
        %v1380 = vsel %vm1185, %v1377, %v1379
        %v1381 = vrot.slane %v483, 2
        %v1382 = vsel %vm1185, %v1379, %v1381
        %v1383 = vrot.slane %v484, 2
        %v1384 = vsel %vm1185, %v1381, %v1383
        %v1385 = vrot.slane %v485, 2
        %v1386 = vsel %vm1185, %v1383, %v1385
        %v1387 = vrot.slane %v486, 2
        %v1388 = vsel %vm1185, %v1385, %v1387
        %v1389 = vrot.slane %v487, 2
        %v1390 = vsel %vm1185, %v1387, %v1389
        %v1391 = vrot.slane %v488, 2
        %v1392 = vsel %vm1185, %v1389, %v1391
        %v1393 = vrot.slane %v489, 2
        %v1394 = vsel %vm1185, %v1391, %v1393
        %v1395 = vrot.slane %v490, 2
        %v1396 = vsel %vm1185, %v1393, %v1395
        %v1397 = vrot.slane %v491, 2
        %v1398 = vsel %vm1185, %v1395, %v1397
        %v1399 = vrot.slane %v492, 2
        %v1400 = vsel %vm1185, %v1397, %v1399
        %v1401 = vrot.slane %v493, 2
        %v1402 = vsel %vm1185, %v1399, %v1401
        %v1403 = vrot.slane %v494, 2
        %v1404 = vsel %vm1185, %v1401, %v1403
        %v1405 = vrot.slane %v495, 2
        %v1406 = vsel %vm1185, %v1403, %v1405
        %v1407 = vrot.slane %v496, 2
        %v1408 = vsel %vm1185, %v1405, %v1407
        %1409 = vrot.lane.b32.xlu0 %v1188, 8
        %v1410 = vpop.permute.xlu0 %1409
        %1411 = vrot.lane.b32.xlu0 %v1190, 8
        %v1412 = vpop.permute.xlu0 %1411
        %1413 = vrot.lane.b32.xlu0 %v1192, 8
        %v1414 = vpop.permute.xlu0 %1413
        %1415 = vrot.lane.b32.xlu0 %v1194, 8
        %v1416 = vpop.permute.xlu0 %1415
        %1417 = vrot.lane.b32.xlu0 %v1196, 8
        %v1418 = vpop.permute.xlu0 %1417
        %1419 = vrot.lane.b32.xlu0 %v1198, 8
        %v1420 = vpop.permute.xlu0 %1419
        %1421 = vrot.lane.b32.xlu0 %v1200, 8
        %v1422 = vpop.permute.xlu0 %1421
        %1423 = vrot.lane.b32.xlu0 %v1202, 8
        %v1424 = vpop.permute.xlu0 %1423
        %1425 = vrot.lane.b32.xlu0 %v1204, 8
        %v1426 = vpop.permute.xlu0 %1425
        %1427 = vrot.lane.b32.xlu0 %v1206, 8
        %v1428 = vpop.permute.xlu0 %1427
        %1429 = vrot.lane.b32.xlu0 %v1208, 8
        %v1430 = vpop.permute.xlu0 %1429
        %1431 = vrot.lane.b32.xlu0 %v1210, 8
        %v1432 = vpop.permute.xlu0 %1431
        %1433 = vrot.lane.b32.xlu0 %v1212, 8
        %v1434 = vpop.permute.xlu0 %1433
        %1435 = vrot.lane.b32.xlu0 %v1214, 8
        %v1436 = vpop.permute.xlu0 %1435
        %1437 = vrot.lane.b32.xlu0 %v1216, 8
        %v1438 = vpop.permute.xlu0 %1437
        %1439 = vrot.lane.b32.xlu0 %v1218, 8
        %v1440 = vpop.permute.xlu0 %1439
        %1441 = vrot.lane.b32.xlu0 %v1220, 8
        %v1442 = vpop.permute.xlu0 %1441
        %1443 = vrot.lane.b32.xlu0 %v1222, 8
        %v1444 = vpop.permute.xlu0 %1443
        %1445 = vrot.lane.b32.xlu0 %v1224, 8
        %v1446 = vpop.permute.xlu0 %1445
        %1447 = vrot.lane.b32.xlu0 %v1226, 8
        %v1448 = vpop.permute.xlu0 %1447
        %1449 = vrot.lane.b32.xlu0 %v1228, 8
        %v1450 = vpop.permute.xlu0 %1449
        %1451 = vrot.lane.b32.xlu0 %v1230, 8
        %v1452 = vpop.permute.xlu0 %1451
        %1453 = vrot.lane.b32.xlu0 %v1232, 8
        %v1454 = vpop.permute.xlu0 %1453
        %1455 = vrot.lane.b32.xlu0 %v1234, 8
        %v1456 = vpop.permute.xlu0 %1455
        %1457 = vrot.lane.b32.xlu0 %v1236, 8
        %v1458 = vpop.permute.xlu0 %1457
        %1459 = vrot.lane.b32.xlu0 %v1238, 8
        %v1460 = vpop.permute.xlu0 %1459
        %1461 = vrot.lane.b32.xlu0 %v1240, 8
        %v1462 = vpop.permute.xlu0 %1461
        %1463 = vrot.lane.b32.xlu0 %v1242, 8
        %v1464 = vpop.permute.xlu0 %1463
        %1465 = vrot.lane.b32.xlu0 %v1244, 8
        %v1466 = vpop.permute.xlu0 %1465
        %1467 = vrot.lane.b32.xlu0 %v1246, 8
        %v1468 = vpop.permute.xlu0 %1467
        %1469 = vrot.lane.b32.xlu0 %v1248, 8
        %v1470 = vpop.permute.xlu0 %1469
        %1471 = vrot.lane.b32.xlu0 %v1250, 8
        %v1472 = vpop.permute.xlu0 %1471
        %1473 = vrot.lane.b32.xlu0 %v1252, 8
        %v1474 = vpop.permute.xlu0 %1473
        %1475 = vrot.lane.b32.xlu0 %v1254, 8
        %v1476 = vpop.permute.xlu0 %1475
        %1477 = vrot.lane.b32.xlu0 %v1256, 8
        %v1478 = vpop.permute.xlu0 %1477
        %1479 = vrot.lane.b32.xlu0 %v1258, 8
        %v1480 = vpop.permute.xlu0 %1479
        %1481 = vrot.lane.b32.xlu0 %v1260, 8
        %v1482 = vpop.permute.xlu0 %1481
        %1483 = vrot.lane.b32.xlu0 %v1262, 8
        %v1484 = vpop.permute.xlu0 %1483
        %1485 = vrot.lane.b32.xlu0 %v1264, 8
        %v1486 = vpop.permute.xlu0 %1485
        %1487 = vrot.lane.b32.xlu0 %v1266, 8
        %v1488 = vpop.permute.xlu0 %1487
        %1489 = vrot.lane.b32.xlu0 %v1268, 8
        %v1490 = vpop.permute.xlu0 %1489
        %1491 = vrot.lane.b32.xlu0 %v1270, 8
        %v1492 = vpop.permute.xlu0 %1491
        %1493 = vrot.lane.b32.xlu0 %v1272, 8
        %v1494 = vpop.permute.xlu0 %1493
        %1495 = vrot.lane.b32.xlu0 %v1274, 8
        %v1496 = vpop.permute.xlu0 %1495
        %1497 = vrot.lane.b32.xlu0 %v1276, 8
        %v1498 = vpop.permute.xlu0 %1497
        %1499 = vrot.lane.b32.xlu0 %v1278, 8
        %v1500 = vpop.permute.xlu0 %1499
        %1501 = vrot.lane.b32.xlu0 %v1280, 8
        %v1502 = vpop.permute.xlu0 %1501
        %1503 = vrot.lane.b32.xlu0 %v1282, 8
        %v1504 = vpop.permute.xlu0 %1503
        %1505 = vrot.lane.b32.xlu0 %v1284, 8
        %v1506 = vpop.permute.xlu0 %1505
        %1507 = vrot.lane.b32.xlu0 %v1286, 8
        %v1508 = vpop.permute.xlu0 %1507
        %1509 = vrot.lane.b32.xlu0 %v1288, 8
        %v1510 = vpop.permute.xlu0 %1509
        %1511 = vrot.lane.b32.xlu0 %v1290, 8
        %v1512 = vpop.permute.xlu0 %1511
        %1513 = vrot.lane.b32.xlu0 %v1292, 8
        %v1514 = vpop.permute.xlu0 %1513
        %1515 = vrot.lane.b32.xlu0 %v1294, 8
        %v1516 = vpop.permute.xlu0 %1515
        %1517 = vrot.lane.b32.xlu0 %v1296, 8
        %v1518 = vpop.permute.xlu0 %1517
        %1519 = vrot.lane.b32.xlu0 %v1298, 8
        %v1520 = vpop.permute.xlu0 %1519
        %1521 = vrot.lane.b32.xlu0 %v1300, 8
        %v1522 = vpop.permute.xlu0 %1521
        %1523 = vrot.lane.b32.xlu0 %v1302, 8
        %v1524 = vpop.permute.xlu0 %1523
        %1525 = vrot.lane.b32.xlu0 %v1304, 8
        %v1526 = vpop.permute.xlu0 %1525
        %1527 = vrot.lane.b32.xlu0 %v1306, 8
        %v1528 = vpop.permute.xlu0 %1527
        %1529 = vrot.lane.b32.xlu0 %v1308, 8
        %v1530 = vpop.permute.xlu0 %1529
        %1531 = vrot.lane.b32.xlu0 %v1310, 8
        %v1532 = vpop.permute.xlu0 %1531
        %1533 = vrot.lane.b32.xlu0 %v1312, 8
        %v1534 = vpop.permute.xlu0 %1533
        %1535 = vrot.lane.b32.xlu0 %v1314, 8
        %v1536 = vpop.permute.xlu0 %1535
        %1537 = vrot.lane.b32.xlu0 %v1316, 8
        %v1538 = vpop.permute.xlu0 %1537
        %1539 = vrot.lane.b32.xlu0 %v1318, 8
        %v1540 = vpop.permute.xlu0 %1539
        %1541 = vrot.lane.b32.xlu0 %v1320, 8
        %v1542 = vpop.permute.xlu0 %1541
        %1543 = vrot.lane.b32.xlu0 %v1322, 8
        %v1544 = vpop.permute.xlu0 %1543
        %1545 = vrot.lane.b32.xlu0 %v1324, 8
        %v1546 = vpop.permute.xlu0 %1545
        %1547 = vrot.lane.b32.xlu0 %v1326, 8
        %v1548 = vpop.permute.xlu0 %1547
        %1549 = vrot.lane.b32.xlu0 %v1328, 8
        %v1550 = vpop.permute.xlu0 %1549
        %1551 = vrot.lane.b32.xlu0 %v1330, 8
        %v1552 = vpop.permute.xlu0 %1551
        %1553 = vrot.lane.b32.xlu0 %v1332, 8
        %v1554 = vpop.permute.xlu0 %1553
        %1555 = vrot.lane.b32.xlu0 %v1334, 8
        %v1556 = vpop.permute.xlu0 %1555
        %1557 = vrot.lane.b32.xlu0 %v1336, 8
        %v1558 = vpop.permute.xlu0 %1557
        %1559 = vrot.lane.b32.xlu0 %v1338, 8
        %v1560 = vpop.permute.xlu0 %1559
        %1561 = vrot.lane.b32.xlu0 %v1340, 8
        %v1562 = vpop.permute.xlu0 %1561
        %1563 = vrot.lane.b32.xlu0 %v1342, 8
        %v1564 = vpop.permute.xlu0 %1563
        %1565 = vrot.lane.b32.xlu0 %v1344, 8
        %v1566 = vpop.permute.xlu0 %1565
        %1567 = vrot.lane.b32.xlu0 %v1346, 8
        %v1568 = vpop.permute.xlu0 %1567
        %1569 = vrot.lane.b32.xlu0 %v1348, 8
        %v1570 = vpop.permute.xlu0 %1569
        %1571 = vrot.lane.b32.xlu0 %v1350, 8
        %v1572 = vpop.permute.xlu0 %1571
        %1573 = vrot.lane.b32.xlu0 %v1352, 8
        %v1574 = vpop.permute.xlu0 %1573
        %1575 = vrot.lane.b32.xlu0 %v1354, 8
        %v1576 = vpop.permute.xlu0 %1575
        %1577 = vrot.lane.b32.xlu0 %v1356, 8
        %v1578 = vpop.permute.xlu0 %1577
        %1579 = vrot.lane.b32.xlu0 %v1358, 8
        %v1580 = vpop.permute.xlu0 %1579
        %1581 = vrot.lane.b32.xlu0 %v1360, 8
        %v1582 = vpop.permute.xlu0 %1581
        %1583 = vrot.lane.b32.xlu0 %v1362, 8
        %v1584 = vpop.permute.xlu0 %1583
        %1585 = vrot.lane.b32.xlu0 %v1364, 8
        %v1586 = vpop.permute.xlu0 %1585
        %1587 = vrot.lane.b32.xlu0 %v1366, 8
        %v1588 = vpop.permute.xlu0 %1587
        %1589 = vrot.lane.b32.xlu0 %v1368, 8
        %v1590 = vpop.permute.xlu0 %1589
        %1591 = vrot.lane.b32.xlu0 %v1370, 8
        %v1592 = vpop.permute.xlu0 %1591
        %1593 = vrot.lane.b32.xlu0 %v1372, 8
        %v1594 = vpop.permute.xlu0 %1593
        %1595 = vrot.lane.b32.xlu0 %v1374, 8
        %v1596 = vpop.permute.xlu0 %1595
        %1597 = vrot.lane.b32.xlu0 %v1376, 8
        %v1598 = vpop.permute.xlu0 %1597
        %1599 = vrot.lane.b32.xlu0 %v1378, 8
        %v1600 = vpop.permute.xlu0 %1599
        %1601 = vrot.lane.b32.xlu0 %v1380, 8
        %v1602 = vpop.permute.xlu0 %1601
        %1603 = vrot.lane.b32.xlu0 %v1382, 8
        %v1604 = vpop.permute.xlu0 %1603
        %1605 = vrot.lane.b32.xlu0 %v1384, 8
        %v1606 = vpop.permute.xlu0 %1605
        %1607 = vrot.lane.b32.xlu0 %v1386, 8
        %v1608 = vpop.permute.xlu0 %1607
        %1609 = vrot.lane.b32.xlu0 %v1388, 8
        %v1610 = vpop.permute.xlu0 %1609
        %1611 = vrot.lane.b32.xlu0 %v1390, 8
        %v1612 = vpop.permute.xlu0 %1611
        %1613 = vrot.lane.b32.xlu0 %v1392, 8
        %v1614 = vpop.permute.xlu0 %1613
        %1615 = vrot.lane.b32.xlu0 %v1394, 8
        %v1616 = vpop.permute.xlu0 %1615
        %1617 = vrot.lane.b32.xlu0 %v1396, 8
        %v1618 = vpop.permute.xlu0 %1617
        %1619 = vrot.lane.b32.xlu0 %v1398, 8
        %v1620 = vpop.permute.xlu0 %1619
        %1621 = vrot.lane.b32.xlu0 %v1400, 8
        %v1622 = vpop.permute.xlu0 %1621
        %1623 = vrot.lane.b32.xlu0 %v1402, 8
        %v1624 = vpop.permute.xlu0 %1623
        %1625 = vrot.lane.b32.xlu0 %v1404, 8
        %v1626 = vpop.permute.xlu0 %1625
        %1627 = vrot.lane.b32.xlu0 %v1406, 8
        %v1628 = vpop.permute.xlu0 %1627
        %1629 = vrot.lane.b32.xlu0 %v1408, 8
        %v1630 = vpop.permute.xlu0 %1629
        %1631 = vrot.lane.b32.xlu0 %v1407, 8
        %v1632 = vpop.permute.xlu0 %1631
        %vm1745 = vcmask 1044480
        %v1746 = vrot.slane %v385, 3
        %v1747 = vrot.slane %v386, 3
        %v1748 = vsel %vm1745, %v1746, %v1747
        %v1749 = vrot.slane %v387, 3
        %v1750 = vsel %vm1745, %v1747, %v1749
        %v1751 = vrot.slane %v388, 3
        %v1752 = vsel %vm1745, %v1749, %v1751
        %v1753 = vrot.slane %v389, 3
        %v1754 = vsel %vm1745, %v1751, %v1753
        %v1755 = vrot.slane %v390, 3
        %v1756 = vsel %vm1745, %v1753, %v1755
        %v1757 = vrot.slane %v391, 3
        %v1758 = vsel %vm1745, %v1755, %v1757
        %v1759 = vrot.slane %v392, 3
        %v1760 = vsel %vm1745, %v1757, %v1759
        %v1761 = vrot.slane %v393, 3
        %v1762 = vsel %vm1745, %v1759, %v1761
        %v1763 = vrot.slane %v394, 3
        %v1764 = vsel %vm1745, %v1761, %v1763
        %v1765 = vrot.slane %v395, 3
        %v1766 = vsel %vm1745, %v1763, %v1765
        %v1767 = vrot.slane %v396, 3
        %v1768 = vsel %vm1745, %v1765, %v1767
        %v1769 = vrot.slane %v397, 3
        %v1770 = vsel %vm1745, %v1767, %v1769
        %v1771 = vrot.slane %v398, 3
        %v1772 = vsel %vm1745, %v1769, %v1771
        %v1773 = vrot.slane %v399, 3
        %v1774 = vsel %vm1745, %v1771, %v1773
        %v1775 = vrot.slane %v400, 3
        %v1776 = vsel %vm1745, %v1773, %v1775
        %v1777 = vrot.slane %v401, 3
        %v1778 = vsel %vm1745, %v1775, %v1777
        %v1779 = vrot.slane %v402, 3
        %v1780 = vsel %vm1745, %v1777, %v1779
        %v1781 = vrot.slane %v403, 3
        %v1782 = vsel %vm1745, %v1779, %v1781
        %v1783 = vrot.slane %v404, 3
        %v1784 = vsel %vm1745, %v1781, %v1783
        %v1785 = vrot.slane %v405, 3
        %v1786 = vsel %vm1745, %v1783, %v1785
        %v1787 = vrot.slane %v406, 3
        %v1788 = vsel %vm1745, %v1785, %v1787
        %v1789 = vrot.slane %v407, 3
        %v1790 = vsel %vm1745, %v1787, %v1789
        %v1791 = vrot.slane %v408, 3
        %v1792 = vsel %vm1745, %v1789, %v1791
        %v1793 = vrot.slane %v409, 3
        %v1794 = vsel %vm1745, %v1791, %v1793
        %v1795 = vrot.slane %v410, 3
        %v1796 = vsel %vm1745, %v1793, %v1795
        %v1797 = vrot.slane %v411, 3
        %v1798 = vsel %vm1745, %v1795, %v1797
        %v1799 = vrot.slane %v412, 3
        %v1800 = vsel %vm1745, %v1797, %v1799
        %v1801 = vrot.slane %v413, 3
        %v1802 = vsel %vm1745, %v1799, %v1801
        %v1803 = vrot.slane %v414, 3
        %v1804 = vsel %vm1745, %v1801, %v1803
        %v1805 = vrot.slane %v415, 3
        %v1806 = vsel %vm1745, %v1803, %v1805
        %v1807 = vrot.slane %v416, 3
        %v1808 = vsel %vm1745, %v1805, %v1807
        %v1809 = vrot.slane %v417, 3
        %v1810 = vsel %vm1745, %v1807, %v1809
        %v1811 = vrot.slane %v418, 3
        %v1812 = vsel %vm1745, %v1809, %v1811
        %v1813 = vrot.slane %v419, 3
        %v1814 = vsel %vm1745, %v1811, %v1813
        %v1815 = vrot.slane %v420, 3
        %v1816 = vsel %vm1745, %v1813, %v1815
        %v1817 = vrot.slane %v421, 3
        %v1818 = vsel %vm1745, %v1815, %v1817
        %v1819 = vrot.slane %v422, 3
        %v1820 = vsel %vm1745, %v1817, %v1819
        %v1821 = vrot.slane %v423, 3
        %v1822 = vsel %vm1745, %v1819, %v1821
        %v1823 = vrot.slane %v424, 3
        %v1824 = vsel %vm1745, %v1821, %v1823
        %v1825 = vrot.slane %v425, 3
        %v1826 = vsel %vm1745, %v1823, %v1825
        %v1827 = vrot.slane %v426, 3
        %v1828 = vsel %vm1745, %v1825, %v1827
        %v1829 = vrot.slane %v427, 3
        %v1830 = vsel %vm1745, %v1827, %v1829
        %v1831 = vrot.slane %v428, 3
        %v1832 = vsel %vm1745, %v1829, %v1831
        %v1833 = vrot.slane %v429, 3
        %v1834 = vsel %vm1745, %v1831, %v1833
        %v1835 = vrot.slane %v430, 3
        %v1836 = vsel %vm1745, %v1833, %v1835
        %v1837 = vrot.slane %v431, 3
        %v1838 = vsel %vm1745, %v1835, %v1837
        %v1839 = vrot.slane %v432, 3
        %v1840 = vsel %vm1745, %v1837, %v1839
        %v1841 = vrot.slane %v433, 3
        %v1842 = vsel %vm1745, %v1839, %v1841
        %v1843 = vrot.slane %v434, 3
        %v1844 = vsel %vm1745, %v1841, %v1843
        %v1845 = vrot.slane %v435, 3
        %v1846 = vsel %vm1745, %v1843, %v1845
        %v1847 = vrot.slane %v436, 3
        %v1848 = vsel %vm1745, %v1845, %v1847
        %v1849 = vrot.slane %v437, 3
        %v1850 = vsel %vm1745, %v1847, %v1849
        %v1851 = vrot.slane %v438, 3
        %v1852 = vsel %vm1745, %v1849, %v1851
        %v1853 = vrot.slane %v439, 3
        %v1854 = vsel %vm1745, %v1851, %v1853
        %v1855 = vrot.slane %v440, 3
        %v1856 = vsel %vm1745, %v1853, %v1855
        %v1857 = vrot.slane %v441, 3
        %v1858 = vsel %vm1745, %v1855, %v1857
        %v1859 = vrot.slane %v442, 3
        %v1860 = vsel %vm1745, %v1857, %v1859
        %v1861 = vrot.slane %v443, 3
        %v1862 = vsel %vm1745, %v1859, %v1861
        %v1863 = vrot.slane %v444, 3
        %v1864 = vsel %vm1745, %v1861, %v1863
        %v1865 = vrot.slane %v445, 3
        %v1866 = vsel %vm1745, %v1863, %v1865
        %v1867 = vrot.slane %v446, 3
        %v1868 = vsel %vm1745, %v1865, %v1867
        %v1869 = vrot.slane %v447, 3
        %v1870 = vsel %vm1745, %v1867, %v1869
        %v1871 = vrot.slane %v448, 3
        %v1872 = vsel %vm1745, %v1869, %v1871
        %v1873 = vrot.slane %v449, 3
        %v1874 = vsel %vm1745, %v1871, %v1873
        %v1875 = vrot.slane %v450, 3
        %v1876 = vsel %vm1745, %v1873, %v1875
        %v1877 = vrot.slane %v451, 3
        %v1878 = vsel %vm1745, %v1875, %v1877
        %v1879 = vrot.slane %v452, 3
        %v1880 = vsel %vm1745, %v1877, %v1879
        %v1881 = vrot.slane %v453, 3
        %v1882 = vsel %vm1745, %v1879, %v1881
        %v1883 = vrot.slane %v454, 3
        %v1884 = vsel %vm1745, %v1881, %v1883
        %v1885 = vrot.slane %v455, 3
        %v1886 = vsel %vm1745, %v1883, %v1885
        %v1887 = vrot.slane %v456, 3
        %v1888 = vsel %vm1745, %v1885, %v1887
        %v1889 = vrot.slane %v457, 3
        %v1890 = vsel %vm1745, %v1887, %v1889
        %v1891 = vrot.slane %v458, 3
        %v1892 = vsel %vm1745, %v1889, %v1891
        %v1893 = vrot.slane %v459, 3
        %v1894 = vsel %vm1745, %v1891, %v1893
        %v1895 = vrot.slane %v460, 3
        %v1896 = vsel %vm1745, %v1893, %v1895
        %v1897 = vrot.slane %v461, 3
        %v1898 = vsel %vm1745, %v1895, %v1897
        %v1899 = vrot.slane %v462, 3
        %v1900 = vsel %vm1745, %v1897, %v1899
        %v1901 = vrot.slane %v463, 3
        %v1902 = vsel %vm1745, %v1899, %v1901
        %v1903 = vrot.slane %v464, 3
        %v1904 = vsel %vm1745, %v1901, %v1903
        %v1905 = vrot.slane %v465, 3
        %v1906 = vsel %vm1745, %v1903, %v1905
        %v1907 = vrot.slane %v466, 3
        %v1908 = vsel %vm1745, %v1905, %v1907
        %v1909 = vrot.slane %v467, 3
        %v1910 = vsel %vm1745, %v1907, %v1909
        %v1911 = vrot.slane %v468, 3
        %v1912 = vsel %vm1745, %v1909, %v1911
        %v1913 = vrot.slane %v469, 3
        %v1914 = vsel %vm1745, %v1911, %v1913
        %v1915 = vrot.slane %v470, 3
        %v1916 = vsel %vm1745, %v1913, %v1915
        %v1917 = vrot.slane %v471, 3
        %v1918 = vsel %vm1745, %v1915, %v1917
        %v1919 = vrot.slane %v472, 3
        %v1920 = vsel %vm1745, %v1917, %v1919
        %v1921 = vrot.slane %v473, 3
        %v1922 = vsel %vm1745, %v1919, %v1921
        %v1923 = vrot.slane %v474, 3
        %v1924 = vsel %vm1745, %v1921, %v1923
        %v1925 = vrot.slane %v475, 3
        %v1926 = vsel %vm1745, %v1923, %v1925
        %v1927 = vrot.slane %v476, 3
        %v1928 = vsel %vm1745, %v1925, %v1927
        %v1929 = vrot.slane %v477, 3
        %v1930 = vsel %vm1745, %v1927, %v1929
        %v1931 = vrot.slane %v478, 3
        %v1932 = vsel %vm1745, %v1929, %v1931
        %v1933 = vrot.slane %v479, 3
        %v1934 = vsel %vm1745, %v1931, %v1933
        %v1935 = vrot.slane %v480, 3
        %v1936 = vsel %vm1745, %v1933, %v1935
        %v1937 = vrot.slane %v481, 3
        %v1938 = vsel %vm1745, %v1935, %v1937
        %v1939 = vrot.slane %v482, 3
        %v1940 = vsel %vm1745, %v1937, %v1939
        %v1941 = vrot.slane %v483, 3
        %v1942 = vsel %vm1745, %v1939, %v1941
        %v1943 = vrot.slane %v484, 3
        %v1944 = vsel %vm1745, %v1941, %v1943
        %v1945 = vrot.slane %v485, 3
        %v1946 = vsel %vm1745, %v1943, %v1945
        %v1947 = vrot.slane %v486, 3
        %v1948 = vsel %vm1745, %v1945, %v1947
        %v1949 = vrot.slane %v487, 3
        %v1950 = vsel %vm1745, %v1947, %v1949
        %v1951 = vrot.slane %v488, 3
        %v1952 = vsel %vm1745, %v1949, %v1951
        %v1953 = vrot.slane %v489, 3
        %v1954 = vsel %vm1745, %v1951, %v1953
        %v1955 = vrot.slane %v490, 3
        %v1956 = vsel %vm1745, %v1953, %v1955
        %v1957 = vrot.slane %v491, 3
        %v1958 = vsel %vm1745, %v1955, %v1957
        %v1959 = vrot.slane %v492, 3
        %v1960 = vsel %vm1745, %v1957, %v1959
        %v1961 = vrot.slane %v493, 3
        %v1962 = vsel %vm1745, %v1959, %v1961
        %v1963 = vrot.slane %v494, 3
        %v1964 = vsel %vm1745, %v1961, %v1963
        %v1965 = vrot.slane %v495, 3
        %v1966 = vsel %vm1745, %v1963, %v1965
        %v1967 = vrot.slane %v496, 3
        %v1968 = vsel %vm1745, %v1965, %v1967
        %1969 = vrot.lane.b32.xlu0 %v1748, 12
        %v1970 = vpop.permute.xlu0 %1969
        %1971 = vrot.lane.b32.xlu0 %v1750, 12
        %v1972 = vpop.permute.xlu0 %1971
        %1973 = vrot.lane.b32.xlu0 %v1752, 12
        %v1974 = vpop.permute.xlu0 %1973
        %1975 = vrot.lane.b32.xlu0 %v1754, 12
        %v1976 = vpop.permute.xlu0 %1975
        %1977 = vrot.lane.b32.xlu0 %v1756, 12
        %v1978 = vpop.permute.xlu0 %1977
        %1979 = vrot.lane.b32.xlu0 %v1758, 12
        %v1980 = vpop.permute.xlu0 %1979
        %1981 = vrot.lane.b32.xlu0 %v1760, 12
        %v1982 = vpop.permute.xlu0 %1981
        %1983 = vrot.lane.b32.xlu0 %v1762, 12
        %v1984 = vpop.permute.xlu0 %1983
        %1985 = vrot.lane.b32.xlu0 %v1764, 12
        %v1986 = vpop.permute.xlu0 %1985
        %1987 = vrot.lane.b32.xlu0 %v1766, 12
        %v1988 = vpop.permute.xlu0 %1987
        %1989 = vrot.lane.b32.xlu0 %v1768, 12
        %v1990 = vpop.permute.xlu0 %1989
        %1991 = vrot.lane.b32.xlu0 %v1770, 12
        %v1992 = vpop.permute.xlu0 %1991
        %1993 = vrot.lane.b32.xlu0 %v1772, 12
        %v1994 = vpop.permute.xlu0 %1993
        %1995 = vrot.lane.b32.xlu0 %v1774, 12
        %v1996 = vpop.permute.xlu0 %1995
        %1997 = vrot.lane.b32.xlu0 %v1776, 12
        %v1998 = vpop.permute.xlu0 %1997
        %1999 = vrot.lane.b32.xlu0 %v1778, 12
        %v2000 = vpop.permute.xlu0 %1999
        %2001 = vrot.lane.b32.xlu0 %v1780, 12
        %v2002 = vpop.permute.xlu0 %2001
        %2003 = vrot.lane.b32.xlu0 %v1782, 12
        %v2004 = vpop.permute.xlu0 %2003
        %2005 = vrot.lane.b32.xlu0 %v1784, 12
        %v2006 = vpop.permute.xlu0 %2005
        %2007 = vrot.lane.b32.xlu0 %v1786, 12
        %v2008 = vpop.permute.xlu0 %2007
        %2009 = vrot.lane.b32.xlu0 %v1788, 12
        %v2010 = vpop.permute.xlu0 %2009
        %2011 = vrot.lane.b32.xlu0 %v1790, 12
        %v2012 = vpop.permute.xlu0 %2011
        %2013 = vrot.lane.b32.xlu0 %v1792, 12
        %v2014 = vpop.permute.xlu0 %2013
        %2015 = vrot.lane.b32.xlu0 %v1794, 12
        %v2016 = vpop.permute.xlu0 %2015
        %2017 = vrot.lane.b32.xlu0 %v1796, 12
        %v2018 = vpop.permute.xlu0 %2017
        %2019 = vrot.lane.b32.xlu0 %v1798, 12
        %v2020 = vpop.permute.xlu0 %2019
        %2021 = vrot.lane.b32.xlu0 %v1800, 12
        %v2022 = vpop.permute.xlu0 %2021
        %2023 = vrot.lane.b32.xlu0 %v1802, 12
        %v2024 = vpop.permute.xlu0 %2023
        %2025 = vrot.lane.b32.xlu0 %v1804, 12
        %v2026 = vpop.permute.xlu0 %2025
        %2027 = vrot.lane.b32.xlu0 %v1806, 12
        %v2028 = vpop.permute.xlu0 %2027
        %2029 = vrot.lane.b32.xlu0 %v1808, 12
        %v2030 = vpop.permute.xlu0 %2029
        %2031 = vrot.lane.b32.xlu0 %v1810, 12
        %v2032 = vpop.permute.xlu0 %2031
        %2033 = vrot.lane.b32.xlu0 %v1812, 12
        %v2034 = vpop.permute.xlu0 %2033
        %2035 = vrot.lane.b32.xlu0 %v1814, 12
        %v2036 = vpop.permute.xlu0 %2035
        %2037 = vrot.lane.b32.xlu0 %v1816, 12
        %v2038 = vpop.permute.xlu0 %2037
        %2039 = vrot.lane.b32.xlu0 %v1818, 12
        %v2040 = vpop.permute.xlu0 %2039
        %2041 = vrot.lane.b32.xlu0 %v1820, 12
        %v2042 = vpop.permute.xlu0 %2041
        %2043 = vrot.lane.b32.xlu0 %v1822, 12
        %v2044 = vpop.permute.xlu0 %2043
        %2045 = vrot.lane.b32.xlu0 %v1824, 12
        %v2046 = vpop.permute.xlu0 %2045
        %2047 = vrot.lane.b32.xlu0 %v1826, 12
        %v2048 = vpop.permute.xlu0 %2047
        %2049 = vrot.lane.b32.xlu0 %v1828, 12
        %v2050 = vpop.permute.xlu0 %2049
        %2051 = vrot.lane.b32.xlu0 %v1830, 12
        %v2052 = vpop.permute.xlu0 %2051
        %2053 = vrot.lane.b32.xlu0 %v1832, 12
        %v2054 = vpop.permute.xlu0 %2053
        %2055 = vrot.lane.b32.xlu0 %v1834, 12
        %v2056 = vpop.permute.xlu0 %2055
        %2057 = vrot.lane.b32.xlu0 %v1836, 12
        %v2058 = vpop.permute.xlu0 %2057
        %2059 = vrot.lane.b32.xlu0 %v1838, 12
        %v2060 = vpop.permute.xlu0 %2059
        %2061 = vrot.lane.b32.xlu0 %v1840, 12
        %v2062 = vpop.permute.xlu0 %2061
        %2063 = vrot.lane.b32.xlu0 %v1842, 12
        %v2064 = vpop.permute.xlu0 %2063
        %2065 = vrot.lane.b32.xlu0 %v1844, 12
        %v2066 = vpop.permute.xlu0 %2065
        %2067 = vrot.lane.b32.xlu0 %v1846, 12
        %v2068 = vpop.permute.xlu0 %2067
        %2069 = vrot.lane.b32.xlu0 %v1848, 12
        %v2070 = vpop.permute.xlu0 %2069
        %2071 = vrot.lane.b32.xlu0 %v1850, 12
        %v2072 = vpop.permute.xlu0 %2071
        %2073 = vrot.lane.b32.xlu0 %v1852, 12
        %v2074 = vpop.permute.xlu0 %2073
        %2075 = vrot.lane.b32.xlu0 %v1854, 12
        %v2076 = vpop.permute.xlu0 %2075
        %2077 = vrot.lane.b32.xlu0 %v1856, 12
        %v2078 = vpop.permute.xlu0 %2077
        %2079 = vrot.lane.b32.xlu0 %v1858, 12
        %v2080 = vpop.permute.xlu0 %2079
        %2081 = vrot.lane.b32.xlu0 %v1860, 12
        %v2082 = vpop.permute.xlu0 %2081
        %2083 = vrot.lane.b32.xlu0 %v1862, 12
        %v2084 = vpop.permute.xlu0 %2083
        %2085 = vrot.lane.b32.xlu0 %v1864, 12
        %v2086 = vpop.permute.xlu0 %2085
        %2087 = vrot.lane.b32.xlu0 %v1866, 12
        %v2088 = vpop.permute.xlu0 %2087
        %2089 = vrot.lane.b32.xlu0 %v1868, 12
        %v2090 = vpop.permute.xlu0 %2089
        %2091 = vrot.lane.b32.xlu0 %v1870, 12
        %v2092 = vpop.permute.xlu0 %2091
        %2093 = vrot.lane.b32.xlu0 %v1872, 12
        %v2094 = vpop.permute.xlu0 %2093
        %2095 = vrot.lane.b32.xlu0 %v1874, 12
        %v2096 = vpop.permute.xlu0 %2095
        %2097 = vrot.lane.b32.xlu0 %v1876, 12
        %v2098 = vpop.permute.xlu0 %2097
        %2099 = vrot.lane.b32.xlu0 %v1878, 12
        %v2100 = vpop.permute.xlu0 %2099
        %2101 = vrot.lane.b32.xlu0 %v1880, 12
        %v2102 = vpop.permute.xlu0 %2101
        %2103 = vrot.lane.b32.xlu0 %v1882, 12
        %v2104 = vpop.permute.xlu0 %2103
        %2105 = vrot.lane.b32.xlu0 %v1884, 12
        %v2106 = vpop.permute.xlu0 %2105
        %2107 = vrot.lane.b32.xlu0 %v1886, 12
        %v2108 = vpop.permute.xlu0 %2107
        %2109 = vrot.lane.b32.xlu0 %v1888, 12
        %v2110 = vpop.permute.xlu0 %2109
        %2111 = vrot.lane.b32.xlu0 %v1890, 12
        %v2112 = vpop.permute.xlu0 %2111
        %2113 = vrot.lane.b32.xlu0 %v1892, 12
        %v2114 = vpop.permute.xlu0 %2113
        %2115 = vrot.lane.b32.xlu0 %v1894, 12
        %v2116 = vpop.permute.xlu0 %2115
        %2117 = vrot.lane.b32.xlu0 %v1896, 12
        %v2118 = vpop.permute.xlu0 %2117
        %2119 = vrot.lane.b32.xlu0 %v1898, 12
        %v2120 = vpop.permute.xlu0 %2119
        %2121 = vrot.lane.b32.xlu0 %v1900, 12
        %v2122 = vpop.permute.xlu0 %2121
        %2123 = vrot.lane.b32.xlu0 %v1902, 12
        %v2124 = vpop.permute.xlu0 %2123
        %2125 = vrot.lane.b32.xlu0 %v1904, 12
        %v2126 = vpop.permute.xlu0 %2125
        %2127 = vrot.lane.b32.xlu0 %v1906, 12
        %v2128 = vpop.permute.xlu0 %2127
        %2129 = vrot.lane.b32.xlu0 %v1908, 12
        %v2130 = vpop.permute.xlu0 %2129
        %2131 = vrot.lane.b32.xlu0 %v1910, 12
        %v2132 = vpop.permute.xlu0 %2131
        %2133 = vrot.lane.b32.xlu0 %v1912, 12
        %v2134 = vpop.permute.xlu0 %2133
        %2135 = vrot.lane.b32.xlu0 %v1914, 12
        %v2136 = vpop.permute.xlu0 %2135
        %2137 = vrot.lane.b32.xlu0 %v1916, 12
        %v2138 = vpop.permute.xlu0 %2137
        %2139 = vrot.lane.b32.xlu0 %v1918, 12
        %v2140 = vpop.permute.xlu0 %2139
        %2141 = vrot.lane.b32.xlu0 %v1920, 12
        %v2142 = vpop.permute.xlu0 %2141
        %2143 = vrot.lane.b32.xlu0 %v1922, 12
        %v2144 = vpop.permute.xlu0 %2143
        %2145 = vrot.lane.b32.xlu0 %v1924, 12
        %v2146 = vpop.permute.xlu0 %2145
        %2147 = vrot.lane.b32.xlu0 %v1926, 12
        %v2148 = vpop.permute.xlu0 %2147
        %2149 = vrot.lane.b32.xlu0 %v1928, 12
        %v2150 = vpop.permute.xlu0 %2149
        %2151 = vrot.lane.b32.xlu0 %v1930, 12
        %v2152 = vpop.permute.xlu0 %2151
        %2153 = vrot.lane.b32.xlu0 %v1932, 12
        %v2154 = vpop.permute.xlu0 %2153
        %2155 = vrot.lane.b32.xlu0 %v1934, 12
        %v2156 = vpop.permute.xlu0 %2155
        %2157 = vrot.lane.b32.xlu0 %v1936, 12
        %v2158 = vpop.permute.xlu0 %2157
        %2159 = vrot.lane.b32.xlu0 %v1938, 12
        %v2160 = vpop.permute.xlu0 %2159
        %2161 = vrot.lane.b32.xlu0 %v1940, 12
        %v2162 = vpop.permute.xlu0 %2161
        %2163 = vrot.lane.b32.xlu0 %v1942, 12
        %v2164 = vpop.permute.xlu0 %2163
        %2165 = vrot.lane.b32.xlu0 %v1944, 12
        %v2166 = vpop.permute.xlu0 %2165
        %2167 = vrot.lane.b32.xlu0 %v1946, 12
        %v2168 = vpop.permute.xlu0 %2167
        %2169 = vrot.lane.b32.xlu0 %v1948, 12
        %v2170 = vpop.permute.xlu0 %2169
        %2171 = vrot.lane.b32.xlu0 %v1950, 12
        %v2172 = vpop.permute.xlu0 %2171
        %2173 = vrot.lane.b32.xlu0 %v1952, 12
        %v2174 = vpop.permute.xlu0 %2173
        %2175 = vrot.lane.b32.xlu0 %v1954, 12
        %v2176 = vpop.permute.xlu0 %2175
        %2177 = vrot.lane.b32.xlu0 %v1956, 12
        %v2178 = vpop.permute.xlu0 %2177
        %2179 = vrot.lane.b32.xlu0 %v1958, 12
        %v2180 = vpop.permute.xlu0 %2179
        %2181 = vrot.lane.b32.xlu0 %v1960, 12
        %v2182 = vpop.permute.xlu0 %2181
        %2183 = vrot.lane.b32.xlu0 %v1962, 12
        %v2184 = vpop.permute.xlu0 %2183
        %2185 = vrot.lane.b32.xlu0 %v1964, 12
        %v2186 = vpop.permute.xlu0 %2185
        %2187 = vrot.lane.b32.xlu0 %v1966, 12
        %v2188 = vpop.permute.xlu0 %2187
        %2189 = vrot.lane.b32.xlu0 %v1968, 12
        %v2190 = vpop.permute.xlu0 %2189
        %2191 = vrot.lane.b32.xlu0 %v1967, 12
        %v2192 = vpop.permute.xlu0 %2191
        %vm2305 = vcmask 1043456
        %v2306 = vrot.slane %v385, 4
        %v2307 = vrot.slane %v386, 4
        %v2308 = vsel %vm2305, %v2306, %v2307
        %v2309 = vrot.slane %v387, 4
        %v2310 = vsel %vm2305, %v2307, %v2309
        %v2311 = vrot.slane %v388, 4
        %v2312 = vsel %vm2305, %v2309, %v2311
        %v2313 = vrot.slane %v389, 4
        %v2314 = vsel %vm2305, %v2311, %v2313
        %v2315 = vrot.slane %v390, 4
        %v2316 = vsel %vm2305, %v2313, %v2315
        %v2317 = vrot.slane %v391, 4
        %v2318 = vsel %vm2305, %v2315, %v2317
        %v2319 = vrot.slane %v392, 4
        %v2320 = vsel %vm2305, %v2317, %v2319
        %v2321 = vrot.slane %v393, 4
        %v2322 = vsel %vm2305, %v2319, %v2321
        %v2323 = vrot.slane %v394, 4
        %v2324 = vsel %vm2305, %v2321, %v2323
        %v2325 = vrot.slane %v395, 4
        %v2326 = vsel %vm2305, %v2323, %v2325
        %v2327 = vrot.slane %v396, 4
        %v2328 = vsel %vm2305, %v2325, %v2327
        %v2329 = vrot.slane %v397, 4
        %v2330 = vsel %vm2305, %v2327, %v2329
        %v2331 = vrot.slane %v398, 4
        %v2332 = vsel %vm2305, %v2329, %v2331
        %v2333 = vrot.slane %v399, 4
        %v2334 = vsel %vm2305, %v2331, %v2333
        %v2335 = vrot.slane %v400, 4
        %v2336 = vsel %vm2305, %v2333, %v2335
        %v2337 = vrot.slane %v401, 4
        %v2338 = vsel %vm2305, %v2335, %v2337
        %v2339 = vrot.slane %v402, 4
        %v2340 = vsel %vm2305, %v2337, %v2339
        %v2341 = vrot.slane %v403, 4
        %v2342 = vsel %vm2305, %v2339, %v2341
        %v2343 = vrot.slane %v404, 4
        %v2344 = vsel %vm2305, %v2341, %v2343
        %v2345 = vrot.slane %v405, 4
        %v2346 = vsel %vm2305, %v2343, %v2345
        %v2347 = vrot.slane %v406, 4
        %v2348 = vsel %vm2305, %v2345, %v2347
        %v2349 = vrot.slane %v407, 4
        %v2350 = vsel %vm2305, %v2347, %v2349
        %v2351 = vrot.slane %v408, 4
        %v2352 = vsel %vm2305, %v2349, %v2351
        %v2353 = vrot.slane %v409, 4
        %v2354 = vsel %vm2305, %v2351, %v2353
        %v2355 = vrot.slane %v410, 4
        %v2356 = vsel %vm2305, %v2353, %v2355
        %v2357 = vrot.slane %v411, 4
        %v2358 = vsel %vm2305, %v2355, %v2357
        %v2359 = vrot.slane %v412, 4
        %v2360 = vsel %vm2305, %v2357, %v2359
        %v2361 = vrot.slane %v413, 4
        %v2362 = vsel %vm2305, %v2359, %v2361
        %v2363 = vrot.slane %v414, 4
        %v2364 = vsel %vm2305, %v2361, %v2363
        %v2365 = vrot.slane %v415, 4
        %v2366 = vsel %vm2305, %v2363, %v2365
        %v2367 = vrot.slane %v416, 4
        %v2368 = vsel %vm2305, %v2365, %v2367
        %v2369 = vrot.slane %v417, 4
        %v2370 = vsel %vm2305, %v2367, %v2369
        %v2371 = vrot.slane %v418, 4
        %v2372 = vsel %vm2305, %v2369, %v2371
        %v2373 = vrot.slane %v419, 4
        %v2374 = vsel %vm2305, %v2371, %v2373
        %v2375 = vrot.slane %v420, 4
        %v2376 = vsel %vm2305, %v2373, %v2375
        %v2377 = vrot.slane %v421, 4
        %v2378 = vsel %vm2305, %v2375, %v2377
        %v2379 = vrot.slane %v422, 4
        %v2380 = vsel %vm2305, %v2377, %v2379
        %v2381 = vrot.slane %v423, 4
        %v2382 = vsel %vm2305, %v2379, %v2381
        %v2383 = vrot.slane %v424, 4
        %v2384 = vsel %vm2305, %v2381, %v2383
        %v2385 = vrot.slane %v425, 4
        %v2386 = vsel %vm2305, %v2383, %v2385
        %v2387 = vrot.slane %v426, 4
        %v2388 = vsel %vm2305, %v2385, %v2387
        %v2389 = vrot.slane %v427, 4
        %v2390 = vsel %vm2305, %v2387, %v2389
        %v2391 = vrot.slane %v428, 4
        %v2392 = vsel %vm2305, %v2389, %v2391
        %v2393 = vrot.slane %v429, 4
        %v2394 = vsel %vm2305, %v2391, %v2393
        %v2395 = vrot.slane %v430, 4
        %v2396 = vsel %vm2305, %v2393, %v2395
        %v2397 = vrot.slane %v431, 4
        %v2398 = vsel %vm2305, %v2395, %v2397
        %v2399 = vrot.slane %v432, 4
        %v2400 = vsel %vm2305, %v2397, %v2399
        %v2401 = vrot.slane %v433, 4
        %v2402 = vsel %vm2305, %v2399, %v2401
        %v2403 = vrot.slane %v434, 4
        %v2404 = vsel %vm2305, %v2401, %v2403
        %v2405 = vrot.slane %v435, 4
        %v2406 = vsel %vm2305, %v2403, %v2405
        %v2407 = vrot.slane %v436, 4
        %v2408 = vsel %vm2305, %v2405, %v2407
        %v2409 = vrot.slane %v437, 4
        %v2410 = vsel %vm2305, %v2407, %v2409
        %v2411 = vrot.slane %v438, 4
        %v2412 = vsel %vm2305, %v2409, %v2411
        %v2413 = vrot.slane %v439, 4
        %v2414 = vsel %vm2305, %v2411, %v2413
        %v2415 = vrot.slane %v440, 4
        %v2416 = vsel %vm2305, %v2413, %v2415
        %v2417 = vrot.slane %v441, 4
        %v2418 = vsel %vm2305, %v2415, %v2417
        %v2419 = vrot.slane %v442, 4
        %v2420 = vsel %vm2305, %v2417, %v2419
        %v2421 = vrot.slane %v443, 4
        %v2422 = vsel %vm2305, %v2419, %v2421
        %v2423 = vrot.slane %v444, 4
        %v2424 = vsel %vm2305, %v2421, %v2423
        %v2425 = vrot.slane %v445, 4
        %v2426 = vsel %vm2305, %v2423, %v2425
        %v2427 = vrot.slane %v446, 4
        %v2428 = vsel %vm2305, %v2425, %v2427
        %v2429 = vrot.slane %v447, 4
        %v2430 = vsel %vm2305, %v2427, %v2429
        %v2431 = vrot.slane %v448, 4
        %v2432 = vsel %vm2305, %v2429, %v2431
        %v2433 = vrot.slane %v449, 4
        %v2434 = vsel %vm2305, %v2431, %v2433
        %v2435 = vrot.slane %v450, 4
        %v2436 = vsel %vm2305, %v2433, %v2435
        %v2437 = vrot.slane %v451, 4
        %v2438 = vsel %vm2305, %v2435, %v2437
        %v2439 = vrot.slane %v452, 4
        %v2440 = vsel %vm2305, %v2437, %v2439
        %v2441 = vrot.slane %v453, 4
        %v2442 = vsel %vm2305, %v2439, %v2441
        %v2443 = vrot.slane %v454, 4
        %v2444 = vsel %vm2305, %v2441, %v2443
        %v2445 = vrot.slane %v455, 4
        %v2446 = vsel %vm2305, %v2443, %v2445
        %v2447 = vrot.slane %v456, 4
        %v2448 = vsel %vm2305, %v2445, %v2447
        %v2449 = vrot.slane %v457, 4
        %v2450 = vsel %vm2305, %v2447, %v2449
        %v2451 = vrot.slane %v458, 4
        %v2452 = vsel %vm2305, %v2449, %v2451
        %v2453 = vrot.slane %v459, 4
        %v2454 = vsel %vm2305, %v2451, %v2453
        %v2455 = vrot.slane %v460, 4
        %v2456 = vsel %vm2305, %v2453, %v2455
        %v2457 = vrot.slane %v461, 4
        %v2458 = vsel %vm2305, %v2455, %v2457
        %v2459 = vrot.slane %v462, 4
        %v2460 = vsel %vm2305, %v2457, %v2459
        %v2461 = vrot.slane %v463, 4
        %v2462 = vsel %vm2305, %v2459, %v2461
        %v2463 = vrot.slane %v464, 4
        %v2464 = vsel %vm2305, %v2461, %v2463
        %v2465 = vrot.slane %v465, 4
        %v2466 = vsel %vm2305, %v2463, %v2465
        %v2467 = vrot.slane %v466, 4
        %v2468 = vsel %vm2305, %v2465, %v2467
        %v2469 = vrot.slane %v467, 4
        %v2470 = vsel %vm2305, %v2467, %v2469
        %v2471 = vrot.slane %v468, 4
        %v2472 = vsel %vm2305, %v2469, %v2471
        %v2473 = vrot.slane %v469, 4
        %v2474 = vsel %vm2305, %v2471, %v2473
        %v2475 = vrot.slane %v470, 4
        %v2476 = vsel %vm2305, %v2473, %v2475
        %v2477 = vrot.slane %v471, 4
        %v2478 = vsel %vm2305, %v2475, %v2477
        %v2479 = vrot.slane %v472, 4
        %v2480 = vsel %vm2305, %v2477, %v2479
        %v2481 = vrot.slane %v473, 4
        %v2482 = vsel %vm2305, %v2479, %v2481
        %v2483 = vrot.slane %v474, 4
        %v2484 = vsel %vm2305, %v2481, %v2483
        %v2485 = vrot.slane %v475, 4
        %v2486 = vsel %vm2305, %v2483, %v2485
        %v2487 = vrot.slane %v476, 4
        %v2488 = vsel %vm2305, %v2485, %v2487
        %v2489 = vrot.slane %v477, 4
        %v2490 = vsel %vm2305, %v2487, %v2489
        %v2491 = vrot.slane %v478, 4
        %v2492 = vsel %vm2305, %v2489, %v2491
        %v2493 = vrot.slane %v479, 4
        %v2494 = vsel %vm2305, %v2491, %v2493
        %v2495 = vrot.slane %v480, 4
        %v2496 = vsel %vm2305, %v2493, %v2495
        %v2497 = vrot.slane %v481, 4
        %v2498 = vsel %vm2305, %v2495, %v2497
        %v2499 = vrot.slane %v482, 4
        %v2500 = vsel %vm2305, %v2497, %v2499
        %v2501 = vrot.slane %v483, 4
        %v2502 = vsel %vm2305, %v2499, %v2501
        %v2503 = vrot.slane %v484, 4
        %v2504 = vsel %vm2305, %v2501, %v2503
        %v2505 = vrot.slane %v485, 4
        %v2506 = vsel %vm2305, %v2503, %v2505
        %v2507 = vrot.slane %v486, 4
        %v2508 = vsel %vm2305, %v2505, %v2507
        %v2509 = vrot.slane %v487, 4
        %v2510 = vsel %vm2305, %v2507, %v2509
        %v2511 = vrot.slane %v488, 4
        %v2512 = vsel %vm2305, %v2509, %v2511
        %v2513 = vrot.slane %v489, 4
        %v2514 = vsel %vm2305, %v2511, %v2513
        %v2515 = vrot.slane %v490, 4
        %v2516 = vsel %vm2305, %v2513, %v2515
        %v2517 = vrot.slane %v491, 4
        %v2518 = vsel %vm2305, %v2515, %v2517
        %v2519 = vrot.slane %v492, 4
        %v2520 = vsel %vm2305, %v2517, %v2519
        %v2521 = vrot.slane %v493, 4
        %v2522 = vsel %vm2305, %v2519, %v2521
        %v2523 = vrot.slane %v494, 4
        %v2524 = vsel %vm2305, %v2521, %v2523
        %v2525 = vrot.slane %v495, 4
        %v2526 = vsel %vm2305, %v2523, %v2525
        %v2527 = vrot.slane %v496, 4
        %v2528 = vsel %vm2305, %v2525, %v2527
        %2529 = vrot.lane.b32.xlu0 %v2308, 16
        %v2530 = vpop.permute.xlu0 %2529
        %2531 = vrot.lane.b32.xlu0 %v2310, 16
        %v2532 = vpop.permute.xlu0 %2531
        %2533 = vrot.lane.b32.xlu0 %v2312, 16
        %v2534 = vpop.permute.xlu0 %2533
        %2535 = vrot.lane.b32.xlu0 %v2314, 16
        %v2536 = vpop.permute.xlu0 %2535
        %2537 = vrot.lane.b32.xlu0 %v2316, 16
        %v2538 = vpop.permute.xlu0 %2537
        %2539 = vrot.lane.b32.xlu0 %v2318, 16
        %v2540 = vpop.permute.xlu0 %2539
        %2541 = vrot.lane.b32.xlu0 %v2320, 16
        %v2542 = vpop.permute.xlu0 %2541
        %2543 = vrot.lane.b32.xlu0 %v2322, 16
        %v2544 = vpop.permute.xlu0 %2543
        %2545 = vrot.lane.b32.xlu0 %v2324, 16
        %v2546 = vpop.permute.xlu0 %2545
        %2547 = vrot.lane.b32.xlu0 %v2326, 16
        %v2548 = vpop.permute.xlu0 %2547
        %2549 = vrot.lane.b32.xlu0 %v2328, 16
        %v2550 = vpop.permute.xlu0 %2549
        %2551 = vrot.lane.b32.xlu0 %v2330, 16
        %v2552 = vpop.permute.xlu0 %2551
        %2553 = vrot.lane.b32.xlu0 %v2332, 16
        %v2554 = vpop.permute.xlu0 %2553
        %2555 = vrot.lane.b32.xlu0 %v2334, 16
        %v2556 = vpop.permute.xlu0 %2555
        %2557 = vrot.lane.b32.xlu0 %v2336, 16
        %v2558 = vpop.permute.xlu0 %2557
        %2559 = vrot.lane.b32.xlu0 %v2338, 16
        %v2560 = vpop.permute.xlu0 %2559
        %2561 = vrot.lane.b32.xlu0 %v2340, 16
        %v2562 = vpop.permute.xlu0 %2561
        %2563 = vrot.lane.b32.xlu0 %v2342, 16
        %v2564 = vpop.permute.xlu0 %2563
        %2565 = vrot.lane.b32.xlu0 %v2344, 16
        %v2566 = vpop.permute.xlu0 %2565
        %2567 = vrot.lane.b32.xlu0 %v2346, 16
        %v2568 = vpop.permute.xlu0 %2567
        %2569 = vrot.lane.b32.xlu0 %v2348, 16
        %v2570 = vpop.permute.xlu0 %2569
        %2571 = vrot.lane.b32.xlu0 %v2350, 16
        %v2572 = vpop.permute.xlu0 %2571
        %2573 = vrot.lane.b32.xlu0 %v2352, 16
        %v2574 = vpop.permute.xlu0 %2573
        %2575 = vrot.lane.b32.xlu0 %v2354, 16
        %v2576 = vpop.permute.xlu0 %2575
        %2577 = vrot.lane.b32.xlu0 %v2356, 16
        %v2578 = vpop.permute.xlu0 %2577
        %2579 = vrot.lane.b32.xlu0 %v2358, 16
        %v2580 = vpop.permute.xlu0 %2579
        %2581 = vrot.lane.b32.xlu0 %v2360, 16
        %v2582 = vpop.permute.xlu0 %2581
        %2583 = vrot.lane.b32.xlu0 %v2362, 16
        %v2584 = vpop.permute.xlu0 %2583
        %2585 = vrot.lane.b32.xlu0 %v2364, 16
        %v2586 = vpop.permute.xlu0 %2585
        %2587 = vrot.lane.b32.xlu0 %v2366, 16
        %v2588 = vpop.permute.xlu0 %2587
        %2589 = vrot.lane.b32.xlu0 %v2368, 16
        %v2590 = vpop.permute.xlu0 %2589
        %2591 = vrot.lane.b32.xlu0 %v2370, 16
        %v2592 = vpop.permute.xlu0 %2591
        %2593 = vrot.lane.b32.xlu0 %v2372, 16
        %v2594 = vpop.permute.xlu0 %2593
        %2595 = vrot.lane.b32.xlu0 %v2374, 16
        %v2596 = vpop.permute.xlu0 %2595
        %2597 = vrot.lane.b32.xlu0 %v2376, 16
        %v2598 = vpop.permute.xlu0 %2597
        %2599 = vrot.lane.b32.xlu0 %v2378, 16
        %v2600 = vpop.permute.xlu0 %2599
        %2601 = vrot.lane.b32.xlu0 %v2380, 16
        %v2602 = vpop.permute.xlu0 %2601
        %2603 = vrot.lane.b32.xlu0 %v2382, 16
        %v2604 = vpop.permute.xlu0 %2603
        %2605 = vrot.lane.b32.xlu0 %v2384, 16
        %v2606 = vpop.permute.xlu0 %2605
        %2607 = vrot.lane.b32.xlu0 %v2386, 16
        %v2608 = vpop.permute.xlu0 %2607
        %2609 = vrot.lane.b32.xlu0 %v2388, 16
        %v2610 = vpop.permute.xlu0 %2609
        %2611 = vrot.lane.b32.xlu0 %v2390, 16
        %v2612 = vpop.permute.xlu0 %2611
        %2613 = vrot.lane.b32.xlu0 %v2392, 16
        %v2614 = vpop.permute.xlu0 %2613
        %2615 = vrot.lane.b32.xlu0 %v2394, 16
        %v2616 = vpop.permute.xlu0 %2615
        %2617 = vrot.lane.b32.xlu0 %v2396, 16
        %v2618 = vpop.permute.xlu0 %2617
        %2619 = vrot.lane.b32.xlu0 %v2398, 16
        %v2620 = vpop.permute.xlu0 %2619
        %2621 = vrot.lane.b32.xlu0 %v2400, 16
        %v2622 = vpop.permute.xlu0 %2621
        %2623 = vrot.lane.b32.xlu0 %v2402, 16
        %v2624 = vpop.permute.xlu0 %2623
        %2625 = vrot.lane.b32.xlu0 %v2404, 16
        %v2626 = vpop.permute.xlu0 %2625
        %2627 = vrot.lane.b32.xlu0 %v2406, 16
        %v2628 = vpop.permute.xlu0 %2627
        %2629 = vrot.lane.b32.xlu0 %v2408, 16
        %v2630 = vpop.permute.xlu0 %2629
        %2631 = vrot.lane.b32.xlu0 %v2410, 16
        %v2632 = vpop.permute.xlu0 %2631
        %2633 = vrot.lane.b32.xlu0 %v2412, 16
        %v2634 = vpop.permute.xlu0 %2633
        %2635 = vrot.lane.b32.xlu0 %v2414, 16
        %v2636 = vpop.permute.xlu0 %2635
        %2637 = vrot.lane.b32.xlu0 %v2416, 16
        %v2638 = vpop.permute.xlu0 %2637
        %2639 = vrot.lane.b32.xlu0 %v2418, 16
        %v2640 = vpop.permute.xlu0 %2639
        %2641 = vrot.lane.b32.xlu0 %v2420, 16
        %v2642 = vpop.permute.xlu0 %2641
        %2643 = vrot.lane.b32.xlu0 %v2422, 16
        %v2644 = vpop.permute.xlu0 %2643
        %2645 = vrot.lane.b32.xlu0 %v2424, 16
        %v2646 = vpop.permute.xlu0 %2645
        %2647 = vrot.lane.b32.xlu0 %v2426, 16
        %v2648 = vpop.permute.xlu0 %2647
        %2649 = vrot.lane.b32.xlu0 %v2428, 16
        %v2650 = vpop.permute.xlu0 %2649
        %2651 = vrot.lane.b32.xlu0 %v2430, 16
        %v2652 = vpop.permute.xlu0 %2651
        %2653 = vrot.lane.b32.xlu0 %v2432, 16
        %v2654 = vpop.permute.xlu0 %2653
        %2655 = vrot.lane.b32.xlu0 %v2434, 16
        %v2656 = vpop.permute.xlu0 %2655
        %2657 = vrot.lane.b32.xlu0 %v2436, 16
        %v2658 = vpop.permute.xlu0 %2657
        %2659 = vrot.lane.b32.xlu0 %v2438, 16
        %v2660 = vpop.permute.xlu0 %2659
        %2661 = vrot.lane.b32.xlu0 %v2440, 16
        %v2662 = vpop.permute.xlu0 %2661
        %2663 = vrot.lane.b32.xlu0 %v2442, 16
        %v2664 = vpop.permute.xlu0 %2663
        %2665 = vrot.lane.b32.xlu0 %v2444, 16
        %v2666 = vpop.permute.xlu0 %2665
        %2667 = vrot.lane.b32.xlu0 %v2446, 16
        %v2668 = vpop.permute.xlu0 %2667
        %2669 = vrot.lane.b32.xlu0 %v2448, 16
        %v2670 = vpop.permute.xlu0 %2669
        %2671 = vrot.lane.b32.xlu0 %v2450, 16
        %v2672 = vpop.permute.xlu0 %2671
        %2673 = vrot.lane.b32.xlu0 %v2452, 16
        %v2674 = vpop.permute.xlu0 %2673
        %2675 = vrot.lane.b32.xlu0 %v2454, 16
        %v2676 = vpop.permute.xlu0 %2675
        %2677 = vrot.lane.b32.xlu0 %v2456, 16
        %v2678 = vpop.permute.xlu0 %2677
        %2679 = vrot.lane.b32.xlu0 %v2458, 16
        %v2680 = vpop.permute.xlu0 %2679
        %2681 = vrot.lane.b32.xlu0 %v2460, 16
        %v2682 = vpop.permute.xlu0 %2681
        %2683 = vrot.lane.b32.xlu0 %v2462, 16
        %v2684 = vpop.permute.xlu0 %2683
        %2685 = vrot.lane.b32.xlu0 %v2464, 16
        %v2686 = vpop.permute.xlu0 %2685
        %2687 = vrot.lane.b32.xlu0 %v2466, 16
        %v2688 = vpop.permute.xlu0 %2687
        %2689 = vrot.lane.b32.xlu0 %v2468, 16
        %v2690 = vpop.permute.xlu0 %2689
        %2691 = vrot.lane.b32.xlu0 %v2470, 16
        %v2692 = vpop.permute.xlu0 %2691
        %2693 = vrot.lane.b32.xlu0 %v2472, 16
        %v2694 = vpop.permute.xlu0 %2693
        %2695 = vrot.lane.b32.xlu0 %v2474, 16
        %v2696 = vpop.permute.xlu0 %2695
        %2697 = vrot.lane.b32.xlu0 %v2476, 16
        %v2698 = vpop.permute.xlu0 %2697
        %2699 = vrot.lane.b32.xlu0 %v2478, 16
        %v2700 = vpop.permute.xlu0 %2699
        %2701 = vrot.lane.b32.xlu0 %v2480, 16
        %v2702 = vpop.permute.xlu0 %2701
        %2703 = vrot.lane.b32.xlu0 %v2482, 16
        %v2704 = vpop.permute.xlu0 %2703
        %2705 = vrot.lane.b32.xlu0 %v2484, 16
        %v2706 = vpop.permute.xlu0 %2705
        %2707 = vrot.lane.b32.xlu0 %v2486, 16
        %v2708 = vpop.permute.xlu0 %2707
        %2709 = vrot.lane.b32.xlu0 %v2488, 16
        %v2710 = vpop.permute.xlu0 %2709
        %2711 = vrot.lane.b32.xlu0 %v2490, 16
        %v2712 = vpop.permute.xlu0 %2711
        %2713 = vrot.lane.b32.xlu0 %v2492, 16
        %v2714 = vpop.permute.xlu0 %2713
        %2715 = vrot.lane.b32.xlu0 %v2494, 16
        %v2716 = vpop.permute.xlu0 %2715
        %2717 = vrot.lane.b32.xlu0 %v2496, 16
        %v2718 = vpop.permute.xlu0 %2717
        %2719 = vrot.lane.b32.xlu0 %v2498, 16
        %v2720 = vpop.permute.xlu0 %2719
        %2721 = vrot.lane.b32.xlu0 %v2500, 16
        %v2722 = vpop.permute.xlu0 %2721
        %2723 = vrot.lane.b32.xlu0 %v2502, 16
        %v2724 = vpop.permute.xlu0 %2723
        %2725 = vrot.lane.b32.xlu0 %v2504, 16
        %v2726 = vpop.permute.xlu0 %2725
        %2727 = vrot.lane.b32.xlu0 %v2506, 16
        %v2728 = vpop.permute.xlu0 %2727
        %2729 = vrot.lane.b32.xlu0 %v2508, 16
        %v2730 = vpop.permute.xlu0 %2729
        %2731 = vrot.lane.b32.xlu0 %v2510, 16
        %v2732 = vpop.permute.xlu0 %2731
        %2733 = vrot.lane.b32.xlu0 %v2512, 16
        %v2734 = vpop.permute.xlu0 %2733
        %2735 = vrot.lane.b32.xlu0 %v2514, 16
        %v2736 = vpop.permute.xlu0 %2735
        %2737 = vrot.lane.b32.xlu0 %v2516, 16
        %v2738 = vpop.permute.xlu0 %2737
        %2739 = vrot.lane.b32.xlu0 %v2518, 16
        %v2740 = vpop.permute.xlu0 %2739
        %2741 = vrot.lane.b32.xlu0 %v2520, 16
        %v2742 = vpop.permute.xlu0 %2741
        %2743 = vrot.lane.b32.xlu0 %v2522, 16
        %v2744 = vpop.permute.xlu0 %2743
        %2745 = vrot.lane.b32.xlu0 %v2524, 16
        %v2746 = vpop.permute.xlu0 %2745
        %2747 = vrot.lane.b32.xlu0 %v2526, 16
        %v2748 = vpop.permute.xlu0 %2747
        %2749 = vrot.lane.b32.xlu0 %v2528, 16
        %v2750 = vpop.permute.xlu0 %2749
        %2751 = vrot.lane.b32.xlu0 %v2527, 16
        %v2752 = vpop.permute.xlu0 %2751
        %vm2865 = vcmask 31744
        %v2866 = vsel %vm2865, %v385, %v850
        %v2867 = vsel %vm2865, %v386, %v852
        %v2868 = vsel %vm2865, %v387, %v854
        %v2869 = vsel %vm2865, %v388, %v856
        %v2870 = vsel %vm2865, %v389, %v858
        %v2871 = vsel %vm2865, %v390, %v860
        %v2872 = vsel %vm2865, %v391, %v862
        %v2873 = vsel %vm2865, %v392, %v864
        %v2874 = vsel %vm2865, %v393, %v866
        %v2875 = vsel %vm2865, %v394, %v868
        %v2876 = vsel %vm2865, %v395, %v870
        %v2877 = vsel %vm2865, %v396, %v872
        %v2878 = vsel %vm2865, %v397, %v874
        %v2879 = vsel %vm2865, %v398, %v876
        %v2880 = vsel %vm2865, %v399, %v878
        %v2881 = vsel %vm2865, %v400, %v880
        %v2882 = vsel %vm2865, %v401, %v882
        %v2883 = vsel %vm2865, %v402, %v884
        %v2884 = vsel %vm2865, %v403, %v886
        %v2885 = vsel %vm2865, %v404, %v888
        %v2886 = vsel %vm2865, %v405, %v890
        %v2887 = vsel %vm2865, %v406, %v892
        %v2888 = vsel %vm2865, %v407, %v894
        %v2889 = vsel %vm2865, %v408, %v896
        %v2890 = vsel %vm2865, %v409, %v898
        %v2891 = vsel %vm2865, %v410, %v900
        %v2892 = vsel %vm2865, %v411, %v902
        %v2893 = vsel %vm2865, %v412, %v904
        %v2894 = vsel %vm2865, %v413, %v906
        %v2895 = vsel %vm2865, %v414, %v908
        %v2896 = vsel %vm2865, %v415, %v910
        %v2897 = vsel %vm2865, %v416, %v912
        %v2898 = vsel %vm2865, %v417, %v914
        %v2899 = vsel %vm2865, %v418, %v916
        %v2900 = vsel %vm2865, %v419, %v918
        %v2901 = vsel %vm2865, %v420, %v920
        %v2902 = vsel %vm2865, %v421, %v922
        %v2903 = vsel %vm2865, %v422, %v924
        %v2904 = vsel %vm2865, %v423, %v926
        %v2905 = vsel %vm2865, %v424, %v928
        %v2906 = vsel %vm2865, %v425, %v930
        %v2907 = vsel %vm2865, %v426, %v932
        %v2908 = vsel %vm2865, %v427, %v934
        %v2909 = vsel %vm2865, %v428, %v936
        %v2910 = vsel %vm2865, %v429, %v938
        %v2911 = vsel %vm2865, %v430, %v940
        %v2912 = vsel %vm2865, %v431, %v942
        %v2913 = vsel %vm2865, %v432, %v944
        %v2914 = vsel %vm2865, %v433, %v946
        %v2915 = vsel %vm2865, %v434, %v948
        %v2916 = vsel %vm2865, %v435, %v950
        %v2917 = vsel %vm2865, %v436, %v952
        %v2918 = vsel %vm2865, %v437, %v954
        %v2919 = vsel %vm2865, %v438, %v956
        %v2920 = vsel %vm2865, %v439, %v958
        %v2921 = vsel %vm2865, %v440, %v960
        %v2922 = vsel %vm2865, %v441, %v962
        %v2923 = vsel %vm2865, %v442, %v964
        %v2924 = vsel %vm2865, %v443, %v966
        %v2925 = vsel %vm2865, %v444, %v968
        %v2926 = vsel %vm2865, %v445, %v970
        %v2927 = vsel %vm2865, %v446, %v972
        %v2928 = vsel %vm2865, %v447, %v974
        %v2929 = vsel %vm2865, %v448, %v976
        %v2930 = vsel %vm2865, %v449, %v978
        %v2931 = vsel %vm2865, %v450, %v980
        %v2932 = vsel %vm2865, %v451, %v982
        %v2933 = vsel %vm2865, %v452, %v984
        %v2934 = vsel %vm2865, %v453, %v986
        %v2935 = vsel %vm2865, %v454, %v988
        %v2936 = vsel %vm2865, %v455, %v990
        %v2937 = vsel %vm2865, %v456, %v992
        %v2938 = vsel %vm2865, %v457, %v994
        %v2939 = vsel %vm2865, %v458, %v996
        %v2940 = vsel %vm2865, %v459, %v998
        %v2941 = vsel %vm2865, %v460, %v1000
        %v2942 = vsel %vm2865, %v461, %v1002
        %v2943 = vsel %vm2865, %v462, %v1004
        %v2944 = vsel %vm2865, %v463, %v1006
        %v2945 = vsel %vm2865, %v464, %v1008
        %v2946 = vsel %vm2865, %v465, %v1010
        %v2947 = vsel %vm2865, %v466, %v1012
        %v2948 = vsel %vm2865, %v467, %v1014
        %v2949 = vsel %vm2865, %v468, %v1016
        %v2950 = vsel %vm2865, %v469, %v1018
        %v2951 = vsel %vm2865, %v470, %v1020
        %v2952 = vsel %vm2865, %v471, %v1022
        %v2953 = vsel %vm2865, %v472, %v1024
        %v2954 = vsel %vm2865, %v473, %v1026
        %v2955 = vsel %vm2865, %v474, %v1028
        %v2956 = vsel %vm2865, %v475, %v1030
        %v2957 = vsel %vm2865, %v476, %v1032
        %v2958 = vsel %vm2865, %v477, %v1034
        %v2959 = vsel %vm2865, %v478, %v1036
        %v2960 = vsel %vm2865, %v479, %v1038
        %v2961 = vsel %vm2865, %v480, %v1040
        %v2962 = vsel %vm2865, %v481, %v1042
        %v2963 = vsel %vm2865, %v482, %v1044
        %v2964 = vsel %vm2865, %v483, %v1046
        %v2965 = vsel %vm2865, %v484, %v1048
        %v2966 = vsel %vm2865, %v485, %v1050
        %v2967 = vsel %vm2865, %v486, %v1052
        %v2968 = vsel %vm2865, %v487, %v1054
        %v2969 = vsel %vm2865, %v488, %v1056
        %v2970 = vsel %vm2865, %v489, %v1058
        %v2971 = vsel %vm2865, %v490, %v1060
        %v2972 = vsel %vm2865, %v491, %v1062
        %v2973 = vsel %vm2865, %v492, %v1064
        %v2974 = vsel %vm2865, %v493, %v1066
        %v2975 = vsel %vm2865, %v494, %v1068
        %v2976 = vsel %vm2865, %v495, %v1070
        %v2977 = vsel %vm2865, %v496, %v1072
        %vm2978 = vcmask 64512
        %v2979 = vsel %vm2978, %v2866, %v1410
        %v2980 = vsel %vm2978, %v2867, %v1412
        %v2981 = vsel %vm2978, %v2868, %v1414
        %v2982 = vsel %vm2978, %v2869, %v1416
        %v2983 = vsel %vm2978, %v2870, %v1418
        %v2984 = vsel %vm2978, %v2871, %v1420
        %v2985 = vsel %vm2978, %v2872, %v1422
        %v2986 = vsel %vm2978, %v2873, %v1424
        %v2987 = vsel %vm2978, %v2874, %v1426
        %v2988 = vsel %vm2978, %v2875, %v1428
        %v2989 = vsel %vm2978, %v2876, %v1430
        %v2990 = vsel %vm2978, %v2877, %v1432
        %v2991 = vsel %vm2978, %v2878, %v1434
        %v2992 = vsel %vm2978, %v2879, %v1436
        %v2993 = vsel %vm2978, %v2880, %v1438
        %v2994 = vsel %vm2978, %v2881, %v1440
        %v2995 = vsel %vm2978, %v2882, %v1442
        %v2996 = vsel %vm2978, %v2883, %v1444
        %v2997 = vsel %vm2978, %v2884, %v1446
        %v2998 = vsel %vm2978, %v2885, %v1448
        %v2999 = vsel %vm2978, %v2886, %v1450
        %v3000 = vsel %vm2978, %v2887, %v1452
        %v3001 = vsel %vm2978, %v2888, %v1454
        %v3002 = vsel %vm2978, %v2889, %v1456
        %v3003 = vsel %vm2978, %v2890, %v1458
        %v3004 = vsel %vm2978, %v2891, %v1460
        %v3005 = vsel %vm2978, %v2892, %v1462
        %v3006 = vsel %vm2978, %v2893, %v1464
        %v3007 = vsel %vm2978, %v2894, %v1466
        %v3008 = vsel %vm2978, %v2895, %v1468
        %v3009 = vsel %vm2978, %v2896, %v1470
        %v3010 = vsel %vm2978, %v2897, %v1472
        %v3011 = vsel %vm2978, %v2898, %v1474
        %v3012 = vsel %vm2978, %v2899, %v1476
        %v3013 = vsel %vm2978, %v2900, %v1478
        %v3014 = vsel %vm2978, %v2901, %v1480
        %v3015 = vsel %vm2978, %v2902, %v1482
        %v3016 = vsel %vm2978, %v2903, %v1484
        %v3017 = vsel %vm2978, %v2904, %v1486
        %v3018 = vsel %vm2978, %v2905, %v1488
        %v3019 = vsel %vm2978, %v2906, %v1490
        %v3020 = vsel %vm2978, %v2907, %v1492
        %v3021 = vsel %vm2978, %v2908, %v1494
        %v3022 = vsel %vm2978, %v2909, %v1496
        %v3023 = vsel %vm2978, %v2910, %v1498
        %v3024 = vsel %vm2978, %v2911, %v1500
        %v3025 = vsel %vm2978, %v2912, %v1502
        %v3026 = vsel %vm2978, %v2913, %v1504
        %v3027 = vsel %vm2978, %v2914, %v1506
        %v3028 = vsel %vm2978, %v2915, %v1508
        %v3029 = vsel %vm2978, %v2916, %v1510
        %v3030 = vsel %vm2978, %v2917, %v1512
        %v3031 = vsel %vm2978, %v2918, %v1514
        %v3032 = vsel %vm2978, %v2919, %v1516
        %v3033 = vsel %vm2978, %v2920, %v1518
        %v3034 = vsel %vm2978, %v2921, %v1520
        %v3035 = vsel %vm2978, %v2922, %v1522
        %v3036 = vsel %vm2978, %v2923, %v1524
        %v3037 = vsel %vm2978, %v2924, %v1526
        %v3038 = vsel %vm2978, %v2925, %v1528
        %v3039 = vsel %vm2978, %v2926, %v1530
        %v3040 = vsel %vm2978, %v2927, %v1532
        %v3041 = vsel %vm2978, %v2928, %v1534
        %v3042 = vsel %vm2978, %v2929, %v1536
        %v3043 = vsel %vm2978, %v2930, %v1538
        %v3044 = vsel %vm2978, %v2931, %v1540
        %v3045 = vsel %vm2978, %v2932, %v1542
        %v3046 = vsel %vm2978, %v2933, %v1544
        %v3047 = vsel %vm2978, %v2934, %v1546
        %v3048 = vsel %vm2978, %v2935, %v1548
        %v3049 = vsel %vm2978, %v2936, %v1550
        %v3050 = vsel %vm2978, %v2937, %v1552
        %v3051 = vsel %vm2978, %v2938, %v1554
        %v3052 = vsel %vm2978, %v2939, %v1556
        %v3053 = vsel %vm2978, %v2940, %v1558
        %v3054 = vsel %vm2978, %v2941, %v1560
        %v3055 = vsel %vm2978, %v2942, %v1562
        %v3056 = vsel %vm2978, %v2943, %v1564
        %v3057 = vsel %vm2978, %v2944, %v1566
        %v3058 = vsel %vm2978, %v2945, %v1568
        %v3059 = vsel %vm2978, %v2946, %v1570
        %v3060 = vsel %vm2978, %v2947, %v1572
        %v3061 = vsel %vm2978, %v2948, %v1574
        %v3062 = vsel %vm2978, %v2949, %v1576
        %v3063 = vsel %vm2978, %v2950, %v1578
        %v3064 = vsel %vm2978, %v2951, %v1580
        %v3065 = vsel %vm2978, %v2952, %v1582
        %v3066 = vsel %vm2978, %v2953, %v1584
        %v3067 = vsel %vm2978, %v2954, %v1586
        %v3068 = vsel %vm2978, %v2955, %v1588
        %v3069 = vsel %vm2978, %v2956, %v1590
        %v3070 = vsel %vm2978, %v2957, %v1592
        %v3071 = vsel %vm2978, %v2958, %v1594
        %v3072 = vsel %vm2978, %v2959, %v1596
        %v3073 = vsel %vm2978, %v2960, %v1598
        %v3074 = vsel %vm2978, %v2961, %v1600
        %v3075 = vsel %vm2978, %v2962, %v1602
        %v3076 = vsel %vm2978, %v2963, %v1604
        %v3077 = vsel %vm2978, %v2964, %v1606
        %v3078 = vsel %vm2978, %v2965, %v1608
        %v3079 = vsel %vm2978, %v2966, %v1610
        %v3080 = vsel %vm2978, %v2967, %v1612
        %v3081 = vsel %vm2978, %v2968, %v1614
        %v3082 = vsel %vm2978, %v2969, %v1616
        %v3083 = vsel %vm2978, %v2970, %v1618
        %v3084 = vsel %vm2978, %v2971, %v1620
        %v3085 = vsel %vm2978, %v2972, %v1622
        %v3086 = vsel %vm2978, %v2973, %v1624
        %v3087 = vsel %vm2978, %v2974, %v1626
        %v3088 = vsel %vm2978, %v2975, %v1628
        %v3089 = vsel %vm2978, %v2976, %v1630
        %v3090 = vsel %vm2978, %v2977, %v1632
        %vm3091 = vcmask 97280
        %v3092 = vsel %vm3091, %v2979, %v1970
        %v3093 = vsel %vm3091, %v2980, %v1972
        %v3094 = vsel %vm3091, %v2981, %v1974
        %v3095 = vsel %vm3091, %v2982, %v1976
        %v3096 = vsel %vm3091, %v2983, %v1978
        %v3097 = vsel %vm3091, %v2984, %v1980
        %v3098 = vsel %vm3091, %v2985, %v1982
        %v3099 = vsel %vm3091, %v2986, %v1984
        %v3100 = vsel %vm3091, %v2987, %v1986
        %v3101 = vsel %vm3091, %v2988, %v1988
        %v3102 = vsel %vm3091, %v2989, %v1990
        %v3103 = vsel %vm3091, %v2990, %v1992
        %v3104 = vsel %vm3091, %v2991, %v1994
        %v3105 = vsel %vm3091, %v2992, %v1996
        %v3106 = vsel %vm3091, %v2993, %v1998
        %v3107 = vsel %vm3091, %v2994, %v2000
        %v3108 = vsel %vm3091, %v2995, %v2002
        %v3109 = vsel %vm3091, %v2996, %v2004
        %v3110 = vsel %vm3091, %v2997, %v2006
        %v3111 = vsel %vm3091, %v2998, %v2008
        %v3112 = vsel %vm3091, %v2999, %v2010
        %v3113 = vsel %vm3091, %v3000, %v2012
        %v3114 = vsel %vm3091, %v3001, %v2014
        %v3115 = vsel %vm3091, %v3002, %v2016
        %v3116 = vsel %vm3091, %v3003, %v2018
        %v3117 = vsel %vm3091, %v3004, %v2020
        %v3118 = vsel %vm3091, %v3005, %v2022
        %v3119 = vsel %vm3091, %v3006, %v2024
        %v3120 = vsel %vm3091, %v3007, %v2026
        %v3121 = vsel %vm3091, %v3008, %v2028
        %v3122 = vsel %vm3091, %v3009, %v2030
        %v3123 = vsel %vm3091, %v3010, %v2032
        %v3124 = vsel %vm3091, %v3011, %v2034
        %v3125 = vsel %vm3091, %v3012, %v2036
        %v3126 = vsel %vm3091, %v3013, %v2038
        %v3127 = vsel %vm3091, %v3014, %v2040
        %v3128 = vsel %vm3091, %v3015, %v2042
        %v3129 = vsel %vm3091, %v3016, %v2044
        %v3130 = vsel %vm3091, %v3017, %v2046
        %v3131 = vsel %vm3091, %v3018, %v2048
        %v3132 = vsel %vm3091, %v3019, %v2050
        %v3133 = vsel %vm3091, %v3020, %v2052
        %v3134 = vsel %vm3091, %v3021, %v2054
        %v3135 = vsel %vm3091, %v3022, %v2056
        %v3136 = vsel %vm3091, %v3023, %v2058
        %v3137 = vsel %vm3091, %v3024, %v2060
        %v3138 = vsel %vm3091, %v3025, %v2062
        %v3139 = vsel %vm3091, %v3026, %v2064
        %v3140 = vsel %vm3091, %v3027, %v2066
        %v3141 = vsel %vm3091, %v3028, %v2068
        %v3142 = vsel %vm3091, %v3029, %v2070
        %v3143 = vsel %vm3091, %v3030, %v2072
        %v3144 = vsel %vm3091, %v3031, %v2074
        %v3145 = vsel %vm3091, %v3032, %v2076
        %v3146 = vsel %vm3091, %v3033, %v2078
        %v3147 = vsel %vm3091, %v3034, %v2080
        %v3148 = vsel %vm3091, %v3035, %v2082
        %v3149 = vsel %vm3091, %v3036, %v2084
        %v3150 = vsel %vm3091, %v3037, %v2086
        %v3151 = vsel %vm3091, %v3038, %v2088
        %v3152 = vsel %vm3091, %v3039, %v2090
        %v3153 = vsel %vm3091, %v3040, %v2092
        %v3154 = vsel %vm3091, %v3041, %v2094
        %v3155 = vsel %vm3091, %v3042, %v2096
        %v3156 = vsel %vm3091, %v3043, %v2098
        %v3157 = vsel %vm3091, %v3044, %v2100
        %v3158 = vsel %vm3091, %v3045, %v2102
        %v3159 = vsel %vm3091, %v3046, %v2104
        %v3160 = vsel %vm3091, %v3047, %v2106
        %v3161 = vsel %vm3091, %v3048, %v2108
        %v3162 = vsel %vm3091, %v3049, %v2110
        %v3163 = vsel %vm3091, %v3050, %v2112
        %v3164 = vsel %vm3091, %v3051, %v2114
        %v3165 = vsel %vm3091, %v3052, %v2116
        %v3166 = vsel %vm3091, %v3053, %v2118
        %v3167 = vsel %vm3091, %v3054, %v2120
        %v3168 = vsel %vm3091, %v3055, %v2122
        %v3169 = vsel %vm3091, %v3056, %v2124
        %v3170 = vsel %vm3091, %v3057, %v2126
        %v3171 = vsel %vm3091, %v3058, %v2128
        %v3172 = vsel %vm3091, %v3059, %v2130
        %v3173 = vsel %vm3091, %v3060, %v2132
        %v3174 = vsel %vm3091, %v3061, %v2134
        %v3175 = vsel %vm3091, %v3062, %v2136
        %v3176 = vsel %vm3091, %v3063, %v2138
        %v3177 = vsel %vm3091, %v3064, %v2140
        %v3178 = vsel %vm3091, %v3065, %v2142
        %v3179 = vsel %vm3091, %v3066, %v2144
        %v3180 = vsel %vm3091, %v3067, %v2146
        %v3181 = vsel %vm3091, %v3068, %v2148
        %v3182 = vsel %vm3091, %v3069, %v2150
        %v3183 = vsel %vm3091, %v3070, %v2152
        %v3184 = vsel %vm3091, %v3071, %v2154
        %v3185 = vsel %vm3091, %v3072, %v2156
        %v3186 = vsel %vm3091, %v3073, %v2158
        %v3187 = vsel %vm3091, %v3074, %v2160
        %v3188 = vsel %vm3091, %v3075, %v2162
        %v3189 = vsel %vm3091, %v3076, %v2164
        %v3190 = vsel %vm3091, %v3077, %v2166
        %v3191 = vsel %vm3091, %v3078, %v2168
        %v3192 = vsel %vm3091, %v3079, %v2170
        %v3193 = vsel %vm3091, %v3080, %v2172
        %v3194 = vsel %vm3091, %v3081, %v2174
        %v3195 = vsel %vm3091, %v3082, %v2176
        %v3196 = vsel %vm3091, %v3083, %v2178
        %v3197 = vsel %vm3091, %v3084, %v2180
        %v3198 = vsel %vm3091, %v3085, %v2182
        %v3199 = vsel %vm3091, %v3086, %v2184
        %v3200 = vsel %vm3091, %v3087, %v2186
        %v3201 = vsel %vm3091, %v3088, %v2188
        %v3202 = vsel %vm3091, %v3089, %v2190
        %v3203 = vsel %vm3091, %v3090, %v2192
        %vm3204 = vcmask 130048
        %v3205 = vsel %vm3204, %v3092, %v2530
        %v3206 = vsel %vm3204, %v3093, %v2532
        %v3207 = vsel %vm3204, %v3094, %v2534
        %v3208 = vsel %vm3204, %v3095, %v2536
        %v3209 = vsel %vm3204, %v3096, %v2538
        %v3210 = vsel %vm3204, %v3097, %v2540
        %v3211 = vsel %vm3204, %v3098, %v2542
        %v3212 = vsel %vm3204, %v3099, %v2544
        %v3213 = vsel %vm3204, %v3100, %v2546
        %v3214 = vsel %vm3204, %v3101, %v2548
        %v3215 = vsel %vm3204, %v3102, %v2550
        %v3216 = vsel %vm3204, %v3103, %v2552
        %v3217 = vsel %vm3204, %v3104, %v2554
        %v3218 = vsel %vm3204, %v3105, %v2556
        %v3219 = vsel %vm3204, %v3106, %v2558
        %v3220 = vsel %vm3204, %v3107, %v2560
        %v3221 = vsel %vm3204, %v3108, %v2562
        %v3222 = vsel %vm3204, %v3109, %v2564
        %v3223 = vsel %vm3204, %v3110, %v2566
        %v3224 = vsel %vm3204, %v3111, %v2568
        %v3225 = vsel %vm3204, %v3112, %v2570
        %v3226 = vsel %vm3204, %v3113, %v2572
        %v3227 = vsel %vm3204, %v3114, %v2574
        %v3228 = vsel %vm3204, %v3115, %v2576
        %v3229 = vsel %vm3204, %v3116, %v2578
        %v3230 = vsel %vm3204, %v3117, %v2580
        %v3231 = vsel %vm3204, %v3118, %v2582
        %v3232 = vsel %vm3204, %v3119, %v2584
        %v3233 = vsel %vm3204, %v3120, %v2586
        %v3234 = vsel %vm3204, %v3121, %v2588
        %v3235 = vsel %vm3204, %v3122, %v2590
        %v3236 = vsel %vm3204, %v3123, %v2592
        %v3237 = vsel %vm3204, %v3124, %v2594
        %v3238 = vsel %vm3204, %v3125, %v2596
        %v3239 = vsel %vm3204, %v3126, %v2598
        %v3240 = vsel %vm3204, %v3127, %v2600
        %v3241 = vsel %vm3204, %v3128, %v2602
        %v3242 = vsel %vm3204, %v3129, %v2604
        %v3243 = vsel %vm3204, %v3130, %v2606
        %v3244 = vsel %vm3204, %v3131, %v2608
        %v3245 = vsel %vm3204, %v3132, %v2610
        %v3246 = vsel %vm3204, %v3133, %v2612
        %v3247 = vsel %vm3204, %v3134, %v2614
        %v3248 = vsel %vm3204, %v3135, %v2616
        %v3249 = vsel %vm3204, %v3136, %v2618
        %v3250 = vsel %vm3204, %v3137, %v2620
        %v3251 = vsel %vm3204, %v3138, %v2622
        %v3252 = vsel %vm3204, %v3139, %v2624
        %v3253 = vsel %vm3204, %v3140, %v2626
        %v3254 = vsel %vm3204, %v3141, %v2628
        %v3255 = vsel %vm3204, %v3142, %v2630
        %v3256 = vsel %vm3204, %v3143, %v2632
        %v3257 = vsel %vm3204, %v3144, %v2634
        %v3258 = vsel %vm3204, %v3145, %v2636
        %v3259 = vsel %vm3204, %v3146, %v2638
        %v3260 = vsel %vm3204, %v3147, %v2640
        %v3261 = vsel %vm3204, %v3148, %v2642
        %v3262 = vsel %vm3204, %v3149, %v2644
        %v3263 = vsel %vm3204, %v3150, %v2646
        %v3264 = vsel %vm3204, %v3151, %v2648
        %v3265 = vsel %vm3204, %v3152, %v2650
        %v3266 = vsel %vm3204, %v3153, %v2652
        %v3267 = vsel %vm3204, %v3154, %v2654
        %v3268 = vsel %vm3204, %v3155, %v2656
        %v3269 = vsel %vm3204, %v3156, %v2658
        %v3270 = vsel %vm3204, %v3157, %v2660
        %v3271 = vsel %vm3204, %v3158, %v2662
        %v3272 = vsel %vm3204, %v3159, %v2664
        %v3273 = vsel %vm3204, %v3160, %v2666
        %v3274 = vsel %vm3204, %v3161, %v2668
        %v3275 = vsel %vm3204, %v3162, %v2670
        %v3276 = vsel %vm3204, %v3163, %v2672
        %v3277 = vsel %vm3204, %v3164, %v2674
        %v3278 = vsel %vm3204, %v3165, %v2676
        %v3279 = vsel %vm3204, %v3166, %v2678
        %v3280 = vsel %vm3204, %v3167, %v2680
        %v3281 = vsel %vm3204, %v3168, %v2682
        %v3282 = vsel %vm3204, %v3169, %v2684
        %v3283 = vsel %vm3204, %v3170, %v2686
        %v3284 = vsel %vm3204, %v3171, %v2688
        %v3285 = vsel %vm3204, %v3172, %v2690
        %v3286 = vsel %vm3204, %v3173, %v2692
        %v3287 = vsel %vm3204, %v3174, %v2694
        %v3288 = vsel %vm3204, %v3175, %v2696
        %v3289 = vsel %vm3204, %v3176, %v2698
        %v3290 = vsel %vm3204, %v3177, %v2700
        %v3291 = vsel %vm3204, %v3178, %v2702
        %v3292 = vsel %vm3204, %v3179, %v2704
        %v3293 = vsel %vm3204, %v3180, %v2706
        %v3294 = vsel %vm3204, %v3181, %v2708
        %v3295 = vsel %vm3204, %v3182, %v2710
        %v3296 = vsel %vm3204, %v3183, %v2712
        %v3297 = vsel %vm3204, %v3184, %v2714
        %v3298 = vsel %vm3204, %v3185, %v2716
        %v3299 = vsel %vm3204, %v3186, %v2718
        %v3300 = vsel %vm3204, %v3187, %v2720
        %v3301 = vsel %vm3204, %v3188, %v2722
        %v3302 = vsel %vm3204, %v3189, %v2724
        %v3303 = vsel %vm3204, %v3190, %v2726
        %v3304 = vsel %vm3204, %v3191, %v2728
        %v3305 = vsel %vm3204, %v3192, %v2730
        %v3306 = vsel %vm3204, %v3193, %v2732
        %v3307 = vsel %vm3204, %v3194, %v2734
        %v3308 = vsel %vm3204, %v3195, %v2736
        %v3309 = vsel %vm3204, %v3196, %v2738
        %v3310 = vsel %vm3204, %v3197, %v2740
        %v3311 = vsel %vm3204, %v3198, %v2742
        %v3312 = vsel %vm3204, %v3199, %v2744
        %v3313 = vsel %vm3204, %v3200, %v2746
        %v3314 = vsel %vm3204, %v3201, %v2748
        %v3315 = vsel %vm3204, %v3202, %v2750
        %v3316 = vsel %vm3204, %v3203, %v2752
        %v3321 = vrot.slane %v497, 1
        %v3322 = vsel %vm625, %v847, %v3321
        %v3323 = vrot.slane %v498, 1
        %v3324 = vsel %vm625, %v3321, %v3323
        %v3325 = vrot.slane %v499, 1
        %v3326 = vsel %vm625, %v3323, %v3325
        %v3327 = vrot.slane %v500, 1
        %v3328 = vsel %vm625, %v3325, %v3327
        %3329 = vrot.lane.b32.xlu0 %v3322, 4
        %v3330 = vpop.permute.xlu0 %3329
        %3331 = vrot.lane.b32.xlu0 %v3324, 4
        %v3332 = vpop.permute.xlu0 %3331
        %3333 = vrot.lane.b32.xlu0 %v3326, 4
        %v3334 = vpop.permute.xlu0 %3333
        %3335 = vrot.lane.b32.xlu0 %v3328, 4
        %v3336 = vpop.permute.xlu0 %3335
        %3337 = vrot.lane.b32.xlu0 %v3327, 4
        %v3338 = vpop.permute.xlu0 %3337
        %v3344 = vrot.slane %v497, 2
        %v3345 = vsel %vm1185, %v1407, %v3344
        %v3346 = vrot.slane %v498, 2
        %v3347 = vsel %vm1185, %v3344, %v3346
        %v3348 = vrot.slane %v499, 2
        %v3349 = vsel %vm1185, %v3346, %v3348
        %v3350 = vrot.slane %v500, 2
        %v3351 = vsel %vm1185, %v3348, %v3350
        %3352 = vrot.lane.b32.xlu0 %v3345, 8
        %v3353 = vpop.permute.xlu0 %3352
        %3354 = vrot.lane.b32.xlu0 %v3347, 8
        %v3355 = vpop.permute.xlu0 %3354
        %3356 = vrot.lane.b32.xlu0 %v3349, 8
        %v3357 = vpop.permute.xlu0 %3356
        %3358 = vrot.lane.b32.xlu0 %v3351, 8
        %v3359 = vpop.permute.xlu0 %3358
        %3360 = vrot.lane.b32.xlu0 %v3350, 8
        %v3361 = vpop.permute.xlu0 %3360
        %v3367 = vrot.slane %v497, 3
        %v3368 = vsel %vm1745, %v1967, %v3367
        %v3369 = vrot.slane %v498, 3
        %v3370 = vsel %vm1745, %v3367, %v3369
        %v3371 = vrot.slane %v499, 3
        %v3372 = vsel %vm1745, %v3369, %v3371
        %v3373 = vrot.slane %v500, 3
        %v3374 = vsel %vm1745, %v3371, %v3373
        %3375 = vrot.lane.b32.xlu0 %v3368, 12
        %v3376 = vpop.permute.xlu0 %3375
        %3377 = vrot.lane.b32.xlu0 %v3370, 12
        %v3378 = vpop.permute.xlu0 %3377
        %3379 = vrot.lane.b32.xlu0 %v3372, 12
        %v3380 = vpop.permute.xlu0 %3379
        %3381 = vrot.lane.b32.xlu0 %v3374, 12
        %v3382 = vpop.permute.xlu0 %3381
        %3383 = vrot.lane.b32.xlu0 %v3373, 12
        %v3384 = vpop.permute.xlu0 %3383
        %v3390 = vrot.slane %v497, 4
        %v3391 = vsel %vm2305, %v2527, %v3390
        %v3392 = vrot.slane %v498, 4
        %v3393 = vsel %vm2305, %v3390, %v3392
        %v3394 = vrot.slane %v499, 4
        %v3395 = vsel %vm2305, %v3392, %v3394
        %v3396 = vrot.slane %v500, 4
        %v3397 = vsel %vm2305, %v3394, %v3396
        %3398 = vrot.lane.b32.xlu0 %v3391, 16
        %v3399 = vpop.permute.xlu0 %3398
        %3400 = vrot.lane.b32.xlu0 %v3393, 16
        %v3401 = vpop.permute.xlu0 %3400
        %3402 = vrot.lane.b32.xlu0 %v3395, 16
        %v3403 = vpop.permute.xlu0 %3402
        %3404 = vrot.lane.b32.xlu0 %v3397, 16
        %v3405 = vpop.permute.xlu0 %3404
        %3406 = vrot.lane.b32.xlu0 %v3396, 16
        %v3407 = vpop.permute.xlu0 %3406
        %v3413 = vsel %vm2865, %v496, %v3330
        %v3414 = vsel %vm2865, %v497, %v3332
        %v3415 = vsel %vm2865, %v498, %v3334
        %v3416 = vsel %vm2865, %v499, %v3336
        %v3417 = vsel %vm2865, %v500, %v3338
        %v3418 = vsel %vm2978, %v3413, %v3353
        %v3419 = vsel %vm2978, %v3414, %v3355
        %v3420 = vsel %vm2978, %v3415, %v3357
        %v3421 = vsel %vm2978, %v3416, %v3359
        %v3422 = vsel %vm2978, %v3417, %v3361
        %v3423 = vsel %vm3091, %v3418, %v3376
        %v3424 = vsel %vm3091, %v3419, %v3378
        %v3425 = vsel %vm3091, %v3420, %v3380
        %v3426 = vsel %vm3091, %v3421, %v3382
        %v3427 = vsel %vm3091, %v3422, %v3384
        %v3428 = vsel %vm3204, %v3423, %v3399
        %v3429 = vsel %vm3204, %v3424, %v3401
        %v3430 = vsel %vm3204, %v3425, %v3403
        %v3431 = vsel %vm3204, %v3426, %v3405
        %v3432 = vsel %vm3204, %v3427, %v3407
        %v3437 = vrot.slane %v501, 1
        %v3438 = vsel %vm625, %v3327, %v3437
        %v3439 = vrot.slane %v502, 1
        %v3440 = vsel %vm625, %v3437, %v3439
        %v3441 = vrot.slane %v503, 1
        %v3442 = vsel %vm625, %v3439, %v3441
        %v3443 = vrot.slane %v504, 1
        %v3444 = vsel %vm625, %v3441, %v3443
        %3445 = vrot.lane.b32.xlu0 %v3438, 4
        %v3446 = vpop.permute.xlu0 %3445
        %3447 = vrot.lane.b32.xlu0 %v3440, 4
        %v3448 = vpop.permute.xlu0 %3447
        %3449 = vrot.lane.b32.xlu0 %v3442, 4
        %v3450 = vpop.permute.xlu0 %3449
        %3451 = vrot.lane.b32.xlu0 %v3444, 4
        %v3452 = vpop.permute.xlu0 %3451
        %3453 = vrot.lane.b32.xlu0 %v3443, 4
        %v3454 = vpop.permute.xlu0 %3453
        %v3460 = vrot.slane %v501, 2
        %v3461 = vsel %vm1185, %v3350, %v3460
        %v3462 = vrot.slane %v502, 2
        %v3463 = vsel %vm1185, %v3460, %v3462
        %v3464 = vrot.slane %v503, 2
        %v3465 = vsel %vm1185, %v3462, %v3464
        %v3466 = vrot.slane %v504, 2
        %v3467 = vsel %vm1185, %v3464, %v3466
        %3468 = vrot.lane.b32.xlu0 %v3461, 8
        %v3469 = vpop.permute.xlu0 %3468
        %3470 = vrot.lane.b32.xlu0 %v3463, 8
        %v3471 = vpop.permute.xlu0 %3470
        %3472 = vrot.lane.b32.xlu0 %v3465, 8
        %v3473 = vpop.permute.xlu0 %3472
        %3474 = vrot.lane.b32.xlu0 %v3467, 8
        %v3475 = vpop.permute.xlu0 %3474
        %3476 = vrot.lane.b32.xlu0 %v3466, 8
        %v3477 = vpop.permute.xlu0 %3476
        %v3483 = vrot.slane %v501, 3
        %v3484 = vsel %vm1745, %v3373, %v3483
        %v3485 = vrot.slane %v502, 3
        %v3486 = vsel %vm1745, %v3483, %v3485
        %v3487 = vrot.slane %v503, 3
        %v3488 = vsel %vm1745, %v3485, %v3487
        %v3489 = vrot.slane %v504, 3
        %v3490 = vsel %vm1745, %v3487, %v3489
        %3491 = vrot.lane.b32.xlu0 %v3484, 12
        %v3492 = vpop.permute.xlu0 %3491
        %3493 = vrot.lane.b32.xlu0 %v3486, 12
        %v3494 = vpop.permute.xlu0 %3493
        %3495 = vrot.lane.b32.xlu0 %v3488, 12
        %v3496 = vpop.permute.xlu0 %3495
        %3497 = vrot.lane.b32.xlu0 %v3490, 12
        %v3498 = vpop.permute.xlu0 %3497
        %3499 = vrot.lane.b32.xlu0 %v3489, 12
        %v3500 = vpop.permute.xlu0 %3499
        %v3506 = vrot.slane %v501, 4
        %v3507 = vsel %vm2305, %v3396, %v3506
        %v3508 = vrot.slane %v502, 4
        %v3509 = vsel %vm2305, %v3506, %v3508
        %v3510 = vrot.slane %v503, 4
        %v3511 = vsel %vm2305, %v3508, %v3510
        %v3512 = vrot.slane %v504, 4
        %v3513 = vsel %vm2305, %v3510, %v3512
        %3514 = vrot.lane.b32.xlu0 %v3507, 16
        %v3515 = vpop.permute.xlu0 %3514
        %3516 = vrot.lane.b32.xlu0 %v3509, 16
        %v3517 = vpop.permute.xlu0 %3516
        %3518 = vrot.lane.b32.xlu0 %v3511, 16
        %v3519 = vpop.permute.xlu0 %3518
        %3520 = vrot.lane.b32.xlu0 %v3513, 16
        %v3521 = vpop.permute.xlu0 %3520
        %3522 = vrot.lane.b32.xlu0 %v3512, 16
        %v3523 = vpop.permute.xlu0 %3522
        %v3529 = vsel %vm2865, %v500, %v3446
        %v3530 = vsel %vm2865, %v501, %v3448
        %v3531 = vsel %vm2865, %v502, %v3450
        %v3532 = vsel %vm2865, %v503, %v3452
        %v3533 = vsel %vm2865, %v504, %v3454
        %v3534 = vsel %vm2978, %v3529, %v3469
        %v3535 = vsel %vm2978, %v3530, %v3471
        %v3536 = vsel %vm2978, %v3531, %v3473
        %v3537 = vsel %vm2978, %v3532, %v3475
        %v3538 = vsel %vm2978, %v3533, %v3477
        %v3539 = vsel %vm3091, %v3534, %v3492
        %v3540 = vsel %vm3091, %v3535, %v3494
        %v3541 = vsel %vm3091, %v3536, %v3496
        %v3542 = vsel %vm3091, %v3537, %v3498
        %v3543 = vsel %vm3091, %v3538, %v3500
        %v3544 = vsel %vm3204, %v3539, %v3515
        %v3545 = vsel %vm3204, %v3540, %v3517
        %v3546 = vsel %vm3204, %v3541, %v3519
        %v3547 = vsel %vm3204, %v3542, %v3521
        %v3548 = vsel %vm3204, %v3543, %v3523
        %v3553 = vrot.slane %v505, 1
        %v3554 = vsel %vm625, %v3443, %v3553
        %v3555 = vrot.slane %v506, 1
        %v3556 = vsel %vm625, %v3553, %v3555
        %v3557 = vrot.slane %v507, 1
        %v3558 = vsel %vm625, %v3555, %v3557
        %v3559 = vrot.slane %v508, 1
        %v3560 = vsel %vm625, %v3557, %v3559
        %3561 = vrot.lane.b32.xlu0 %v3554, 4
        %v3562 = vpop.permute.xlu0 %3561
        %3563 = vrot.lane.b32.xlu0 %v3556, 4
        %v3564 = vpop.permute.xlu0 %3563
        %3565 = vrot.lane.b32.xlu0 %v3558, 4
        %v3566 = vpop.permute.xlu0 %3565
        %3567 = vrot.lane.b32.xlu0 %v3560, 4
        %v3568 = vpop.permute.xlu0 %3567
        %3569 = vrot.lane.b32.xlu0 %v3559, 4
        %v3570 = vpop.permute.xlu0 %3569
        %v3576 = vrot.slane %v505, 2
        %v3577 = vsel %vm1185, %v3466, %v3576
        %v3578 = vrot.slane %v506, 2
        %v3579 = vsel %vm1185, %v3576, %v3578
        %v3580 = vrot.slane %v507, 2
        %v3581 = vsel %vm1185, %v3578, %v3580
        %v3582 = vrot.slane %v508, 2
        %v3583 = vsel %vm1185, %v3580, %v3582
        %3584 = vrot.lane.b32.xlu0 %v3577, 8
        %v3585 = vpop.permute.xlu0 %3584
        %3586 = vrot.lane.b32.xlu0 %v3579, 8
        %v3587 = vpop.permute.xlu0 %3586
        %3588 = vrot.lane.b32.xlu0 %v3581, 8
        %v3589 = vpop.permute.xlu0 %3588
        %3590 = vrot.lane.b32.xlu0 %v3583, 8
        %v3591 = vpop.permute.xlu0 %3590
        %3592 = vrot.lane.b32.xlu0 %v3582, 8
        %v3593 = vpop.permute.xlu0 %3592
        %v3599 = vrot.slane %v505, 3
        %v3600 = vsel %vm1745, %v3489, %v3599
        %v3601 = vrot.slane %v506, 3
        %v3602 = vsel %vm1745, %v3599, %v3601
        %v3603 = vrot.slane %v507, 3
        %v3604 = vsel %vm1745, %v3601, %v3603
        %v3605 = vrot.slane %v508, 3
        %v3606 = vsel %vm1745, %v3603, %v3605
        %3607 = vrot.lane.b32.xlu0 %v3600, 12
        %v3608 = vpop.permute.xlu0 %3607
        %3609 = vrot.lane.b32.xlu0 %v3602, 12
        %v3610 = vpop.permute.xlu0 %3609
        %3611 = vrot.lane.b32.xlu0 %v3604, 12
        %v3612 = vpop.permute.xlu0 %3611
        %3613 = vrot.lane.b32.xlu0 %v3606, 12
        %v3614 = vpop.permute.xlu0 %3613
        %3615 = vrot.lane.b32.xlu0 %v3605, 12
        %v3616 = vpop.permute.xlu0 %3615
        %v3622 = vrot.slane %v505, 4
        %v3623 = vsel %vm2305, %v3512, %v3622
        %v3624 = vrot.slane %v506, 4
        %v3625 = vsel %vm2305, %v3622, %v3624
        %v3626 = vrot.slane %v507, 4
        %v3627 = vsel %vm2305, %v3624, %v3626
        %v3628 = vrot.slane %v508, 4
        %v3629 = vsel %vm2305, %v3626, %v3628
        %3630 = vrot.lane.b32.xlu0 %v3623, 16
        %v3631 = vpop.permute.xlu0 %3630
        %3632 = vrot.lane.b32.xlu0 %v3625, 16
        %v3633 = vpop.permute.xlu0 %3632
        %3634 = vrot.lane.b32.xlu0 %v3627, 16
        %v3635 = vpop.permute.xlu0 %3634
        %3636 = vrot.lane.b32.xlu0 %v3629, 16
        %v3637 = vpop.permute.xlu0 %3636
        %3638 = vrot.lane.b32.xlu0 %v3628, 16
        %v3639 = vpop.permute.xlu0 %3638
        %v3645 = vsel %vm2865, %v504, %v3562
        %v3646 = vsel %vm2865, %v505, %v3564
        %v3647 = vsel %vm2865, %v506, %v3566
        %v3648 = vsel %vm2865, %v507, %v3568
        %v3649 = vsel %vm2865, %v508, %v3570
        %v3650 = vsel %vm2978, %v3645, %v3585
        %v3651 = vsel %vm2978, %v3646, %v3587
        %v3652 = vsel %vm2978, %v3647, %v3589
        %v3653 = vsel %vm2978, %v3648, %v3591
        %v3654 = vsel %vm2978, %v3649, %v3593
        %v3655 = vsel %vm3091, %v3650, %v3608
        %v3656 = vsel %vm3091, %v3651, %v3610
        %v3657 = vsel %vm3091, %v3652, %v3612
        %v3658 = vsel %vm3091, %v3653, %v3614
        %v3659 = vsel %vm3091, %v3654, %v3616
        %v3660 = vsel %vm3204, %v3655, %v3631
        %v3661 = vsel %vm3204, %v3656, %v3633
        %v3662 = vsel %vm3204, %v3657, %v3635
        %v3663 = vsel %vm3204, %v3658, %v3637
        %v3664 = vsel %vm3204, %v3659, %v3639
        %v3669 = vrot.slane %v509, 1
        %v3670 = vsel %vm625, %v3559, %v3669
        %v3671 = vrot.slane %v510, 1
        %v3672 = vsel %vm625, %v3669, %v3671
        %v3673 = vrot.slane %v511, 1
        %v3674 = vsel %vm625, %v3671, %v3673
        %v3675 = vrot.slane %v512, 1
        %v3676 = vsel %vm625, %v3673, %v3675
        %3677 = vrot.lane.b32.xlu0 %v3670, 4
        %v3678 = vpop.permute.xlu0 %3677
        %3679 = vrot.lane.b32.xlu0 %v3672, 4
        %v3680 = vpop.permute.xlu0 %3679
        %3681 = vrot.lane.b32.xlu0 %v3674, 4
        %v3682 = vpop.permute.xlu0 %3681
        %3683 = vrot.lane.b32.xlu0 %v3676, 4
        %v3684 = vpop.permute.xlu0 %3683
        %3685 = vrot.lane.b32.xlu0 %v3675, 4
        %v3686 = vpop.permute.xlu0 %3685
        %v3692 = vrot.slane %v509, 2
        %v3693 = vsel %vm1185, %v3582, %v3692
        %v3694 = vrot.slane %v510, 2
        %v3695 = vsel %vm1185, %v3692, %v3694
        %v3696 = vrot.slane %v511, 2
        %v3697 = vsel %vm1185, %v3694, %v3696
        %v3698 = vrot.slane %v512, 2
        %v3699 = vsel %vm1185, %v3696, %v3698
        %3700 = vrot.lane.b32.xlu0 %v3693, 8
        %v3701 = vpop.permute.xlu0 %3700
        %3702 = vrot.lane.b32.xlu0 %v3695, 8
        %v3703 = vpop.permute.xlu0 %3702
        %3704 = vrot.lane.b32.xlu0 %v3697, 8
        %v3705 = vpop.permute.xlu0 %3704
        %3706 = vrot.lane.b32.xlu0 %v3699, 8
        %v3707 = vpop.permute.xlu0 %3706
        %3708 = vrot.lane.b32.xlu0 %v3698, 8
        %v3709 = vpop.permute.xlu0 %3708
        %v3715 = vrot.slane %v509, 3
        %v3716 = vsel %vm1745, %v3605, %v3715
        %v3717 = vrot.slane %v510, 3
        %v3718 = vsel %vm1745, %v3715, %v3717
        %v3719 = vrot.slane %v511, 3
        %v3720 = vsel %vm1745, %v3717, %v3719
        %v3721 = vrot.slane %v512, 3
        %v3722 = vsel %vm1745, %v3719, %v3721
        %3723 = vrot.lane.b32.xlu0 %v3716, 12
        %v3724 = vpop.permute.xlu0 %3723
        %3725 = vrot.lane.b32.xlu0 %v3718, 12
        %v3726 = vpop.permute.xlu0 %3725
        %3727 = vrot.lane.b32.xlu0 %v3720, 12
        %v3728 = vpop.permute.xlu0 %3727
        %3729 = vrot.lane.b32.xlu0 %v3722, 12
        %v3730 = vpop.permute.xlu0 %3729
        %3731 = vrot.lane.b32.xlu0 %v3721, 12
        %v3732 = vpop.permute.xlu0 %3731
        %v3738 = vrot.slane %v509, 4
        %v3739 = vsel %vm2305, %v3628, %v3738
        %v3740 = vrot.slane %v510, 4
        %v3741 = vsel %vm2305, %v3738, %v3740
        %v3742 = vrot.slane %v511, 4
        %v3743 = vsel %vm2305, %v3740, %v3742
        %v3744 = vrot.slane %v512, 4
        %v3745 = vsel %vm2305, %v3742, %v3744
        %3746 = vrot.lane.b32.xlu0 %v3739, 16
        %v3747 = vpop.permute.xlu0 %3746
        %3748 = vrot.lane.b32.xlu0 %v3741, 16
        %v3749 = vpop.permute.xlu0 %3748
        %3750 = vrot.lane.b32.xlu0 %v3743, 16
        %v3751 = vpop.permute.xlu0 %3750
        %3752 = vrot.lane.b32.xlu0 %v3745, 16
        %v3753 = vpop.permute.xlu0 %3752
        %3754 = vrot.lane.b32.xlu0 %v3744, 16
        %v3755 = vpop.permute.xlu0 %3754
        %v3761 = vsel %vm2865, %v508, %v3678
        %v3762 = vsel %vm2865, %v509, %v3680
        %v3763 = vsel %vm2865, %v510, %v3682
        %v3764 = vsel %vm2865, %v511, %v3684
        %v3765 = vsel %vm2865, %v512, %v3686
        %v3766 = vsel %vm2978, %v3761, %v3701
        %v3767 = vsel %vm2978, %v3762, %v3703
        %v3768 = vsel %vm2978, %v3763, %v3705
        %v3769 = vsel %vm2978, %v3764, %v3707
        %v3770 = vsel %vm2978, %v3765, %v3709
        %v3771 = vsel %vm3091, %v3766, %v3724
        %v3772 = vsel %vm3091, %v3767, %v3726
        %v3773 = vsel %vm3091, %v3768, %v3728
        %v3774 = vsel %vm3091, %v3769, %v3730
        %v3775 = vsel %vm3091, %v3770, %v3732
        %v3776 = vsel %vm3204, %v3771, %v3747
        %v3777 = vsel %vm3204, %v3772, %v3749
        %v3778 = vsel %vm3204, %v3773, %v3751
        %v3779 = vsel %vm3204, %v3774, %v3753
        %v3780 = vsel %vm3204, %v3775, %v3755
        %3893 = vrot.lane.b32.xlu0 %v3209, 20
        %v3894 = vpop.permute.xlu0 %3893
        %3895 = vrot.lane.b32.xlu0 %v3210, 20
        %v3896 = vpop.permute.xlu0 %3895
        %3897 = vrot.lane.b32.xlu0 %v3211, 20
        %v3898 = vpop.permute.xlu0 %3897
        %3899 = vrot.lane.b32.xlu0 %v3212, 20
        %v3900 = vpop.permute.xlu0 %3899
        %3901 = vrot.lane.b32.xlu0 %v3213, 20
        %v3902 = vpop.permute.xlu0 %3901
        %3903 = vrot.lane.b32.xlu0 %v3214, 20
        %v3904 = vpop.permute.xlu0 %3903
        %3905 = vrot.lane.b32.xlu0 %v3215, 20
        %v3906 = vpop.permute.xlu0 %3905
        %3907 = vrot.lane.b32.xlu0 %v3216, 20
        %v3908 = vpop.permute.xlu0 %3907
        %3909 = vrot.lane.b32.xlu0 %v3217, 20
        %v3910 = vpop.permute.xlu0 %3909
        %3911 = vrot.lane.b32.xlu0 %v3218, 20
        %v3912 = vpop.permute.xlu0 %3911
        %3913 = vrot.lane.b32.xlu0 %v3219, 20
        %v3914 = vpop.permute.xlu0 %3913
        %3915 = vrot.lane.b32.xlu0 %v3220, 20
        %v3916 = vpop.permute.xlu0 %3915
        %3917 = vrot.lane.b32.xlu0 %v3221, 20
        %v3918 = vpop.permute.xlu0 %3917
        %3919 = vrot.lane.b32.xlu0 %v3222, 20
        %v3920 = vpop.permute.xlu0 %3919
        %3921 = vrot.lane.b32.xlu0 %v3223, 20
        %v3922 = vpop.permute.xlu0 %3921
        %3923 = vrot.lane.b32.xlu0 %v3224, 20
        %v3924 = vpop.permute.xlu0 %3923
        %3925 = vrot.lane.b32.xlu0 %v3225, 20
        %v3926 = vpop.permute.xlu0 %3925
        %3927 = vrot.lane.b32.xlu0 %v3226, 20
        %v3928 = vpop.permute.xlu0 %3927
        %3929 = vrot.lane.b32.xlu0 %v3227, 20
        %v3930 = vpop.permute.xlu0 %3929
        %3931 = vrot.lane.b32.xlu0 %v3228, 20
        %v3932 = vpop.permute.xlu0 %3931
        %3933 = vrot.lane.b32.xlu0 %v3229, 20
        %v3934 = vpop.permute.xlu0 %3933
        %3935 = vrot.lane.b32.xlu0 %v3230, 20
        %v3936 = vpop.permute.xlu0 %3935
        %3937 = vrot.lane.b32.xlu0 %v3231, 20
        %v3938 = vpop.permute.xlu0 %3937
        %3939 = vrot.lane.b32.xlu0 %v3232, 20
        %v3940 = vpop.permute.xlu0 %3939
        %3941 = vrot.lane.b32.xlu0 %v3233, 20
        %v3942 = vpop.permute.xlu0 %3941
        %3943 = vrot.lane.b32.xlu0 %v3234, 20
        %v3944 = vpop.permute.xlu0 %3943
        %3945 = vrot.lane.b32.xlu0 %v3235, 20
        %v3946 = vpop.permute.xlu0 %3945
        %3947 = vrot.lane.b32.xlu0 %v3236, 20
        %v3948 = vpop.permute.xlu0 %3947
        %3949 = vrot.lane.b32.xlu0 %v3237, 20
        %v3950 = vpop.permute.xlu0 %3949
        %3951 = vrot.lane.b32.xlu0 %v3238, 20
        %v3952 = vpop.permute.xlu0 %3951
        %3953 = vrot.lane.b32.xlu0 %v3239, 20
        %v3954 = vpop.permute.xlu0 %3953
        %3955 = vrot.lane.b32.xlu0 %v3240, 20
        %v3956 = vpop.permute.xlu0 %3955
        %3957 = vrot.lane.b32.xlu0 %v3241, 20
        %v3958 = vpop.permute.xlu0 %3957
        %3959 = vrot.lane.b32.xlu0 %v3242, 20
        %v3960 = vpop.permute.xlu0 %3959
        %3961 = vrot.lane.b32.xlu0 %v3243, 20
        %v3962 = vpop.permute.xlu0 %3961
        %3963 = vrot.lane.b32.xlu0 %v3244, 20
        %v3964 = vpop.permute.xlu0 %3963
        %3965 = vrot.lane.b32.xlu0 %v3245, 20
        %v3966 = vpop.permute.xlu0 %3965
        %3967 = vrot.lane.b32.xlu0 %v3246, 20
        %v3968 = vpop.permute.xlu0 %3967
        %3969 = vrot.lane.b32.xlu0 %v3247, 20
        %v3970 = vpop.permute.xlu0 %3969
        %3971 = vrot.lane.b32.xlu0 %v3248, 20
        %v3972 = vpop.permute.xlu0 %3971
        %3973 = vrot.lane.b32.xlu0 %v3249, 20
        %v3974 = vpop.permute.xlu0 %3973
        %3975 = vrot.lane.b32.xlu0 %v3250, 20
        %v3976 = vpop.permute.xlu0 %3975
        %3977 = vrot.lane.b32.xlu0 %v3251, 20
        %v3978 = vpop.permute.xlu0 %3977
        %3979 = vrot.lane.b32.xlu0 %v3252, 20
        %v3980 = vpop.permute.xlu0 %3979
        %3981 = vrot.lane.b32.xlu0 %v3253, 20
        %v3982 = vpop.permute.xlu0 %3981
        %3983 = vrot.lane.b32.xlu0 %v3254, 20
        %v3984 = vpop.permute.xlu0 %3983
        %3985 = vrot.lane.b32.xlu0 %v3255, 20
        %v3986 = vpop.permute.xlu0 %3985
        %3987 = vrot.lane.b32.xlu0 %v3256, 20
        %v3988 = vpop.permute.xlu0 %3987
        %3989 = vrot.lane.b32.xlu0 %v3257, 20
        %v3990 = vpop.permute.xlu0 %3989
        %3991 = vrot.lane.b32.xlu0 %v3258, 20
        %v3992 = vpop.permute.xlu0 %3991
        %3993 = vrot.lane.b32.xlu0 %v3259, 20
        %v3994 = vpop.permute.xlu0 %3993
        %3995 = vrot.lane.b32.xlu0 %v3260, 20
        %v3996 = vpop.permute.xlu0 %3995
        %3997 = vrot.lane.b32.xlu0 %v3261, 20
        %v3998 = vpop.permute.xlu0 %3997
        %3999 = vrot.lane.b32.xlu0 %v3262, 20
        %v4000 = vpop.permute.xlu0 %3999
        %4001 = vrot.lane.b32.xlu0 %v3263, 20
        %v4002 = vpop.permute.xlu0 %4001
        %4003 = vrot.lane.b32.xlu0 %v3264, 20
        %v4004 = vpop.permute.xlu0 %4003
        %4005 = vrot.lane.b32.xlu0 %v3265, 20
        %v4006 = vpop.permute.xlu0 %4005
        %4007 = vrot.lane.b32.xlu0 %v3266, 20
        %v4008 = vpop.permute.xlu0 %4007
        %4009 = vrot.lane.b32.xlu0 %v3267, 20
        %v4010 = vpop.permute.xlu0 %4009
        %4011 = vrot.lane.b32.xlu0 %v3268, 20
        %v4012 = vpop.permute.xlu0 %4011
        %4013 = vrot.lane.b32.xlu0 %v3269, 20
        %v4014 = vpop.permute.xlu0 %4013
        %4015 = vrot.lane.b32.xlu0 %v3270, 20
        %v4016 = vpop.permute.xlu0 %4015
        %4017 = vrot.lane.b32.xlu0 %v3271, 20
        %v4018 = vpop.permute.xlu0 %4017
        %4019 = vrot.lane.b32.xlu0 %v3272, 20
        %v4020 = vpop.permute.xlu0 %4019
        %4021 = vrot.lane.b32.xlu0 %v3273, 20
        %v4022 = vpop.permute.xlu0 %4021
        %4023 = vrot.lane.b32.xlu0 %v3274, 20
        %v4024 = vpop.permute.xlu0 %4023
        %4025 = vrot.lane.b32.xlu0 %v3275, 20
        %v4026 = vpop.permute.xlu0 %4025
        %4027 = vrot.lane.b32.xlu0 %v3276, 20
        %v4028 = vpop.permute.xlu0 %4027
        %4029 = vrot.lane.b32.xlu0 %v3277, 20
        %v4030 = vpop.permute.xlu0 %4029
        %4031 = vrot.lane.b32.xlu0 %v3278, 20
        %v4032 = vpop.permute.xlu0 %4031
        %4033 = vrot.lane.b32.xlu0 %v3279, 20
        %v4034 = vpop.permute.xlu0 %4033
        %4035 = vrot.lane.b32.xlu0 %v3280, 20
        %v4036 = vpop.permute.xlu0 %4035
        %4037 = vrot.lane.b32.xlu0 %v3281, 20
        %v4038 = vpop.permute.xlu0 %4037
        %4039 = vrot.lane.b32.xlu0 %v3282, 20
        %v4040 = vpop.permute.xlu0 %4039
        %4041 = vrot.lane.b32.xlu0 %v3283, 20
        %v4042 = vpop.permute.xlu0 %4041
        %4043 = vrot.lane.b32.xlu0 %v3284, 20
        %v4044 = vpop.permute.xlu0 %4043
        %4045 = vrot.lane.b32.xlu0 %v3285, 20
        %v4046 = vpop.permute.xlu0 %4045
        %4047 = vrot.lane.b32.xlu0 %v3286, 20
        %v4048 = vpop.permute.xlu0 %4047
        %4049 = vrot.lane.b32.xlu0 %v3287, 20
        %v4050 = vpop.permute.xlu0 %4049
        %4051 = vrot.lane.b32.xlu0 %v3288, 20
        %v4052 = vpop.permute.xlu0 %4051
        %4053 = vrot.lane.b32.xlu0 %v3289, 20
        %v4054 = vpop.permute.xlu0 %4053
        %4055 = vrot.lane.b32.xlu0 %v3290, 20
        %v4056 = vpop.permute.xlu0 %4055
        %4057 = vrot.lane.b32.xlu0 %v3291, 20
        %v4058 = vpop.permute.xlu0 %4057
        %4059 = vrot.lane.b32.xlu0 %v3292, 20
        %v4060 = vpop.permute.xlu0 %4059
        %4061 = vrot.lane.b32.xlu0 %v3293, 20
        %v4062 = vpop.permute.xlu0 %4061
        %4063 = vrot.lane.b32.xlu0 %v3294, 20
        %v4064 = vpop.permute.xlu0 %4063
        %4065 = vrot.lane.b32.xlu0 %v3295, 20
        %v4066 = vpop.permute.xlu0 %4065
        %4067 = vrot.lane.b32.xlu0 %v3296, 20
        %v4068 = vpop.permute.xlu0 %4067
        %4069 = vrot.lane.b32.xlu0 %v3297, 20
        %v4070 = vpop.permute.xlu0 %4069
        %4071 = vrot.lane.b32.xlu0 %v3298, 20
        %v4072 = vpop.permute.xlu0 %4071
        %4073 = vrot.lane.b32.xlu0 %v3299, 20
        %v4074 = vpop.permute.xlu0 %4073
        %4075 = vrot.lane.b32.xlu0 %v3300, 20
        %v4076 = vpop.permute.xlu0 %4075
        %4077 = vrot.lane.b32.xlu0 %v3301, 20
        %v4078 = vpop.permute.xlu0 %4077
        %4079 = vrot.lane.b32.xlu0 %v3302, 20
        %v4080 = vpop.permute.xlu0 %4079
        %4081 = vrot.lane.b32.xlu0 %v3303, 20
        %v4082 = vpop.permute.xlu0 %4081
        %4083 = vrot.lane.b32.xlu0 %v3304, 20
        %v4084 = vpop.permute.xlu0 %4083
        %4085 = vrot.lane.b32.xlu0 %v3305, 20
        %v4086 = vpop.permute.xlu0 %4085
        %4087 = vrot.lane.b32.xlu0 %v3306, 20
        %v4088 = vpop.permute.xlu0 %4087
        %4089 = vrot.lane.b32.xlu0 %v3307, 20
        %v4090 = vpop.permute.xlu0 %4089
        %4091 = vrot.lane.b32.xlu0 %v3308, 20
        %v4092 = vpop.permute.xlu0 %4091
        %4093 = vrot.lane.b32.xlu0 %v3309, 20
        %v4094 = vpop.permute.xlu0 %4093
        %4095 = vrot.lane.b32.xlu0 %v3310, 20
        %v4096 = vpop.permute.xlu0 %4095
        %4097 = vrot.lane.b32.xlu0 %v3311, 20
        %v4098 = vpop.permute.xlu0 %4097
        %4099 = vrot.lane.b32.xlu0 %v3312, 20
        %v4100 = vpop.permute.xlu0 %4099
        %4101 = vrot.lane.b32.xlu0 %v3313, 20
        %v4102 = vpop.permute.xlu0 %4101
        %4103 = vrot.lane.b32.xlu0 %v3314, 20
        %v4104 = vpop.permute.xlu0 %4103
        %4105 = vrot.lane.b32.xlu0 %v3315, 20
        %v4106 = vpop.permute.xlu0 %4105
        %4107 = vrot.lane.b32.xlu0 %v3428, 20
        %v4108 = vpop.permute.xlu0 %4107
        %4109 = vrot.lane.b32.xlu0 %v3429, 20
        %v4110 = vpop.permute.xlu0 %4109
        %4111 = vrot.lane.b32.xlu0 %v3430, 20
        %v4112 = vpop.permute.xlu0 %4111
        %4113 = vrot.lane.b32.xlu0 %v3431, 20
        %v4114 = vpop.permute.xlu0 %4113
        %4115 = vrot.lane.b32.xlu0 %v3432, 20
        %v4116 = vpop.permute.xlu0 %4115
        %4234 = vrot.lane.b32.xlu0 %v3213, 40
        %v4235 = vpop.permute.xlu0 %4234
        %4236 = vrot.lane.b32.xlu0 %v3214, 40
        %v4237 = vpop.permute.xlu0 %4236
        %4238 = vrot.lane.b32.xlu0 %v3215, 40
        %v4239 = vpop.permute.xlu0 %4238
        %4240 = vrot.lane.b32.xlu0 %v3216, 40
        %v4241 = vpop.permute.xlu0 %4240
        %4242 = vrot.lane.b32.xlu0 %v3217, 40
        %v4243 = vpop.permute.xlu0 %4242
        %4244 = vrot.lane.b32.xlu0 %v3218, 40
        %v4245 = vpop.permute.xlu0 %4244
        %4246 = vrot.lane.b32.xlu0 %v3219, 40
        %v4247 = vpop.permute.xlu0 %4246
        %4248 = vrot.lane.b32.xlu0 %v3220, 40
        %v4249 = vpop.permute.xlu0 %4248
        %4250 = vrot.lane.b32.xlu0 %v3221, 40
        %v4251 = vpop.permute.xlu0 %4250
        %4252 = vrot.lane.b32.xlu0 %v3222, 40
        %v4253 = vpop.permute.xlu0 %4252
        %4254 = vrot.lane.b32.xlu0 %v3223, 40
        %v4255 = vpop.permute.xlu0 %4254
        %4256 = vrot.lane.b32.xlu0 %v3224, 40
        %v4257 = vpop.permute.xlu0 %4256
        %4258 = vrot.lane.b32.xlu0 %v3225, 40
        %v4259 = vpop.permute.xlu0 %4258
        %4260 = vrot.lane.b32.xlu0 %v3226, 40
        %v4261 = vpop.permute.xlu0 %4260
        %4262 = vrot.lane.b32.xlu0 %v3227, 40
        %v4263 = vpop.permute.xlu0 %4262
        %4264 = vrot.lane.b32.xlu0 %v3228, 40
        %v4265 = vpop.permute.xlu0 %4264
        %4266 = vrot.lane.b32.xlu0 %v3229, 40
        %v4267 = vpop.permute.xlu0 %4266
        %4268 = vrot.lane.b32.xlu0 %v3230, 40
        %v4269 = vpop.permute.xlu0 %4268
        %4270 = vrot.lane.b32.xlu0 %v3231, 40
        %v4271 = vpop.permute.xlu0 %4270
        %4272 = vrot.lane.b32.xlu0 %v3232, 40
        %v4273 = vpop.permute.xlu0 %4272
        %4274 = vrot.lane.b32.xlu0 %v3233, 40
        %v4275 = vpop.permute.xlu0 %4274
        %4276 = vrot.lane.b32.xlu0 %v3234, 40
        %v4277 = vpop.permute.xlu0 %4276
        %4278 = vrot.lane.b32.xlu0 %v3235, 40
        %v4279 = vpop.permute.xlu0 %4278
        %4280 = vrot.lane.b32.xlu0 %v3236, 40
        %v4281 = vpop.permute.xlu0 %4280
        %4282 = vrot.lane.b32.xlu0 %v3237, 40
        %v4283 = vpop.permute.xlu0 %4282
        %4284 = vrot.lane.b32.xlu0 %v3238, 40
        %v4285 = vpop.permute.xlu0 %4284
        %4286 = vrot.lane.b32.xlu0 %v3239, 40
        %v4287 = vpop.permute.xlu0 %4286
        %4288 = vrot.lane.b32.xlu0 %v3240, 40
        %v4289 = vpop.permute.xlu0 %4288
        %4290 = vrot.lane.b32.xlu0 %v3241, 40
        %v4291 = vpop.permute.xlu0 %4290
        %4292 = vrot.lane.b32.xlu0 %v3242, 40
        %v4293 = vpop.permute.xlu0 %4292
        %4294 = vrot.lane.b32.xlu0 %v3243, 40
        %v4295 = vpop.permute.xlu0 %4294
        %4296 = vrot.lane.b32.xlu0 %v3244, 40
        %v4297 = vpop.permute.xlu0 %4296
        %4298 = vrot.lane.b32.xlu0 %v3245, 40
        %v4299 = vpop.permute.xlu0 %4298
        %4300 = vrot.lane.b32.xlu0 %v3246, 40
        %v4301 = vpop.permute.xlu0 %4300
        %4302 = vrot.lane.b32.xlu0 %v3247, 40
        %v4303 = vpop.permute.xlu0 %4302
        %4304 = vrot.lane.b32.xlu0 %v3248, 40
        %v4305 = vpop.permute.xlu0 %4304
        %4306 = vrot.lane.b32.xlu0 %v3249, 40
        %v4307 = vpop.permute.xlu0 %4306
        %4308 = vrot.lane.b32.xlu0 %v3250, 40
        %v4309 = vpop.permute.xlu0 %4308
        %4310 = vrot.lane.b32.xlu0 %v3251, 40
        %v4311 = vpop.permute.xlu0 %4310
        %4312 = vrot.lane.b32.xlu0 %v3252, 40
        %v4313 = vpop.permute.xlu0 %4312
        %4314 = vrot.lane.b32.xlu0 %v3253, 40
        %v4315 = vpop.permute.xlu0 %4314
        %4316 = vrot.lane.b32.xlu0 %v3254, 40
        %v4317 = vpop.permute.xlu0 %4316
        %4318 = vrot.lane.b32.xlu0 %v3255, 40
        %v4319 = vpop.permute.xlu0 %4318
        %4320 = vrot.lane.b32.xlu0 %v3256, 40
        %v4321 = vpop.permute.xlu0 %4320
        %4322 = vrot.lane.b32.xlu0 %v3257, 40
        %v4323 = vpop.permute.xlu0 %4322
        %4324 = vrot.lane.b32.xlu0 %v3258, 40
        %v4325 = vpop.permute.xlu0 %4324
        %4326 = vrot.lane.b32.xlu0 %v3259, 40
        %v4327 = vpop.permute.xlu0 %4326
        %4328 = vrot.lane.b32.xlu0 %v3260, 40
        %v4329 = vpop.permute.xlu0 %4328
        %4330 = vrot.lane.b32.xlu0 %v3261, 40
        %v4331 = vpop.permute.xlu0 %4330
        %4332 = vrot.lane.b32.xlu0 %v3262, 40
        %v4333 = vpop.permute.xlu0 %4332
        %4334 = vrot.lane.b32.xlu0 %v3263, 40
        %v4335 = vpop.permute.xlu0 %4334
        %4336 = vrot.lane.b32.xlu0 %v3264, 40
        %v4337 = vpop.permute.xlu0 %4336
        %4338 = vrot.lane.b32.xlu0 %v3265, 40
        %v4339 = vpop.permute.xlu0 %4338
        %4340 = vrot.lane.b32.xlu0 %v3266, 40
        %v4341 = vpop.permute.xlu0 %4340
        %4342 = vrot.lane.b32.xlu0 %v3267, 40
        %v4343 = vpop.permute.xlu0 %4342
        %4344 = vrot.lane.b32.xlu0 %v3268, 40
        %v4345 = vpop.permute.xlu0 %4344
        %4346 = vrot.lane.b32.xlu0 %v3269, 40
        %v4347 = vpop.permute.xlu0 %4346
        %4348 = vrot.lane.b32.xlu0 %v3270, 40
        %v4349 = vpop.permute.xlu0 %4348
        %4350 = vrot.lane.b32.xlu0 %v3271, 40
        %v4351 = vpop.permute.xlu0 %4350
        %4352 = vrot.lane.b32.xlu0 %v3272, 40
        %v4353 = vpop.permute.xlu0 %4352
        %4354 = vrot.lane.b32.xlu0 %v3273, 40
        %v4355 = vpop.permute.xlu0 %4354
        %4356 = vrot.lane.b32.xlu0 %v3274, 40
        %v4357 = vpop.permute.xlu0 %4356
        %4358 = vrot.lane.b32.xlu0 %v3275, 40
        %v4359 = vpop.permute.xlu0 %4358
        %4360 = vrot.lane.b32.xlu0 %v3276, 40
        %v4361 = vpop.permute.xlu0 %4360
        %4362 = vrot.lane.b32.xlu0 %v3277, 40
        %v4363 = vpop.permute.xlu0 %4362
        %4364 = vrot.lane.b32.xlu0 %v3278, 40
        %v4365 = vpop.permute.xlu0 %4364
        %4366 = vrot.lane.b32.xlu0 %v3279, 40
        %v4367 = vpop.permute.xlu0 %4366
        %4368 = vrot.lane.b32.xlu0 %v3280, 40
        %v4369 = vpop.permute.xlu0 %4368
        %4370 = vrot.lane.b32.xlu0 %v3281, 40
        %v4371 = vpop.permute.xlu0 %4370
        %4372 = vrot.lane.b32.xlu0 %v3282, 40
        %v4373 = vpop.permute.xlu0 %4372
        %4374 = vrot.lane.b32.xlu0 %v3283, 40
        %v4375 = vpop.permute.xlu0 %4374
        %4376 = vrot.lane.b32.xlu0 %v3284, 40
        %v4377 = vpop.permute.xlu0 %4376
        %4378 = vrot.lane.b32.xlu0 %v3285, 40
        %v4379 = vpop.permute.xlu0 %4378
        %4380 = vrot.lane.b32.xlu0 %v3286, 40
        %v4381 = vpop.permute.xlu0 %4380
        %4382 = vrot.lane.b32.xlu0 %v3287, 40
        %v4383 = vpop.permute.xlu0 %4382
        %4384 = vrot.lane.b32.xlu0 %v3288, 40
        %v4385 = vpop.permute.xlu0 %4384
        %4386 = vrot.lane.b32.xlu0 %v3289, 40
        %v4387 = vpop.permute.xlu0 %4386
        %4388 = vrot.lane.b32.xlu0 %v3290, 40
        %v4389 = vpop.permute.xlu0 %4388
        %4390 = vrot.lane.b32.xlu0 %v3291, 40
        %v4391 = vpop.permute.xlu0 %4390
        %4392 = vrot.lane.b32.xlu0 %v3292, 40
        %v4393 = vpop.permute.xlu0 %4392
        %4394 = vrot.lane.b32.xlu0 %v3293, 40
        %v4395 = vpop.permute.xlu0 %4394
        %4396 = vrot.lane.b32.xlu0 %v3294, 40
        %v4397 = vpop.permute.xlu0 %4396
        %4398 = vrot.lane.b32.xlu0 %v3295, 40
        %v4399 = vpop.permute.xlu0 %4398
        %4400 = vrot.lane.b32.xlu0 %v3296, 40
        %v4401 = vpop.permute.xlu0 %4400
        %4402 = vrot.lane.b32.xlu0 %v3297, 40
        %v4403 = vpop.permute.xlu0 %4402
        %4404 = vrot.lane.b32.xlu0 %v3298, 40
        %v4405 = vpop.permute.xlu0 %4404
        %4406 = vrot.lane.b32.xlu0 %v3299, 40
        %v4407 = vpop.permute.xlu0 %4406
        %4408 = vrot.lane.b32.xlu0 %v3300, 40
        %v4409 = vpop.permute.xlu0 %4408
        %4410 = vrot.lane.b32.xlu0 %v3301, 40
        %v4411 = vpop.permute.xlu0 %4410
        %4412 = vrot.lane.b32.xlu0 %v3302, 40
        %v4413 = vpop.permute.xlu0 %4412
        %4414 = vrot.lane.b32.xlu0 %v3303, 40
        %v4415 = vpop.permute.xlu0 %4414
        %4416 = vrot.lane.b32.xlu0 %v3304, 40
        %v4417 = vpop.permute.xlu0 %4416
        %4418 = vrot.lane.b32.xlu0 %v3305, 40
        %v4419 = vpop.permute.xlu0 %4418
        %4420 = vrot.lane.b32.xlu0 %v3306, 40
        %v4421 = vpop.permute.xlu0 %4420
        %4422 = vrot.lane.b32.xlu0 %v3307, 40
        %v4423 = vpop.permute.xlu0 %4422
        %4424 = vrot.lane.b32.xlu0 %v3308, 40
        %v4425 = vpop.permute.xlu0 %4424
        %4426 = vrot.lane.b32.xlu0 %v3309, 40
        %v4427 = vpop.permute.xlu0 %4426
        %4428 = vrot.lane.b32.xlu0 %v3310, 40
        %v4429 = vpop.permute.xlu0 %4428
        %4430 = vrot.lane.b32.xlu0 %v3311, 40
        %v4431 = vpop.permute.xlu0 %4430
        %4432 = vrot.lane.b32.xlu0 %v3312, 40
        %v4433 = vpop.permute.xlu0 %4432
        %4434 = vrot.lane.b32.xlu0 %v3313, 40
        %v4435 = vpop.permute.xlu0 %4434
        %4436 = vrot.lane.b32.xlu0 %v3314, 40
        %v4437 = vpop.permute.xlu0 %4436
        %4438 = vrot.lane.b32.xlu0 %v3315, 40
        %v4439 = vpop.permute.xlu0 %4438
        %4440 = vrot.lane.b32.xlu0 %v3428, 40
        %v4441 = vpop.permute.xlu0 %4440
        %4442 = vrot.lane.b32.xlu0 %v3429, 40
        %v4443 = vpop.permute.xlu0 %4442
        %4444 = vrot.lane.b32.xlu0 %v3430, 40
        %v4445 = vpop.permute.xlu0 %4444
        %4446 = vrot.lane.b32.xlu0 %v3431, 40
        %v4447 = vpop.permute.xlu0 %4446
        %4448 = vrot.lane.b32.xlu0 %v3544, 40
        %v4449 = vpop.permute.xlu0 %4448
        %4450 = vrot.lane.b32.xlu0 %v3545, 40
        %v4451 = vpop.permute.xlu0 %4450
        %4452 = vrot.lane.b32.xlu0 %v3546, 40
        %v4453 = vpop.permute.xlu0 %4452
        %4454 = vrot.lane.b32.xlu0 %v3547, 40
        %v4455 = vpop.permute.xlu0 %4454
        %4456 = vrot.lane.b32.xlu0 %v3548, 40
        %v4457 = vpop.permute.xlu0 %4456
        %4575 = vrot.lane.b32.xlu0 %v3217, 60
        %v4576 = vpop.permute.xlu0 %4575
        %4577 = vrot.lane.b32.xlu0 %v3218, 60
        %v4578 = vpop.permute.xlu0 %4577
        %4579 = vrot.lane.b32.xlu0 %v3219, 60
        %v4580 = vpop.permute.xlu0 %4579
        %4581 = vrot.lane.b32.xlu0 %v3220, 60
        %v4582 = vpop.permute.xlu0 %4581
        %4583 = vrot.lane.b32.xlu0 %v3221, 60
        %v4584 = vpop.permute.xlu0 %4583
        %4585 = vrot.lane.b32.xlu0 %v3222, 60
        %v4586 = vpop.permute.xlu0 %4585
        %4587 = vrot.lane.b32.xlu0 %v3223, 60
        %v4588 = vpop.permute.xlu0 %4587
        %4589 = vrot.lane.b32.xlu0 %v3224, 60
        %v4590 = vpop.permute.xlu0 %4589
        %4591 = vrot.lane.b32.xlu0 %v3225, 60
        %v4592 = vpop.permute.xlu0 %4591
        %4593 = vrot.lane.b32.xlu0 %v3226, 60
        %v4594 = vpop.permute.xlu0 %4593
        %4595 = vrot.lane.b32.xlu0 %v3227, 60
        %v4596 = vpop.permute.xlu0 %4595
        %4597 = vrot.lane.b32.xlu0 %v3228, 60
        %v4598 = vpop.permute.xlu0 %4597
        %4599 = vrot.lane.b32.xlu0 %v3229, 60
        %v4600 = vpop.permute.xlu0 %4599
        %4601 = vrot.lane.b32.xlu0 %v3230, 60
        %v4602 = vpop.permute.xlu0 %4601
        %4603 = vrot.lane.b32.xlu0 %v3231, 60
        %v4604 = vpop.permute.xlu0 %4603
        %4605 = vrot.lane.b32.xlu0 %v3232, 60
        %v4606 = vpop.permute.xlu0 %4605
        %4607 = vrot.lane.b32.xlu0 %v3233, 60
        %v4608 = vpop.permute.xlu0 %4607
        %4609 = vrot.lane.b32.xlu0 %v3234, 60
        %v4610 = vpop.permute.xlu0 %4609
        %4611 = vrot.lane.b32.xlu0 %v3235, 60
        %v4612 = vpop.permute.xlu0 %4611
        %4613 = vrot.lane.b32.xlu0 %v3236, 60
        %v4614 = vpop.permute.xlu0 %4613
        %4615 = vrot.lane.b32.xlu0 %v3237, 60
        %v4616 = vpop.permute.xlu0 %4615
        %4617 = vrot.lane.b32.xlu0 %v3238, 60
        %v4618 = vpop.permute.xlu0 %4617
        %4619 = vrot.lane.b32.xlu0 %v3239, 60
        %v4620 = vpop.permute.xlu0 %4619
        %4621 = vrot.lane.b32.xlu0 %v3240, 60
        %v4622 = vpop.permute.xlu0 %4621
        %4623 = vrot.lane.b32.xlu0 %v3241, 60
        %v4624 = vpop.permute.xlu0 %4623
        %4625 = vrot.lane.b32.xlu0 %v3242, 60
        %v4626 = vpop.permute.xlu0 %4625
        %4627 = vrot.lane.b32.xlu0 %v3243, 60
        %v4628 = vpop.permute.xlu0 %4627
        %4629 = vrot.lane.b32.xlu0 %v3244, 60
        %v4630 = vpop.permute.xlu0 %4629
        %4631 = vrot.lane.b32.xlu0 %v3245, 60
        %v4632 = vpop.permute.xlu0 %4631
        %4633 = vrot.lane.b32.xlu0 %v3246, 60
        %v4634 = vpop.permute.xlu0 %4633
        %4635 = vrot.lane.b32.xlu0 %v3247, 60
        %v4636 = vpop.permute.xlu0 %4635
        %4637 = vrot.lane.b32.xlu0 %v3248, 60
        %v4638 = vpop.permute.xlu0 %4637
        %4639 = vrot.lane.b32.xlu0 %v3249, 60
        %v4640 = vpop.permute.xlu0 %4639
        %4641 = vrot.lane.b32.xlu0 %v3250, 60
        %v4642 = vpop.permute.xlu0 %4641
        %4643 = vrot.lane.b32.xlu0 %v3251, 60
        %v4644 = vpop.permute.xlu0 %4643
        %4645 = vrot.lane.b32.xlu0 %v3252, 60
        %v4646 = vpop.permute.xlu0 %4645
        %4647 = vrot.lane.b32.xlu0 %v3253, 60
        %v4648 = vpop.permute.xlu0 %4647
        %4649 = vrot.lane.b32.xlu0 %v3254, 60
        %v4650 = vpop.permute.xlu0 %4649
        %4651 = vrot.lane.b32.xlu0 %v3255, 60
        %v4652 = vpop.permute.xlu0 %4651
        %4653 = vrot.lane.b32.xlu0 %v3256, 60
        %v4654 = vpop.permute.xlu0 %4653
        %4655 = vrot.lane.b32.xlu0 %v3257, 60
        %v4656 = vpop.permute.xlu0 %4655
        %4657 = vrot.lane.b32.xlu0 %v3258, 60
        %v4658 = vpop.permute.xlu0 %4657
        %4659 = vrot.lane.b32.xlu0 %v3259, 60
        %v4660 = vpop.permute.xlu0 %4659
        %4661 = vrot.lane.b32.xlu0 %v3260, 60
        %v4662 = vpop.permute.xlu0 %4661
        %4663 = vrot.lane.b32.xlu0 %v3261, 60
        %v4664 = vpop.permute.xlu0 %4663
        %4665 = vrot.lane.b32.xlu0 %v3262, 60
        %v4666 = vpop.permute.xlu0 %4665
        %4667 = vrot.lane.b32.xlu0 %v3263, 60
        %v4668 = vpop.permute.xlu0 %4667
        %4669 = vrot.lane.b32.xlu0 %v3264, 60
        %v4670 = vpop.permute.xlu0 %4669
        %4671 = vrot.lane.b32.xlu0 %v3265, 60
        %v4672 = vpop.permute.xlu0 %4671
        %4673 = vrot.lane.b32.xlu0 %v3266, 60
        %v4674 = vpop.permute.xlu0 %4673
        %4675 = vrot.lane.b32.xlu0 %v3267, 60
        %v4676 = vpop.permute.xlu0 %4675
        %4677 = vrot.lane.b32.xlu0 %v3268, 60
        %v4678 = vpop.permute.xlu0 %4677
        %4679 = vrot.lane.b32.xlu0 %v3269, 60
        %v4680 = vpop.permute.xlu0 %4679
        %4681 = vrot.lane.b32.xlu0 %v3270, 60
        %v4682 = vpop.permute.xlu0 %4681
        %4683 = vrot.lane.b32.xlu0 %v3271, 60
        %v4684 = vpop.permute.xlu0 %4683
        %4685 = vrot.lane.b32.xlu0 %v3272, 60
        %v4686 = vpop.permute.xlu0 %4685
        %4687 = vrot.lane.b32.xlu0 %v3273, 60
        %v4688 = vpop.permute.xlu0 %4687
        %4689 = vrot.lane.b32.xlu0 %v3274, 60
        %v4690 = vpop.permute.xlu0 %4689
        %4691 = vrot.lane.b32.xlu0 %v3275, 60
        %v4692 = vpop.permute.xlu0 %4691
        %4693 = vrot.lane.b32.xlu0 %v3276, 60
        %v4694 = vpop.permute.xlu0 %4693
        %4695 = vrot.lane.b32.xlu0 %v3277, 60
        %v4696 = vpop.permute.xlu0 %4695
        %4697 = vrot.lane.b32.xlu0 %v3278, 60
        %v4698 = vpop.permute.xlu0 %4697
        %4699 = vrot.lane.b32.xlu0 %v3279, 60
        %v4700 = vpop.permute.xlu0 %4699
        %4701 = vrot.lane.b32.xlu0 %v3280, 60
        %v4702 = vpop.permute.xlu0 %4701
        %4703 = vrot.lane.b32.xlu0 %v3281, 60
        %v4704 = vpop.permute.xlu0 %4703
        %4705 = vrot.lane.b32.xlu0 %v3282, 60
        %v4706 = vpop.permute.xlu0 %4705
        %4707 = vrot.lane.b32.xlu0 %v3283, 60
        %v4708 = vpop.permute.xlu0 %4707
        %4709 = vrot.lane.b32.xlu0 %v3284, 60
        %v4710 = vpop.permute.xlu0 %4709
        %4711 = vrot.lane.b32.xlu0 %v3285, 60
        %v4712 = vpop.permute.xlu0 %4711
        %4713 = vrot.lane.b32.xlu0 %v3286, 60
        %v4714 = vpop.permute.xlu0 %4713
        %4715 = vrot.lane.b32.xlu0 %v3287, 60
        %v4716 = vpop.permute.xlu0 %4715
        %4717 = vrot.lane.b32.xlu0 %v3288, 60
        %v4718 = vpop.permute.xlu0 %4717
        %4719 = vrot.lane.b32.xlu0 %v3289, 60
        %v4720 = vpop.permute.xlu0 %4719
        %4721 = vrot.lane.b32.xlu0 %v3290, 60
        %v4722 = vpop.permute.xlu0 %4721
        %4723 = vrot.lane.b32.xlu0 %v3291, 60
        %v4724 = vpop.permute.xlu0 %4723
        %4725 = vrot.lane.b32.xlu0 %v3292, 60
        %v4726 = vpop.permute.xlu0 %4725
        %4727 = vrot.lane.b32.xlu0 %v3293, 60
        %v4728 = vpop.permute.xlu0 %4727
        %4729 = vrot.lane.b32.xlu0 %v3294, 60
        %v4730 = vpop.permute.xlu0 %4729
        %4731 = vrot.lane.b32.xlu0 %v3295, 60
        %v4732 = vpop.permute.xlu0 %4731
        %4733 = vrot.lane.b32.xlu0 %v3296, 60
        %v4734 = vpop.permute.xlu0 %4733
        %4735 = vrot.lane.b32.xlu0 %v3297, 60
        %v4736 = vpop.permute.xlu0 %4735
        %4737 = vrot.lane.b32.xlu0 %v3298, 60
        %v4738 = vpop.permute.xlu0 %4737
        %4739 = vrot.lane.b32.xlu0 %v3299, 60
        %v4740 = vpop.permute.xlu0 %4739
        %4741 = vrot.lane.b32.xlu0 %v3300, 60
        %v4742 = vpop.permute.xlu0 %4741
        %4743 = vrot.lane.b32.xlu0 %v3301, 60
        %v4744 = vpop.permute.xlu0 %4743
        %4745 = vrot.lane.b32.xlu0 %v3302, 60
        %v4746 = vpop.permute.xlu0 %4745
        %4747 = vrot.lane.b32.xlu0 %v3303, 60
        %v4748 = vpop.permute.xlu0 %4747
        %4749 = vrot.lane.b32.xlu0 %v3304, 60
        %v4750 = vpop.permute.xlu0 %4749
        %4751 = vrot.lane.b32.xlu0 %v3305, 60
        %v4752 = vpop.permute.xlu0 %4751
        %4753 = vrot.lane.b32.xlu0 %v3306, 60
        %v4754 = vpop.permute.xlu0 %4753
        %4755 = vrot.lane.b32.xlu0 %v3307, 60
        %v4756 = vpop.permute.xlu0 %4755
        %4757 = vrot.lane.b32.xlu0 %v3308, 60
        %v4758 = vpop.permute.xlu0 %4757
        %4759 = vrot.lane.b32.xlu0 %v3309, 60
        %v4760 = vpop.permute.xlu0 %4759
        %4761 = vrot.lane.b32.xlu0 %v3310, 60
        %v4762 = vpop.permute.xlu0 %4761
        %4763 = vrot.lane.b32.xlu0 %v3311, 60
        %v4764 = vpop.permute.xlu0 %4763
        %4765 = vrot.lane.b32.xlu0 %v3312, 60
        %v4766 = vpop.permute.xlu0 %4765
        %4767 = vrot.lane.b32.xlu0 %v3313, 60
        %v4768 = vpop.permute.xlu0 %4767
        %4769 = vrot.lane.b32.xlu0 %v3314, 60
        %v4770 = vpop.permute.xlu0 %4769
        %4771 = vrot.lane.b32.xlu0 %v3315, 60
        %v4772 = vpop.permute.xlu0 %4771
        %4773 = vrot.lane.b32.xlu0 %v3428, 60
        %v4774 = vpop.permute.xlu0 %4773
        %4775 = vrot.lane.b32.xlu0 %v3429, 60
        %v4776 = vpop.permute.xlu0 %4775
        %4777 = vrot.lane.b32.xlu0 %v3430, 60
        %v4778 = vpop.permute.xlu0 %4777
        %4779 = vrot.lane.b32.xlu0 %v3431, 60
        %v4780 = vpop.permute.xlu0 %4779
        %4781 = vrot.lane.b32.xlu0 %v3544, 60
        %v4782 = vpop.permute.xlu0 %4781
        %4783 = vrot.lane.b32.xlu0 %v3545, 60
        %v4784 = vpop.permute.xlu0 %4783
        %4785 = vrot.lane.b32.xlu0 %v3546, 60
        %v4786 = vpop.permute.xlu0 %4785
        %4787 = vrot.lane.b32.xlu0 %v3547, 60
        %v4788 = vpop.permute.xlu0 %4787
        %4789 = vrot.lane.b32.xlu0 %v3660, 60
        %v4790 = vpop.permute.xlu0 %4789
        %4791 = vrot.lane.b32.xlu0 %v3661, 60
        %v4792 = vpop.permute.xlu0 %4791
        %4793 = vrot.lane.b32.xlu0 %v3662, 60
        %v4794 = vpop.permute.xlu0 %4793
        %4795 = vrot.lane.b32.xlu0 %v3663, 60
        %v4796 = vpop.permute.xlu0 %4795
        %4797 = vrot.lane.b32.xlu0 %v3664, 60
        %v4798 = vpop.permute.xlu0 %4797
        %4916 = vrot.lane.b32.xlu0 %v3221, 80
        %v4917 = vpop.permute.xlu0 %4916
        %4918 = vrot.lane.b32.xlu0 %v3222, 80
        %v4919 = vpop.permute.xlu0 %4918
        %4920 = vrot.lane.b32.xlu0 %v3223, 80
        %v4921 = vpop.permute.xlu0 %4920
        %4922 = vrot.lane.b32.xlu0 %v3224, 80
        %v4923 = vpop.permute.xlu0 %4922
        %4924 = vrot.lane.b32.xlu0 %v3225, 80
        %v4925 = vpop.permute.xlu0 %4924
        %4926 = vrot.lane.b32.xlu0 %v3226, 80
        %v4927 = vpop.permute.xlu0 %4926
        %4928 = vrot.lane.b32.xlu0 %v3227, 80
        %v4929 = vpop.permute.xlu0 %4928
        %4930 = vrot.lane.b32.xlu0 %v3228, 80
        %v4931 = vpop.permute.xlu0 %4930
        %4932 = vrot.lane.b32.xlu0 %v3229, 80
        %v4933 = vpop.permute.xlu0 %4932
        %4934 = vrot.lane.b32.xlu0 %v3230, 80
        %v4935 = vpop.permute.xlu0 %4934
        %4936 = vrot.lane.b32.xlu0 %v3231, 80
        %v4937 = vpop.permute.xlu0 %4936
        %4938 = vrot.lane.b32.xlu0 %v3232, 80
        %v4939 = vpop.permute.xlu0 %4938
        %4940 = vrot.lane.b32.xlu0 %v3233, 80
        %v4941 = vpop.permute.xlu0 %4940
        %4942 = vrot.lane.b32.xlu0 %v3234, 80
        %v4943 = vpop.permute.xlu0 %4942
        %4944 = vrot.lane.b32.xlu0 %v3235, 80
        %v4945 = vpop.permute.xlu0 %4944
        %4946 = vrot.lane.b32.xlu0 %v3236, 80
        %v4947 = vpop.permute.xlu0 %4946
        %4948 = vrot.lane.b32.xlu0 %v3237, 80
        %v4949 = vpop.permute.xlu0 %4948
        %4950 = vrot.lane.b32.xlu0 %v3238, 80
        %v4951 = vpop.permute.xlu0 %4950
        %4952 = vrot.lane.b32.xlu0 %v3239, 80
        %v4953 = vpop.permute.xlu0 %4952
        %4954 = vrot.lane.b32.xlu0 %v3240, 80
        %v4955 = vpop.permute.xlu0 %4954
        %4956 = vrot.lane.b32.xlu0 %v3241, 80
        %v4957 = vpop.permute.xlu0 %4956
        %4958 = vrot.lane.b32.xlu0 %v3242, 80
        %v4959 = vpop.permute.xlu0 %4958
        %4960 = vrot.lane.b32.xlu0 %v3243, 80
        %v4961 = vpop.permute.xlu0 %4960
        %4962 = vrot.lane.b32.xlu0 %v3244, 80
        %v4963 = vpop.permute.xlu0 %4962
        %4964 = vrot.lane.b32.xlu0 %v3245, 80
        %v4965 = vpop.permute.xlu0 %4964
        %4966 = vrot.lane.b32.xlu0 %v3246, 80
        %v4967 = vpop.permute.xlu0 %4966
        %4968 = vrot.lane.b32.xlu0 %v3247, 80
        %v4969 = vpop.permute.xlu0 %4968
        %4970 = vrot.lane.b32.xlu0 %v3248, 80
        %v4971 = vpop.permute.xlu0 %4970
        %4972 = vrot.lane.b32.xlu0 %v3249, 80
        %v4973 = vpop.permute.xlu0 %4972
        %4974 = vrot.lane.b32.xlu0 %v3250, 80
        %v4975 = vpop.permute.xlu0 %4974
        %4976 = vrot.lane.b32.xlu0 %v3251, 80
        %v4977 = vpop.permute.xlu0 %4976
        %4978 = vrot.lane.b32.xlu0 %v3252, 80
        %v4979 = vpop.permute.xlu0 %4978
        %4980 = vrot.lane.b32.xlu0 %v3253, 80
        %v4981 = vpop.permute.xlu0 %4980
        %4982 = vrot.lane.b32.xlu0 %v3254, 80
        %v4983 = vpop.permute.xlu0 %4982
        %4984 = vrot.lane.b32.xlu0 %v3255, 80
        %v4985 = vpop.permute.xlu0 %4984
        %4986 = vrot.lane.b32.xlu0 %v3256, 80
        %v4987 = vpop.permute.xlu0 %4986
        %4988 = vrot.lane.b32.xlu0 %v3257, 80
        %v4989 = vpop.permute.xlu0 %4988
        %4990 = vrot.lane.b32.xlu0 %v3258, 80
        %v4991 = vpop.permute.xlu0 %4990
        %4992 = vrot.lane.b32.xlu0 %v3259, 80
        %v4993 = vpop.permute.xlu0 %4992
        %4994 = vrot.lane.b32.xlu0 %v3260, 80
        %v4995 = vpop.permute.xlu0 %4994
        %4996 = vrot.lane.b32.xlu0 %v3261, 80
        %v4997 = vpop.permute.xlu0 %4996
        %4998 = vrot.lane.b32.xlu0 %v3262, 80
        %v4999 = vpop.permute.xlu0 %4998
        %5000 = vrot.lane.b32.xlu0 %v3263, 80
        %v5001 = vpop.permute.xlu0 %5000
        %5002 = vrot.lane.b32.xlu0 %v3264, 80
        %v5003 = vpop.permute.xlu0 %5002
        %5004 = vrot.lane.b32.xlu0 %v3265, 80
        %v5005 = vpop.permute.xlu0 %5004
        %5006 = vrot.lane.b32.xlu0 %v3266, 80
        %v5007 = vpop.permute.xlu0 %5006
        %5008 = vrot.lane.b32.xlu0 %v3267, 80
        %v5009 = vpop.permute.xlu0 %5008
        %5010 = vrot.lane.b32.xlu0 %v3268, 80
        %v5011 = vpop.permute.xlu0 %5010
        %5012 = vrot.lane.b32.xlu0 %v3269, 80
        %v5013 = vpop.permute.xlu0 %5012
        %5014 = vrot.lane.b32.xlu0 %v3270, 80
        %v5015 = vpop.permute.xlu0 %5014
        %5016 = vrot.lane.b32.xlu0 %v3271, 80
        %v5017 = vpop.permute.xlu0 %5016
        %5018 = vrot.lane.b32.xlu0 %v3272, 80
        %v5019 = vpop.permute.xlu0 %5018
        %5020 = vrot.lane.b32.xlu0 %v3273, 80
        %v5021 = vpop.permute.xlu0 %5020
        %5022 = vrot.lane.b32.xlu0 %v3274, 80
        %v5023 = vpop.permute.xlu0 %5022
        %5024 = vrot.lane.b32.xlu0 %v3275, 80
        %v5025 = vpop.permute.xlu0 %5024
        %5026 = vrot.lane.b32.xlu0 %v3276, 80
        %v5027 = vpop.permute.xlu0 %5026
        %5028 = vrot.lane.b32.xlu0 %v3277, 80
        %v5029 = vpop.permute.xlu0 %5028
        %5030 = vrot.lane.b32.xlu0 %v3278, 80
        %v5031 = vpop.permute.xlu0 %5030
        %5032 = vrot.lane.b32.xlu0 %v3279, 80
        %v5033 = vpop.permute.xlu0 %5032
        %5034 = vrot.lane.b32.xlu0 %v3280, 80
        %v5035 = vpop.permute.xlu0 %5034
        %5036 = vrot.lane.b32.xlu0 %v3281, 80
        %v5037 = vpop.permute.xlu0 %5036
        %5038 = vrot.lane.b32.xlu0 %v3282, 80
        %v5039 = vpop.permute.xlu0 %5038
        %5040 = vrot.lane.b32.xlu0 %v3283, 80
        %v5041 = vpop.permute.xlu0 %5040
        %5042 = vrot.lane.b32.xlu0 %v3284, 80
        %v5043 = vpop.permute.xlu0 %5042
        %5044 = vrot.lane.b32.xlu0 %v3285, 80
        %v5045 = vpop.permute.xlu0 %5044
        %5046 = vrot.lane.b32.xlu0 %v3286, 80
        %v5047 = vpop.permute.xlu0 %5046
        %5048 = vrot.lane.b32.xlu0 %v3287, 80
        %v5049 = vpop.permute.xlu0 %5048
        %5050 = vrot.lane.b32.xlu0 %v3288, 80
        %v5051 = vpop.permute.xlu0 %5050
        %5052 = vrot.lane.b32.xlu0 %v3289, 80
        %v5053 = vpop.permute.xlu0 %5052
        %5054 = vrot.lane.b32.xlu0 %v3290, 80
        %v5055 = vpop.permute.xlu0 %5054
        %5056 = vrot.lane.b32.xlu0 %v3291, 80
        %v5057 = vpop.permute.xlu0 %5056
        %5058 = vrot.lane.b32.xlu0 %v3292, 80
        %v5059 = vpop.permute.xlu0 %5058
        %5060 = vrot.lane.b32.xlu0 %v3293, 80
        %v5061 = vpop.permute.xlu0 %5060
        %5062 = vrot.lane.b32.xlu0 %v3294, 80
        %v5063 = vpop.permute.xlu0 %5062
        %5064 = vrot.lane.b32.xlu0 %v3295, 80
        %v5065 = vpop.permute.xlu0 %5064
        %5066 = vrot.lane.b32.xlu0 %v3296, 80
        %v5067 = vpop.permute.xlu0 %5066
        %5068 = vrot.lane.b32.xlu0 %v3297, 80
        %v5069 = vpop.permute.xlu0 %5068
        %5070 = vrot.lane.b32.xlu0 %v3298, 80
        %v5071 = vpop.permute.xlu0 %5070
        %5072 = vrot.lane.b32.xlu0 %v3299, 80
        %v5073 = vpop.permute.xlu0 %5072
        %5074 = vrot.lane.b32.xlu0 %v3300, 80
        %v5075 = vpop.permute.xlu0 %5074
        %5076 = vrot.lane.b32.xlu0 %v3301, 80
        %v5077 = vpop.permute.xlu0 %5076
        %5078 = vrot.lane.b32.xlu0 %v3302, 80
        %v5079 = vpop.permute.xlu0 %5078
        %5080 = vrot.lane.b32.xlu0 %v3303, 80
        %v5081 = vpop.permute.xlu0 %5080
        %5082 = vrot.lane.b32.xlu0 %v3304, 80
        %v5083 = vpop.permute.xlu0 %5082
        %5084 = vrot.lane.b32.xlu0 %v3305, 80
        %v5085 = vpop.permute.xlu0 %5084
        %5086 = vrot.lane.b32.xlu0 %v3306, 80
        %v5087 = vpop.permute.xlu0 %5086
        %5088 = vrot.lane.b32.xlu0 %v3307, 80
        %v5089 = vpop.permute.xlu0 %5088
        %5090 = vrot.lane.b32.xlu0 %v3308, 80
        %v5091 = vpop.permute.xlu0 %5090
        %5092 = vrot.lane.b32.xlu0 %v3309, 80
        %v5093 = vpop.permute.xlu0 %5092
        %5094 = vrot.lane.b32.xlu0 %v3310, 80
        %v5095 = vpop.permute.xlu0 %5094
        %5096 = vrot.lane.b32.xlu0 %v3311, 80
        %v5097 = vpop.permute.xlu0 %5096
        %5098 = vrot.lane.b32.xlu0 %v3312, 80
        %v5099 = vpop.permute.xlu0 %5098
        %5100 = vrot.lane.b32.xlu0 %v3313, 80
        %v5101 = vpop.permute.xlu0 %5100
        %5102 = vrot.lane.b32.xlu0 %v3314, 80
        %v5103 = vpop.permute.xlu0 %5102
        %5104 = vrot.lane.b32.xlu0 %v3315, 80
        %v5105 = vpop.permute.xlu0 %5104
        %5106 = vrot.lane.b32.xlu0 %v3428, 80
        %v5107 = vpop.permute.xlu0 %5106
        %5108 = vrot.lane.b32.xlu0 %v3429, 80
        %v5109 = vpop.permute.xlu0 %5108
        %5110 = vrot.lane.b32.xlu0 %v3430, 80
        %v5111 = vpop.permute.xlu0 %5110
        %5112 = vrot.lane.b32.xlu0 %v3431, 80
        %v5113 = vpop.permute.xlu0 %5112
        %5114 = vrot.lane.b32.xlu0 %v3544, 80
        %v5115 = vpop.permute.xlu0 %5114
        %5116 = vrot.lane.b32.xlu0 %v3545, 80
        %v5117 = vpop.permute.xlu0 %5116
        %5118 = vrot.lane.b32.xlu0 %v3546, 80
        %v5119 = vpop.permute.xlu0 %5118
        %5120 = vrot.lane.b32.xlu0 %v3547, 80
        %v5121 = vpop.permute.xlu0 %5120
        %5122 = vrot.lane.b32.xlu0 %v3660, 80
        %v5123 = vpop.permute.xlu0 %5122
        %5124 = vrot.lane.b32.xlu0 %v3661, 80
        %v5125 = vpop.permute.xlu0 %5124
        %5126 = vrot.lane.b32.xlu0 %v3662, 80
        %v5127 = vpop.permute.xlu0 %5126
        %5128 = vrot.lane.b32.xlu0 %v3663, 80
        %v5129 = vpop.permute.xlu0 %5128
        %5130 = vrot.lane.b32.xlu0 %v3776, 80
        %v5131 = vpop.permute.xlu0 %5130
        %5132 = vrot.lane.b32.xlu0 %v3777, 80
        %v5133 = vpop.permute.xlu0 %5132
        %5134 = vrot.lane.b32.xlu0 %v3778, 80
        %v5135 = vpop.permute.xlu0 %5134
        %5136 = vrot.lane.b32.xlu0 %v3779, 80
        %v5137 = vpop.permute.xlu0 %5136
        %5138 = vrot.lane.b32.xlu0 %v3780, 80
        %v5139 = vpop.permute.xlu0 %5138
        %vm5252 = vcmask 162816
        %v5253 = vsel %vm5252, %v3205, %v3894
        %v5254 = vsel %vm5252, %v3206, %v3896
        %v5255 = vsel %vm5252, %v3207, %v3898
        %v5256 = vsel %vm5252, %v3208, %v3900
        %v5257 = vsel %vm5252, %v3209, %v3902
        %v5258 = vsel %vm5252, %v3210, %v3904
        %v5259 = vsel %vm5252, %v3211, %v3906
        %v5260 = vsel %vm5252, %v3212, %v3908
        %v5261 = vsel %vm5252, %v3213, %v3910
        %v5262 = vsel %vm5252, %v3214, %v3912
        %v5263 = vsel %vm5252, %v3215, %v3914
        %v5264 = vsel %vm5252, %v3216, %v3916
        %v5265 = vsel %vm5252, %v3217, %v3918
        %v5266 = vsel %vm5252, %v3218, %v3920
        %v5267 = vsel %vm5252, %v3219, %v3922
        %v5268 = vsel %vm5252, %v3220, %v3924
        %v5269 = vsel %vm5252, %v3221, %v3926
        %v5270 = vsel %vm5252, %v3222, %v3928
        %v5271 = vsel %vm5252, %v3223, %v3930
        %v5272 = vsel %vm5252, %v3224, %v3932
        %v5273 = vsel %vm5252, %v3225, %v3934
        %v5274 = vsel %vm5252, %v3226, %v3936
        %v5275 = vsel %vm5252, %v3227, %v3938
        %v5276 = vsel %vm5252, %v3228, %v3940
        %v5277 = vsel %vm5252, %v3229, %v3942
        %v5278 = vsel %vm5252, %v3230, %v3944
        %v5279 = vsel %vm5252, %v3231, %v3946
        %v5280 = vsel %vm5252, %v3232, %v3948
        %v5281 = vsel %vm5252, %v3233, %v3950
        %v5282 = vsel %vm5252, %v3234, %v3952
        %v5283 = vsel %vm5252, %v3235, %v3954
        %v5284 = vsel %vm5252, %v3236, %v3956
        %v5285 = vsel %vm5252, %v3237, %v3958
        %v5286 = vsel %vm5252, %v3238, %v3960
        %v5287 = vsel %vm5252, %v3239, %v3962
        %v5288 = vsel %vm5252, %v3240, %v3964
        %v5289 = vsel %vm5252, %v3241, %v3966
        %v5290 = vsel %vm5252, %v3242, %v3968
        %v5291 = vsel %vm5252, %v3243, %v3970
        %v5292 = vsel %vm5252, %v3244, %v3972
        %v5293 = vsel %vm5252, %v3245, %v3974
        %v5294 = vsel %vm5252, %v3246, %v3976
        %v5295 = vsel %vm5252, %v3247, %v3978
        %v5296 = vsel %vm5252, %v3248, %v3980
        %v5297 = vsel %vm5252, %v3249, %v3982
        %v5298 = vsel %vm5252, %v3250, %v3984
        %v5299 = vsel %vm5252, %v3251, %v3986
        %v5300 = vsel %vm5252, %v3252, %v3988
        %v5301 = vsel %vm5252, %v3253, %v3990
        %v5302 = vsel %vm5252, %v3254, %v3992
        %v5303 = vsel %vm5252, %v3255, %v3994
        %v5304 = vsel %vm5252, %v3256, %v3996
        %v5305 = vsel %vm5252, %v3257, %v3998
        %v5306 = vsel %vm5252, %v3258, %v4000
        %v5307 = vsel %vm5252, %v3259, %v4002
        %v5308 = vsel %vm5252, %v3260, %v4004
        %v5309 = vsel %vm5252, %v3261, %v4006
        %v5310 = vsel %vm5252, %v3262, %v4008
        %v5311 = vsel %vm5252, %v3263, %v4010
        %v5312 = vsel %vm5252, %v3264, %v4012
        %v5313 = vsel %vm5252, %v3265, %v4014
        %v5314 = vsel %vm5252, %v3266, %v4016
        %v5315 = vsel %vm5252, %v3267, %v4018
        %v5316 = vsel %vm5252, %v3268, %v4020
        %v5317 = vsel %vm5252, %v3269, %v4022
        %v5318 = vsel %vm5252, %v3270, %v4024
        %v5319 = vsel %vm5252, %v3271, %v4026
        %v5320 = vsel %vm5252, %v3272, %v4028
        %v5321 = vsel %vm5252, %v3273, %v4030
        %v5322 = vsel %vm5252, %v3274, %v4032
        %v5323 = vsel %vm5252, %v3275, %v4034
        %v5324 = vsel %vm5252, %v3276, %v4036
        %v5325 = vsel %vm5252, %v3277, %v4038
        %v5326 = vsel %vm5252, %v3278, %v4040
        %v5327 = vsel %vm5252, %v3279, %v4042
        %v5328 = vsel %vm5252, %v3280, %v4044
        %v5329 = vsel %vm5252, %v3281, %v4046
        %v5330 = vsel %vm5252, %v3282, %v4048
        %v5331 = vsel %vm5252, %v3283, %v4050
        %v5332 = vsel %vm5252, %v3284, %v4052
        %v5333 = vsel %vm5252, %v3285, %v4054
        %v5334 = vsel %vm5252, %v3286, %v4056
        %v5335 = vsel %vm5252, %v3287, %v4058
        %v5336 = vsel %vm5252, %v3288, %v4060
        %v5337 = vsel %vm5252, %v3289, %v4062
        %v5338 = vsel %vm5252, %v3290, %v4064
        %v5339 = vsel %vm5252, %v3291, %v4066
        %v5340 = vsel %vm5252, %v3292, %v4068
        %v5341 = vsel %vm5252, %v3293, %v4070
        %v5342 = vsel %vm5252, %v3294, %v4072
        %v5343 = vsel %vm5252, %v3295, %v4074
        %v5344 = vsel %vm5252, %v3296, %v4076
        %v5345 = vsel %vm5252, %v3297, %v4078
        %v5346 = vsel %vm5252, %v3298, %v4080
        %v5347 = vsel %vm5252, %v3299, %v4082
        %v5348 = vsel %vm5252, %v3300, %v4084
        %v5349 = vsel %vm5252, %v3301, %v4086
        %v5350 = vsel %vm5252, %v3302, %v4088
        %v5351 = vsel %vm5252, %v3303, %v4090
        %v5352 = vsel %vm5252, %v3304, %v4092
        %v5353 = vsel %vm5252, %v3305, %v4094
        %v5354 = vsel %vm5252, %v3306, %v4096
        %v5355 = vsel %vm5252, %v3307, %v4098
        %v5356 = vsel %vm5252, %v3308, %v4100
        %v5357 = vsel %vm5252, %v3309, %v4102
        %v5358 = vsel %vm5252, %v3310, %v4104
        %v5359 = vsel %vm5252, %v3311, %v4106
        %v5360 = vsel %vm5252, %v3312, %v4108
        %v5361 = vsel %vm5252, %v3313, %v4110
        %v5362 = vsel %vm5252, %v3314, %v4112
        %v5363 = vsel %vm5252, %v3315, %v4114
        %v5364 = vsel %vm5252, %v3316, %v4116
        %vm5365 = vcmask 326656
        %v5366 = vsel %vm5365, %v5253, %v4235
        %v5367 = vsel %vm5365, %v5254, %v4237
        %v5368 = vsel %vm5365, %v5255, %v4239
        %v5369 = vsel %vm5365, %v5256, %v4241
        %v5370 = vsel %vm5365, %v5257, %v4243
        %v5371 = vsel %vm5365, %v5258, %v4245
        %v5372 = vsel %vm5365, %v5259, %v4247
        %v5373 = vsel %vm5365, %v5260, %v4249
        %v5374 = vsel %vm5365, %v5261, %v4251
        %v5375 = vsel %vm5365, %v5262, %v4253
        %v5376 = vsel %vm5365, %v5263, %v4255
        %v5377 = vsel %vm5365, %v5264, %v4257
        %v5378 = vsel %vm5365, %v5265, %v4259
        %v5379 = vsel %vm5365, %v5266, %v4261
        %v5380 = vsel %vm5365, %v5267, %v4263
        %v5381 = vsel %vm5365, %v5268, %v4265
        %v5382 = vsel %vm5365, %v5269, %v4267
        %v5383 = vsel %vm5365, %v5270, %v4269
        %v5384 = vsel %vm5365, %v5271, %v4271
        %v5385 = vsel %vm5365, %v5272, %v4273
        %v5386 = vsel %vm5365, %v5273, %v4275
        %v5387 = vsel %vm5365, %v5274, %v4277
        %v5388 = vsel %vm5365, %v5275, %v4279
        %v5389 = vsel %vm5365, %v5276, %v4281
        %v5390 = vsel %vm5365, %v5277, %v4283
        %v5391 = vsel %vm5365, %v5278, %v4285
        %v5392 = vsel %vm5365, %v5279, %v4287
        %v5393 = vsel %vm5365, %v5280, %v4289
        %v5394 = vsel %vm5365, %v5281, %v4291
        %v5395 = vsel %vm5365, %v5282, %v4293
        %v5396 = vsel %vm5365, %v5283, %v4295
        %v5397 = vsel %vm5365, %v5284, %v4297
        %v5398 = vsel %vm5365, %v5285, %v4299
        %v5399 = vsel %vm5365, %v5286, %v4301
        %v5400 = vsel %vm5365, %v5287, %v4303
        %v5401 = vsel %vm5365, %v5288, %v4305
        %v5402 = vsel %vm5365, %v5289, %v4307
        %v5403 = vsel %vm5365, %v5290, %v4309
        %v5404 = vsel %vm5365, %v5291, %v4311
        %v5405 = vsel %vm5365, %v5292, %v4313
        %v5406 = vsel %vm5365, %v5293, %v4315
        %v5407 = vsel %vm5365, %v5294, %v4317
        %v5408 = vsel %vm5365, %v5295, %v4319
        %v5409 = vsel %vm5365, %v5296, %v4321
        %v5410 = vsel %vm5365, %v5297, %v4323
        %v5411 = vsel %vm5365, %v5298, %v4325
        %v5412 = vsel %vm5365, %v5299, %v4327
        %v5413 = vsel %vm5365, %v5300, %v4329
        %v5414 = vsel %vm5365, %v5301, %v4331
        %v5415 = vsel %vm5365, %v5302, %v4333
        %v5416 = vsel %vm5365, %v5303, %v4335
        %v5417 = vsel %vm5365, %v5304, %v4337
        %v5418 = vsel %vm5365, %v5305, %v4339
        %v5419 = vsel %vm5365, %v5306, %v4341
        %v5420 = vsel %vm5365, %v5307, %v4343
        %v5421 = vsel %vm5365, %v5308, %v4345
        %v5422 = vsel %vm5365, %v5309, %v4347
        %v5423 = vsel %vm5365, %v5310, %v4349
        %v5424 = vsel %vm5365, %v5311, %v4351
        %v5425 = vsel %vm5365, %v5312, %v4353
        %v5426 = vsel %vm5365, %v5313, %v4355
        %v5427 = vsel %vm5365, %v5314, %v4357
        %v5428 = vsel %vm5365, %v5315, %v4359
        %v5429 = vsel %vm5365, %v5316, %v4361
        %v5430 = vsel %vm5365, %v5317, %v4363
        %v5431 = vsel %vm5365, %v5318, %v4365
        %v5432 = vsel %vm5365, %v5319, %v4367
        %v5433 = vsel %vm5365, %v5320, %v4369
        %v5434 = vsel %vm5365, %v5321, %v4371
        %v5435 = vsel %vm5365, %v5322, %v4373
        %v5436 = vsel %vm5365, %v5323, %v4375
        %v5437 = vsel %vm5365, %v5324, %v4377
        %v5438 = vsel %vm5365, %v5325, %v4379
        %v5439 = vsel %vm5365, %v5326, %v4381
        %v5440 = vsel %vm5365, %v5327, %v4383
        %v5441 = vsel %vm5365, %v5328, %v4385
        %v5442 = vsel %vm5365, %v5329, %v4387
        %v5443 = vsel %vm5365, %v5330, %v4389
        %v5444 = vsel %vm5365, %v5331, %v4391
        %v5445 = vsel %vm5365, %v5332, %v4393
        %v5446 = vsel %vm5365, %v5333, %v4395
        %v5447 = vsel %vm5365, %v5334, %v4397
        %v5448 = vsel %vm5365, %v5335, %v4399
        %v5449 = vsel %vm5365, %v5336, %v4401
        %v5450 = vsel %vm5365, %v5337, %v4403
        %v5451 = vsel %vm5365, %v5338, %v4405
        %v5452 = vsel %vm5365, %v5339, %v4407
        %v5453 = vsel %vm5365, %v5340, %v4409
        %v5454 = vsel %vm5365, %v5341, %v4411
        %v5455 = vsel %vm5365, %v5342, %v4413
        %v5456 = vsel %vm5365, %v5343, %v4415
        %v5457 = vsel %vm5365, %v5344, %v4417
        %v5458 = vsel %vm5365, %v5345, %v4419
        %v5459 = vsel %vm5365, %v5346, %v4421
        %v5460 = vsel %vm5365, %v5347, %v4423
        %v5461 = vsel %vm5365, %v5348, %v4425
        %v5462 = vsel %vm5365, %v5349, %v4427
        %v5463 = vsel %vm5365, %v5350, %v4429
        %v5464 = vsel %vm5365, %v5351, %v4431
        %v5465 = vsel %vm5365, %v5352, %v4433
        %v5466 = vsel %vm5365, %v5353, %v4435
        %v5467 = vsel %vm5365, %v5354, %v4437
        %v5468 = vsel %vm5365, %v5355, %v4439
        %v5469 = vsel %vm5365, %v5356, %v4441
        %v5470 = vsel %vm5365, %v5357, %v4443
        %v5471 = vsel %vm5365, %v5358, %v4445
        %v5472 = vsel %vm5365, %v5359, %v4447
        %v5473 = vsel %vm5365, %v5360, %v4449
        %v5474 = vsel %vm5365, %v5361, %v4451
        %v5475 = vsel %vm5365, %v5362, %v4453
        %v5476 = vsel %vm5365, %v5363, %v4455
        %v5477 = vsel %vm5365, %v5364, %v4457
        %vm5478 = vcmask 490496
        %v5479 = vsel %vm5478, %v5366, %v4576
        %v5480 = vsel %vm5478, %v5367, %v4578
        %v5481 = vsel %vm5478, %v5368, %v4580
        %v5482 = vsel %vm5478, %v5369, %v4582
        %v5483 = vsel %vm5478, %v5370, %v4584
        %v5484 = vsel %vm5478, %v5371, %v4586
        %v5485 = vsel %vm5478, %v5372, %v4588
        %v5486 = vsel %vm5478, %v5373, %v4590
        %v5487 = vsel %vm5478, %v5374, %v4592
        %v5488 = vsel %vm5478, %v5375, %v4594
        %v5489 = vsel %vm5478, %v5376, %v4596
        %v5490 = vsel %vm5478, %v5377, %v4598
        %v5491 = vsel %vm5478, %v5378, %v4600
        %v5492 = vsel %vm5478, %v5379, %v4602
        %v5493 = vsel %vm5478, %v5380, %v4604
        %v5494 = vsel %vm5478, %v5381, %v4606
        %v5495 = vsel %vm5478, %v5382, %v4608
        %v5496 = vsel %vm5478, %v5383, %v4610
        %v5497 = vsel %vm5478, %v5384, %v4612
        %v5498 = vsel %vm5478, %v5385, %v4614
        %v5499 = vsel %vm5478, %v5386, %v4616
        %v5500 = vsel %vm5478, %v5387, %v4618
        %v5501 = vsel %vm5478, %v5388, %v4620
        %v5502 = vsel %vm5478, %v5389, %v4622
        %v5503 = vsel %vm5478, %v5390, %v4624
        %v5504 = vsel %vm5478, %v5391, %v4626
        %v5505 = vsel %vm5478, %v5392, %v4628
        %v5506 = vsel %vm5478, %v5393, %v4630
        %v5507 = vsel %vm5478, %v5394, %v4632
        %v5508 = vsel %vm5478, %v5395, %v4634
        %v5509 = vsel %vm5478, %v5396, %v4636
        %v5510 = vsel %vm5478, %v5397, %v4638
        %v5511 = vsel %vm5478, %v5398, %v4640
        %v5512 = vsel %vm5478, %v5399, %v4642
        %v5513 = vsel %vm5478, %v5400, %v4644
        %v5514 = vsel %vm5478, %v5401, %v4646
        %v5515 = vsel %vm5478, %v5402, %v4648
        %v5516 = vsel %vm5478, %v5403, %v4650
        %v5517 = vsel %vm5478, %v5404, %v4652
        %v5518 = vsel %vm5478, %v5405, %v4654
        %v5519 = vsel %vm5478, %v5406, %v4656
        %v5520 = vsel %vm5478, %v5407, %v4658
        %v5521 = vsel %vm5478, %v5408, %v4660
        %v5522 = vsel %vm5478, %v5409, %v4662
        %v5523 = vsel %vm5478, %v5410, %v4664
        %v5524 = vsel %vm5478, %v5411, %v4666
        %v5525 = vsel %vm5478, %v5412, %v4668
        %v5526 = vsel %vm5478, %v5413, %v4670
        %v5527 = vsel %vm5478, %v5414, %v4672
        %v5528 = vsel %vm5478, %v5415, %v4674
        %v5529 = vsel %vm5478, %v5416, %v4676
        %v5530 = vsel %vm5478, %v5417, %v4678
        %v5531 = vsel %vm5478, %v5418, %v4680
        %v5532 = vsel %vm5478, %v5419, %v4682
        %v5533 = vsel %vm5478, %v5420, %v4684
        %v5534 = vsel %vm5478, %v5421, %v4686
        %v5535 = vsel %vm5478, %v5422, %v4688
        %v5536 = vsel %vm5478, %v5423, %v4690
        %v5537 = vsel %vm5478, %v5424, %v4692
        %v5538 = vsel %vm5478, %v5425, %v4694
        %v5539 = vsel %vm5478, %v5426, %v4696
        %v5540 = vsel %vm5478, %v5427, %v4698
        %v5541 = vsel %vm5478, %v5428, %v4700
        %v5542 = vsel %vm5478, %v5429, %v4702
        %v5543 = vsel %vm5478, %v5430, %v4704
        %v5544 = vsel %vm5478, %v5431, %v4706
        %v5545 = vsel %vm5478, %v5432, %v4708
        %v5546 = vsel %vm5478, %v5433, %v4710
        %v5547 = vsel %vm5478, %v5434, %v4712
        %v5548 = vsel %vm5478, %v5435, %v4714
        %v5549 = vsel %vm5478, %v5436, %v4716
        %v5550 = vsel %vm5478, %v5437, %v4718
        %v5551 = vsel %vm5478, %v5438, %v4720
        %v5552 = vsel %vm5478, %v5439, %v4722
        %v5553 = vsel %vm5478, %v5440, %v4724
        %v5554 = vsel %vm5478, %v5441, %v4726
        %v5555 = vsel %vm5478, %v5442, %v4728
        %v5556 = vsel %vm5478, %v5443, %v4730
        %v5557 = vsel %vm5478, %v5444, %v4732
        %v5558 = vsel %vm5478, %v5445, %v4734
        %v5559 = vsel %vm5478, %v5446, %v4736
        %v5560 = vsel %vm5478, %v5447, %v4738
        %v5561 = vsel %vm5478, %v5448, %v4740
        %v5562 = vsel %vm5478, %v5449, %v4742
        %v5563 = vsel %vm5478, %v5450, %v4744
        %v5564 = vsel %vm5478, %v5451, %v4746
        %v5565 = vsel %vm5478, %v5452, %v4748
        %v5566 = vsel %vm5478, %v5453, %v4750
        %v5567 = vsel %vm5478, %v5454, %v4752
        %v5568 = vsel %vm5478, %v5455, %v4754
        %v5569 = vsel %vm5478, %v5456, %v4756
        %v5570 = vsel %vm5478, %v5457, %v4758
        %v5571 = vsel %vm5478, %v5458, %v4760
        %v5572 = vsel %vm5478, %v5459, %v4762
        %v5573 = vsel %vm5478, %v5460, %v4764
        %v5574 = vsel %vm5478, %v5461, %v4766
        %v5575 = vsel %vm5478, %v5462, %v4768
        %v5576 = vsel %vm5478, %v5463, %v4770
        %v5577 = vsel %vm5478, %v5464, %v4772
        %v5578 = vsel %vm5478, %v5465, %v4774
        %v5579 = vsel %vm5478, %v5466, %v4776
        %v5580 = vsel %vm5478, %v5467, %v4778
        %v5581 = vsel %vm5478, %v5468, %v4780
        %v5582 = vsel %vm5478, %v5469, %v4782
        %v5583 = vsel %vm5478, %v5470, %v4784
        %v5584 = vsel %vm5478, %v5471, %v4786
        %v5585 = vsel %vm5478, %v5472, %v4788
        %v5586 = vsel %vm5478, %v5473, %v4790
        %v5587 = vsel %vm5478, %v5474, %v4792
        %v5588 = vsel %vm5478, %v5475, %v4794
        %v5589 = vsel %vm5478, %v5476, %v4796
        %v5590 = vsel %vm5478, %v5477, %v4798
        %vm5591 = vcmask 654336
        %v5592 = vsel %vm5591, %v5479, %v4917
        %v5593 = vsel %vm5591, %v5480, %v4919
        %v5594 = vsel %vm5591, %v5481, %v4921
        %v5595 = vsel %vm5591, %v5482, %v4923
        %v5596 = vsel %vm5591, %v5483, %v4925
        %v5597 = vsel %vm5591, %v5484, %v4927
        %v5598 = vsel %vm5591, %v5485, %v4929
        %v5599 = vsel %vm5591, %v5486, %v4931
        %v5600 = vsel %vm5591, %v5487, %v4933
        %v5601 = vsel %vm5591, %v5488, %v4935
        %v5602 = vsel %vm5591, %v5489, %v4937
        %v5603 = vsel %vm5591, %v5490, %v4939
        %v5604 = vsel %vm5591, %v5491, %v4941
        %v5605 = vsel %vm5591, %v5492, %v4943
        %v5606 = vsel %vm5591, %v5493, %v4945
        %v5607 = vsel %vm5591, %v5494, %v4947
        %v5608 = vsel %vm5591, %v5495, %v4949
        %v5609 = vsel %vm5591, %v5496, %v4951
        %v5610 = vsel %vm5591, %v5497, %v4953
        %v5611 = vsel %vm5591, %v5498, %v4955
        %v5612 = vsel %vm5591, %v5499, %v4957
        %v5613 = vsel %vm5591, %v5500, %v4959
        %v5614 = vsel %vm5591, %v5501, %v4961
        %v5615 = vsel %vm5591, %v5502, %v4963
        %v5616 = vsel %vm5591, %v5503, %v4965
        %v5617 = vsel %vm5591, %v5504, %v4967
        %v5618 = vsel %vm5591, %v5505, %v4969
        %v5619 = vsel %vm5591, %v5506, %v4971
        %v5620 = vsel %vm5591, %v5507, %v4973
        %v5621 = vsel %vm5591, %v5508, %v4975
        %v5622 = vsel %vm5591, %v5509, %v4977
        %v5623 = vsel %vm5591, %v5510, %v4979
        %v5624 = vsel %vm5591, %v5511, %v4981
        %v5625 = vsel %vm5591, %v5512, %v4983
        %v5626 = vsel %vm5591, %v5513, %v4985
        %v5627 = vsel %vm5591, %v5514, %v4987
        %v5628 = vsel %vm5591, %v5515, %v4989
        %v5629 = vsel %vm5591, %v5516, %v4991
        %v5630 = vsel %vm5591, %v5517, %v4993
        %v5631 = vsel %vm5591, %v5518, %v4995
        %v5632 = vsel %vm5591, %v5519, %v4997
        %v5633 = vsel %vm5591, %v5520, %v4999
        %v5634 = vsel %vm5591, %v5521, %v5001
        %v5635 = vsel %vm5591, %v5522, %v5003
        %v5636 = vsel %vm5591, %v5523, %v5005
        %v5637 = vsel %vm5591, %v5524, %v5007
        %v5638 = vsel %vm5591, %v5525, %v5009
        %v5639 = vsel %vm5591, %v5526, %v5011
        %v5640 = vsel %vm5591, %v5527, %v5013
        %v5641 = vsel %vm5591, %v5528, %v5015
        %v5642 = vsel %vm5591, %v5529, %v5017
        %v5643 = vsel %vm5591, %v5530, %v5019
        %v5644 = vsel %vm5591, %v5531, %v5021
        %v5645 = vsel %vm5591, %v5532, %v5023
        %v5646 = vsel %vm5591, %v5533, %v5025
        %v5647 = vsel %vm5591, %v5534, %v5027
        %v5648 = vsel %vm5591, %v5535, %v5029
        %v5649 = vsel %vm5591, %v5536, %v5031
        %v5650 = vsel %vm5591, %v5537, %v5033
        %v5651 = vsel %vm5591, %v5538, %v5035
        %v5652 = vsel %vm5591, %v5539, %v5037
        %v5653 = vsel %vm5591, %v5540, %v5039
        %v5654 = vsel %vm5591, %v5541, %v5041
        %v5655 = vsel %vm5591, %v5542, %v5043
        %v5656 = vsel %vm5591, %v5543, %v5045
        %v5657 = vsel %vm5591, %v5544, %v5047
        %v5658 = vsel %vm5591, %v5545, %v5049
        %v5659 = vsel %vm5591, %v5546, %v5051
        %v5660 = vsel %vm5591, %v5547, %v5053
        %v5661 = vsel %vm5591, %v5548, %v5055
        %v5662 = vsel %vm5591, %v5549, %v5057
        %v5663 = vsel %vm5591, %v5550, %v5059
        %v5664 = vsel %vm5591, %v5551, %v5061
        %v5665 = vsel %vm5591, %v5552, %v5063
        %v5666 = vsel %vm5591, %v5553, %v5065
        %v5667 = vsel %vm5591, %v5554, %v5067
        %v5668 = vsel %vm5591, %v5555, %v5069
        %v5669 = vsel %vm5591, %v5556, %v5071
        %v5670 = vsel %vm5591, %v5557, %v5073
        %v5671 = vsel %vm5591, %v5558, %v5075
        %v5672 = vsel %vm5591, %v5559, %v5077
        %v5673 = vsel %vm5591, %v5560, %v5079
        %v5674 = vsel %vm5591, %v5561, %v5081
        %v5675 = vsel %vm5591, %v5562, %v5083
        %v5676 = vsel %vm5591, %v5563, %v5085
        %v5677 = vsel %vm5591, %v5564, %v5087
        %v5678 = vsel %vm5591, %v5565, %v5089
        %v5679 = vsel %vm5591, %v5566, %v5091
        %v5680 = vsel %vm5591, %v5567, %v5093
        %v5681 = vsel %vm5591, %v5568, %v5095
        %v5682 = vsel %vm5591, %v5569, %v5097
        %v5683 = vsel %vm5591, %v5570, %v5099
        %v5684 = vsel %vm5591, %v5571, %v5101
        %v5685 = vsel %vm5591, %v5572, %v5103
        %v5686 = vsel %vm5591, %v5573, %v5105
        %v5687 = vsel %vm5591, %v5574, %v5107
        %v5688 = vsel %vm5591, %v5575, %v5109
        %v5689 = vsel %vm5591, %v5576, %v5111
        %v5690 = vsel %vm5591, %v5577, %v5113
        %v5691 = vsel %vm5591, %v5578, %v5115
        %v5692 = vsel %vm5591, %v5579, %v5117
        %v5693 = vsel %vm5591, %v5580, %v5119
        %v5694 = vsel %vm5591, %v5581, %v5121
        %v5695 = vsel %vm5591, %v5582, %v5123
        %v5696 = vsel %vm5591, %v5583, %v5125
        %v5697 = vsel %vm5591, %v5584, %v5127
        %v5698 = vsel %vm5591, %v5585, %v5129
        %v5699 = vsel %vm5591, %v5586, %v5131
        %v5700 = vsel %vm5591, %v5587, %v5133
        %v5701 = vsel %vm5591, %v5588, %v5135
        %v5702 = vsel %vm5591, %v5589, %v5137
        %v5703 = vsel %vm5591, %v5590, %v5139
        %v5704 = vld [vmem:[%s1] sm:$0xf]
        %v5705 = vld [vmem:[%s1 + $0x4] sm:$0xf]
        %v5706 = vld [vmem:[%s1 + $0x8] sm:$0xf]
        %v5707 = vld [vmem:[%s1 + $0xc] sm:$0xf]
        %v5708 = vld [vmem:[%s1 + $0x10] sm:$0xf]
        %v5709 = vld [vmem:[%s1 + $0x14] sm:$0xf]
        %v5710 = vld [vmem:[%s1 + $0x18] sm:$0xf]
        %v5711 = vld [vmem:[%s1 + $0x1c] sm:$0xf]
        %v5712 = vld [vmem:[%s1 + $0x20] sm:$0xf]
        %v5713 = vld [vmem:[%s1 + $0x24] sm:$0xf]
        %v5714 = vld [vmem:[%s1 + $0x28] sm:$0xf]
        %v5715 = vld [vmem:[%s1 + $0x2c] sm:$0xf]
        %v5716 = vld [vmem:[%s1 + $0x30] sm:$0x3]
        %v5717 = vpack.c.bf16 %v5593, %v5592
        %v5718 = vpack.c.bf16 %v5595, %v5594
        %v5719 = vpack.c.bf16 %v5597, %v5596
        %v5720 = vpack.c.bf16 %v5599, %v5598
        %v5721 = vpack.c.bf16 %v5601, %v5600
        %v5722 = vpack.c.bf16 %v5603, %v5602
        %v5723 = vpack.c.bf16 %v5605, %v5604
        %v5724 = vpack.c.bf16 %v5607, %v5606
        %v5725 = vpack.c.bf16 %v5609, %v5608
        %v5726 = vpack.c.bf16 %v5611, %v5610
        %v5727 = vpack.c.bf16 %v5613, %v5612
        %v5728 = vpack.c.bf16 %v5615, %v5614
        %v5729 = vpack.c.bf16 %v5617, %v5616
        %v5730 = vpack.c.bf16 %v5619, %v5618
        %v5731 = vpack.c.bf16 %v5621, %v5620
        %v5732 = vpack.c.bf16 %v5623, %v5622
        %v5733 = vpack.c.bf16 %v5625, %v5624
        %v5734 = vpack.c.bf16 %v5627, %v5626
        %v5735 = vpack.c.bf16 %v5629, %v5628
        %v5736 = vpack.c.bf16 %v5631, %v5630
        %v5737 = vpack.c.bf16 %v5633, %v5632
        %v5738 = vpack.c.bf16 %v5635, %v5634
        %v5739 = vpack.c.bf16 %v5637, %v5636
        %v5740 = vpack.c.bf16 %v5639, %v5638
        %v5741 = vpack.c.bf16 %v5641, %v5640
        %v5742 = vpack.c.bf16 %v5643, %v5642
        %v5743 = vpack.c.bf16 %v5645, %v5644
        %v5744 = vpack.c.bf16 %v5647, %v5646
        %v5745 = vpack.c.bf16 %v5649, %v5648
        %v5746 = vpack.c.bf16 %v5651, %v5650
        %v5747 = vpack.c.bf16 %v5653, %v5652
        %v5748 = vpack.c.bf16 %v5655, %v5654
        %v5749 = vpack.c.bf16 %v5657, %v5656
        %v5750 = vpack.c.bf16 %v5659, %v5658
        %v5751 = vpack.c.bf16 %v5661, %v5660
        %v5752 = vpack.c.bf16 %v5663, %v5662
        %v5753 = vpack.c.bf16 %v5665, %v5664
        %v5754 = vpack.c.bf16 %v5667, %v5666
        %v5755 = vpack.c.bf16 %v5669, %v5668
        %v5756 = vpack.c.bf16 %v5671, %v5670
        %v5757 = vpack.c.bf16 %v5673, %v5672
        %v5758 = vpack.c.bf16 %v5675, %v5674
        %v5759 = vpack.c.bf16 %v5677, %v5676
        %v5760 = vpack.c.bf16 %v5679, %v5678
        %v5761 = vpack.c.bf16 %v5681, %v5680
        %v5762 = vpack.c.bf16 %v5683, %v5682
        %v5763 = vpack.c.bf16 %v5685, %v5684
        %v5764 = vpack.c.bf16 %v5687, %v5686
        %v5765 = vpack.c.bf16 %v5689, %v5688
        %v5766 = vpack.c.bf16 %v5691, %v5690
        %v5767 = vpack.c.bf16 %v5693, %v5692
        %v5768 = vpack.c.bf16 %v5695, %v5694
        %v5769 = vpack.c.bf16 %v5697, %v5696
        %v5770 = vpack.c.bf16 %v5699, %v5698
        %v5771 = vpack.c.bf16 %v5701, %v5700
        %v5772 = vpack.c.bf16 %v5703, %v5702
        %v5773 = vld [vmem:[%s2] sm:$0x1]
        %v5775 = vlaneseq
        %v5776 = vshrl.u32 %v5775, 7
        %v5777 = vsub.s32 0, %v5776
        %v5778 = vrot.slane %v5773, %v5777
        %v5793 = vunpack.c.l.b16 %v5704
        %v5794 = vunpack.c.l.b16 %v5705
        %v5795 = vunpack.c.l.b16 %v5706
        %v5796 = vunpack.c.l.b16 %v5707
        %v5797 = vunpack.c.l.b16 %v5708
        %v5798 = vunpack.c.l.b16 %v5709
        %v5799 = vunpack.c.l.b16 %v5710
        %v5800 = vunpack.c.l.b16 %v5711
        %v5801 = vunpack.c.l.b16 %v5712
        %v5802 = vunpack.c.l.b16 %v5713
        %v5803 = vunpack.c.l.b16 %v5714
        %v5804 = vunpack.c.l.b16 %v5715
        %v5805 = vunpack.c.l.b16 %v5716
        %v5806 = vpack.c.b16 %v5794, %v5793
        %v5807 = vpack.c.b16 %v5796, %v5795
        %v5808 = vpack.c.b16 %v5798, %v5797
        %v5809 = vpack.c.b16 %v5800, %v5799
        %v5810 = vpack.c.b16 %v5802, %v5801
        %v5811 = vpack.c.b16 %v5804, %v5803
        %v5812 = vpack.c.b16 %v5805, %v5805
        %vm5819 = vcmask 818176
        %v5821 = vsel %vm5819, %v5717, 0
        %v5824 = vsel %vm5819, %v5718, 0
        %v5827 = vsel %vm5819, %v5719, 0
        %v5830 = vsel %vm5819, %v5720, 0
        %v5833 = vsel %vm5819, %v5721, 0
        %v5836 = vsel %vm5819, %v5722, 0
        %v5839 = vsel %vm5819, %v5723, 0
        %v5842 = vsel %vm5819, %v5724, 0
        %v5845 = vsel %vm5819, %v5725, 0
        %v5848 = vsel %vm5819, %v5726, 0
        %v5851 = vsel %vm5819, %v5727, 0
        %v5854 = vsel %vm5819, %v5728, 0
        %v5857 = vsel %vm5819, %v5729, 0
        %v5860 = vsel %vm5819, %v5730, 0
        %v5863 = vsel %vm5819, %v5731, 0
        %v5866 = vsel %vm5819, %v5732, 0
        %v5869 = vsel %vm5819, %v5733, 0
        %v5872 = vsel %vm5819, %v5734, 0
        %v5875 = vsel %vm5819, %v5735, 0
        %v5878 = vsel %vm5819, %v5736, 0
        %v5881 = vsel %vm5819, %v5737, 0
        %v5884 = vsel %vm5819, %v5738, 0
        %v5887 = vsel %vm5819, %v5739, 0
        %v5890 = vsel %vm5819, %v5740, 0
        %v5893 = vsel %vm5819, %v5741, 0
        %v5896 = vsel %vm5819, %v5742, 0
        %v5899 = vsel %vm5819, %v5743, 0
        %v5902 = vsel %vm5819, %v5744, 0
        %v5905 = vsel %vm5819, %v5745, 0
        %v5908 = vsel %vm5819, %v5746, 0
        %v5911 = vsel %vm5819, %v5747, 0
        %v5914 = vsel %vm5819, %v5748, 0
        %v5917 = vsel %vm5819, %v5749, 0
        %v5920 = vsel %vm5819, %v5750, 0
        %v5923 = vsel %vm5819, %v5751, 0
        %v5926 = vsel %vm5819, %v5752, 0
        %v5929 = vsel %vm5819, %v5753, 0
        %v5932 = vsel %vm5819, %v5754, 0
        %v5935 = vsel %vm5819, %v5755, 0
        %v5938 = vsel %vm5819, %v5756, 0
        %v5941 = vsel %vm5819, %v5757, 0
        %v5944 = vsel %vm5819, %v5758, 0
        %v5947 = vsel %vm5819, %v5759, 0
        %v5950 = vsel %vm5819, %v5760, 0
        %v5953 = vsel %vm5819, %v5761, 0
        %v5956 = vsel %vm5819, %v5762, 0
        %v5959 = vsel %vm5819, %v5763, 0
        %v5962 = vsel %vm5819, %v5764, 0
        %v5965 = vsel %vm5819, %v5765, 0
        %v5968 = vsel %vm5819, %v5766, 0
        %v5971 = vsel %vm5819, %v5767, 0
        %v5974 = vsel %vm5819, %v5768, 0
        %v5977 = vsel %vm5819, %v5769, 0
        %v5980 = vsel %vm5819, %v5770, 0
        %v5983 = vsel %vm5819, %v5771, 0
        %v5986 = vsel %vm5819, %v5772, 0
        %vm5988 = vcmask 1041408
        %v5990 = vsel %vm5988, %v5812, 0
        %5992 = vmatprep.subr.bf16.mxu0 0
        %5993 = vmatpush1.bf16.msra.mxu0 0
        %5994 = vmatprep.subr.bf16.mxu0 0
        %5995 = vmatpush1.bf16.msra.mxu0 %v5990
        %5996 = vmatprep.subr.bf16.mxu0 0
        %5997 = vmatpush1.bf16.msra.mxu0 %v5811
        %5998 = vmatprep.subr.bf16.mxu0 0
        %5999 = vmatpush1.bf16.msra.mxu0 %v5810
        %6000 = vmatprep.subr.bf16.mxu0 0
        %6001 = vmatpush1.bf16.msra.mxu0 %v5809
        %6002 = vmatprep.subr.bf16.mxu0 0
        %6003 = vmatpush1.bf16.msra.mxu0 %v5808
        %6004 = vmatprep.subr.bf16.mxu0 0
        %6005 = vmatpush1.bf16.msra.mxu0 %v5807
        %6006 = vmatprep.subr.bf16.mxu0 0
        %6007 = vmatpush1.bf16.msra.mxu0 %v5806
        %6008 = vmatprep.subr.bf16.mxu0 0
        %6009 = vmatpush2.bf16.msra.mxu0 0
        %6010 = vmatprep.subr.bf16.mxu0 0
        %6011 = vmatpush2.bf16.msra.mxu0 0
        %6012 = vmatprep.subr.bf16.mxu0 0
        %6013 = vmatpush2.bf16.msra.mxu0 0
        %6014 = vmatprep.subr.bf16.mxu0 0
        %6015 = vmatpush2.bf16.msra.mxu0 0
        %6016 = vmatprep.subr.bf16.mxu0 0
        %6017 = vmatpush2.bf16.msra.mxu0 0
        %6018 = vmatprep.subr.bf16.mxu0 0
        %6019 = vmatpush2.bf16.msra.mxu0 0
        %6020 = vmatprep.subr.bf16.mxu0 0
        %6021 = vmatpush2.bf16.msra.mxu0 0
        %6022 = vmatprep.subr.bf16.mxu0 0
        %6023 = vmatpush2.bf16.msra.mxu0 0
        %6024 = vmatprep.mubr.bf16.mxu0 0
        %6025 = vmatmul.mubr.bf16.gmra.mxu0 %v5821
        %v6026 = vpop.f32.mrf.mxu0
        %v6027 = vadd.f32 %v5778, %v6026
        %v6028 = vpop.f32.mrf.mxu0
        %v6029 = vpop.f32.mrf.mxu0
        %v6030 = vadd.f32 %v5778, %v6029
        %v6031 = vpop.f32.mrf.mxu0
        %6032 = vmatprep.mubr.bf16.mxu0 0
        %6033 = vmatmul.mubr.bf16.gmra.mxu0 %v5824
        %v6034 = vpop.f32.mrf.mxu0
        %v6035 = vadd.f32 %v5778, %v6034
        %v6036 = vpop.f32.mrf.mxu0
        %v6037 = vpop.f32.mrf.mxu0
        %v6038 = vadd.f32 %v5778, %v6037
        %v6039 = vpop.f32.mrf.mxu0
        %6040 = vmatprep.mubr.bf16.mxu0 0
        %6041 = vmatmul.mubr.bf16.gmra.mxu0 %v5827
        %v6042 = vpop.f32.mrf.mxu0
        %v6043 = vadd.f32 %v5778, %v6042
        %v6044 = vpop.f32.mrf.mxu0
        %v6045 = vpop.f32.mrf.mxu0
        %v6046 = vadd.f32 %v5778, %v6045
        %v6047 = vpop.f32.mrf.mxu0
        %6048 = vmatprep.mubr.bf16.mxu0 0
        %6049 = vmatmul.mubr.bf16.gmra.mxu0 %v5830
        %v6050 = vpop.f32.mrf.mxu0
        %v6051 = vadd.f32 %v5778, %v6050
        %v6052 = vpop.f32.mrf.mxu0
        %v6053 = vpop.f32.mrf.mxu0
        %v6054 = vadd.f32 %v5778, %v6053
        %v6055 = vpop.f32.mrf.mxu0
        %6056 = vmatprep.mubr.bf16.mxu0 0
        %6057 = vmatmul.mubr.bf16.gmra.mxu0 %v5833
        %v6058 = vpop.f32.mrf.mxu0
        %v6059 = vadd.f32 %v5778, %v6058
        %v6060 = vpop.f32.mrf.mxu0
        %v6061 = vpop.f32.mrf.mxu0
        %v6062 = vadd.f32 %v5778, %v6061
        %v6063 = vpop.f32.mrf.mxu0
        %6064 = vmatprep.mubr.bf16.mxu0 0
        %6065 = vmatmul.mubr.bf16.gmra.mxu0 %v5836
        %v6066 = vpop.f32.mrf.mxu0
        %v6067 = vadd.f32 %v5778, %v6066
        %v6068 = vpop.f32.mrf.mxu0
        %v6069 = vpop.f32.mrf.mxu0
        %v6070 = vadd.f32 %v5778, %v6069
        %v6071 = vpop.f32.mrf.mxu0
        %6072 = vmatprep.mubr.bf16.mxu0 0
        %6073 = vmatmul.mubr.bf16.gmra.mxu0 %v5839
        %v6074 = vpop.f32.mrf.mxu0
        %v6075 = vadd.f32 %v5778, %v6074
        %v6076 = vpop.f32.mrf.mxu0
        %v6077 = vpop.f32.mrf.mxu0
        %v6078 = vadd.f32 %v5778, %v6077
        %v6079 = vpop.f32.mrf.mxu0
        %6080 = vmatprep.mubr.bf16.mxu0 0
        %6081 = vmatmul.mubr.bf16.gmra.mxu0 %v5842
        %v6082 = vpop.f32.mrf.mxu0
        %v6083 = vadd.f32 %v5778, %v6082
        %v6084 = vpop.f32.mrf.mxu0
        %v6085 = vpop.f32.mrf.mxu0
        %v6086 = vadd.f32 %v5778, %v6085
        %v6087 = vpop.f32.mrf.mxu0
        %6088 = vmatprep.mubr.bf16.mxu0 0
        %6089 = vmatmul.mubr.bf16.gmra.mxu0 %v5845
        %v6090 = vpop.f32.mrf.mxu0
        %v6091 = vadd.f32 %v5778, %v6090
        %v6092 = vpop.f32.mrf.mxu0
        %v6093 = vpop.f32.mrf.mxu0
        %v6094 = vadd.f32 %v5778, %v6093
        %v6095 = vpop.f32.mrf.mxu0
        %6096 = vmatprep.mubr.bf16.mxu0 0
        %6097 = vmatmul.mubr.bf16.gmra.mxu0 %v5848
        %v6098 = vpop.f32.mrf.mxu0
        %v6099 = vadd.f32 %v5778, %v6098
        %v6100 = vpop.f32.mrf.mxu0
        %v6101 = vpop.f32.mrf.mxu0
        %v6102 = vadd.f32 %v5778, %v6101
        %v6103 = vpop.f32.mrf.mxu0
        %6104 = vmatprep.mubr.bf16.mxu0 0
        %6105 = vmatmul.mubr.bf16.gmra.mxu0 %v5851
        %v6106 = vpop.f32.mrf.mxu0
        %v6107 = vadd.f32 %v5778, %v6106
        %v6108 = vpop.f32.mrf.mxu0
        %v6109 = vpop.f32.mrf.mxu0
        %v6110 = vadd.f32 %v5778, %v6109
        %v6111 = vpop.f32.mrf.mxu0
        %6112 = vmatprep.mubr.bf16.mxu0 0
        %6113 = vmatmul.mubr.bf16.gmra.mxu0 %v5854
        %v6114 = vpop.f32.mrf.mxu0
        %v6115 = vadd.f32 %v5778, %v6114
        %v6116 = vpop.f32.mrf.mxu0
        %v6117 = vpop.f32.mrf.mxu0
        %v6118 = vadd.f32 %v5778, %v6117
        %v6119 = vpop.f32.mrf.mxu0
        %6120 = vmatprep.mubr.bf16.mxu0 0
        %6121 = vmatmul.mubr.bf16.gmra.mxu0 %v5857
        %v6122 = vpop.f32.mrf.mxu0
        %v6123 = vadd.f32 %v5778, %v6122
        %v6124 = vpop.f32.mrf.mxu0
        %v6125 = vpop.f32.mrf.mxu0
        %v6126 = vadd.f32 %v5778, %v6125
        %v6127 = vpop.f32.mrf.mxu0
        %6128 = vmatprep.mubr.bf16.mxu0 0
        %6129 = vmatmul.mubr.bf16.gmra.mxu0 %v5860
        %v6130 = vpop.f32.mrf.mxu0
        %v6131 = vadd.f32 %v5778, %v6130
        %v6132 = vpop.f32.mrf.mxu0
        %v6133 = vpop.f32.mrf.mxu0
        %v6134 = vadd.f32 %v5778, %v6133
        %v6135 = vpop.f32.mrf.mxu0
        %6136 = vmatprep.mubr.bf16.mxu0 0
        %6137 = vmatmul.mubr.bf16.gmra.mxu0 %v5863
        %v6138 = vpop.f32.mrf.mxu0
        %v6139 = vadd.f32 %v5778, %v6138
        %v6140 = vpop.f32.mrf.mxu0
        %v6141 = vpop.f32.mrf.mxu0
        %v6142 = vadd.f32 %v5778, %v6141
        %v6143 = vpop.f32.mrf.mxu0
        %6144 = vmatprep.mubr.bf16.mxu0 0
        %6145 = vmatmul.mubr.bf16.gmra.mxu0 %v5866
        %v6146 = vpop.f32.mrf.mxu0
        %v6147 = vadd.f32 %v5778, %v6146
        %v6148 = vpop.f32.mrf.mxu0
        %v6149 = vpop.f32.mrf.mxu0
        %v6150 = vadd.f32 %v5778, %v6149
        %v6151 = vpop.f32.mrf.mxu0
        %6152 = vmatprep.mubr.bf16.mxu0 0
        %6153 = vmatmul.mubr.bf16.gmra.mxu0 %v5869
        %v6154 = vpop.f32.mrf.mxu0
        %v6155 = vadd.f32 %v5778, %v6154
        %v6156 = vpop.f32.mrf.mxu0
        %v6157 = vpop.f32.mrf.mxu0
        %v6158 = vadd.f32 %v5778, %v6157
        %v6159 = vpop.f32.mrf.mxu0
        %6160 = vmatprep.mubr.bf16.mxu0 0
        %6161 = vmatmul.mubr.bf16.gmra.mxu0 %v5872
        %v6162 = vpop.f32.mrf.mxu0
        %v6163 = vadd.f32 %v5778, %v6162
        %v6164 = vpop.f32.mrf.mxu0
        %v6165 = vpop.f32.mrf.mxu0
        %v6166 = vadd.f32 %v5778, %v6165
        %v6167 = vpop.f32.mrf.mxu0
        %6168 = vmatprep.mubr.bf16.mxu0 0
        %6169 = vmatmul.mubr.bf16.gmra.mxu0 %v5875
        %v6170 = vpop.f32.mrf.mxu0
        %v6171 = vadd.f32 %v5778, %v6170
        %v6172 = vpop.f32.mrf.mxu0
        %v6173 = vpop.f32.mrf.mxu0
        %v6174 = vadd.f32 %v5778, %v6173
        %v6175 = vpop.f32.mrf.mxu0
        %6176 = vmatprep.mubr.bf16.mxu0 0
        %6177 = vmatmul.mubr.bf16.gmra.mxu0 %v5878
        %v6178 = vpop.f32.mrf.mxu0
        %v6179 = vadd.f32 %v5778, %v6178
        %v6180 = vpop.f32.mrf.mxu0
        %v6181 = vpop.f32.mrf.mxu0
        %v6182 = vadd.f32 %v5778, %v6181
        %v6183 = vpop.f32.mrf.mxu0
        %6184 = vmatprep.mubr.bf16.mxu0 0
        %6185 = vmatmul.mubr.bf16.gmra.mxu0 %v5881
        %v6186 = vpop.f32.mrf.mxu0
        %v6187 = vadd.f32 %v5778, %v6186
        %v6188 = vpop.f32.mrf.mxu0
        %v6189 = vpop.f32.mrf.mxu0
        %v6190 = vadd.f32 %v5778, %v6189
        %v6191 = vpop.f32.mrf.mxu0
        %6192 = vmatprep.mubr.bf16.mxu0 0
        %6193 = vmatmul.mubr.bf16.gmra.mxu0 %v5884
        %v6194 = vpop.f32.mrf.mxu0
        %v6195 = vadd.f32 %v5778, %v6194
        %v6196 = vpop.f32.mrf.mxu0
        %v6197 = vpop.f32.mrf.mxu0
        %v6198 = vadd.f32 %v5778, %v6197
        %v6199 = vpop.f32.mrf.mxu0
        %6200 = vmatprep.mubr.bf16.mxu0 0
        %6201 = vmatmul.mubr.bf16.gmra.mxu0 %v5887
        %v6202 = vpop.f32.mrf.mxu0
        %v6203 = vadd.f32 %v5778, %v6202
        %v6204 = vpop.f32.mrf.mxu0
        %v6205 = vpop.f32.mrf.mxu0
        %v6206 = vadd.f32 %v5778, %v6205
        %v6207 = vpop.f32.mrf.mxu0
        %6208 = vmatprep.mubr.bf16.mxu0 0
        %6209 = vmatmul.mubr.bf16.gmra.mxu0 %v5890
        %v6210 = vpop.f32.mrf.mxu0
        %v6211 = vadd.f32 %v5778, %v6210
        %v6212 = vpop.f32.mrf.mxu0
        %v6213 = vpop.f32.mrf.mxu0
        %v6214 = vadd.f32 %v5778, %v6213
        %v6215 = vpop.f32.mrf.mxu0
        %6216 = vmatprep.mubr.bf16.mxu0 0
        %6217 = vmatmul.mubr.bf16.gmra.mxu0 %v5893
        %v6218 = vpop.f32.mrf.mxu0
        %v6219 = vadd.f32 %v5778, %v6218
        %v6220 = vpop.f32.mrf.mxu0
        %v6221 = vpop.f32.mrf.mxu0
        %v6222 = vadd.f32 %v5778, %v6221
        %v6223 = vpop.f32.mrf.mxu0
        %6224 = vmatprep.mubr.bf16.mxu0 0
        %6225 = vmatmul.mubr.bf16.gmra.mxu0 %v5896
        %v6226 = vpop.f32.mrf.mxu0
        %v6227 = vadd.f32 %v5778, %v6226
        %v6228 = vpop.f32.mrf.mxu0
        %v6229 = vpop.f32.mrf.mxu0
        %v6230 = vadd.f32 %v5778, %v6229
        %v6231 = vpop.f32.mrf.mxu0
        %6232 = vmatprep.mubr.bf16.mxu0 0
        %6233 = vmatmul.mubr.bf16.gmra.mxu0 %v5899
        %v6234 = vpop.f32.mrf.mxu0
        %v6235 = vadd.f32 %v5778, %v6234
        %v6236 = vpop.f32.mrf.mxu0
        %v6237 = vpop.f32.mrf.mxu0
        %v6238 = vadd.f32 %v5778, %v6237
        %v6239 = vpop.f32.mrf.mxu0
        %6240 = vmatprep.mubr.bf16.mxu0 0
        %6241 = vmatmul.mubr.bf16.gmra.mxu0 %v5902
        %v6242 = vpop.f32.mrf.mxu0
        %v6243 = vadd.f32 %v5778, %v6242
        %v6244 = vpop.f32.mrf.mxu0
        %v6245 = vpop.f32.mrf.mxu0
        %v6246 = vadd.f32 %v5778, %v6245
        %v6247 = vpop.f32.mrf.mxu0
        %6248 = vmatprep.mubr.bf16.mxu0 0
        %6249 = vmatmul.mubr.bf16.gmra.mxu0 %v5905
        %v6250 = vpop.f32.mrf.mxu0
        %v6251 = vadd.f32 %v5778, %v6250
        %v6252 = vpop.f32.mrf.mxu0
        %v6253 = vpop.f32.mrf.mxu0
        %v6254 = vadd.f32 %v5778, %v6253
        %v6255 = vpop.f32.mrf.mxu0
        %6256 = vmatprep.mubr.bf16.mxu0 0
        %6257 = vmatmul.mubr.bf16.gmra.mxu0 %v5908
        %v6258 = vpop.f32.mrf.mxu0
        %v6259 = vadd.f32 %v5778, %v6258
        %v6260 = vpop.f32.mrf.mxu0
        %v6261 = vpop.f32.mrf.mxu0
        %v6262 = vadd.f32 %v5778, %v6261
        %v6263 = vpop.f32.mrf.mxu0
        %6264 = vmatprep.mubr.bf16.mxu0 0
        %6265 = vmatmul.mubr.bf16.gmra.mxu0 %v5911
        %v6266 = vpop.f32.mrf.mxu0
        %v6267 = vadd.f32 %v5778, %v6266
        %v6268 = vpop.f32.mrf.mxu0
        %v6269 = vpop.f32.mrf.mxu0
        %v6270 = vadd.f32 %v5778, %v6269
        %v6271 = vpop.f32.mrf.mxu0
        %6272 = vmatprep.mubr.bf16.mxu0 0
        %6273 = vmatmul.mubr.bf16.gmra.mxu0 %v5914
        %v6274 = vpop.f32.mrf.mxu0
        %v6275 = vadd.f32 %v5778, %v6274
        %v6276 = vpop.f32.mrf.mxu0
        %v6277 = vpop.f32.mrf.mxu0
        %v6278 = vadd.f32 %v5778, %v6277
        %v6279 = vpop.f32.mrf.mxu0
        %6280 = vmatprep.mubr.bf16.mxu0 0
        %6281 = vmatmul.mubr.bf16.gmra.mxu0 %v5917
        %v6282 = vpop.f32.mrf.mxu0
        %v6283 = vadd.f32 %v5778, %v6282
        %v6284 = vpop.f32.mrf.mxu0
        %v6285 = vpop.f32.mrf.mxu0
        %v6286 = vadd.f32 %v5778, %v6285
        %v6287 = vpop.f32.mrf.mxu0
        %6288 = vmatprep.mubr.bf16.mxu0 0
        %6289 = vmatmul.mubr.bf16.gmra.mxu0 %v5920
        %v6290 = vpop.f32.mrf.mxu0
        %v6291 = vadd.f32 %v5778, %v6290
        %v6292 = vpop.f32.mrf.mxu0
        %v6293 = vpop.f32.mrf.mxu0
        %v6294 = vadd.f32 %v5778, %v6293
        %v6295 = vpop.f32.mrf.mxu0
        %6296 = vmatprep.mubr.bf16.mxu0 0
        %6297 = vmatmul.mubr.bf16.gmra.mxu0 %v5923
        %v6298 = vpop.f32.mrf.mxu0
        %v6299 = vadd.f32 %v5778, %v6298
        %v6300 = vpop.f32.mrf.mxu0
        %v6301 = vpop.f32.mrf.mxu0
        %v6302 = vadd.f32 %v5778, %v6301
        %v6303 = vpop.f32.mrf.mxu0
        %6304 = vmatprep.mubr.bf16.mxu0 0
        %6305 = vmatmul.mubr.bf16.gmra.mxu0 %v5926
        %v6306 = vpop.f32.mrf.mxu0
        %v6307 = vadd.f32 %v5778, %v6306
        %v6308 = vpop.f32.mrf.mxu0
        %v6309 = vpop.f32.mrf.mxu0
        %v6310 = vadd.f32 %v5778, %v6309
        %v6311 = vpop.f32.mrf.mxu0
        %6312 = vmatprep.mubr.bf16.mxu0 0
        %6313 = vmatmul.mubr.bf16.gmra.mxu0 %v5929
        %v6314 = vpop.f32.mrf.mxu0
        %v6315 = vadd.f32 %v5778, %v6314
        %v6316 = vpop.f32.mrf.mxu0
        %v6317 = vpop.f32.mrf.mxu0
        %v6318 = vadd.f32 %v5778, %v6317
        %v6319 = vpop.f32.mrf.mxu0
        %6320 = vmatprep.mubr.bf16.mxu0 0
        %6321 = vmatmul.mubr.bf16.gmra.mxu0 %v5932
        %v6322 = vpop.f32.mrf.mxu0
        %v6323 = vadd.f32 %v5778, %v6322
        %v6324 = vpop.f32.mrf.mxu0
        %v6325 = vpop.f32.mrf.mxu0
        %v6326 = vadd.f32 %v5778, %v6325
        %v6327 = vpop.f32.mrf.mxu0
        %6328 = vmatprep.mubr.bf16.mxu0 0
        %6329 = vmatmul.mubr.bf16.gmra.mxu0 %v5935
        %v6330 = vpop.f32.mrf.mxu0
        %v6331 = vadd.f32 %v5778, %v6330
        %v6332 = vpop.f32.mrf.mxu0
        %v6333 = vpop.f32.mrf.mxu0
        %v6334 = vadd.f32 %v5778, %v6333
        %v6335 = vpop.f32.mrf.mxu0
        %6336 = vmatprep.mubr.bf16.mxu0 0
        %6337 = vmatmul.mubr.bf16.gmra.mxu0 %v5938
        %v6338 = vpop.f32.mrf.mxu0
        %v6339 = vadd.f32 %v5778, %v6338
        %v6340 = vpop.f32.mrf.mxu0
        %v6341 = vpop.f32.mrf.mxu0
        %v6342 = vadd.f32 %v5778, %v6341
        %v6343 = vpop.f32.mrf.mxu0
        %6344 = vmatprep.mubr.bf16.mxu0 0
        %6345 = vmatmul.mubr.bf16.gmra.mxu0 %v5941
        %v6346 = vpop.f32.mrf.mxu0
        %v6347 = vadd.f32 %v5778, %v6346
        %v6348 = vpop.f32.mrf.mxu0
        %v6349 = vpop.f32.mrf.mxu0
        %v6350 = vadd.f32 %v5778, %v6349
        %v6351 = vpop.f32.mrf.mxu0
        %6352 = vmatprep.mubr.bf16.mxu0 0
        %6353 = vmatmul.mubr.bf16.gmra.mxu0 %v5944
        %v6354 = vpop.f32.mrf.mxu0
        %v6355 = vadd.f32 %v5778, %v6354
        %v6356 = vpop.f32.mrf.mxu0
        %v6357 = vpop.f32.mrf.mxu0
        %v6358 = vadd.f32 %v5778, %v6357
        %v6359 = vpop.f32.mrf.mxu0
        %6360 = vmatprep.mubr.bf16.mxu0 0
        %6361 = vmatmul.mubr.bf16.gmra.mxu0 %v5947
        %v6362 = vpop.f32.mrf.mxu0
        %v6363 = vadd.f32 %v5778, %v6362
        %v6364 = vpop.f32.mrf.mxu0
        %v6365 = vpop.f32.mrf.mxu0
        %v6366 = vadd.f32 %v5778, %v6365
        %v6367 = vpop.f32.mrf.mxu0
        %6368 = vmatprep.mubr.bf16.mxu0 0
        %6369 = vmatmul.mubr.bf16.gmra.mxu0 %v5950
        %v6370 = vpop.f32.mrf.mxu0
        %v6371 = vadd.f32 %v5778, %v6370
        %v6372 = vpop.f32.mrf.mxu0
        %v6373 = vpop.f32.mrf.mxu0
        %v6374 = vadd.f32 %v5778, %v6373
        %v6375 = vpop.f32.mrf.mxu0
        %6376 = vmatprep.mubr.bf16.mxu0 0
        %6377 = vmatmul.mubr.bf16.gmra.mxu0 %v5953
        %v6378 = vpop.f32.mrf.mxu0
        %v6379 = vadd.f32 %v5778, %v6378
        %v6380 = vpop.f32.mrf.mxu0
        %v6381 = vpop.f32.mrf.mxu0
        %v6382 = vadd.f32 %v5778, %v6381
        %v6383 = vpop.f32.mrf.mxu0
        %6384 = vmatprep.mubr.bf16.mxu0 0
        %6385 = vmatmul.mubr.bf16.gmra.mxu0 %v5956
        %v6386 = vpop.f32.mrf.mxu0
        %v6387 = vadd.f32 %v5778, %v6386
        %v6388 = vpop.f32.mrf.mxu0
        %v6389 = vpop.f32.mrf.mxu0
        %v6390 = vadd.f32 %v5778, %v6389
        %v6391 = vpop.f32.mrf.mxu0
        %6392 = vmatprep.mubr.bf16.mxu0 0
        %6393 = vmatmul.mubr.bf16.gmra.mxu0 %v5959
        %v6394 = vpop.f32.mrf.mxu0
        %v6395 = vadd.f32 %v5778, %v6394
        %v6396 = vpop.f32.mrf.mxu0
        %v6397 = vpop.f32.mrf.mxu0
        %v6398 = vadd.f32 %v5778, %v6397
        %v6399 = vpop.f32.mrf.mxu0
        %6400 = vmatprep.mubr.bf16.mxu0 0
        %6401 = vmatmul.mubr.bf16.gmra.mxu0 %v5962
        %v6402 = vpop.f32.mrf.mxu0
        %v6403 = vadd.f32 %v5778, %v6402
        %v6404 = vpop.f32.mrf.mxu0
        %v6405 = vpop.f32.mrf.mxu0
        %v6406 = vadd.f32 %v5778, %v6405
        %v6407 = vpop.f32.mrf.mxu0
        %6408 = vmatprep.mubr.bf16.mxu0 0
        %6409 = vmatmul.mubr.bf16.gmra.mxu0 %v5965
        %v6410 = vpop.f32.mrf.mxu0
        %v6411 = vadd.f32 %v5778, %v6410
        %v6412 = vpop.f32.mrf.mxu0
        %v6413 = vpop.f32.mrf.mxu0
        %v6414 = vadd.f32 %v5778, %v6413
        %v6415 = vpop.f32.mrf.mxu0
        %6416 = vmatprep.mubr.bf16.mxu0 0
        %6417 = vmatmul.mubr.bf16.gmra.mxu0 %v5968
        %v6418 = vpop.f32.mrf.mxu0
        %v6419 = vadd.f32 %v5778, %v6418
        %v6420 = vpop.f32.mrf.mxu0
        %v6421 = vpop.f32.mrf.mxu0
        %v6422 = vadd.f32 %v5778, %v6421
        %v6423 = vpop.f32.mrf.mxu0
        %6424 = vmatprep.mubr.bf16.mxu0 0
        %6425 = vmatmul.mubr.bf16.gmra.mxu0 %v5971
        %v6426 = vpop.f32.mrf.mxu0
        %v6427 = vadd.f32 %v5778, %v6426
        %v6428 = vpop.f32.mrf.mxu0
        %v6429 = vpop.f32.mrf.mxu0
        %v6430 = vadd.f32 %v5778, %v6429
        %v6431 = vpop.f32.mrf.mxu0
        %6432 = vmatprep.mubr.bf16.mxu0 0
        %6433 = vmatmul.mubr.bf16.gmra.mxu0 %v5974
        %v6434 = vpop.f32.mrf.mxu0
        %v6435 = vadd.f32 %v5778, %v6434
        %v6436 = vpop.f32.mrf.mxu0
        %v6437 = vpop.f32.mrf.mxu0
        %v6438 = vadd.f32 %v5778, %v6437
        %v6439 = vpop.f32.mrf.mxu0
        %6440 = vmatprep.mubr.bf16.mxu0 0
        %6441 = vmatmul.mubr.bf16.gmra.mxu0 %v5977
        %v6442 = vpop.f32.mrf.mxu0
        %v6443 = vadd.f32 %v5778, %v6442
        %v6444 = vpop.f32.mrf.mxu0
        %v6445 = vpop.f32.mrf.mxu0
        %v6446 = vadd.f32 %v5778, %v6445
        %v6447 = vpop.f32.mrf.mxu0
        %6448 = vmatprep.mubr.bf16.mxu0 0
        %6449 = vmatmul.mubr.bf16.gmra.mxu0 %v5980
        %v6450 = vpop.f32.mrf.mxu0
        %v6451 = vadd.f32 %v5778, %v6450
        %v6452 = vpop.f32.mrf.mxu0
        %v6453 = vpop.f32.mrf.mxu0
        %v6454 = vadd.f32 %v5778, %v6453
        %v6455 = vpop.f32.mrf.mxu0
        %6456 = vmatprep.mubr.bf16.mxu0 0
        %6457 = vmatmul.mubr.bf16.gmra.mxu0 %v5983
        %v6458 = vpop.f32.mrf.mxu0
        %v6459 = vadd.f32 %v5778, %v6458
        %v6460 = vpop.f32.mrf.mxu0
        %v6461 = vpop.f32.mrf.mxu0
        %v6462 = vadd.f32 %v5778, %v6461
        %v6463 = vpop.f32.mrf.mxu0
        %6464 = vmatprep.mubr.bf16.mxu0 0
        %6465 = vmatmul.mubr.bf16.gmra.mxu0 %v5986
        %v6466 = vpop.f32.mrf.mxu0
        %v6467 = vadd.f32 %v5778, %v6466
        %v6468 = vpop.f32.mrf.mxu0
        %v6469 = vpop.f32.mrf.mxu0
        %v6470 = vadd.f32 %v5778, %v6469
        %v6471 = vpop.f32.mrf.mxu0
        %6472 = vdwg.mxu0
        %v6473 = vmax.f32 %v6027, 0.0
        %v6474 = vmax.f32 %v6030, 0.0
        %v6475 = vmax.f32 %v6035, 0.0
        %v6476 = vmax.f32 %v6038, 0.0
        %v6477 = vmax.f32 %v6043, 0.0
        %v6478 = vmax.f32 %v6046, 0.0
        %v6479 = vmax.f32 %v6051, 0.0
        %v6480 = vmax.f32 %v6054, 0.0
        %v6481 = vmax.f32 %v6059, 0.0
        %v6482 = vmax.f32 %v6062, 0.0
        %v6483 = vmax.f32 %v6067, 0.0
        %v6484 = vmax.f32 %v6070, 0.0
        %v6485 = vmax.f32 %v6075, 0.0
        %v6486 = vmax.f32 %v6078, 0.0
        %v6487 = vmax.f32 %v6083, 0.0
        %v6488 = vmax.f32 %v6086, 0.0
        %v6489 = vmax.f32 %v6091, 0.0
        %v6490 = vmax.f32 %v6094, 0.0
        %v6491 = vmax.f32 %v6099, 0.0
        %v6492 = vmax.f32 %v6102, 0.0
        %v6493 = vmax.f32 %v6107, 0.0
        %v6494 = vmax.f32 %v6110, 0.0
        %v6495 = vmax.f32 %v6115, 0.0
        %v6496 = vmax.f32 %v6118, 0.0
        %v6497 = vmax.f32 %v6123, 0.0
        %v6498 = vmax.f32 %v6126, 0.0
        %v6499 = vmax.f32 %v6131, 0.0
        %v6500 = vmax.f32 %v6134, 0.0
        %v6501 = vmax.f32 %v6139, 0.0
        %v6502 = vmax.f32 %v6142, 0.0
        %v6503 = vmax.f32 %v6147, 0.0
        %v6504 = vmax.f32 %v6150, 0.0
        %v6505 = vmax.f32 %v6155, 0.0
        %v6506 = vmax.f32 %v6158, 0.0
        %v6507 = vmax.f32 %v6163, 0.0
        %v6508 = vmax.f32 %v6166, 0.0
        %v6509 = vmax.f32 %v6171, 0.0
        %v6510 = vmax.f32 %v6174, 0.0
        %v6511 = vmax.f32 %v6179, 0.0
        %v6512 = vmax.f32 %v6182, 0.0
        %v6513 = vmax.f32 %v6187, 0.0
        %v6514 = vmax.f32 %v6190, 0.0
        %v6515 = vmax.f32 %v6195, 0.0
        %v6516 = vmax.f32 %v6198, 0.0
        %v6517 = vmax.f32 %v6203, 0.0
        %v6518 = vmax.f32 %v6206, 0.0
        %v6519 = vmax.f32 %v6211, 0.0
        %v6520 = vmax.f32 %v6214, 0.0
        %v6521 = vmax.f32 %v6219, 0.0
        %v6522 = vmax.f32 %v6222, 0.0
        %v6523 = vmax.f32 %v6227, 0.0
        %v6524 = vmax.f32 %v6230, 0.0
        %v6525 = vmax.f32 %v6235, 0.0
        %v6526 = vmax.f32 %v6238, 0.0
        %v6527 = vmax.f32 %v6243, 0.0
        %v6528 = vmax.f32 %v6246, 0.0
        %v6529 = vmax.f32 %v6251, 0.0
        %v6530 = vmax.f32 %v6254, 0.0
        %v6531 = vmax.f32 %v6259, 0.0
        %v6532 = vmax.f32 %v6262, 0.0
        %v6533 = vmax.f32 %v6267, 0.0
        %v6534 = vmax.f32 %v6270, 0.0
        %v6535 = vmax.f32 %v6275, 0.0
        %v6536 = vmax.f32 %v6278, 0.0
        %v6537 = vmax.f32 %v6283, 0.0
        %v6538 = vmax.f32 %v6286, 0.0
        %v6539 = vmax.f32 %v6291, 0.0
        %v6540 = vmax.f32 %v6294, 0.0
        %v6541 = vmax.f32 %v6299, 0.0
        %v6542 = vmax.f32 %v6302, 0.0
        %v6543 = vmax.f32 %v6307, 0.0
        %v6544 = vmax.f32 %v6310, 0.0
        %v6545 = vmax.f32 %v6315, 0.0
        %v6546 = vmax.f32 %v6318, 0.0
        %v6547 = vmax.f32 %v6323, 0.0
        %v6548 = vmax.f32 %v6326, 0.0
        %v6549 = vmax.f32 %v6331, 0.0
        %v6550 = vmax.f32 %v6334, 0.0
        %v6551 = vmax.f32 %v6339, 0.0
        %v6552 = vmax.f32 %v6342, 0.0
        %v6553 = vmax.f32 %v6347, 0.0
        %v6554 = vmax.f32 %v6350, 0.0
        %v6555 = vmax.f32 %v6355, 0.0
        %v6556 = vmax.f32 %v6358, 0.0
        %v6557 = vmax.f32 %v6363, 0.0
        %v6558 = vmax.f32 %v6366, 0.0
        %v6559 = vmax.f32 %v6371, 0.0
        %v6560 = vmax.f32 %v6374, 0.0
        %v6561 = vmax.f32 %v6379, 0.0
        %v6562 = vmax.f32 %v6382, 0.0
        %v6563 = vmax.f32 %v6387, 0.0
        %v6564 = vmax.f32 %v6390, 0.0
        %v6565 = vmax.f32 %v6395, 0.0
        %v6566 = vmax.f32 %v6398, 0.0
        %v6567 = vmax.f32 %v6403, 0.0
        %v6568 = vmax.f32 %v6406, 0.0
        %v6569 = vmax.f32 %v6411, 0.0
        %v6570 = vmax.f32 %v6414, 0.0
        %v6571 = vmax.f32 %v6419, 0.0
        %v6572 = vmax.f32 %v6422, 0.0
        %v6573 = vmax.f32 %v6427, 0.0
        %v6574 = vmax.f32 %v6430, 0.0
        %v6575 = vmax.f32 %v6435, 0.0
        %v6576 = vmax.f32 %v6438, 0.0
        %v6577 = vmax.f32 %v6443, 0.0
        %v6578 = vmax.f32 %v6446, 0.0
        %v6579 = vmax.f32 %v6451, 0.0
        %v6580 = vmax.f32 %v6454, 0.0
        %v6581 = vmax.f32 %v6459, 0.0
        %v6582 = vmax.f32 %v6462, 0.0
        %v6583 = vmax.f32 %v6467, 0.0
        %v6584 = vmax.f32 %v6470, 0.0
        %v6693 = vrot.slane %v6473, 1
        %v6694 = vrot.slane %v6474, 1
        %v6695 = vsel %vm625, %v6693, %v6694
        %v6696 = vrot.slane %v6475, 1
        %v6697 = vsel %vm625, %v6694, %v6696
        %v6698 = vrot.slane %v6476, 1
        %v6699 = vsel %vm625, %v6696, %v6698
        %v6700 = vrot.slane %v6477, 1
        %v6701 = vsel %vm625, %v6698, %v6700
        %v6702 = vrot.slane %v6478, 1
        %v6703 = vsel %vm625, %v6700, %v6702
        %v6704 = vrot.slane %v6479, 1
        %v6705 = vsel %vm625, %v6702, %v6704
        %v6706 = vrot.slane %v6480, 1
        %v6707 = vsel %vm625, %v6704, %v6706
        %v6708 = vrot.slane %v6481, 1
        %v6709 = vsel %vm625, %v6706, %v6708
        %v6710 = vrot.slane %v6482, 1
        %v6711 = vsel %vm625, %v6708, %v6710
        %v6712 = vrot.slane %v6483, 1
        %v6713 = vsel %vm625, %v6710, %v6712
        %v6714 = vrot.slane %v6484, 1
        %v6715 = vsel %vm625, %v6712, %v6714
        %v6716 = vrot.slane %v6485, 1
        %v6717 = vsel %vm625, %v6714, %v6716
        %v6718 = vrot.slane %v6486, 1
        %v6719 = vsel %vm625, %v6716, %v6718
        %v6720 = vrot.slane %v6487, 1
        %v6721 = vsel %vm625, %v6718, %v6720
        %v6722 = vrot.slane %v6488, 1
        %v6723 = vsel %vm625, %v6720, %v6722
        %v6724 = vrot.slane %v6489, 1
        %v6725 = vsel %vm625, %v6722, %v6724
        %v6726 = vrot.slane %v6490, 1
        %v6727 = vsel %vm625, %v6724, %v6726
        %v6728 = vrot.slane %v6491, 1
        %v6729 = vsel %vm625, %v6726, %v6728
        %v6730 = vrot.slane %v6492, 1
        %v6731 = vsel %vm625, %v6728, %v6730
        %v6732 = vrot.slane %v6493, 1
        %v6733 = vsel %vm625, %v6730, %v6732
        %v6734 = vrot.slane %v6494, 1
        %v6735 = vsel %vm625, %v6732, %v6734
        %v6736 = vrot.slane %v6495, 1
        %v6737 = vsel %vm625, %v6734, %v6736
        %v6738 = vrot.slane %v6496, 1
        %v6739 = vsel %vm625, %v6736, %v6738
        %v6740 = vrot.slane %v6497, 1
        %v6741 = vsel %vm625, %v6738, %v6740
        %v6742 = vrot.slane %v6498, 1
        %v6743 = vsel %vm625, %v6740, %v6742
        %v6744 = vrot.slane %v6499, 1
        %v6745 = vsel %vm625, %v6742, %v6744
        %v6746 = vrot.slane %v6500, 1
        %v6747 = vsel %vm625, %v6744, %v6746
        %v6748 = vrot.slane %v6501, 1
        %v6749 = vsel %vm625, %v6746, %v6748
        %v6750 = vrot.slane %v6502, 1
        %v6751 = vsel %vm625, %v6748, %v6750
        %v6752 = vrot.slane %v6503, 1
        %v6753 = vsel %vm625, %v6750, %v6752
        %v6754 = vrot.slane %v6504, 1
        %v6755 = vsel %vm625, %v6752, %v6754
        %v6756 = vrot.slane %v6505, 1
        %v6757 = vsel %vm625, %v6754, %v6756
        %v6758 = vrot.slane %v6506, 1
        %v6759 = vsel %vm625, %v6756, %v6758
        %v6760 = vrot.slane %v6507, 1
        %v6761 = vsel %vm625, %v6758, %v6760
        %v6762 = vrot.slane %v6508, 1
        %v6763 = vsel %vm625, %v6760, %v6762
        %v6764 = vrot.slane %v6509, 1
        %v6765 = vsel %vm625, %v6762, %v6764
        %v6766 = vrot.slane %v6510, 1
        %v6767 = vsel %vm625, %v6764, %v6766
        %v6768 = vrot.slane %v6511, 1
        %v6769 = vsel %vm625, %v6766, %v6768
        %v6770 = vrot.slane %v6512, 1
        %v6771 = vsel %vm625, %v6768, %v6770
        %v6772 = vrot.slane %v6513, 1
        %v6773 = vsel %vm625, %v6770, %v6772
        %v6774 = vrot.slane %v6514, 1
        %v6775 = vsel %vm625, %v6772, %v6774
        %v6776 = vrot.slane %v6515, 1
        %v6777 = vsel %vm625, %v6774, %v6776
        %v6778 = vrot.slane %v6516, 1
        %v6779 = vsel %vm625, %v6776, %v6778
        %v6780 = vrot.slane %v6517, 1
        %v6781 = vsel %vm625, %v6778, %v6780
        %v6782 = vrot.slane %v6518, 1
        %v6783 = vsel %vm625, %v6780, %v6782
        %v6784 = vrot.slane %v6519, 1
        %v6785 = vsel %vm625, %v6782, %v6784
        %v6786 = vrot.slane %v6520, 1
        %v6787 = vsel %vm625, %v6784, %v6786
        %v6788 = vrot.slane %v6521, 1
        %v6789 = vsel %vm625, %v6786, %v6788
        %v6790 = vrot.slane %v6522, 1
        %v6791 = vsel %vm625, %v6788, %v6790
        %v6792 = vrot.slane %v6523, 1
        %v6793 = vsel %vm625, %v6790, %v6792
        %v6794 = vrot.slane %v6524, 1
        %v6795 = vsel %vm625, %v6792, %v6794
        %v6796 = vrot.slane %v6525, 1
        %v6797 = vsel %vm625, %v6794, %v6796
        %v6798 = vrot.slane %v6526, 1
        %v6799 = vsel %vm625, %v6796, %v6798
        %v6800 = vrot.slane %v6527, 1
        %v6801 = vsel %vm625, %v6798, %v6800
        %v6802 = vrot.slane %v6528, 1
        %v6803 = vsel %vm625, %v6800, %v6802
        %v6804 = vrot.slane %v6529, 1
        %v6805 = vsel %vm625, %v6802, %v6804
        %v6806 = vrot.slane %v6530, 1
        %v6807 = vsel %vm625, %v6804, %v6806
        %v6808 = vrot.slane %v6531, 1
        %v6809 = vsel %vm625, %v6806, %v6808
        %v6810 = vrot.slane %v6532, 1
        %v6811 = vsel %vm625, %v6808, %v6810
        %v6812 = vrot.slane %v6533, 1
        %v6813 = vsel %vm625, %v6810, %v6812
        %v6814 = vrot.slane %v6534, 1
        %v6815 = vsel %vm625, %v6812, %v6814
        %v6816 = vrot.slane %v6535, 1
        %v6817 = vsel %vm625, %v6814, %v6816
        %v6818 = vrot.slane %v6536, 1
        %v6819 = vsel %vm625, %v6816, %v6818
        %v6820 = vrot.slane %v6537, 1
        %v6821 = vsel %vm625, %v6818, %v6820
        %v6822 = vrot.slane %v6538, 1
        %v6823 = vsel %vm625, %v6820, %v6822
        %v6824 = vrot.slane %v6539, 1
        %v6825 = vsel %vm625, %v6822, %v6824
        %v6826 = vrot.slane %v6540, 1
        %v6827 = vsel %vm625, %v6824, %v6826
        %v6828 = vrot.slane %v6541, 1
        %v6829 = vsel %vm625, %v6826, %v6828
        %v6830 = vrot.slane %v6542, 1
        %v6831 = vsel %vm625, %v6828, %v6830
        %v6832 = vrot.slane %v6543, 1
        %v6833 = vsel %vm625, %v6830, %v6832
        %v6834 = vrot.slane %v6544, 1
        %v6835 = vsel %vm625, %v6832, %v6834
        %v6836 = vrot.slane %v6545, 1
        %v6837 = vsel %vm625, %v6834, %v6836
        %v6838 = vrot.slane %v6546, 1
        %v6839 = vsel %vm625, %v6836, %v6838
        %v6840 = vrot.slane %v6547, 1
        %v6841 = vsel %vm625, %v6838, %v6840
        %v6842 = vrot.slane %v6548, 1
        %v6843 = vsel %vm625, %v6840, %v6842
        %v6844 = vrot.slane %v6549, 1
        %v6845 = vsel %vm625, %v6842, %v6844
        %v6846 = vrot.slane %v6550, 1
        %v6847 = vsel %vm625, %v6844, %v6846
        %v6848 = vrot.slane %v6551, 1
        %v6849 = vsel %vm625, %v6846, %v6848
        %v6850 = vrot.slane %v6552, 1
        %v6851 = vsel %vm625, %v6848, %v6850
        %v6852 = vrot.slane %v6553, 1
        %v6853 = vsel %vm625, %v6850, %v6852
        %v6854 = vrot.slane %v6554, 1
        %v6855 = vsel %vm625, %v6852, %v6854
        %v6856 = vrot.slane %v6555, 1
        %v6857 = vsel %vm625, %v6854, %v6856
        %v6858 = vrot.slane %v6556, 1
        %v6859 = vsel %vm625, %v6856, %v6858
        %v6860 = vrot.slane %v6557, 1
        %v6861 = vsel %vm625, %v6858, %v6860
        %v6862 = vrot.slane %v6558, 1
        %v6863 = vsel %vm625, %v6860, %v6862
        %v6864 = vrot.slane %v6559, 1
        %v6865 = vsel %vm625, %v6862, %v6864
        %v6866 = vrot.slane %v6560, 1
        %v6867 = vsel %vm625, %v6864, %v6866
        %v6868 = vrot.slane %v6561, 1
        %v6869 = vsel %vm625, %v6866, %v6868
        %v6870 = vrot.slane %v6562, 1
        %v6871 = vsel %vm625, %v6868, %v6870
        %v6872 = vrot.slane %v6563, 1
        %v6873 = vsel %vm625, %v6870, %v6872
        %v6874 = vrot.slane %v6564, 1
        %v6875 = vsel %vm625, %v6872, %v6874
        %v6876 = vrot.slane %v6565, 1
        %v6877 = vsel %vm625, %v6874, %v6876
        %v6878 = vrot.slane %v6566, 1
        %v6879 = vsel %vm625, %v6876, %v6878
        %v6880 = vrot.slane %v6567, 1
        %v6881 = vsel %vm625, %v6878, %v6880
        %v6882 = vrot.slane %v6568, 1
        %v6883 = vsel %vm625, %v6880, %v6882
        %v6884 = vrot.slane %v6569, 1
        %v6885 = vsel %vm625, %v6882, %v6884
        %v6886 = vrot.slane %v6570, 1
        %v6887 = vsel %vm625, %v6884, %v6886
        %v6888 = vrot.slane %v6571, 1
        %v6889 = vsel %vm625, %v6886, %v6888
        %v6890 = vrot.slane %v6572, 1
        %v6891 = vsel %vm625, %v6888, %v6890
        %v6892 = vrot.slane %v6573, 1
        %v6893 = vsel %vm625, %v6890, %v6892
        %v6894 = vrot.slane %v6574, 1
        %v6895 = vsel %vm625, %v6892, %v6894
        %v6896 = vrot.slane %v6575, 1
        %v6897 = vsel %vm625, %v6894, %v6896
        %v6898 = vrot.slane %v6576, 1
        %v6899 = vsel %vm625, %v6896, %v6898
        %v6900 = vrot.slane %v6577, 1
        %v6901 = vsel %vm625, %v6898, %v6900
        %v6902 = vrot.slane %v6578, 1
        %v6903 = vsel %vm625, %v6900, %v6902
        %v6904 = vrot.slane %v6579, 1
        %v6905 = vsel %vm625, %v6902, %v6904
        %v6906 = vrot.slane %v6580, 1
        %v6907 = vsel %vm625, %v6904, %v6906
        %v7016 = vmax.f32 %v6473, %v6695
        %v7017 = vmax.f32 %v6474, %v6697
        %v7018 = vmax.f32 %v6475, %v6699
        %v7019 = vmax.f32 %v6476, %v6701
        %v7020 = vmax.f32 %v6477, %v6703
        %v7021 = vmax.f32 %v6478, %v6705
        %v7022 = vmax.f32 %v6479, %v6707
        %v7023 = vmax.f32 %v6480, %v6709
        %v7024 = vmax.f32 %v6481, %v6711
        %v7025 = vmax.f32 %v6482, %v6713
        %v7026 = vmax.f32 %v6483, %v6715
        %v7027 = vmax.f32 %v6484, %v6717
        %v7028 = vmax.f32 %v6485, %v6719
        %v7029 = vmax.f32 %v6486, %v6721
        %v7030 = vmax.f32 %v6487, %v6723
        %v7031 = vmax.f32 %v6488, %v6725
        %v7032 = vmax.f32 %v6489, %v6727
        %v7033 = vmax.f32 %v6490, %v6729
        %v7034 = vmax.f32 %v6491, %v6731
        %v7035 = vmax.f32 %v6492, %v6733
        %v7036 = vmax.f32 %v6493, %v6735
        %v7037 = vmax.f32 %v6494, %v6737
        %v7038 = vmax.f32 %v6495, %v6739
        %v7039 = vmax.f32 %v6496, %v6741
        %v7040 = vmax.f32 %v6497, %v6743
        %v7041 = vmax.f32 %v6498, %v6745
        %v7042 = vmax.f32 %v6499, %v6747
        %v7043 = vmax.f32 %v6500, %v6749
        %v7044 = vmax.f32 %v6501, %v6751
        %v7045 = vmax.f32 %v6502, %v6753
        %v7046 = vmax.f32 %v6503, %v6755
        %v7047 = vmax.f32 %v6504, %v6757
        %v7048 = vmax.f32 %v6505, %v6759
        %v7049 = vmax.f32 %v6506, %v6761
        %v7050 = vmax.f32 %v6507, %v6763
        %v7051 = vmax.f32 %v6508, %v6765
        %v7052 = vmax.f32 %v6509, %v6767
        %v7053 = vmax.f32 %v6510, %v6769
        %v7054 = vmax.f32 %v6511, %v6771
        %v7055 = vmax.f32 %v6512, %v6773
        %v7056 = vmax.f32 %v6513, %v6775
        %v7057 = vmax.f32 %v6514, %v6777
        %v7058 = vmax.f32 %v6515, %v6779
        %v7059 = vmax.f32 %v6516, %v6781
        %v7060 = vmax.f32 %v6517, %v6783
        %v7061 = vmax.f32 %v6518, %v6785
        %v7062 = vmax.f32 %v6519, %v6787
        %v7063 = vmax.f32 %v6520, %v6789
        %v7064 = vmax.f32 %v6521, %v6791
        %v7065 = vmax.f32 %v6522, %v6793
        %v7066 = vmax.f32 %v6523, %v6795
        %v7067 = vmax.f32 %v6524, %v6797
        %v7068 = vmax.f32 %v6525, %v6799
        %v7069 = vmax.f32 %v6526, %v6801
        %v7070 = vmax.f32 %v6527, %v6803
        %v7071 = vmax.f32 %v6528, %v6805
        %v7072 = vmax.f32 %v6529, %v6807
        %v7073 = vmax.f32 %v6530, %v6809
        %v7074 = vmax.f32 %v6531, %v6811
        %v7075 = vmax.f32 %v6532, %v6813
        %v7076 = vmax.f32 %v6533, %v6815
        %v7077 = vmax.f32 %v6534, %v6817
        %v7078 = vmax.f32 %v6535, %v6819
        %v7079 = vmax.f32 %v6536, %v6821
        %v7080 = vmax.f32 %v6537, %v6823
        %v7081 = vmax.f32 %v6538, %v6825
        %v7082 = vmax.f32 %v6539, %v6827
        %v7083 = vmax.f32 %v6540, %v6829
        %v7084 = vmax.f32 %v6541, %v6831
        %v7085 = vmax.f32 %v6542, %v6833
        %v7086 = vmax.f32 %v6543, %v6835
        %v7087 = vmax.f32 %v6544, %v6837
        %v7088 = vmax.f32 %v6545, %v6839
        %v7089 = vmax.f32 %v6546, %v6841
        %v7090 = vmax.f32 %v6547, %v6843
        %v7091 = vmax.f32 %v6548, %v6845
        %v7092 = vmax.f32 %v6549, %v6847
        %v7093 = vmax.f32 %v6550, %v6849
        %v7094 = vmax.f32 %v6551, %v6851
        %v7095 = vmax.f32 %v6552, %v6853
        %v7096 = vmax.f32 %v6553, %v6855
        %v7097 = vmax.f32 %v6554, %v6857
        %v7098 = vmax.f32 %v6555, %v6859
        %v7099 = vmax.f32 %v6556, %v6861
        %v7100 = vmax.f32 %v6557, %v6863
        %v7101 = vmax.f32 %v6558, %v6865
        %v7102 = vmax.f32 %v6559, %v6867
        %v7103 = vmax.f32 %v6560, %v6869
        %v7104 = vmax.f32 %v6561, %v6871
        %v7105 = vmax.f32 %v6562, %v6873
        %v7106 = vmax.f32 %v6563, %v6875
        %v7107 = vmax.f32 %v6564, %v6877
        %v7108 = vmax.f32 %v6565, %v6879
        %v7109 = vmax.f32 %v6566, %v6881
        %v7110 = vmax.f32 %v6567, %v6883
        %v7111 = vmax.f32 %v6568, %v6885
        %v7112 = vmax.f32 %v6569, %v6887
        %v7113 = vmax.f32 %v6570, %v6889
        %v7114 = vmax.f32 %v6571, %v6891
        %v7115 = vmax.f32 %v6572, %v6893
        %v7116 = vmax.f32 %v6573, %v6895
        %v7117 = vmax.f32 %v6574, %v6897
        %v7118 = vmax.f32 %v6575, %v6899
        %v7119 = vmax.f32 %v6576, %v6901
        %v7120 = vmax.f32 %v6577, %v6903
        %v7121 = vmax.f32 %v6578, %v6905
        %v7122 = vmax.f32 %v6579, %v6907
        %v7123 = vmax.f32 %v6580, %v6906
        %v7128 = vrot.slane %v6581, 1
        %v7129 = vsel %vm625, %v6906, %v7128
        %v7130 = vrot.slane %v6582, 1
        %v7131 = vsel %vm625, %v7128, %v7130
        %v7132 = vrot.slane %v6583, 1
        %v7133 = vsel %vm625, %v7130, %v7132
        %v7134 = vrot.slane %v6584, 1
        %v7135 = vsel %vm625, %v7132, %v7134
        %v7141 = vmax.f32 %v6580, %v7129
        %v7142 = vmax.f32 %v6581, %v7131
        %v7143 = vmax.f32 %v6582, %v7133
        %v7144 = vmax.f32 %v6583, %v7135
        %v7145 = vmax.f32 %v6584, %v7134
        %v7146 = vmax.f32 %v7016, %v7020
        %v7147 = vmax.f32 %v7017, %v7021
        %v7148 = vmax.f32 %v7018, %v7022
        %v7149 = vmax.f32 %v7019, %v7023
        %v7150 = vmax.f32 %v7020, %v7024
        %v7151 = vmax.f32 %v7021, %v7025
        %v7152 = vmax.f32 %v7022, %v7026
        %v7153 = vmax.f32 %v7023, %v7027
        %v7154 = vmax.f32 %v7024, %v7028
        %v7155 = vmax.f32 %v7025, %v7029
        %v7156 = vmax.f32 %v7026, %v7030
        %v7157 = vmax.f32 %v7027, %v7031
        %v7158 = vmax.f32 %v7028, %v7032
        %v7159 = vmax.f32 %v7029, %v7033
        %v7160 = vmax.f32 %v7030, %v7034
        %v7161 = vmax.f32 %v7031, %v7035
        %v7162 = vmax.f32 %v7032, %v7036
        %v7163 = vmax.f32 %v7033, %v7037
        %v7164 = vmax.f32 %v7034, %v7038
        %v7165 = vmax.f32 %v7035, %v7039
        %v7166 = vmax.f32 %v7036, %v7040
        %v7167 = vmax.f32 %v7037, %v7041
        %v7168 = vmax.f32 %v7038, %v7042
        %v7169 = vmax.f32 %v7039, %v7043
        %v7170 = vmax.f32 %v7040, %v7044
        %v7171 = vmax.f32 %v7041, %v7045
        %v7172 = vmax.f32 %v7042, %v7046
        %v7173 = vmax.f32 %v7043, %v7047
        %v7174 = vmax.f32 %v7044, %v7048
        %v7175 = vmax.f32 %v7045, %v7049
        %v7176 = vmax.f32 %v7046, %v7050
        %v7177 = vmax.f32 %v7047, %v7051
        %v7178 = vmax.f32 %v7048, %v7052
        %v7179 = vmax.f32 %v7049, %v7053
        %v7180 = vmax.f32 %v7050, %v7054
        %v7181 = vmax.f32 %v7051, %v7055
        %v7182 = vmax.f32 %v7052, %v7056
        %v7183 = vmax.f32 %v7053, %v7057
        %v7184 = vmax.f32 %v7054, %v7058
        %v7185 = vmax.f32 %v7055, %v7059
        %v7186 = vmax.f32 %v7056, %v7060
        %v7187 = vmax.f32 %v7057, %v7061
        %v7188 = vmax.f32 %v7058, %v7062
        %v7189 = vmax.f32 %v7059, %v7063
        %v7190 = vmax.f32 %v7060, %v7064
        %v7191 = vmax.f32 %v7061, %v7065
        %v7192 = vmax.f32 %v7062, %v7066
        %v7193 = vmax.f32 %v7063, %v7067
        %v7194 = vmax.f32 %v7064, %v7068
        %v7195 = vmax.f32 %v7065, %v7069
        %v7196 = vmax.f32 %v7066, %v7070
        %v7197 = vmax.f32 %v7067, %v7071
        %v7198 = vmax.f32 %v7068, %v7072
        %v7199 = vmax.f32 %v7069, %v7073
        %v7200 = vmax.f32 %v7070, %v7074
        %v7201 = vmax.f32 %v7071, %v7075
        %v7202 = vmax.f32 %v7072, %v7076
        %v7203 = vmax.f32 %v7073, %v7077
        %v7204 = vmax.f32 %v7074, %v7078
        %v7205 = vmax.f32 %v7075, %v7079
        %v7206 = vmax.f32 %v7076, %v7080
        %v7207 = vmax.f32 %v7077, %v7081
        %v7208 = vmax.f32 %v7078, %v7082
        %v7209 = vmax.f32 %v7079, %v7083
        %v7210 = vmax.f32 %v7080, %v7084
        %v7211 = vmax.f32 %v7081, %v7085
        %v7212 = vmax.f32 %v7082, %v7086
        %v7213 = vmax.f32 %v7083, %v7087
        %v7214 = vmax.f32 %v7084, %v7088
        %v7215 = vmax.f32 %v7085, %v7089
        %v7216 = vmax.f32 %v7086, %v7090
        %v7217 = vmax.f32 %v7087, %v7091
        %v7218 = vmax.f32 %v7088, %v7092
        %v7219 = vmax.f32 %v7089, %v7093
        %v7220 = vmax.f32 %v7090, %v7094
        %v7221 = vmax.f32 %v7091, %v7095
        %v7222 = vmax.f32 %v7092, %v7096
        %v7223 = vmax.f32 %v7093, %v7097
        %v7224 = vmax.f32 %v7094, %v7098
        %v7225 = vmax.f32 %v7095, %v7099
        %v7226 = vmax.f32 %v7096, %v7100
        %v7227 = vmax.f32 %v7097, %v7101
        %v7228 = vmax.f32 %v7098, %v7102
        %v7229 = vmax.f32 %v7099, %v7103
        %v7230 = vmax.f32 %v7100, %v7104
        %v7231 = vmax.f32 %v7101, %v7105
        %v7232 = vmax.f32 %v7102, %v7106
        %v7233 = vmax.f32 %v7103, %v7107
        %v7234 = vmax.f32 %v7104, %v7108
        %v7235 = vmax.f32 %v7105, %v7109
        %v7236 = vmax.f32 %v7106, %v7110
        %v7237 = vmax.f32 %v7107, %v7111
        %v7238 = vmax.f32 %v7108, %v7112
        %v7239 = vmax.f32 %v7109, %v7113
        %v7240 = vmax.f32 %v7110, %v7114
        %v7241 = vmax.f32 %v7111, %v7115
        %v7242 = vmax.f32 %v7112, %v7116
        %v7243 = vmax.f32 %v7113, %v7117
        %v7244 = vmax.f32 %v7114, %v7118
        %v7245 = vmax.f32 %v7115, %v7119
        %v7246 = vmax.f32 %v7116, %v7120
        %v7247 = vmax.f32 %v7117, %v7121
        %v7248 = vmax.f32 %v7118, %v7122
        %v7249 = vmax.f32 %v7119, %v7141
        %v7250 = vmax.f32 %v7120, %v7142
        %v7251 = vmax.f32 %v7121, %v7143
        %v7252 = vmax.f32 %v7122, %v7144
        %v7253 = vmax.f32 %v7123, %v7145
        %v7329 = vrot.slane %v7146, 2
        %v7330 = vrot.slane %v7147, 2
        %v7331 = vsel %vm1185, %v7329, %v7330
        %v7332 = vrot.slane %v7148, 2
        %v7333 = vsel %vm1185, %v7330, %v7332
        %v7334 = vrot.slane %v7149, 2
        %v7335 = vsel %vm1185, %v7332, %v7334
        %v7336 = vrot.slane %v7150, 2
        %v7337 = vsel %vm1185, %v7334, %v7336
        %v7338 = vrot.slane %v7151, 2
        %v7339 = vsel %vm1185, %v7336, %v7338
        %v7340 = vrot.slane %v7152, 2
        %v7341 = vsel %vm1185, %v7338, %v7340
        %v7342 = vrot.slane %v7153, 2
        %v7343 = vsel %vm1185, %v7340, %v7342
        %v7344 = vrot.slane %v7154, 2
        %v7345 = vsel %vm1185, %v7342, %v7344
        %v7346 = vrot.slane %v7155, 2
        %v7347 = vsel %vm1185, %v7344, %v7346
        %v7348 = vrot.slane %v7156, 2
        %v7349 = vsel %vm1185, %v7346, %v7348
        %v7350 = vrot.slane %v7157, 2
        %v7351 = vsel %vm1185, %v7348, %v7350
        %v7352 = vrot.slane %v7158, 2
        %v7353 = vsel %vm1185, %v7350, %v7352
        %v7354 = vrot.slane %v7159, 2
        %v7355 = vsel %vm1185, %v7352, %v7354
        %v7356 = vrot.slane %v7160, 2
        %v7357 = vsel %vm1185, %v7354, %v7356
        %v7358 = vrot.slane %v7161, 2
        %v7359 = vsel %vm1185, %v7356, %v7358
        %v7360 = vrot.slane %v7162, 2
        %v7361 = vsel %vm1185, %v7358, %v7360
        %v7362 = vrot.slane %v7163, 2
        %v7363 = vsel %vm1185, %v7360, %v7362
        %v7364 = vrot.slane %v7164, 2
        %v7365 = vsel %vm1185, %v7362, %v7364
        %v7366 = vrot.slane %v7165, 2
        %v7367 = vsel %vm1185, %v7364, %v7366
        %v7368 = vrot.slane %v7166, 2
        %v7369 = vsel %vm1185, %v7366, %v7368
        %v7370 = vrot.slane %v7167, 2
        %v7371 = vsel %vm1185, %v7368, %v7370
        %v7372 = vrot.slane %v7168, 2
        %v7373 = vsel %vm1185, %v7370, %v7372
        %v7374 = vrot.slane %v7169, 2
        %v7375 = vsel %vm1185, %v7372, %v7374
        %v7376 = vrot.slane %v7170, 2
        %v7377 = vsel %vm1185, %v7374, %v7376
        %v7378 = vrot.slane %v7171, 2
        %v7379 = vsel %vm1185, %v7376, %v7378
        %v7380 = vrot.slane %v7172, 2
        %v7381 = vsel %vm1185, %v7378, %v7380
        %v7382 = vrot.slane %v7173, 2
        %v7383 = vsel %vm1185, %v7380, %v7382
        %v7384 = vrot.slane %v7174, 2
        %v7385 = vsel %vm1185, %v7382, %v7384
        %v7386 = vrot.slane %v7175, 2
        %v7387 = vsel %vm1185, %v7384, %v7386
        %v7388 = vrot.slane %v7176, 2
        %v7389 = vsel %vm1185, %v7386, %v7388
        %v7390 = vrot.slane %v7177, 2
        %v7391 = vsel %vm1185, %v7388, %v7390
        %v7392 = vrot.slane %v7178, 2
        %v7393 = vsel %vm1185, %v7390, %v7392
        %v7394 = vrot.slane %v7179, 2
        %v7395 = vsel %vm1185, %v7392, %v7394
        %v7396 = vrot.slane %v7180, 2
        %v7397 = vsel %vm1185, %v7394, %v7396
        %v7398 = vrot.slane %v7181, 2
        %v7399 = vsel %vm1185, %v7396, %v7398
        %v7400 = vrot.slane %v7182, 2
        %v7401 = vsel %vm1185, %v7398, %v7400
        %v7402 = vrot.slane %v7183, 2
        %v7403 = vsel %vm1185, %v7400, %v7402
        %v7404 = vrot.slane %v7184, 2
        %v7405 = vsel %vm1185, %v7402, %v7404
        %v7406 = vrot.slane %v7185, 2
        %v7407 = vsel %vm1185, %v7404, %v7406
        %v7408 = vrot.slane %v7186, 2
        %v7409 = vsel %vm1185, %v7406, %v7408
        %v7410 = vrot.slane %v7187, 2
        %v7411 = vsel %vm1185, %v7408, %v7410
        %v7412 = vrot.slane %v7188, 2
        %v7413 = vsel %vm1185, %v7410, %v7412
        %v7414 = vrot.slane %v7189, 2
        %v7415 = vsel %vm1185, %v7412, %v7414
        %v7416 = vrot.slane %v7190, 2
        %v7417 = vsel %vm1185, %v7414, %v7416
        %v7418 = vrot.slane %v7191, 2
        %v7419 = vsel %vm1185, %v7416, %v7418
        %v7420 = vrot.slane %v7192, 2
        %v7421 = vsel %vm1185, %v7418, %v7420
        %v7422 = vrot.slane %v7193, 2
        %v7423 = vsel %vm1185, %v7420, %v7422
        %v7424 = vrot.slane %v7194, 2
        %v7425 = vsel %vm1185, %v7422, %v7424
        %v7426 = vrot.slane %v7195, 2
        %v7427 = vsel %vm1185, %v7424, %v7426
        %v7428 = vrot.slane %v7196, 2
        %v7429 = vsel %vm1185, %v7426, %v7428
        %v7430 = vrot.slane %v7197, 2
        %v7431 = vsel %vm1185, %v7428, %v7430
        %v7432 = vrot.slane %v7198, 2
        %v7433 = vsel %vm1185, %v7430, %v7432
        %v7434 = vrot.slane %v7199, 2
        %v7435 = vsel %vm1185, %v7432, %v7434
        %v7436 = vrot.slane %v7200, 2
        %v7437 = vsel %vm1185, %v7434, %v7436
        %v7438 = vrot.slane %v7201, 2
        %v7439 = vsel %vm1185, %v7436, %v7438
        %v7440 = vrot.slane %v7202, 2
        %v7441 = vsel %vm1185, %v7438, %v7440
        %v7442 = vrot.slane %v7203, 2
        %v7443 = vsel %vm1185, %v7440, %v7442
        %v7444 = vrot.slane %v7204, 2
        %v7445 = vsel %vm1185, %v7442, %v7444
        %v7446 = vrot.slane %v7205, 2
        %v7447 = vsel %vm1185, %v7444, %v7446
        %v7448 = vrot.slane %v7206, 2
        %v7449 = vsel %vm1185, %v7446, %v7448
        %v7450 = vrot.slane %v7207, 2
        %v7451 = vsel %vm1185, %v7448, %v7450
        %v7452 = vrot.slane %v7208, 2
        %v7453 = vsel %vm1185, %v7450, %v7452
        %v7454 = vrot.slane %v7209, 2
        %v7455 = vsel %vm1185, %v7452, %v7454
        %v7456 = vrot.slane %v7210, 2
        %v7457 = vsel %vm1185, %v7454, %v7456
        %v7458 = vrot.slane %v7211, 2
        %v7459 = vsel %vm1185, %v7456, %v7458
        %v7460 = vrot.slane %v7212, 2
        %v7461 = vsel %vm1185, %v7458, %v7460
        %v7462 = vrot.slane %v7213, 2
        %v7463 = vsel %vm1185, %v7460, %v7462
        %v7464 = vrot.slane %v7214, 2
        %v7465 = vsel %vm1185, %v7462, %v7464
        %v7466 = vrot.slane %v7215, 2
        %v7467 = vsel %vm1185, %v7464, %v7466
        %v7468 = vrot.slane %v7216, 2
        %v7469 = vsel %vm1185, %v7466, %v7468
        %v7470 = vrot.slane %v7217, 2
        %v7471 = vsel %vm1185, %v7468, %v7470
        %v7472 = vrot.slane %v7218, 2
        %v7473 = vsel %vm1185, %v7470, %v7472
        %v7474 = vrot.slane %v7219, 2
        %v7475 = vsel %vm1185, %v7472, %v7474
        %v7476 = vrot.slane %v7220, 2
        %v7477 = vsel %vm1185, %v7474, %v7476
        %7478 = vrot.lane.b32.xlu0 %v7331, 8
        %v7479 = vpop.permute.xlu0 %7478
        %7480 = vrot.lane.b32.xlu0 %v7333, 8
        %v7481 = vpop.permute.xlu0 %7480
        %7482 = vrot.lane.b32.xlu0 %v7335, 8
        %v7483 = vpop.permute.xlu0 %7482
        %7484 = vrot.lane.b32.xlu0 %v7337, 8
        %v7485 = vpop.permute.xlu0 %7484
        %7486 = vrot.lane.b32.xlu0 %v7339, 8
        %v7487 = vpop.permute.xlu0 %7486
        %7488 = vrot.lane.b32.xlu0 %v7341, 8
        %v7489 = vpop.permute.xlu0 %7488
        %7490 = vrot.lane.b32.xlu0 %v7343, 8
        %v7491 = vpop.permute.xlu0 %7490
        %7492 = vrot.lane.b32.xlu0 %v7345, 8
        %v7493 = vpop.permute.xlu0 %7492
        %7494 = vrot.lane.b32.xlu0 %v7347, 8
        %v7495 = vpop.permute.xlu0 %7494
        %7496 = vrot.lane.b32.xlu0 %v7349, 8
        %v7497 = vpop.permute.xlu0 %7496
        %7498 = vrot.lane.b32.xlu0 %v7351, 8
        %v7499 = vpop.permute.xlu0 %7498
        %7500 = vrot.lane.b32.xlu0 %v7353, 8
        %v7501 = vpop.permute.xlu0 %7500
        %7502 = vrot.lane.b32.xlu0 %v7355, 8
        %v7503 = vpop.permute.xlu0 %7502
        %7504 = vrot.lane.b32.xlu0 %v7357, 8
        %v7505 = vpop.permute.xlu0 %7504
        %7506 = vrot.lane.b32.xlu0 %v7359, 8
        %v7507 = vpop.permute.xlu0 %7506
        %7508 = vrot.lane.b32.xlu0 %v7361, 8
        %v7509 = vpop.permute.xlu0 %7508
        %7510 = vrot.lane.b32.xlu0 %v7363, 8
        %v7511 = vpop.permute.xlu0 %7510
        %7512 = vrot.lane.b32.xlu0 %v7365, 8
        %v7513 = vpop.permute.xlu0 %7512
        %7514 = vrot.lane.b32.xlu0 %v7367, 8
        %v7515 = vpop.permute.xlu0 %7514
        %7516 = vrot.lane.b32.xlu0 %v7369, 8
        %v7517 = vpop.permute.xlu0 %7516
        %7518 = vrot.lane.b32.xlu0 %v7371, 8
        %v7519 = vpop.permute.xlu0 %7518
        %7520 = vrot.lane.b32.xlu0 %v7373, 8
        %v7521 = vpop.permute.xlu0 %7520
        %7522 = vrot.lane.b32.xlu0 %v7375, 8
        %v7523 = vpop.permute.xlu0 %7522
        %7524 = vrot.lane.b32.xlu0 %v7377, 8
        %v7525 = vpop.permute.xlu0 %7524
        %7526 = vrot.lane.b32.xlu0 %v7379, 8
        %v7527 = vpop.permute.xlu0 %7526
        %7528 = vrot.lane.b32.xlu0 %v7381, 8
        %v7529 = vpop.permute.xlu0 %7528
        %7530 = vrot.lane.b32.xlu0 %v7383, 8
        %v7531 = vpop.permute.xlu0 %7530
        %7532 = vrot.lane.b32.xlu0 %v7385, 8
        %v7533 = vpop.permute.xlu0 %7532
        %7534 = vrot.lane.b32.xlu0 %v7387, 8
        %v7535 = vpop.permute.xlu0 %7534
        %7536 = vrot.lane.b32.xlu0 %v7389, 8
        %v7537 = vpop.permute.xlu0 %7536
        %7538 = vrot.lane.b32.xlu0 %v7391, 8
        %v7539 = vpop.permute.xlu0 %7538
        %7540 = vrot.lane.b32.xlu0 %v7393, 8
        %v7541 = vpop.permute.xlu0 %7540
        %7542 = vrot.lane.b32.xlu0 %v7395, 8
        %v7543 = vpop.permute.xlu0 %7542
        %7544 = vrot.lane.b32.xlu0 %v7397, 8
        %v7545 = vpop.permute.xlu0 %7544
        %7546 = vrot.lane.b32.xlu0 %v7399, 8
        %v7547 = vpop.permute.xlu0 %7546
        %7548 = vrot.lane.b32.xlu0 %v7401, 8
        %v7549 = vpop.permute.xlu0 %7548
        %7550 = vrot.lane.b32.xlu0 %v7403, 8
        %v7551 = vpop.permute.xlu0 %7550
        %7552 = vrot.lane.b32.xlu0 %v7405, 8
        %v7553 = vpop.permute.xlu0 %7552
        %7554 = vrot.lane.b32.xlu0 %v7407, 8
        %v7555 = vpop.permute.xlu0 %7554
        %7556 = vrot.lane.b32.xlu0 %v7409, 8
        %v7557 = vpop.permute.xlu0 %7556
        %7558 = vrot.lane.b32.xlu0 %v7411, 8
        %v7559 = vpop.permute.xlu0 %7558
        %7560 = vrot.lane.b32.xlu0 %v7413, 8
        %v7561 = vpop.permute.xlu0 %7560
        %7562 = vrot.lane.b32.xlu0 %v7415, 8
        %v7563 = vpop.permute.xlu0 %7562
        %7564 = vrot.lane.b32.xlu0 %v7417, 8
        %v7565 = vpop.permute.xlu0 %7564
        %7566 = vrot.lane.b32.xlu0 %v7419, 8
        %v7567 = vpop.permute.xlu0 %7566
        %7568 = vrot.lane.b32.xlu0 %v7421, 8
        %v7569 = vpop.permute.xlu0 %7568
        %7570 = vrot.lane.b32.xlu0 %v7423, 8
        %v7571 = vpop.permute.xlu0 %7570
        %7572 = vrot.lane.b32.xlu0 %v7425, 8
        %v7573 = vpop.permute.xlu0 %7572
        %7574 = vrot.lane.b32.xlu0 %v7427, 8
        %v7575 = vpop.permute.xlu0 %7574
        %7576 = vrot.lane.b32.xlu0 %v7429, 8
        %v7577 = vpop.permute.xlu0 %7576
        %7578 = vrot.lane.b32.xlu0 %v7431, 8
        %v7579 = vpop.permute.xlu0 %7578
        %7580 = vrot.lane.b32.xlu0 %v7433, 8
        %v7581 = vpop.permute.xlu0 %7580
        %7582 = vrot.lane.b32.xlu0 %v7435, 8
        %v7583 = vpop.permute.xlu0 %7582
        %7584 = vrot.lane.b32.xlu0 %v7437, 8
        %v7585 = vpop.permute.xlu0 %7584
        %7586 = vrot.lane.b32.xlu0 %v7439, 8
        %v7587 = vpop.permute.xlu0 %7586
        %7588 = vrot.lane.b32.xlu0 %v7441, 8
        %v7589 = vpop.permute.xlu0 %7588
        %7590 = vrot.lane.b32.xlu0 %v7443, 8
        %v7591 = vpop.permute.xlu0 %7590
        %7592 = vrot.lane.b32.xlu0 %v7445, 8
        %v7593 = vpop.permute.xlu0 %7592
        %7594 = vrot.lane.b32.xlu0 %v7447, 8
        %v7595 = vpop.permute.xlu0 %7594
        %7596 = vrot.lane.b32.xlu0 %v7449, 8
        %v7597 = vpop.permute.xlu0 %7596
        %7598 = vrot.lane.b32.xlu0 %v7451, 8
        %v7599 = vpop.permute.xlu0 %7598
        %7600 = vrot.lane.b32.xlu0 %v7453, 8
        %v7601 = vpop.permute.xlu0 %7600
        %7602 = vrot.lane.b32.xlu0 %v7455, 8
        %v7603 = vpop.permute.xlu0 %7602
        %7604 = vrot.lane.b32.xlu0 %v7457, 8
        %v7605 = vpop.permute.xlu0 %7604
        %7606 = vrot.lane.b32.xlu0 %v7459, 8
        %v7607 = vpop.permute.xlu0 %7606
        %7608 = vrot.lane.b32.xlu0 %v7461, 8
        %v7609 = vpop.permute.xlu0 %7608
        %7610 = vrot.lane.b32.xlu0 %v7463, 8
        %v7611 = vpop.permute.xlu0 %7610
        %7612 = vrot.lane.b32.xlu0 %v7465, 8
        %v7613 = vpop.permute.xlu0 %7612
        %7614 = vrot.lane.b32.xlu0 %v7467, 8
        %v7615 = vpop.permute.xlu0 %7614
        %7616 = vrot.lane.b32.xlu0 %v7469, 8
        %v7617 = vpop.permute.xlu0 %7616
        %7618 = vrot.lane.b32.xlu0 %v7471, 8
        %v7619 = vpop.permute.xlu0 %7618
        %7620 = vrot.lane.b32.xlu0 %v7473, 8
        %v7621 = vpop.permute.xlu0 %7620
        %7622 = vrot.lane.b32.xlu0 %v7475, 8
        %v7623 = vpop.permute.xlu0 %7622
        %7624 = vrot.lane.b32.xlu0 %v7477, 8
        %v7625 = vpop.permute.xlu0 %7624
        %7626 = vrot.lane.b32.xlu0 %v7476, 8
        %v7627 = vpop.permute.xlu0 %7626
        %v7703 = vrot.slane %v7146, 4
        %v7704 = vrot.slane %v7147, 4
        %v7705 = vsel %vm2305, %v7703, %v7704
        %v7706 = vrot.slane %v7148, 4
        %v7707 = vsel %vm2305, %v7704, %v7706
        %v7708 = vrot.slane %v7149, 4
        %v7709 = vsel %vm2305, %v7706, %v7708
        %v7710 = vrot.slane %v7150, 4
        %v7711 = vsel %vm2305, %v7708, %v7710
        %v7712 = vrot.slane %v7151, 4
        %v7713 = vsel %vm2305, %v7710, %v7712
        %v7714 = vrot.slane %v7152, 4
        %v7715 = vsel %vm2305, %v7712, %v7714
        %v7716 = vrot.slane %v7153, 4
        %v7717 = vsel %vm2305, %v7714, %v7716
        %v7718 = vrot.slane %v7154, 4
        %v7719 = vsel %vm2305, %v7716, %v7718
        %v7720 = vrot.slane %v7155, 4
        %v7721 = vsel %vm2305, %v7718, %v7720
        %v7722 = vrot.slane %v7156, 4
        %v7723 = vsel %vm2305, %v7720, %v7722
        %v7724 = vrot.slane %v7157, 4
        %v7725 = vsel %vm2305, %v7722, %v7724
        %v7726 = vrot.slane %v7158, 4
        %v7727 = vsel %vm2305, %v7724, %v7726
        %v7728 = vrot.slane %v7159, 4
        %v7729 = vsel %vm2305, %v7726, %v7728
        %v7730 = vrot.slane %v7160, 4
        %v7731 = vsel %vm2305, %v7728, %v7730
        %v7732 = vrot.slane %v7161, 4
        %v7733 = vsel %vm2305, %v7730, %v7732
        %v7734 = vrot.slane %v7162, 4
        %v7735 = vsel %vm2305, %v7732, %v7734
        %v7736 = vrot.slane %v7163, 4
        %v7737 = vsel %vm2305, %v7734, %v7736
        %v7738 = vrot.slane %v7164, 4
        %v7739 = vsel %vm2305, %v7736, %v7738
        %v7740 = vrot.slane %v7165, 4
        %v7741 = vsel %vm2305, %v7738, %v7740
        %v7742 = vrot.slane %v7166, 4
        %v7743 = vsel %vm2305, %v7740, %v7742
        %v7744 = vrot.slane %v7167, 4
        %v7745 = vsel %vm2305, %v7742, %v7744
        %v7746 = vrot.slane %v7168, 4
        %v7747 = vsel %vm2305, %v7744, %v7746
        %v7748 = vrot.slane %v7169, 4
        %v7749 = vsel %vm2305, %v7746, %v7748
        %v7750 = vrot.slane %v7170, 4
        %v7751 = vsel %vm2305, %v7748, %v7750
        %v7752 = vrot.slane %v7171, 4
        %v7753 = vsel %vm2305, %v7750, %v7752
        %v7754 = vrot.slane %v7172, 4
        %v7755 = vsel %vm2305, %v7752, %v7754
        %v7756 = vrot.slane %v7173, 4
        %v7757 = vsel %vm2305, %v7754, %v7756
        %v7758 = vrot.slane %v7174, 4
        %v7759 = vsel %vm2305, %v7756, %v7758
        %v7760 = vrot.slane %v7175, 4
        %v7761 = vsel %vm2305, %v7758, %v7760
        %v7762 = vrot.slane %v7176, 4
        %v7763 = vsel %vm2305, %v7760, %v7762
        %v7764 = vrot.slane %v7177, 4
        %v7765 = vsel %vm2305, %v7762, %v7764
        %v7766 = vrot.slane %v7178, 4
        %v7767 = vsel %vm2305, %v7764, %v7766
        %v7768 = vrot.slane %v7179, 4
        %v7769 = vsel %vm2305, %v7766, %v7768
        %v7770 = vrot.slane %v7180, 4
        %v7771 = vsel %vm2305, %v7768, %v7770
        %v7772 = vrot.slane %v7181, 4
        %v7773 = vsel %vm2305, %v7770, %v7772
        %v7774 = vrot.slane %v7182, 4
        %v7775 = vsel %vm2305, %v7772, %v7774
        %v7776 = vrot.slane %v7183, 4
        %v7777 = vsel %vm2305, %v7774, %v7776
        %v7778 = vrot.slane %v7184, 4
        %v7779 = vsel %vm2305, %v7776, %v7778
        %v7780 = vrot.slane %v7185, 4
        %v7781 = vsel %vm2305, %v7778, %v7780
        %v7782 = vrot.slane %v7186, 4
        %v7783 = vsel %vm2305, %v7780, %v7782
        %v7784 = vrot.slane %v7187, 4
        %v7785 = vsel %vm2305, %v7782, %v7784
        %v7786 = vrot.slane %v7188, 4
        %v7787 = vsel %vm2305, %v7784, %v7786
        %v7788 = vrot.slane %v7189, 4
        %v7789 = vsel %vm2305, %v7786, %v7788
        %v7790 = vrot.slane %v7190, 4
        %v7791 = vsel %vm2305, %v7788, %v7790
        %v7792 = vrot.slane %v7191, 4
        %v7793 = vsel %vm2305, %v7790, %v7792
        %v7794 = vrot.slane %v7192, 4
        %v7795 = vsel %vm2305, %v7792, %v7794
        %v7796 = vrot.slane %v7193, 4
        %v7797 = vsel %vm2305, %v7794, %v7796
        %v7798 = vrot.slane %v7194, 4
        %v7799 = vsel %vm2305, %v7796, %v7798
        %v7800 = vrot.slane %v7195, 4
        %v7801 = vsel %vm2305, %v7798, %v7800
        %v7802 = vrot.slane %v7196, 4
        %v7803 = vsel %vm2305, %v7800, %v7802
        %v7804 = vrot.slane %v7197, 4
        %v7805 = vsel %vm2305, %v7802, %v7804
        %v7806 = vrot.slane %v7198, 4
        %v7807 = vsel %vm2305, %v7804, %v7806
        %v7808 = vrot.slane %v7199, 4
        %v7809 = vsel %vm2305, %v7806, %v7808
        %v7810 = vrot.slane %v7200, 4
        %v7811 = vsel %vm2305, %v7808, %v7810
        %v7812 = vrot.slane %v7201, 4
        %v7813 = vsel %vm2305, %v7810, %v7812
        %v7814 = vrot.slane %v7202, 4
        %v7815 = vsel %vm2305, %v7812, %v7814
        %v7816 = vrot.slane %v7203, 4
        %v7817 = vsel %vm2305, %v7814, %v7816
        %v7818 = vrot.slane %v7204, 4
        %v7819 = vsel %vm2305, %v7816, %v7818
        %v7820 = vrot.slane %v7205, 4
        %v7821 = vsel %vm2305, %v7818, %v7820
        %v7822 = vrot.slane %v7206, 4
        %v7823 = vsel %vm2305, %v7820, %v7822
        %v7824 = vrot.slane %v7207, 4
        %v7825 = vsel %vm2305, %v7822, %v7824
        %v7826 = vrot.slane %v7208, 4
        %v7827 = vsel %vm2305, %v7824, %v7826
        %v7828 = vrot.slane %v7209, 4
        %v7829 = vsel %vm2305, %v7826, %v7828
        %v7830 = vrot.slane %v7210, 4
        %v7831 = vsel %vm2305, %v7828, %v7830
        %v7832 = vrot.slane %v7211, 4
        %v7833 = vsel %vm2305, %v7830, %v7832
        %v7834 = vrot.slane %v7212, 4
        %v7835 = vsel %vm2305, %v7832, %v7834
        %v7836 = vrot.slane %v7213, 4
        %v7837 = vsel %vm2305, %v7834, %v7836
        %v7838 = vrot.slane %v7214, 4
        %v7839 = vsel %vm2305, %v7836, %v7838
        %v7840 = vrot.slane %v7215, 4
        %v7841 = vsel %vm2305, %v7838, %v7840
        %v7842 = vrot.slane %v7216, 4
        %v7843 = vsel %vm2305, %v7840, %v7842
        %v7844 = vrot.slane %v7217, 4
        %v7845 = vsel %vm2305, %v7842, %v7844
        %v7846 = vrot.slane %v7218, 4
        %v7847 = vsel %vm2305, %v7844, %v7846
        %v7848 = vrot.slane %v7219, 4
        %v7849 = vsel %vm2305, %v7846, %v7848
        %v7850 = vrot.slane %v7220, 4
        %v7851 = vsel %vm2305, %v7848, %v7850
        %7852 = vrot.lane.b32.xlu0 %v7705, 16
        %v7853 = vpop.permute.xlu0 %7852
        %7854 = vrot.lane.b32.xlu0 %v7707, 16
        %v7855 = vpop.permute.xlu0 %7854
        %7856 = vrot.lane.b32.xlu0 %v7709, 16
        %v7857 = vpop.permute.xlu0 %7856
        %7858 = vrot.lane.b32.xlu0 %v7711, 16
        %v7859 = vpop.permute.xlu0 %7858
        %7860 = vrot.lane.b32.xlu0 %v7713, 16
        %v7861 = vpop.permute.xlu0 %7860
        %7862 = vrot.lane.b32.xlu0 %v7715, 16
        %v7863 = vpop.permute.xlu0 %7862
        %7864 = vrot.lane.b32.xlu0 %v7717, 16
        %v7865 = vpop.permute.xlu0 %7864
        %7866 = vrot.lane.b32.xlu0 %v7719, 16
        %v7867 = vpop.permute.xlu0 %7866
        %7868 = vrot.lane.b32.xlu0 %v7721, 16
        %v7869 = vpop.permute.xlu0 %7868
        %7870 = vrot.lane.b32.xlu0 %v7723, 16
        %v7871 = vpop.permute.xlu0 %7870
        %7872 = vrot.lane.b32.xlu0 %v7725, 16
        %v7873 = vpop.permute.xlu0 %7872
        %7874 = vrot.lane.b32.xlu0 %v7727, 16
        %v7875 = vpop.permute.xlu0 %7874
        %7876 = vrot.lane.b32.xlu0 %v7729, 16
        %v7877 = vpop.permute.xlu0 %7876
        %7878 = vrot.lane.b32.xlu0 %v7731, 16
        %v7879 = vpop.permute.xlu0 %7878
        %7880 = vrot.lane.b32.xlu0 %v7733, 16
        %v7881 = vpop.permute.xlu0 %7880
        %7882 = vrot.lane.b32.xlu0 %v7735, 16
        %v7883 = vpop.permute.xlu0 %7882
        %7884 = vrot.lane.b32.xlu0 %v7737, 16
        %v7885 = vpop.permute.xlu0 %7884
        %7886 = vrot.lane.b32.xlu0 %v7739, 16
        %v7887 = vpop.permute.xlu0 %7886
        %7888 = vrot.lane.b32.xlu0 %v7741, 16
        %v7889 = vpop.permute.xlu0 %7888
        %7890 = vrot.lane.b32.xlu0 %v7743, 16
        %v7891 = vpop.permute.xlu0 %7890
        %7892 = vrot.lane.b32.xlu0 %v7745, 16
        %v7893 = vpop.permute.xlu0 %7892
        %7894 = vrot.lane.b32.xlu0 %v7747, 16
        %v7895 = vpop.permute.xlu0 %7894
        %7896 = vrot.lane.b32.xlu0 %v7749, 16
        %v7897 = vpop.permute.xlu0 %7896
        %7898 = vrot.lane.b32.xlu0 %v7751, 16
        %v7899 = vpop.permute.xlu0 %7898
        %7900 = vrot.lane.b32.xlu0 %v7753, 16
        %v7901 = vpop.permute.xlu0 %7900
        %7902 = vrot.lane.b32.xlu0 %v7755, 16
        %v7903 = vpop.permute.xlu0 %7902
        %7904 = vrot.lane.b32.xlu0 %v7757, 16
        %v7905 = vpop.permute.xlu0 %7904
        %7906 = vrot.lane.b32.xlu0 %v7759, 16
        %v7907 = vpop.permute.xlu0 %7906
        %7908 = vrot.lane.b32.xlu0 %v7761, 16
        %v7909 = vpop.permute.xlu0 %7908
        %7910 = vrot.lane.b32.xlu0 %v7763, 16
        %v7911 = vpop.permute.xlu0 %7910
        %7912 = vrot.lane.b32.xlu0 %v7765, 16
        %v7913 = vpop.permute.xlu0 %7912
        %7914 = vrot.lane.b32.xlu0 %v7767, 16
        %v7915 = vpop.permute.xlu0 %7914
        %7916 = vrot.lane.b32.xlu0 %v7769, 16
        %v7917 = vpop.permute.xlu0 %7916
        %7918 = vrot.lane.b32.xlu0 %v7771, 16
        %v7919 = vpop.permute.xlu0 %7918
        %7920 = vrot.lane.b32.xlu0 %v7773, 16
        %v7921 = vpop.permute.xlu0 %7920
        %7922 = vrot.lane.b32.xlu0 %v7775, 16
        %v7923 = vpop.permute.xlu0 %7922
        %7924 = vrot.lane.b32.xlu0 %v7777, 16
        %v7925 = vpop.permute.xlu0 %7924
        %7926 = vrot.lane.b32.xlu0 %v7779, 16
        %v7927 = vpop.permute.xlu0 %7926
        %7928 = vrot.lane.b32.xlu0 %v7781, 16
        %v7929 = vpop.permute.xlu0 %7928
        %7930 = vrot.lane.b32.xlu0 %v7783, 16
        %v7931 = vpop.permute.xlu0 %7930
        %7932 = vrot.lane.b32.xlu0 %v7785, 16
        %v7933 = vpop.permute.xlu0 %7932
        %7934 = vrot.lane.b32.xlu0 %v7787, 16
        %v7935 = vpop.permute.xlu0 %7934
        %7936 = vrot.lane.b32.xlu0 %v7789, 16
        %v7937 = vpop.permute.xlu0 %7936
        %7938 = vrot.lane.b32.xlu0 %v7791, 16
        %v7939 = vpop.permute.xlu0 %7938
        %7940 = vrot.lane.b32.xlu0 %v7793, 16
        %v7941 = vpop.permute.xlu0 %7940
        %7942 = vrot.lane.b32.xlu0 %v7795, 16
        %v7943 = vpop.permute.xlu0 %7942
        %7944 = vrot.lane.b32.xlu0 %v7797, 16
        %v7945 = vpop.permute.xlu0 %7944
        %7946 = vrot.lane.b32.xlu0 %v7799, 16
        %v7947 = vpop.permute.xlu0 %7946
        %7948 = vrot.lane.b32.xlu0 %v7801, 16
        %v7949 = vpop.permute.xlu0 %7948
        %7950 = vrot.lane.b32.xlu0 %v7803, 16
        %v7951 = vpop.permute.xlu0 %7950
        %7952 = vrot.lane.b32.xlu0 %v7805, 16
        %v7953 = vpop.permute.xlu0 %7952
        %7954 = vrot.lane.b32.xlu0 %v7807, 16
        %v7955 = vpop.permute.xlu0 %7954
        %7956 = vrot.lane.b32.xlu0 %v7809, 16
        %v7957 = vpop.permute.xlu0 %7956
        %7958 = vrot.lane.b32.xlu0 %v7811, 16
        %v7959 = vpop.permute.xlu0 %7958
        %7960 = vrot.lane.b32.xlu0 %v7813, 16
        %v7961 = vpop.permute.xlu0 %7960
        %7962 = vrot.lane.b32.xlu0 %v7815, 16
        %v7963 = vpop.permute.xlu0 %7962
        %7964 = vrot.lane.b32.xlu0 %v7817, 16
        %v7965 = vpop.permute.xlu0 %7964
        %7966 = vrot.lane.b32.xlu0 %v7819, 16
        %v7967 = vpop.permute.xlu0 %7966
        %7968 = vrot.lane.b32.xlu0 %v7821, 16
        %v7969 = vpop.permute.xlu0 %7968
        %7970 = vrot.lane.b32.xlu0 %v7823, 16
        %v7971 = vpop.permute.xlu0 %7970
        %7972 = vrot.lane.b32.xlu0 %v7825, 16
        %v7973 = vpop.permute.xlu0 %7972
        %7974 = vrot.lane.b32.xlu0 %v7827, 16
        %v7975 = vpop.permute.xlu0 %7974
        %7976 = vrot.lane.b32.xlu0 %v7829, 16
        %v7977 = vpop.permute.xlu0 %7976
        %7978 = vrot.lane.b32.xlu0 %v7831, 16
        %v7979 = vpop.permute.xlu0 %7978
        %7980 = vrot.lane.b32.xlu0 %v7833, 16
        %v7981 = vpop.permute.xlu0 %7980
        %7982 = vrot.lane.b32.xlu0 %v7835, 16
        %v7983 = vpop.permute.xlu0 %7982
        %7984 = vrot.lane.b32.xlu0 %v7837, 16
        %v7985 = vpop.permute.xlu0 %7984
        %7986 = vrot.lane.b32.xlu0 %v7839, 16
        %v7987 = vpop.permute.xlu0 %7986
        %7988 = vrot.lane.b32.xlu0 %v7841, 16
        %v7989 = vpop.permute.xlu0 %7988
        %7990 = vrot.lane.b32.xlu0 %v7843, 16
        %v7991 = vpop.permute.xlu0 %7990
        %7992 = vrot.lane.b32.xlu0 %v7845, 16
        %v7993 = vpop.permute.xlu0 %7992
        %7994 = vrot.lane.b32.xlu0 %v7847, 16
        %v7995 = vpop.permute.xlu0 %7994
        %7996 = vrot.lane.b32.xlu0 %v7849, 16
        %v7997 = vpop.permute.xlu0 %7996
        %7998 = vrot.lane.b32.xlu0 %v7851, 16
        %v7999 = vpop.permute.xlu0 %7998
        %8000 = vrot.lane.b32.xlu0 %v7850, 16
        %v8001 = vpop.permute.xlu0 %8000
        %v8078 = vrot.slane %v7146, 6
        %v8079 = vrot.slane %v7147, 6
        %v8080 = vsel %vm5988, %v8078, %v8079
        %v8081 = vrot.slane %v7148, 6
        %v8082 = vsel %vm5988, %v8079, %v8081
        %v8083 = vrot.slane %v7149, 6
        %v8084 = vsel %vm5988, %v8081, %v8083
        %v8085 = vrot.slane %v7150, 6
        %v8086 = vsel %vm5988, %v8083, %v8085
        %v8087 = vrot.slane %v7151, 6
        %v8088 = vsel %vm5988, %v8085, %v8087
        %v8089 = vrot.slane %v7152, 6
        %v8090 = vsel %vm5988, %v8087, %v8089
        %v8091 = vrot.slane %v7153, 6
        %v8092 = vsel %vm5988, %v8089, %v8091
        %v8093 = vrot.slane %v7154, 6
        %v8094 = vsel %vm5988, %v8091, %v8093
        %v8095 = vrot.slane %v7155, 6
        %v8096 = vsel %vm5988, %v8093, %v8095
        %v8097 = vrot.slane %v7156, 6
        %v8098 = vsel %vm5988, %v8095, %v8097
        %v8099 = vrot.slane %v7157, 6
        %v8100 = vsel %vm5988, %v8097, %v8099
        %v8101 = vrot.slane %v7158, 6
        %v8102 = vsel %vm5988, %v8099, %v8101
        %v8103 = vrot.slane %v7159, 6
        %v8104 = vsel %vm5988, %v8101, %v8103
        %v8105 = vrot.slane %v7160, 6
        %v8106 = vsel %vm5988, %v8103, %v8105
        %v8107 = vrot.slane %v7161, 6
        %v8108 = vsel %vm5988, %v8105, %v8107
        %v8109 = vrot.slane %v7162, 6
        %v8110 = vsel %vm5988, %v8107, %v8109
        %v8111 = vrot.slane %v7163, 6
        %v8112 = vsel %vm5988, %v8109, %v8111
        %v8113 = vrot.slane %v7164, 6
        %v8114 = vsel %vm5988, %v8111, %v8113
        %v8115 = vrot.slane %v7165, 6
        %v8116 = vsel %vm5988, %v8113, %v8115
        %v8117 = vrot.slane %v7166, 6
        %v8118 = vsel %vm5988, %v8115, %v8117
        %v8119 = vrot.slane %v7167, 6
        %v8120 = vsel %vm5988, %v8117, %v8119
        %v8121 = vrot.slane %v7168, 6
        %v8122 = vsel %vm5988, %v8119, %v8121
        %v8123 = vrot.slane %v7169, 6
        %v8124 = vsel %vm5988, %v8121, %v8123
        %v8125 = vrot.slane %v7170, 6
        %v8126 = vsel %vm5988, %v8123, %v8125
        %v8127 = vrot.slane %v7171, 6
        %v8128 = vsel %vm5988, %v8125, %v8127
        %v8129 = vrot.slane %v7172, 6
        %v8130 = vsel %vm5988, %v8127, %v8129
        %v8131 = vrot.slane %v7173, 6
        %v8132 = vsel %vm5988, %v8129, %v8131
        %v8133 = vrot.slane %v7174, 6
        %v8134 = vsel %vm5988, %v8131, %v8133
        %v8135 = vrot.slane %v7175, 6
        %v8136 = vsel %vm5988, %v8133, %v8135
        %v8137 = vrot.slane %v7176, 6
        %v8138 = vsel %vm5988, %v8135, %v8137
        %v8139 = vrot.slane %v7177, 6
        %v8140 = vsel %vm5988, %v8137, %v8139
        %v8141 = vrot.slane %v7178, 6
        %v8142 = vsel %vm5988, %v8139, %v8141
        %v8143 = vrot.slane %v7179, 6
        %v8144 = vsel %vm5988, %v8141, %v8143
        %v8145 = vrot.slane %v7180, 6
        %v8146 = vsel %vm5988, %v8143, %v8145
        %v8147 = vrot.slane %v7181, 6
        %v8148 = vsel %vm5988, %v8145, %v8147
        %v8149 = vrot.slane %v7182, 6
        %v8150 = vsel %vm5988, %v8147, %v8149
        %v8151 = vrot.slane %v7183, 6
        %v8152 = vsel %vm5988, %v8149, %v8151
        %v8153 = vrot.slane %v7184, 6
        %v8154 = vsel %vm5988, %v8151, %v8153
        %v8155 = vrot.slane %v7185, 6
        %v8156 = vsel %vm5988, %v8153, %v8155
        %v8157 = vrot.slane %v7186, 6
        %v8158 = vsel %vm5988, %v8155, %v8157
        %v8159 = vrot.slane %v7187, 6
        %v8160 = vsel %vm5988, %v8157, %v8159
        %v8161 = vrot.slane %v7188, 6
        %v8162 = vsel %vm5988, %v8159, %v8161
        %v8163 = vrot.slane %v7189, 6
        %v8164 = vsel %vm5988, %v8161, %v8163
        %v8165 = vrot.slane %v7190, 6
        %v8166 = vsel %vm5988, %v8163, %v8165
        %v8167 = vrot.slane %v7191, 6
        %v8168 = vsel %vm5988, %v8165, %v8167
        %v8169 = vrot.slane %v7192, 6
        %v8170 = vsel %vm5988, %v8167, %v8169
        %v8171 = vrot.slane %v7193, 6
        %v8172 = vsel %vm5988, %v8169, %v8171
        %v8173 = vrot.slane %v7194, 6
        %v8174 = vsel %vm5988, %v8171, %v8173
        %v8175 = vrot.slane %v7195, 6
        %v8176 = vsel %vm5988, %v8173, %v8175
        %v8177 = vrot.slane %v7196, 6
        %v8178 = vsel %vm5988, %v8175, %v8177
        %v8179 = vrot.slane %v7197, 6
        %v8180 = vsel %vm5988, %v8177, %v8179
        %v8181 = vrot.slane %v7198, 6
        %v8182 = vsel %vm5988, %v8179, %v8181
        %v8183 = vrot.slane %v7199, 6
        %v8184 = vsel %vm5988, %v8181, %v8183
        %v8185 = vrot.slane %v7200, 6
        %v8186 = vsel %vm5988, %v8183, %v8185
        %v8187 = vrot.slane %v7201, 6
        %v8188 = vsel %vm5988, %v8185, %v8187
        %v8189 = vrot.slane %v7202, 6
        %v8190 = vsel %vm5988, %v8187, %v8189
        %v8191 = vrot.slane %v7203, 6
        %v8192 = vsel %vm5988, %v8189, %v8191
        %v8193 = vrot.slane %v7204, 6
        %v8194 = vsel %vm5988, %v8191, %v8193
        %v8195 = vrot.slane %v7205, 6
        %v8196 = vsel %vm5988, %v8193, %v8195
        %v8197 = vrot.slane %v7206, 6
        %v8198 = vsel %vm5988, %v8195, %v8197
        %v8199 = vrot.slane %v7207, 6
        %v8200 = vsel %vm5988, %v8197, %v8199
        %v8201 = vrot.slane %v7208, 6
        %v8202 = vsel %vm5988, %v8199, %v8201
        %v8203 = vrot.slane %v7209, 6
        %v8204 = vsel %vm5988, %v8201, %v8203
        %v8205 = vrot.slane %v7210, 6
        %v8206 = vsel %vm5988, %v8203, %v8205
        %v8207 = vrot.slane %v7211, 6
        %v8208 = vsel %vm5988, %v8205, %v8207
        %v8209 = vrot.slane %v7212, 6
        %v8210 = vsel %vm5988, %v8207, %v8209
        %v8211 = vrot.slane %v7213, 6
        %v8212 = vsel %vm5988, %v8209, %v8211
        %v8213 = vrot.slane %v7214, 6
        %v8214 = vsel %vm5988, %v8211, %v8213
        %v8215 = vrot.slane %v7215, 6
        %v8216 = vsel %vm5988, %v8213, %v8215
        %v8217 = vrot.slane %v7216, 6
        %v8218 = vsel %vm5988, %v8215, %v8217
        %v8219 = vrot.slane %v7217, 6
        %v8220 = vsel %vm5988, %v8217, %v8219
        %v8221 = vrot.slane %v7218, 6
        %v8222 = vsel %vm5988, %v8219, %v8221
        %v8223 = vrot.slane %v7219, 6
        %v8224 = vsel %vm5988, %v8221, %v8223
        %v8225 = vrot.slane %v7220, 6
        %v8226 = vsel %vm5988, %v8223, %v8225
        %v8227 = vrot.slane %v7221, 6
        %v8228 = vsel %vm5988, %v8225, %v8227
        %8229 = vrot.lane.b32.xlu0 %v8080, 24
        %v8230 = vpop.permute.xlu0 %8229
        %8231 = vrot.lane.b32.xlu0 %v8082, 24
        %v8232 = vpop.permute.xlu0 %8231
        %8233 = vrot.lane.b32.xlu0 %v8084, 24
        %v8234 = vpop.permute.xlu0 %8233
        %8235 = vrot.lane.b32.xlu0 %v8086, 24
        %v8236 = vpop.permute.xlu0 %8235
        %8237 = vrot.lane.b32.xlu0 %v8088, 24
        %v8238 = vpop.permute.xlu0 %8237
        %8239 = vrot.lane.b32.xlu0 %v8090, 24
        %v8240 = vpop.permute.xlu0 %8239
        %8241 = vrot.lane.b32.xlu0 %v8092, 24
        %v8242 = vpop.permute.xlu0 %8241
        %8243 = vrot.lane.b32.xlu0 %v8094, 24
        %v8244 = vpop.permute.xlu0 %8243
        %8245 = vrot.lane.b32.xlu0 %v8096, 24
        %v8246 = vpop.permute.xlu0 %8245
        %8247 = vrot.lane.b32.xlu0 %v8098, 24
        %v8248 = vpop.permute.xlu0 %8247
        %8249 = vrot.lane.b32.xlu0 %v8100, 24
        %v8250 = vpop.permute.xlu0 %8249
        %8251 = vrot.lane.b32.xlu0 %v8102, 24
        %v8252 = vpop.permute.xlu0 %8251
        %8253 = vrot.lane.b32.xlu0 %v8104, 24
        %v8254 = vpop.permute.xlu0 %8253
        %8255 = vrot.lane.b32.xlu0 %v8106, 24
        %v8256 = vpop.permute.xlu0 %8255
        %8257 = vrot.lane.b32.xlu0 %v8108, 24
        %v8258 = vpop.permute.xlu0 %8257
        %8259 = vrot.lane.b32.xlu0 %v8110, 24
        %v8260 = vpop.permute.xlu0 %8259
        %8261 = vrot.lane.b32.xlu0 %v8112, 24
        %v8262 = vpop.permute.xlu0 %8261
        %8263 = vrot.lane.b32.xlu0 %v8114, 24
        %v8264 = vpop.permute.xlu0 %8263
        %8265 = vrot.lane.b32.xlu0 %v8116, 24
        %v8266 = vpop.permute.xlu0 %8265
        %8267 = vrot.lane.b32.xlu0 %v8118, 24
        %v8268 = vpop.permute.xlu0 %8267
        %8269 = vrot.lane.b32.xlu0 %v8120, 24
        %v8270 = vpop.permute.xlu0 %8269
        %8271 = vrot.lane.b32.xlu0 %v8122, 24
        %v8272 = vpop.permute.xlu0 %8271
        %8273 = vrot.lane.b32.xlu0 %v8124, 24
        %v8274 = vpop.permute.xlu0 %8273
        %8275 = vrot.lane.b32.xlu0 %v8126, 24
        %v8276 = vpop.permute.xlu0 %8275
        %8277 = vrot.lane.b32.xlu0 %v8128, 24
        %v8278 = vpop.permute.xlu0 %8277
        %8279 = vrot.lane.b32.xlu0 %v8130, 24
        %v8280 = vpop.permute.xlu0 %8279
        %8281 = vrot.lane.b32.xlu0 %v8132, 24
        %v8282 = vpop.permute.xlu0 %8281
        %8283 = vrot.lane.b32.xlu0 %v8134, 24
        %v8284 = vpop.permute.xlu0 %8283
        %8285 = vrot.lane.b32.xlu0 %v8136, 24
        %v8286 = vpop.permute.xlu0 %8285
        %8287 = vrot.lane.b32.xlu0 %v8138, 24
        %v8288 = vpop.permute.xlu0 %8287
        %8289 = vrot.lane.b32.xlu0 %v8140, 24
        %v8290 = vpop.permute.xlu0 %8289
        %8291 = vrot.lane.b32.xlu0 %v8142, 24
        %v8292 = vpop.permute.xlu0 %8291
        %8293 = vrot.lane.b32.xlu0 %v8144, 24
        %v8294 = vpop.permute.xlu0 %8293
        %8295 = vrot.lane.b32.xlu0 %v8146, 24
        %v8296 = vpop.permute.xlu0 %8295
        %8297 = vrot.lane.b32.xlu0 %v8148, 24
        %v8298 = vpop.permute.xlu0 %8297
        %8299 = vrot.lane.b32.xlu0 %v8150, 24
        %v8300 = vpop.permute.xlu0 %8299
        %8301 = vrot.lane.b32.xlu0 %v8152, 24
        %v8302 = vpop.permute.xlu0 %8301
        %8303 = vrot.lane.b32.xlu0 %v8154, 24
        %v8304 = vpop.permute.xlu0 %8303
        %8305 = vrot.lane.b32.xlu0 %v8156, 24
        %v8306 = vpop.permute.xlu0 %8305
        %8307 = vrot.lane.b32.xlu0 %v8158, 24
        %v8308 = vpop.permute.xlu0 %8307
        %8309 = vrot.lane.b32.xlu0 %v8160, 24
        %v8310 = vpop.permute.xlu0 %8309
        %8311 = vrot.lane.b32.xlu0 %v8162, 24
        %v8312 = vpop.permute.xlu0 %8311
        %8313 = vrot.lane.b32.xlu0 %v8164, 24
        %v8314 = vpop.permute.xlu0 %8313
        %8315 = vrot.lane.b32.xlu0 %v8166, 24
        %v8316 = vpop.permute.xlu0 %8315
        %8317 = vrot.lane.b32.xlu0 %v8168, 24
        %v8318 = vpop.permute.xlu0 %8317
        %8319 = vrot.lane.b32.xlu0 %v8170, 24
        %v8320 = vpop.permute.xlu0 %8319
        %8321 = vrot.lane.b32.xlu0 %v8172, 24
        %v8322 = vpop.permute.xlu0 %8321
        %8323 = vrot.lane.b32.xlu0 %v8174, 24
        %v8324 = vpop.permute.xlu0 %8323
        %8325 = vrot.lane.b32.xlu0 %v8176, 24
        %v8326 = vpop.permute.xlu0 %8325
        %8327 = vrot.lane.b32.xlu0 %v8178, 24
        %v8328 = vpop.permute.xlu0 %8327
        %8329 = vrot.lane.b32.xlu0 %v8180, 24
        %v8330 = vpop.permute.xlu0 %8329
        %8331 = vrot.lane.b32.xlu0 %v8182, 24
        %v8332 = vpop.permute.xlu0 %8331
        %8333 = vrot.lane.b32.xlu0 %v8184, 24
        %v8334 = vpop.permute.xlu0 %8333
        %8335 = vrot.lane.b32.xlu0 %v8186, 24
        %v8336 = vpop.permute.xlu0 %8335
        %8337 = vrot.lane.b32.xlu0 %v8188, 24
        %v8338 = vpop.permute.xlu0 %8337
        %8339 = vrot.lane.b32.xlu0 %v8190, 24
        %v8340 = vpop.permute.xlu0 %8339
        %8341 = vrot.lane.b32.xlu0 %v8192, 24
        %v8342 = vpop.permute.xlu0 %8341
        %8343 = vrot.lane.b32.xlu0 %v8194, 24
        %v8344 = vpop.permute.xlu0 %8343
        %8345 = vrot.lane.b32.xlu0 %v8196, 24
        %v8346 = vpop.permute.xlu0 %8345
        %8347 = vrot.lane.b32.xlu0 %v8198, 24
        %v8348 = vpop.permute.xlu0 %8347
        %8349 = vrot.lane.b32.xlu0 %v8200, 24
        %v8350 = vpop.permute.xlu0 %8349
        %8351 = vrot.lane.b32.xlu0 %v8202, 24
        %v8352 = vpop.permute.xlu0 %8351
        %8353 = vrot.lane.b32.xlu0 %v8204, 24
        %v8354 = vpop.permute.xlu0 %8353
        %8355 = vrot.lane.b32.xlu0 %v8206, 24
        %v8356 = vpop.permute.xlu0 %8355
        %8357 = vrot.lane.b32.xlu0 %v8208, 24
        %v8358 = vpop.permute.xlu0 %8357
        %8359 = vrot.lane.b32.xlu0 %v8210, 24
        %v8360 = vpop.permute.xlu0 %8359
        %8361 = vrot.lane.b32.xlu0 %v8212, 24
        %v8362 = vpop.permute.xlu0 %8361
        %8363 = vrot.lane.b32.xlu0 %v8214, 24
        %v8364 = vpop.permute.xlu0 %8363
        %8365 = vrot.lane.b32.xlu0 %v8216, 24
        %v8366 = vpop.permute.xlu0 %8365
        %8367 = vrot.lane.b32.xlu0 %v8218, 24
        %v8368 = vpop.permute.xlu0 %8367
        %8369 = vrot.lane.b32.xlu0 %v8220, 24
        %v8370 = vpop.permute.xlu0 %8369
        %8371 = vrot.lane.b32.xlu0 %v8222, 24
        %v8372 = vpop.permute.xlu0 %8371
        %8373 = vrot.lane.b32.xlu0 %v8224, 24
        %v8374 = vpop.permute.xlu0 %8373
        %8375 = vrot.lane.b32.xlu0 %v8226, 24
        %v8376 = vpop.permute.xlu0 %8375
        %8377 = vrot.lane.b32.xlu0 %v8228, 24
        %v8378 = vpop.permute.xlu0 %8377
        %8454 = vrot.lane.b32.xlu0 %v7147, 32
        %v8455 = vpop.permute.xlu0 %8454
        %8456 = vrot.lane.b32.xlu0 %v7148, 32
        %v8457 = vpop.permute.xlu0 %8456
        %8458 = vrot.lane.b32.xlu0 %v7149, 32
        %v8459 = vpop.permute.xlu0 %8458
        %8460 = vrot.lane.b32.xlu0 %v7150, 32
        %v8461 = vpop.permute.xlu0 %8460
        %8462 = vrot.lane.b32.xlu0 %v7151, 32
        %v8463 = vpop.permute.xlu0 %8462
        %8464 = vrot.lane.b32.xlu0 %v7152, 32
        %v8465 = vpop.permute.xlu0 %8464
        %8466 = vrot.lane.b32.xlu0 %v7153, 32
        %v8467 = vpop.permute.xlu0 %8466
        %8468 = vrot.lane.b32.xlu0 %v7154, 32
        %v8469 = vpop.permute.xlu0 %8468
        %8470 = vrot.lane.b32.xlu0 %v7155, 32
        %v8471 = vpop.permute.xlu0 %8470
        %8472 = vrot.lane.b32.xlu0 %v7156, 32
        %v8473 = vpop.permute.xlu0 %8472
        %8474 = vrot.lane.b32.xlu0 %v7157, 32
        %v8475 = vpop.permute.xlu0 %8474
        %8476 = vrot.lane.b32.xlu0 %v7158, 32
        %v8477 = vpop.permute.xlu0 %8476
        %8478 = vrot.lane.b32.xlu0 %v7159, 32
        %v8479 = vpop.permute.xlu0 %8478
        %8480 = vrot.lane.b32.xlu0 %v7160, 32
        %v8481 = vpop.permute.xlu0 %8480
        %8482 = vrot.lane.b32.xlu0 %v7161, 32
        %v8483 = vpop.permute.xlu0 %8482
        %8484 = vrot.lane.b32.xlu0 %v7162, 32
        %v8485 = vpop.permute.xlu0 %8484
        %8486 = vrot.lane.b32.xlu0 %v7163, 32
        %v8487 = vpop.permute.xlu0 %8486
        %8488 = vrot.lane.b32.xlu0 %v7164, 32
        %v8489 = vpop.permute.xlu0 %8488
        %8490 = vrot.lane.b32.xlu0 %v7165, 32
        %v8491 = vpop.permute.xlu0 %8490
        %8492 = vrot.lane.b32.xlu0 %v7166, 32
        %v8493 = vpop.permute.xlu0 %8492
        %8494 = vrot.lane.b32.xlu0 %v7167, 32
        %v8495 = vpop.permute.xlu0 %8494
        %8496 = vrot.lane.b32.xlu0 %v7168, 32
        %v8497 = vpop.permute.xlu0 %8496
        %8498 = vrot.lane.b32.xlu0 %v7169, 32
        %v8499 = vpop.permute.xlu0 %8498
        %8500 = vrot.lane.b32.xlu0 %v7170, 32
        %v8501 = vpop.permute.xlu0 %8500
        %8502 = vrot.lane.b32.xlu0 %v7171, 32
        %v8503 = vpop.permute.xlu0 %8502
        %8504 = vrot.lane.b32.xlu0 %v7172, 32
        %v8505 = vpop.permute.xlu0 %8504
        %8506 = vrot.lane.b32.xlu0 %v7173, 32
        %v8507 = vpop.permute.xlu0 %8506
        %8508 = vrot.lane.b32.xlu0 %v7174, 32
        %v8509 = vpop.permute.xlu0 %8508
        %8510 = vrot.lane.b32.xlu0 %v7175, 32
        %v8511 = vpop.permute.xlu0 %8510
        %8512 = vrot.lane.b32.xlu0 %v7176, 32
        %v8513 = vpop.permute.xlu0 %8512
        %8514 = vrot.lane.b32.xlu0 %v7177, 32
        %v8515 = vpop.permute.xlu0 %8514
        %8516 = vrot.lane.b32.xlu0 %v7178, 32
        %v8517 = vpop.permute.xlu0 %8516
        %8518 = vrot.lane.b32.xlu0 %v7179, 32
        %v8519 = vpop.permute.xlu0 %8518
        %8520 = vrot.lane.b32.xlu0 %v7180, 32
        %v8521 = vpop.permute.xlu0 %8520
        %8522 = vrot.lane.b32.xlu0 %v7181, 32
        %v8523 = vpop.permute.xlu0 %8522
        %8524 = vrot.lane.b32.xlu0 %v7182, 32
        %v8525 = vpop.permute.xlu0 %8524
        %8526 = vrot.lane.b32.xlu0 %v7183, 32
        %v8527 = vpop.permute.xlu0 %8526
        %8528 = vrot.lane.b32.xlu0 %v7184, 32
        %v8529 = vpop.permute.xlu0 %8528
        %8530 = vrot.lane.b32.xlu0 %v7185, 32
        %v8531 = vpop.permute.xlu0 %8530
        %8532 = vrot.lane.b32.xlu0 %v7186, 32
        %v8533 = vpop.permute.xlu0 %8532
        %8534 = vrot.lane.b32.xlu0 %v7187, 32
        %v8535 = vpop.permute.xlu0 %8534
        %8536 = vrot.lane.b32.xlu0 %v7188, 32
        %v8537 = vpop.permute.xlu0 %8536
        %8538 = vrot.lane.b32.xlu0 %v7189, 32
        %v8539 = vpop.permute.xlu0 %8538
        %8540 = vrot.lane.b32.xlu0 %v7190, 32
        %v8541 = vpop.permute.xlu0 %8540
        %8542 = vrot.lane.b32.xlu0 %v7191, 32
        %v8543 = vpop.permute.xlu0 %8542
        %8544 = vrot.lane.b32.xlu0 %v7192, 32
        %v8545 = vpop.permute.xlu0 %8544
        %8546 = vrot.lane.b32.xlu0 %v7193, 32
        %v8547 = vpop.permute.xlu0 %8546
        %8548 = vrot.lane.b32.xlu0 %v7194, 32
        %v8549 = vpop.permute.xlu0 %8548
        %8550 = vrot.lane.b32.xlu0 %v7195, 32
        %v8551 = vpop.permute.xlu0 %8550
        %8552 = vrot.lane.b32.xlu0 %v7196, 32
        %v8553 = vpop.permute.xlu0 %8552
        %8554 = vrot.lane.b32.xlu0 %v7197, 32
        %v8555 = vpop.permute.xlu0 %8554
        %8556 = vrot.lane.b32.xlu0 %v7198, 32
        %v8557 = vpop.permute.xlu0 %8556
        %8558 = vrot.lane.b32.xlu0 %v7199, 32
        %v8559 = vpop.permute.xlu0 %8558
        %8560 = vrot.lane.b32.xlu0 %v7200, 32
        %v8561 = vpop.permute.xlu0 %8560
        %8562 = vrot.lane.b32.xlu0 %v7201, 32
        %v8563 = vpop.permute.xlu0 %8562
        %8564 = vrot.lane.b32.xlu0 %v7202, 32
        %v8565 = vpop.permute.xlu0 %8564
        %8566 = vrot.lane.b32.xlu0 %v7203, 32
        %v8567 = vpop.permute.xlu0 %8566
        %8568 = vrot.lane.b32.xlu0 %v7204, 32
        %v8569 = vpop.permute.xlu0 %8568
        %8570 = vrot.lane.b32.xlu0 %v7205, 32
        %v8571 = vpop.permute.xlu0 %8570
        %8572 = vrot.lane.b32.xlu0 %v7206, 32
        %v8573 = vpop.permute.xlu0 %8572
        %8574 = vrot.lane.b32.xlu0 %v7207, 32
        %v8575 = vpop.permute.xlu0 %8574
        %8576 = vrot.lane.b32.xlu0 %v7208, 32
        %v8577 = vpop.permute.xlu0 %8576
        %8578 = vrot.lane.b32.xlu0 %v7209, 32
        %v8579 = vpop.permute.xlu0 %8578
        %8580 = vrot.lane.b32.xlu0 %v7210, 32
        %v8581 = vpop.permute.xlu0 %8580
        %8582 = vrot.lane.b32.xlu0 %v7211, 32
        %v8583 = vpop.permute.xlu0 %8582
        %8584 = vrot.lane.b32.xlu0 %v7212, 32
        %v8585 = vpop.permute.xlu0 %8584
        %8586 = vrot.lane.b32.xlu0 %v7213, 32
        %v8587 = vpop.permute.xlu0 %8586
        %8588 = vrot.lane.b32.xlu0 %v7214, 32
        %v8589 = vpop.permute.xlu0 %8588
        %8590 = vrot.lane.b32.xlu0 %v7215, 32
        %v8591 = vpop.permute.xlu0 %8590
        %8592 = vrot.lane.b32.xlu0 %v7216, 32
        %v8593 = vpop.permute.xlu0 %8592
        %8594 = vrot.lane.b32.xlu0 %v7217, 32
        %v8595 = vpop.permute.xlu0 %8594
        %8596 = vrot.lane.b32.xlu0 %v7218, 32
        %v8597 = vpop.permute.xlu0 %8596
        %8598 = vrot.lane.b32.xlu0 %v7219, 32
        %v8599 = vpop.permute.xlu0 %8598
        %8600 = vrot.lane.b32.xlu0 %v7220, 32
        %v8601 = vpop.permute.xlu0 %8600
        %8602 = vrot.lane.b32.xlu0 %v7221, 32
        %v8603 = vpop.permute.xlu0 %8602
        %v8679 = vsel %vm2978, %v7146, %v7479
        %v8680 = vsel %vm2978, %v7147, %v7481
        %v8681 = vsel %vm2978, %v7148, %v7483
        %v8682 = vsel %vm2978, %v7149, %v7485
        %v8683 = vsel %vm2978, %v7150, %v7487
        %v8684 = vsel %vm2978, %v7151, %v7489
        %v8685 = vsel %vm2978, %v7152, %v7491
        %v8686 = vsel %vm2978, %v7153, %v7493
        %v8687 = vsel %vm2978, %v7154, %v7495
        %v8688 = vsel %vm2978, %v7155, %v7497
        %v8689 = vsel %vm2978, %v7156, %v7499
        %v8690 = vsel %vm2978, %v7157, %v7501
        %v8691 = vsel %vm2978, %v7158, %v7503
        %v8692 = vsel %vm2978, %v7159, %v7505
        %v8693 = vsel %vm2978, %v7160, %v7507
        %v8694 = vsel %vm2978, %v7161, %v7509
        %v8695 = vsel %vm2978, %v7162, %v7511
        %v8696 = vsel %vm2978, %v7163, %v7513
        %v8697 = vsel %vm2978, %v7164, %v7515
        %v8698 = vsel %vm2978, %v7165, %v7517
        %v8699 = vsel %vm2978, %v7166, %v7519
        %v8700 = vsel %vm2978, %v7167, %v7521
        %v8701 = vsel %vm2978, %v7168, %v7523
        %v8702 = vsel %vm2978, %v7169, %v7525
        %v8703 = vsel %vm2978, %v7170, %v7527
        %v8704 = vsel %vm2978, %v7171, %v7529
        %v8705 = vsel %vm2978, %v7172, %v7531
        %v8706 = vsel %vm2978, %v7173, %v7533
        %v8707 = vsel %vm2978, %v7174, %v7535
        %v8708 = vsel %vm2978, %v7175, %v7537
        %v8709 = vsel %vm2978, %v7176, %v7539
        %v8710 = vsel %vm2978, %v7177, %v7541
        %v8711 = vsel %vm2978, %v7178, %v7543
        %v8712 = vsel %vm2978, %v7179, %v7545
        %v8713 = vsel %vm2978, %v7180, %v7547
        %v8714 = vsel %vm2978, %v7181, %v7549
        %v8715 = vsel %vm2978, %v7182, %v7551
        %v8716 = vsel %vm2978, %v7183, %v7553
        %v8717 = vsel %vm2978, %v7184, %v7555
        %v8718 = vsel %vm2978, %v7185, %v7557
        %v8719 = vsel %vm2978, %v7186, %v7559
        %v8720 = vsel %vm2978, %v7187, %v7561
        %v8721 = vsel %vm2978, %v7188, %v7563
        %v8722 = vsel %vm2978, %v7189, %v7565
        %v8723 = vsel %vm2978, %v7190, %v7567
        %v8724 = vsel %vm2978, %v7191, %v7569
        %v8725 = vsel %vm2978, %v7192, %v7571
        %v8726 = vsel %vm2978, %v7193, %v7573
        %v8727 = vsel %vm2978, %v7194, %v7575
        %v8728 = vsel %vm2978, %v7195, %v7577
        %v8729 = vsel %vm2978, %v7196, %v7579
        %v8730 = vsel %vm2978, %v7197, %v7581
        %v8731 = vsel %vm2978, %v7198, %v7583
        %v8732 = vsel %vm2978, %v7199, %v7585
        %v8733 = vsel %vm2978, %v7200, %v7587
        %v8734 = vsel %vm2978, %v7201, %v7589
        %v8735 = vsel %vm2978, %v7202, %v7591
        %v8736 = vsel %vm2978, %v7203, %v7593
        %v8737 = vsel %vm2978, %v7204, %v7595
        %v8738 = vsel %vm2978, %v7205, %v7597
        %v8739 = vsel %vm2978, %v7206, %v7599
        %v8740 = vsel %vm2978, %v7207, %v7601
        %v8741 = vsel %vm2978, %v7208, %v7603
        %v8742 = vsel %vm2978, %v7209, %v7605
        %v8743 = vsel %vm2978, %v7210, %v7607
        %v8744 = vsel %vm2978, %v7211, %v7609
        %v8745 = vsel %vm2978, %v7212, %v7611
        %v8746 = vsel %vm2978, %v7213, %v7613
        %v8747 = vsel %vm2978, %v7214, %v7615
        %v8748 = vsel %vm2978, %v7215, %v7617
        %v8749 = vsel %vm2978, %v7216, %v7619
        %v8750 = vsel %vm2978, %v7217, %v7621
        %v8751 = vsel %vm2978, %v7218, %v7623
        %v8752 = vsel %vm2978, %v7219, %v7625
        %v8753 = vsel %vm2978, %v7220, %v7627
        %v8754 = vsel %vm3204, %v8679, %v7853
        %v8755 = vsel %vm3204, %v8680, %v7855
        %v8756 = vsel %vm3204, %v8681, %v7857
        %v8757 = vsel %vm3204, %v8682, %v7859
        %v8758 = vsel %vm3204, %v8683, %v7861
        %v8759 = vsel %vm3204, %v8684, %v7863
        %v8760 = vsel %vm3204, %v8685, %v7865
        %v8761 = vsel %vm3204, %v8686, %v7867
        %v8762 = vsel %vm3204, %v8687, %v7869
        %v8763 = vsel %vm3204, %v8688, %v7871
        %v8764 = vsel %vm3204, %v8689, %v7873
        %v8765 = vsel %vm3204, %v8690, %v7875
        %v8766 = vsel %vm3204, %v8691, %v7877
        %v8767 = vsel %vm3204, %v8692, %v7879
        %v8768 = vsel %vm3204, %v8693, %v7881
        %v8769 = vsel %vm3204, %v8694, %v7883
        %v8770 = vsel %vm3204, %v8695, %v7885
        %v8771 = vsel %vm3204, %v8696, %v7887
        %v8772 = vsel %vm3204, %v8697, %v7889
        %v8773 = vsel %vm3204, %v8698, %v7891
        %v8774 = vsel %vm3204, %v8699, %v7893
        %v8775 = vsel %vm3204, %v8700, %v7895
        %v8776 = vsel %vm3204, %v8701, %v7897
        %v8777 = vsel %vm3204, %v8702, %v7899
        %v8778 = vsel %vm3204, %v8703, %v7901
        %v8779 = vsel %vm3204, %v8704, %v7903
        %v8780 = vsel %vm3204, %v8705, %v7905
        %v8781 = vsel %vm3204, %v8706, %v7907
        %v8782 = vsel %vm3204, %v8707, %v7909
        %v8783 = vsel %vm3204, %v8708, %v7911
        %v8784 = vsel %vm3204, %v8709, %v7913
        %v8785 = vsel %vm3204, %v8710, %v7915
        %v8786 = vsel %vm3204, %v8711, %v7917
        %v8787 = vsel %vm3204, %v8712, %v7919
        %v8788 = vsel %vm3204, %v8713, %v7921
        %v8789 = vsel %vm3204, %v8714, %v7923
        %v8790 = vsel %vm3204, %v8715, %v7925
        %v8791 = vsel %vm3204, %v8716, %v7927
        %v8792 = vsel %vm3204, %v8717, %v7929
        %v8793 = vsel %vm3204, %v8718, %v7931
        %v8794 = vsel %vm3204, %v8719, %v7933
        %v8795 = vsel %vm3204, %v8720, %v7935
        %v8796 = vsel %vm3204, %v8721, %v7937
        %v8797 = vsel %vm3204, %v8722, %v7939
        %v8798 = vsel %vm3204, %v8723, %v7941
        %v8799 = vsel %vm3204, %v8724, %v7943
        %v8800 = vsel %vm3204, %v8725, %v7945
        %v8801 = vsel %vm3204, %v8726, %v7947
        %v8802 = vsel %vm3204, %v8727, %v7949
        %v8803 = vsel %vm3204, %v8728, %v7951
        %v8804 = vsel %vm3204, %v8729, %v7953
        %v8805 = vsel %vm3204, %v8730, %v7955
        %v8806 = vsel %vm3204, %v8731, %v7957
        %v8807 = vsel %vm3204, %v8732, %v7959
        %v8808 = vsel %vm3204, %v8733, %v7961
        %v8809 = vsel %vm3204, %v8734, %v7963
        %v8810 = vsel %vm3204, %v8735, %v7965
        %v8811 = vsel %vm3204, %v8736, %v7967
        %v8812 = vsel %vm3204, %v8737, %v7969
        %v8813 = vsel %vm3204, %v8738, %v7971
        %v8814 = vsel %vm3204, %v8739, %v7973
        %v8815 = vsel %vm3204, %v8740, %v7975
        %v8816 = vsel %vm3204, %v8741, %v7977
        %v8817 = vsel %vm3204, %v8742, %v7979
        %v8818 = vsel %vm3204, %v8743, %v7981
        %v8819 = vsel %vm3204, %v8744, %v7983
        %v8820 = vsel %vm3204, %v8745, %v7985
        %v8821 = vsel %vm3204, %v8746, %v7987
        %v8822 = vsel %vm3204, %v8747, %v7989
        %v8823 = vsel %vm3204, %v8748, %v7991
        %v8824 = vsel %vm3204, %v8749, %v7993
        %v8825 = vsel %vm3204, %v8750, %v7995
        %v8826 = vsel %vm3204, %v8751, %v7997
        %v8827 = vsel %vm3204, %v8752, %v7999
        %v8828 = vsel %vm3204, %v8753, %v8001
        %vm8829 = vcmask 195584
        %v8830 = vsel %vm8829, %v8754, %v8230
        %v8831 = vsel %vm8829, %v8755, %v8232
        %v8832 = vsel %vm8829, %v8756, %v8234
        %v8833 = vsel %vm8829, %v8757, %v8236
        %v8834 = vsel %vm8829, %v8758, %v8238
        %v8835 = vsel %vm8829, %v8759, %v8240
        %v8836 = vsel %vm8829, %v8760, %v8242
        %v8837 = vsel %vm8829, %v8761, %v8244
        %v8838 = vsel %vm8829, %v8762, %v8246
        %v8839 = vsel %vm8829, %v8763, %v8248
        %v8840 = vsel %vm8829, %v8764, %v8250
        %v8841 = vsel %vm8829, %v8765, %v8252
        %v8842 = vsel %vm8829, %v8766, %v8254
        %v8843 = vsel %vm8829, %v8767, %v8256
        %v8844 = vsel %vm8829, %v8768, %v8258
        %v8845 = vsel %vm8829, %v8769, %v8260
        %v8846 = vsel %vm8829, %v8770, %v8262
        %v8847 = vsel %vm8829, %v8771, %v8264
        %v8848 = vsel %vm8829, %v8772, %v8266
        %v8849 = vsel %vm8829, %v8773, %v8268
        %v8850 = vsel %vm8829, %v8774, %v8270
        %v8851 = vsel %vm8829, %v8775, %v8272
        %v8852 = vsel %vm8829, %v8776, %v8274
        %v8853 = vsel %vm8829, %v8777, %v8276
        %v8854 = vsel %vm8829, %v8778, %v8278
        %v8855 = vsel %vm8829, %v8779, %v8280
        %v8856 = vsel %vm8829, %v8780, %v8282
        %v8857 = vsel %vm8829, %v8781, %v8284
        %v8858 = vsel %vm8829, %v8782, %v8286
        %v8859 = vsel %vm8829, %v8783, %v8288
        %v8860 = vsel %vm8829, %v8784, %v8290
        %v8861 = vsel %vm8829, %v8785, %v8292
        %v8862 = vsel %vm8829, %v8786, %v8294
        %v8863 = vsel %vm8829, %v8787, %v8296
        %v8864 = vsel %vm8829, %v8788, %v8298
        %v8865 = vsel %vm8829, %v8789, %v8300
        %v8866 = vsel %vm8829, %v8790, %v8302
        %v8867 = vsel %vm8829, %v8791, %v8304
        %v8868 = vsel %vm8829, %v8792, %v8306
        %v8869 = vsel %vm8829, %v8793, %v8308
        %v8870 = vsel %vm8829, %v8794, %v8310
        %v8871 = vsel %vm8829, %v8795, %v8312
        %v8872 = vsel %vm8829, %v8796, %v8314
        %v8873 = vsel %vm8829, %v8797, %v8316
        %v8874 = vsel %vm8829, %v8798, %v8318
        %v8875 = vsel %vm8829, %v8799, %v8320
        %v8876 = vsel %vm8829, %v8800, %v8322
        %v8877 = vsel %vm8829, %v8801, %v8324
        %v8878 = vsel %vm8829, %v8802, %v8326
        %v8879 = vsel %vm8829, %v8803, %v8328
        %v8880 = vsel %vm8829, %v8804, %v8330
        %v8881 = vsel %vm8829, %v8805, %v8332
        %v8882 = vsel %vm8829, %v8806, %v8334
        %v8883 = vsel %vm8829, %v8807, %v8336
        %v8884 = vsel %vm8829, %v8808, %v8338
        %v8885 = vsel %vm8829, %v8809, %v8340
        %v8886 = vsel %vm8829, %v8810, %v8342
        %v8887 = vsel %vm8829, %v8811, %v8344
        %v8888 = vsel %vm8829, %v8812, %v8346
        %v8889 = vsel %vm8829, %v8813, %v8348
        %v8890 = vsel %vm8829, %v8814, %v8350
        %v8891 = vsel %vm8829, %v8815, %v8352
        %v8892 = vsel %vm8829, %v8816, %v8354
        %v8893 = vsel %vm8829, %v8817, %v8356
        %v8894 = vsel %vm8829, %v8818, %v8358
        %v8895 = vsel %vm8829, %v8819, %v8360
        %v8896 = vsel %vm8829, %v8820, %v8362
        %v8897 = vsel %vm8829, %v8821, %v8364
        %v8898 = vsel %vm8829, %v8822, %v8366
        %v8899 = vsel %vm8829, %v8823, %v8368
        %v8900 = vsel %vm8829, %v8824, %v8370
        %v8901 = vsel %vm8829, %v8825, %v8372
        %v8902 = vsel %vm8829, %v8826, %v8374
        %v8903 = vsel %vm8829, %v8827, %v8376
        %v8904 = vsel %vm8829, %v8828, %v8378
        %vm8905 = vcmask 261120
        %v8906 = vsel %vm8905, %v8830, %v8455
        %v8907 = vsel %vm8905, %v8831, %v8457
        %v8908 = vsel %vm8905, %v8832, %v8459
        %v8909 = vsel %vm8905, %v8833, %v8461
        %v8910 = vsel %vm8905, %v8834, %v8463
        %v8911 = vsel %vm8905, %v8835, %v8465
        %v8912 = vsel %vm8905, %v8836, %v8467
        %v8913 = vsel %vm8905, %v8837, %v8469
        %v8914 = vsel %vm8905, %v8838, %v8471
        %v8915 = vsel %vm8905, %v8839, %v8473
        %v8916 = vsel %vm8905, %v8840, %v8475
        %v8917 = vsel %vm8905, %v8841, %v8477
        %v8918 = vsel %vm8905, %v8842, %v8479
        %v8919 = vsel %vm8905, %v8843, %v8481
        %v8920 = vsel %vm8905, %v8844, %v8483
        %v8921 = vsel %vm8905, %v8845, %v8485
        %v8922 = vsel %vm8905, %v8846, %v8487
        %v8923 = vsel %vm8905, %v8847, %v8489
        %v8924 = vsel %vm8905, %v8848, %v8491
        %v8925 = vsel %vm8905, %v8849, %v8493
        %v8926 = vsel %vm8905, %v8850, %v8495
        %v8927 = vsel %vm8905, %v8851, %v8497
        %v8928 = vsel %vm8905, %v8852, %v8499
        %v8929 = vsel %vm8905, %v8853, %v8501
        %v8930 = vsel %vm8905, %v8854, %v8503
        %v8931 = vsel %vm8905, %v8855, %v8505
        %v8932 = vsel %vm8905, %v8856, %v8507
        %v8933 = vsel %vm8905, %v8857, %v8509
        %v8934 = vsel %vm8905, %v8858, %v8511
        %v8935 = vsel %vm8905, %v8859, %v8513
        %v8936 = vsel %vm8905, %v8860, %v8515
        %v8937 = vsel %vm8905, %v8861, %v8517
        %v8938 = vsel %vm8905, %v8862, %v8519
        %v8939 = vsel %vm8905, %v8863, %v8521
        %v8940 = vsel %vm8905, %v8864, %v8523
        %v8941 = vsel %vm8905, %v8865, %v8525
        %v8942 = vsel %vm8905, %v8866, %v8527
        %v8943 = vsel %vm8905, %v8867, %v8529
        %v8944 = vsel %vm8905, %v8868, %v8531
        %v8945 = vsel %vm8905, %v8869, %v8533
        %v8946 = vsel %vm8905, %v8870, %v8535
        %v8947 = vsel %vm8905, %v8871, %v8537
        %v8948 = vsel %vm8905, %v8872, %v8539
        %v8949 = vsel %vm8905, %v8873, %v8541
        %v8950 = vsel %vm8905, %v8874, %v8543
        %v8951 = vsel %vm8905, %v8875, %v8545
        %v8952 = vsel %vm8905, %v8876, %v8547
        %v8953 = vsel %vm8905, %v8877, %v8549
        %v8954 = vsel %vm8905, %v8878, %v8551
        %v8955 = vsel %vm8905, %v8879, %v8553
        %v8956 = vsel %vm8905, %v8880, %v8555
        %v8957 = vsel %vm8905, %v8881, %v8557
        %v8958 = vsel %vm8905, %v8882, %v8559
        %v8959 = vsel %vm8905, %v8883, %v8561
        %v8960 = vsel %vm8905, %v8884, %v8563
        %v8961 = vsel %vm8905, %v8885, %v8565
        %v8962 = vsel %vm8905, %v8886, %v8567
        %v8963 = vsel %vm8905, %v8887, %v8569
        %v8964 = vsel %vm8905, %v8888, %v8571
        %v8965 = vsel %vm8905, %v8889, %v8573
        %v8966 = vsel %vm8905, %v8890, %v8575
        %v8967 = vsel %vm8905, %v8891, %v8577
        %v8968 = vsel %vm8905, %v8892, %v8579
        %v8969 = vsel %vm8905, %v8893, %v8581
        %v8970 = vsel %vm8905, %v8894, %v8583
        %v8971 = vsel %vm8905, %v8895, %v8585
        %v8972 = vsel %vm8905, %v8896, %v8587
        %v8973 = vsel %vm8905, %v8897, %v8589
        %v8974 = vsel %vm8905, %v8898, %v8591
        %v8975 = vsel %vm8905, %v8899, %v8593
        %v8976 = vsel %vm8905, %v8900, %v8595
        %v8977 = vsel %vm8905, %v8901, %v8597
        %v8978 = vsel %vm8905, %v8902, %v8599
        %v8979 = vsel %vm8905, %v8903, %v8601
        %v8980 = vsel %vm8905, %v8904, %v8603
        %v8988 = vrot.slane %v7221, 2
        %v8989 = vsel %vm1185, %v7476, %v8988
        %v8990 = vrot.slane %v7222, 2
        %v8991 = vsel %vm1185, %v8988, %v8990
        %v8992 = vrot.slane %v7223, 2
        %v8993 = vsel %vm1185, %v8990, %v8992
        %v8994 = vrot.slane %v7224, 2
        %v8995 = vsel %vm1185, %v8992, %v8994
        %v8996 = vrot.slane %v7225, 2
        %v8997 = vsel %vm1185, %v8994, %v8996
        %v8998 = vrot.slane %v7226, 2
        %v8999 = vsel %vm1185, %v8996, %v8998
        %v9000 = vrot.slane %v7227, 2
        %v9001 = vsel %vm1185, %v8998, %v9000
        %v9002 = vrot.slane %v7228, 2
        %v9003 = vsel %vm1185, %v9000, %v9002
        %9004 = vrot.lane.b32.xlu0 %v8989, 8
        %v9005 = vpop.permute.xlu0 %9004
        %9006 = vrot.lane.b32.xlu0 %v8991, 8
        %v9007 = vpop.permute.xlu0 %9006
        %9008 = vrot.lane.b32.xlu0 %v8993, 8
        %v9009 = vpop.permute.xlu0 %9008
        %9010 = vrot.lane.b32.xlu0 %v8995, 8
        %v9011 = vpop.permute.xlu0 %9010
        %9012 = vrot.lane.b32.xlu0 %v8997, 8
        %v9013 = vpop.permute.xlu0 %9012
        %9014 = vrot.lane.b32.xlu0 %v8999, 8
        %v9015 = vpop.permute.xlu0 %9014
        %9016 = vrot.lane.b32.xlu0 %v9001, 8
        %v9017 = vpop.permute.xlu0 %9016
        %9018 = vrot.lane.b32.xlu0 %v9003, 8
        %v9019 = vpop.permute.xlu0 %9018
        %9020 = vrot.lane.b32.xlu0 %v9002, 8
        %v9021 = vpop.permute.xlu0 %9020
        %v9031 = vrot.slane %v7221, 4
        %v9032 = vsel %vm2305, %v7850, %v9031
        %v9033 = vrot.slane %v7222, 4
        %v9034 = vsel %vm2305, %v9031, %v9033
        %v9035 = vrot.slane %v7223, 4
        %v9036 = vsel %vm2305, %v9033, %v9035
        %v9037 = vrot.slane %v7224, 4
        %v9038 = vsel %vm2305, %v9035, %v9037
        %v9039 = vrot.slane %v7225, 4
        %v9040 = vsel %vm2305, %v9037, %v9039
        %v9041 = vrot.slane %v7226, 4
        %v9042 = vsel %vm2305, %v9039, %v9041
        %v9043 = vrot.slane %v7227, 4
        %v9044 = vsel %vm2305, %v9041, %v9043
        %v9045 = vrot.slane %v7228, 4
        %v9046 = vsel %vm2305, %v9043, %v9045
        %9047 = vrot.lane.b32.xlu0 %v9032, 16
        %v9048 = vpop.permute.xlu0 %9047
        %9049 = vrot.lane.b32.xlu0 %v9034, 16
        %v9050 = vpop.permute.xlu0 %9049
        %9051 = vrot.lane.b32.xlu0 %v9036, 16
        %v9052 = vpop.permute.xlu0 %9051
        %9053 = vrot.lane.b32.xlu0 %v9038, 16
        %v9054 = vpop.permute.xlu0 %9053
        %9055 = vrot.lane.b32.xlu0 %v9040, 16
        %v9056 = vpop.permute.xlu0 %9055
        %9057 = vrot.lane.b32.xlu0 %v9042, 16
        %v9058 = vpop.permute.xlu0 %9057
        %9059 = vrot.lane.b32.xlu0 %v9044, 16
        %v9060 = vpop.permute.xlu0 %9059
        %9061 = vrot.lane.b32.xlu0 %v9046, 16
        %v9062 = vpop.permute.xlu0 %9061
        %9063 = vrot.lane.b32.xlu0 %v9045, 16
        %v9064 = vpop.permute.xlu0 %9063
        %v9075 = vrot.slane %v7222, 6
        %v9076 = vsel %vm5988, %v8227, %v9075
        %v9077 = vrot.slane %v7223, 6
        %v9078 = vsel %vm5988, %v9075, %v9077
        %v9079 = vrot.slane %v7224, 6
        %v9080 = vsel %vm5988, %v9077, %v9079
        %v9081 = vrot.slane %v7225, 6
        %v9082 = vsel %vm5988, %v9079, %v9081
        %v9083 = vrot.slane %v7226, 6
        %v9084 = vsel %vm5988, %v9081, %v9083
        %v9085 = vrot.slane %v7227, 6
        %v9086 = vsel %vm5988, %v9083, %v9085
        %v9087 = vrot.slane %v7228, 6
        %v9088 = vsel %vm5988, %v9085, %v9087
        %v9089 = vrot.slane %v7229, 6
        %v9090 = vsel %vm5988, %v9087, %v9089
        %9091 = vrot.lane.b32.xlu0 %v9076, 24
        %v9092 = vpop.permute.xlu0 %9091
        %9093 = vrot.lane.b32.xlu0 %v9078, 24
        %v9094 = vpop.permute.xlu0 %9093
        %9095 = vrot.lane.b32.xlu0 %v9080, 24
        %v9096 = vpop.permute.xlu0 %9095
        %9097 = vrot.lane.b32.xlu0 %v9082, 24
        %v9098 = vpop.permute.xlu0 %9097
        %9099 = vrot.lane.b32.xlu0 %v9084, 24
        %v9100 = vpop.permute.xlu0 %9099
        %9101 = vrot.lane.b32.xlu0 %v9086, 24
        %v9102 = vpop.permute.xlu0 %9101
        %9103 = vrot.lane.b32.xlu0 %v9088, 24
        %v9104 = vpop.permute.xlu0 %9103
        %9105 = vrot.lane.b32.xlu0 %v9090, 24
        %v9106 = vpop.permute.xlu0 %9105
        %9115 = vrot.lane.b32.xlu0 %v7222, 32
        %v9116 = vpop.permute.xlu0 %9115
        %9117 = vrot.lane.b32.xlu0 %v7223, 32
        %v9118 = vpop.permute.xlu0 %9117
        %9119 = vrot.lane.b32.xlu0 %v7224, 32
        %v9120 = vpop.permute.xlu0 %9119
        %9121 = vrot.lane.b32.xlu0 %v7225, 32
        %v9122 = vpop.permute.xlu0 %9121
        %9123 = vrot.lane.b32.xlu0 %v7226, 32
        %v9124 = vpop.permute.xlu0 %9123
        %9125 = vrot.lane.b32.xlu0 %v7227, 32
        %v9126 = vpop.permute.xlu0 %9125
        %9127 = vrot.lane.b32.xlu0 %v7228, 32
        %v9128 = vpop.permute.xlu0 %9127
        %9129 = vrot.lane.b32.xlu0 %v7229, 32
        %v9130 = vpop.permute.xlu0 %9129
        %v9139 = vsel %vm2978, %v7220, %v9005
        %v9140 = vsel %vm2978, %v7221, %v9007
        %v9141 = vsel %vm2978, %v7222, %v9009
        %v9142 = vsel %vm2978, %v7223, %v9011
        %v9143 = vsel %vm2978, %v7224, %v9013
        %v9144 = vsel %vm2978, %v7225, %v9015
        %v9145 = vsel %vm2978, %v7226, %v9017
        %v9146 = vsel %vm2978, %v7227, %v9019
        %v9147 = vsel %vm2978, %v7228, %v9021
        %v9148 = vsel %vm3204, %v9139, %v9048
        %v9149 = vsel %vm3204, %v9140, %v9050
        %v9150 = vsel %vm3204, %v9141, %v9052
        %v9151 = vsel %vm3204, %v9142, %v9054
        %v9152 = vsel %vm3204, %v9143, %v9056
        %v9153 = vsel %vm3204, %v9144, %v9058
        %v9154 = vsel %vm3204, %v9145, %v9060
        %v9155 = vsel %vm3204, %v9146, %v9062
        %v9156 = vsel %vm3204, %v9147, %v9064
        %v9157 = vsel %vm8829, %v9148, %v8378
        %v9158 = vsel %vm8829, %v9149, %v9092
        %v9159 = vsel %vm8829, %v9150, %v9094
        %v9160 = vsel %vm8829, %v9151, %v9096
        %v9161 = vsel %vm8829, %v9152, %v9098
        %v9162 = vsel %vm8829, %v9153, %v9100
        %v9163 = vsel %vm8829, %v9154, %v9102
        %v9164 = vsel %vm8829, %v9155, %v9104
        %v9165 = vsel %vm8829, %v9156, %v9106
        %v9166 = vsel %vm8905, %v9157, %v8603
        %v9167 = vsel %vm8905, %v9158, %v9116
        %v9168 = vsel %vm8905, %v9159, %v9118
        %v9169 = vsel %vm8905, %v9160, %v9120
        %v9170 = vsel %vm8905, %v9161, %v9122
        %v9171 = vsel %vm8905, %v9162, %v9124
        %v9172 = vsel %vm8905, %v9163, %v9126
        %v9173 = vsel %vm8905, %v9164, %v9128
        %v9174 = vsel %vm8905, %v9165, %v9130
        %v9182 = vrot.slane %v7229, 2
        %v9183 = vsel %vm1185, %v9002, %v9182
        %v9184 = vrot.slane %v7230, 2
        %v9185 = vsel %vm1185, %v9182, %v9184
        %v9186 = vrot.slane %v7231, 2
        %v9187 = vsel %vm1185, %v9184, %v9186
        %v9188 = vrot.slane %v7232, 2
        %v9189 = vsel %vm1185, %v9186, %v9188
        %v9190 = vrot.slane %v7233, 2
        %v9191 = vsel %vm1185, %v9188, %v9190
        %v9192 = vrot.slane %v7234, 2
        %v9193 = vsel %vm1185, %v9190, %v9192
        %v9194 = vrot.slane %v7235, 2
        %v9195 = vsel %vm1185, %v9192, %v9194
        %v9196 = vrot.slane %v7236, 2
        %v9197 = vsel %vm1185, %v9194, %v9196
        %9198 = vrot.lane.b32.xlu0 %v9183, 8
        %v9199 = vpop.permute.xlu0 %9198
        %9200 = vrot.lane.b32.xlu0 %v9185, 8
        %v9201 = vpop.permute.xlu0 %9200
        %9202 = vrot.lane.b32.xlu0 %v9187, 8
        %v9203 = vpop.permute.xlu0 %9202
        %9204 = vrot.lane.b32.xlu0 %v9189, 8
        %v9205 = vpop.permute.xlu0 %9204
        %9206 = vrot.lane.b32.xlu0 %v9191, 8
        %v9207 = vpop.permute.xlu0 %9206
        %9208 = vrot.lane.b32.xlu0 %v9193, 8
        %v9209 = vpop.permute.xlu0 %9208
        %9210 = vrot.lane.b32.xlu0 %v9195, 8
        %v9211 = vpop.permute.xlu0 %9210
        %9212 = vrot.lane.b32.xlu0 %v9197, 8
        %v9213 = vpop.permute.xlu0 %9212
        %9214 = vrot.lane.b32.xlu0 %v9196, 8
        %v9215 = vpop.permute.xlu0 %9214
        %v9225 = vrot.slane %v7229, 4
        %v9226 = vsel %vm2305, %v9045, %v9225
        %v9227 = vrot.slane %v7230, 4
        %v9228 = vsel %vm2305, %v9225, %v9227
        %v9229 = vrot.slane %v7231, 4
        %v9230 = vsel %vm2305, %v9227, %v9229
        %v9231 = vrot.slane %v7232, 4
        %v9232 = vsel %vm2305, %v9229, %v9231
        %v9233 = vrot.slane %v7233, 4
        %v9234 = vsel %vm2305, %v9231, %v9233
        %v9235 = vrot.slane %v7234, 4
        %v9236 = vsel %vm2305, %v9233, %v9235
        %v9237 = vrot.slane %v7235, 4
        %v9238 = vsel %vm2305, %v9235, %v9237
        %v9239 = vrot.slane %v7236, 4
        %v9240 = vsel %vm2305, %v9237, %v9239
        %9241 = vrot.lane.b32.xlu0 %v9226, 16
        %v9242 = vpop.permute.xlu0 %9241
        %9243 = vrot.lane.b32.xlu0 %v9228, 16
        %v9244 = vpop.permute.xlu0 %9243
        %9245 = vrot.lane.b32.xlu0 %v9230, 16
        %v9246 = vpop.permute.xlu0 %9245
        %9247 = vrot.lane.b32.xlu0 %v9232, 16
        %v9248 = vpop.permute.xlu0 %9247
        %9249 = vrot.lane.b32.xlu0 %v9234, 16
        %v9250 = vpop.permute.xlu0 %9249
        %9251 = vrot.lane.b32.xlu0 %v9236, 16
        %v9252 = vpop.permute.xlu0 %9251
        %9253 = vrot.lane.b32.xlu0 %v9238, 16
        %v9254 = vpop.permute.xlu0 %9253
        %9255 = vrot.lane.b32.xlu0 %v9240, 16
        %v9256 = vpop.permute.xlu0 %9255
        %9257 = vrot.lane.b32.xlu0 %v9239, 16
        %v9258 = vpop.permute.xlu0 %9257
        %v9269 = vrot.slane %v7230, 6
        %v9270 = vsel %vm5988, %v9089, %v9269
        %v9271 = vrot.slane %v7231, 6
        %v9272 = vsel %vm5988, %v9269, %v9271
        %v9273 = vrot.slane %v7232, 6
        %v9274 = vsel %vm5988, %v9271, %v9273
        %v9275 = vrot.slane %v7233, 6
        %v9276 = vsel %vm5988, %v9273, %v9275
        %v9277 = vrot.slane %v7234, 6
        %v9278 = vsel %vm5988, %v9275, %v9277
        %v9279 = vrot.slane %v7235, 6
        %v9280 = vsel %vm5988, %v9277, %v9279
        %v9281 = vrot.slane %v7236, 6
        %v9282 = vsel %vm5988, %v9279, %v9281
        %v9283 = vrot.slane %v7237, 6
        %v9284 = vsel %vm5988, %v9281, %v9283
        %9285 = vrot.lane.b32.xlu0 %v9270, 24
        %v9286 = vpop.permute.xlu0 %9285
        %9287 = vrot.lane.b32.xlu0 %v9272, 24
        %v9288 = vpop.permute.xlu0 %9287
        %9289 = vrot.lane.b32.xlu0 %v9274, 24
        %v9290 = vpop.permute.xlu0 %9289
        %9291 = vrot.lane.b32.xlu0 %v9276, 24
        %v9292 = vpop.permute.xlu0 %9291
        %9293 = vrot.lane.b32.xlu0 %v9278, 24
        %v9294 = vpop.permute.xlu0 %9293
        %9295 = vrot.lane.b32.xlu0 %v9280, 24
        %v9296 = vpop.permute.xlu0 %9295
        %9297 = vrot.lane.b32.xlu0 %v9282, 24
        %v9298 = vpop.permute.xlu0 %9297
        %9299 = vrot.lane.b32.xlu0 %v9284, 24
        %v9300 = vpop.permute.xlu0 %9299
        %9309 = vrot.lane.b32.xlu0 %v7230, 32
        %v9310 = vpop.permute.xlu0 %9309
        %9311 = vrot.lane.b32.xlu0 %v7231, 32
        %v9312 = vpop.permute.xlu0 %9311
        %9313 = vrot.lane.b32.xlu0 %v7232, 32
        %v9314 = vpop.permute.xlu0 %9313
        %9315 = vrot.lane.b32.xlu0 %v7233, 32
        %v9316 = vpop.permute.xlu0 %9315
        %9317 = vrot.lane.b32.xlu0 %v7234, 32
        %v9318 = vpop.permute.xlu0 %9317
        %9319 = vrot.lane.b32.xlu0 %v7235, 32
        %v9320 = vpop.permute.xlu0 %9319
        %9321 = vrot.lane.b32.xlu0 %v7236, 32
        %v9322 = vpop.permute.xlu0 %9321
        %9323 = vrot.lane.b32.xlu0 %v7237, 32
        %v9324 = vpop.permute.xlu0 %9323
        %v9333 = vsel %vm2978, %v7228, %v9199
        %v9334 = vsel %vm2978, %v7229, %v9201
        %v9335 = vsel %vm2978, %v7230, %v9203
        %v9336 = vsel %vm2978, %v7231, %v9205
        %v9337 = vsel %vm2978, %v7232, %v9207
        %v9338 = vsel %vm2978, %v7233, %v9209
        %v9339 = vsel %vm2978, %v7234, %v9211
        %v9340 = vsel %vm2978, %v7235, %v9213
        %v9341 = vsel %vm2978, %v7236, %v9215
        %v9342 = vsel %vm3204, %v9333, %v9242
        %v9343 = vsel %vm3204, %v9334, %v9244
        %v9344 = vsel %vm3204, %v9335, %v9246
        %v9345 = vsel %vm3204, %v9336, %v9248
        %v9346 = vsel %vm3204, %v9337, %v9250
        %v9347 = vsel %vm3204, %v9338, %v9252
        %v9348 = vsel %vm3204, %v9339, %v9254
        %v9349 = vsel %vm3204, %v9340, %v9256
        %v9350 = vsel %vm3204, %v9341, %v9258
        %v9351 = vsel %vm8829, %v9342, %v9106
        %v9352 = vsel %vm8829, %v9343, %v9286
        %v9353 = vsel %vm8829, %v9344, %v9288
        %v9354 = vsel %vm8829, %v9345, %v9290
        %v9355 = vsel %vm8829, %v9346, %v9292
        %v9356 = vsel %vm8829, %v9347, %v9294
        %v9357 = vsel %vm8829, %v9348, %v9296
        %v9358 = vsel %vm8829, %v9349, %v9298
        %v9359 = vsel %vm8829, %v9350, %v9300
        %v9360 = vsel %vm8905, %v9351, %v9130
        %v9361 = vsel %vm8905, %v9352, %v9310
        %v9362 = vsel %vm8905, %v9353, %v9312
        %v9363 = vsel %vm8905, %v9354, %v9314
        %v9364 = vsel %vm8905, %v9355, %v9316
        %v9365 = vsel %vm8905, %v9356, %v9318
        %v9366 = vsel %vm8905, %v9357, %v9320
        %v9367 = vsel %vm8905, %v9358, %v9322
        %v9368 = vsel %vm8905, %v9359, %v9324
        %v9376 = vrot.slane %v7237, 2
        %v9377 = vsel %vm1185, %v9196, %v9376
        %v9378 = vrot.slane %v7238, 2
        %v9379 = vsel %vm1185, %v9376, %v9378
        %v9380 = vrot.slane %v7239, 2
        %v9381 = vsel %vm1185, %v9378, %v9380
        %v9382 = vrot.slane %v7240, 2
        %v9383 = vsel %vm1185, %v9380, %v9382
        %v9384 = vrot.slane %v7241, 2
        %v9385 = vsel %vm1185, %v9382, %v9384
        %v9386 = vrot.slane %v7242, 2
        %v9387 = vsel %vm1185, %v9384, %v9386
        %v9388 = vrot.slane %v7243, 2
        %v9389 = vsel %vm1185, %v9386, %v9388
        %v9390 = vrot.slane %v7244, 2
        %v9391 = vsel %vm1185, %v9388, %v9390
        %9392 = vrot.lane.b32.xlu0 %v9377, 8
        %v9393 = vpop.permute.xlu0 %9392
        %9394 = vrot.lane.b32.xlu0 %v9379, 8
        %v9395 = vpop.permute.xlu0 %9394
        %9396 = vrot.lane.b32.xlu0 %v9381, 8
        %v9397 = vpop.permute.xlu0 %9396
        %9398 = vrot.lane.b32.xlu0 %v9383, 8
        %v9399 = vpop.permute.xlu0 %9398
        %9400 = vrot.lane.b32.xlu0 %v9385, 8
        %v9401 = vpop.permute.xlu0 %9400
        %9402 = vrot.lane.b32.xlu0 %v9387, 8
        %v9403 = vpop.permute.xlu0 %9402
        %9404 = vrot.lane.b32.xlu0 %v9389, 8
        %v9405 = vpop.permute.xlu0 %9404
        %9406 = vrot.lane.b32.xlu0 %v9391, 8
        %v9407 = vpop.permute.xlu0 %9406
        %9408 = vrot.lane.b32.xlu0 %v9390, 8
        %v9409 = vpop.permute.xlu0 %9408
        %v9419 = vrot.slane %v7237, 4
        %v9420 = vsel %vm2305, %v9239, %v9419
        %v9421 = vrot.slane %v7238, 4
        %v9422 = vsel %vm2305, %v9419, %v9421
        %v9423 = vrot.slane %v7239, 4
        %v9424 = vsel %vm2305, %v9421, %v9423
        %v9425 = vrot.slane %v7240, 4
        %v9426 = vsel %vm2305, %v9423, %v9425
        %v9427 = vrot.slane %v7241, 4
        %v9428 = vsel %vm2305, %v9425, %v9427
        %v9429 = vrot.slane %v7242, 4
        %v9430 = vsel %vm2305, %v9427, %v9429
        %v9431 = vrot.slane %v7243, 4
        %v9432 = vsel %vm2305, %v9429, %v9431
        %v9433 = vrot.slane %v7244, 4
        %v9434 = vsel %vm2305, %v9431, %v9433
        %9435 = vrot.lane.b32.xlu0 %v9420, 16
        %v9436 = vpop.permute.xlu0 %9435
        %9437 = vrot.lane.b32.xlu0 %v9422, 16
        %v9438 = vpop.permute.xlu0 %9437
        %9439 = vrot.lane.b32.xlu0 %v9424, 16
        %v9440 = vpop.permute.xlu0 %9439
        %9441 = vrot.lane.b32.xlu0 %v9426, 16
        %v9442 = vpop.permute.xlu0 %9441
        %9443 = vrot.lane.b32.xlu0 %v9428, 16
        %v9444 = vpop.permute.xlu0 %9443
        %9445 = vrot.lane.b32.xlu0 %v9430, 16
        %v9446 = vpop.permute.xlu0 %9445
        %9447 = vrot.lane.b32.xlu0 %v9432, 16
        %v9448 = vpop.permute.xlu0 %9447
        %9449 = vrot.lane.b32.xlu0 %v9434, 16
        %v9450 = vpop.permute.xlu0 %9449
        %9451 = vrot.lane.b32.xlu0 %v9433, 16
        %v9452 = vpop.permute.xlu0 %9451
        %v9463 = vrot.slane %v7238, 6
        %v9464 = vsel %vm5988, %v9283, %v9463
        %v9465 = vrot.slane %v7239, 6
        %v9466 = vsel %vm5988, %v9463, %v9465
        %v9467 = vrot.slane %v7240, 6
        %v9468 = vsel %vm5988, %v9465, %v9467
        %v9469 = vrot.slane %v7241, 6
        %v9470 = vsel %vm5988, %v9467, %v9469
        %v9471 = vrot.slane %v7242, 6
        %v9472 = vsel %vm5988, %v9469, %v9471
        %v9473 = vrot.slane %v7243, 6
        %v9474 = vsel %vm5988, %v9471, %v9473
        %v9475 = vrot.slane %v7244, 6
        %v9476 = vsel %vm5988, %v9473, %v9475
        %v9477 = vrot.slane %v7245, 6
        %v9478 = vsel %vm5988, %v9475, %v9477
        %9479 = vrot.lane.b32.xlu0 %v9464, 24
        %v9480 = vpop.permute.xlu0 %9479
        %9481 = vrot.lane.b32.xlu0 %v9466, 24
        %v9482 = vpop.permute.xlu0 %9481
        %9483 = vrot.lane.b32.xlu0 %v9468, 24
        %v9484 = vpop.permute.xlu0 %9483
        %9485 = vrot.lane.b32.xlu0 %v9470, 24
        %v9486 = vpop.permute.xlu0 %9485
        %9487 = vrot.lane.b32.xlu0 %v9472, 24
        %v9488 = vpop.permute.xlu0 %9487
        %9489 = vrot.lane.b32.xlu0 %v9474, 24
        %v9490 = vpop.permute.xlu0 %9489
        %9491 = vrot.lane.b32.xlu0 %v9476, 24
        %v9492 = vpop.permute.xlu0 %9491
        %9493 = vrot.lane.b32.xlu0 %v9478, 24
        %v9494 = vpop.permute.xlu0 %9493
        %9503 = vrot.lane.b32.xlu0 %v7238, 32
        %v9504 = vpop.permute.xlu0 %9503
        %9505 = vrot.lane.b32.xlu0 %v7239, 32
        %v9506 = vpop.permute.xlu0 %9505
        %9507 = vrot.lane.b32.xlu0 %v7240, 32
        %v9508 = vpop.permute.xlu0 %9507
        %9509 = vrot.lane.b32.xlu0 %v7241, 32
        %v9510 = vpop.permute.xlu0 %9509
        %9511 = vrot.lane.b32.xlu0 %v7242, 32
        %v9512 = vpop.permute.xlu0 %9511
        %9513 = vrot.lane.b32.xlu0 %v7243, 32
        %v9514 = vpop.permute.xlu0 %9513
        %9515 = vrot.lane.b32.xlu0 %v7244, 32
        %v9516 = vpop.permute.xlu0 %9515
        %9517 = vrot.lane.b32.xlu0 %v7245, 32
        %v9518 = vpop.permute.xlu0 %9517
        %v9527 = vsel %vm2978, %v7236, %v9393
        %v9528 = vsel %vm2978, %v7237, %v9395
        %v9529 = vsel %vm2978, %v7238, %v9397
        %v9530 = vsel %vm2978, %v7239, %v9399
        %v9531 = vsel %vm2978, %v7240, %v9401
        %v9532 = vsel %vm2978, %v7241, %v9403
        %v9533 = vsel %vm2978, %v7242, %v9405
        %v9534 = vsel %vm2978, %v7243, %v9407
        %v9535 = vsel %vm2978, %v7244, %v9409
        %v9536 = vsel %vm3204, %v9527, %v9436
        %v9537 = vsel %vm3204, %v9528, %v9438
        %v9538 = vsel %vm3204, %v9529, %v9440
        %v9539 = vsel %vm3204, %v9530, %v9442
        %v9540 = vsel %vm3204, %v9531, %v9444
        %v9541 = vsel %vm3204, %v9532, %v9446
        %v9542 = vsel %vm3204, %v9533, %v9448
        %v9543 = vsel %vm3204, %v9534, %v9450
        %v9544 = vsel %vm3204, %v9535, %v9452
        %v9545 = vsel %vm8829, %v9536, %v9300
        %v9546 = vsel %vm8829, %v9537, %v9480
        %v9547 = vsel %vm8829, %v9538, %v9482
        %v9548 = vsel %vm8829, %v9539, %v9484
        %v9549 = vsel %vm8829, %v9540, %v9486
        %v9550 = vsel %vm8829, %v9541, %v9488
        %v9551 = vsel %vm8829, %v9542, %v9490
        %v9552 = vsel %vm8829, %v9543, %v9492
        %v9553 = vsel %vm8829, %v9544, %v9494
        %v9554 = vsel %vm8905, %v9545, %v9324
        %v9555 = vsel %vm8905, %v9546, %v9504
        %v9556 = vsel %vm8905, %v9547, %v9506
        %v9557 = vsel %vm8905, %v9548, %v9508
        %v9558 = vsel %vm8905, %v9549, %v9510
        %v9559 = vsel %vm8905, %v9550, %v9512
        %v9560 = vsel %vm8905, %v9551, %v9514
        %v9561 = vsel %vm8905, %v9552, %v9516
        %v9562 = vsel %vm8905, %v9553, %v9518
        %v9570 = vrot.slane %v7245, 2
        %v9571 = vsel %vm1185, %v9390, %v9570
        %v9572 = vrot.slane %v7246, 2
        %v9573 = vsel %vm1185, %v9570, %v9572
        %v9574 = vrot.slane %v7247, 2
        %v9575 = vsel %vm1185, %v9572, %v9574
        %v9576 = vrot.slane %v7248, 2
        %v9577 = vsel %vm1185, %v9574, %v9576
        %v9578 = vrot.slane %v7249, 2
        %v9579 = vsel %vm1185, %v9576, %v9578
        %v9580 = vrot.slane %v7250, 2
        %v9581 = vsel %vm1185, %v9578, %v9580
        %v9582 = vrot.slane %v7251, 2
        %v9583 = vsel %vm1185, %v9580, %v9582
        %v9584 = vrot.slane %v7252, 2
        %v9585 = vsel %vm1185, %v9582, %v9584
        %9586 = vrot.lane.b32.xlu0 %v9571, 8
        %v9587 = vpop.permute.xlu0 %9586
        %9588 = vrot.lane.b32.xlu0 %v9573, 8
        %v9589 = vpop.permute.xlu0 %9588
        %9590 = vrot.lane.b32.xlu0 %v9575, 8
        %v9591 = vpop.permute.xlu0 %9590
        %9592 = vrot.lane.b32.xlu0 %v9577, 8
        %v9593 = vpop.permute.xlu0 %9592
        %9594 = vrot.lane.b32.xlu0 %v9579, 8
        %v9595 = vpop.permute.xlu0 %9594
        %9596 = vrot.lane.b32.xlu0 %v9581, 8
        %v9597 = vpop.permute.xlu0 %9596
        %9598 = vrot.lane.b32.xlu0 %v9583, 8
        %v9599 = vpop.permute.xlu0 %9598
        %9600 = vrot.lane.b32.xlu0 %v9585, 8
        %v9601 = vpop.permute.xlu0 %9600
        %9602 = vrot.lane.b32.xlu0 %v9584, 8
        %v9603 = vpop.permute.xlu0 %9602
        %v9613 = vrot.slane %v7245, 4
        %v9614 = vsel %vm2305, %v9433, %v9613
        %v9615 = vrot.slane %v7246, 4
        %v9616 = vsel %vm2305, %v9613, %v9615
        %v9617 = vrot.slane %v7247, 4
        %v9618 = vsel %vm2305, %v9615, %v9617
        %v9619 = vrot.slane %v7248, 4
        %v9620 = vsel %vm2305, %v9617, %v9619
        %v9621 = vrot.slane %v7249, 4
        %v9622 = vsel %vm2305, %v9619, %v9621
        %v9623 = vrot.slane %v7250, 4
        %v9624 = vsel %vm2305, %v9621, %v9623
        %v9625 = vrot.slane %v7251, 4
        %v9626 = vsel %vm2305, %v9623, %v9625
        %v9627 = vrot.slane %v7252, 4
        %v9628 = vsel %vm2305, %v9625, %v9627
        %9629 = vrot.lane.b32.xlu0 %v9614, 16
        %v9630 = vpop.permute.xlu0 %9629
        %9631 = vrot.lane.b32.xlu0 %v9616, 16
        %v9632 = vpop.permute.xlu0 %9631
        %9633 = vrot.lane.b32.xlu0 %v9618, 16
        %v9634 = vpop.permute.xlu0 %9633
        %9635 = vrot.lane.b32.xlu0 %v9620, 16
        %v9636 = vpop.permute.xlu0 %9635
        %9637 = vrot.lane.b32.xlu0 %v9622, 16
        %v9638 = vpop.permute.xlu0 %9637
        %9639 = vrot.lane.b32.xlu0 %v9624, 16
        %v9640 = vpop.permute.xlu0 %9639
        %9641 = vrot.lane.b32.xlu0 %v9626, 16
        %v9642 = vpop.permute.xlu0 %9641
        %9643 = vrot.lane.b32.xlu0 %v9628, 16
        %v9644 = vpop.permute.xlu0 %9643
        %9645 = vrot.lane.b32.xlu0 %v9627, 16
        %v9646 = vpop.permute.xlu0 %9645
        %v9657 = vrot.slane %v7246, 6
        %v9658 = vsel %vm5988, %v9477, %v9657
        %v9659 = vrot.slane %v7247, 6
        %v9660 = vsel %vm5988, %v9657, %v9659
        %v9661 = vrot.slane %v7248, 6
        %v9662 = vsel %vm5988, %v9659, %v9661
        %v9663 = vrot.slane %v7249, 6
        %v9664 = vsel %vm5988, %v9661, %v9663
        %v9665 = vrot.slane %v7250, 6
        %v9666 = vsel %vm5988, %v9663, %v9665
        %v9667 = vrot.slane %v7251, 6
        %v9668 = vsel %vm5988, %v9665, %v9667
        %v9669 = vrot.slane %v7252, 6
        %v9670 = vsel %vm5988, %v9667, %v9669
        %v9671 = vrot.slane %v7253, 6
        %v9672 = vsel %vm5988, %v9669, %v9671
        %9673 = vrot.lane.b32.xlu0 %v9658, 24
        %v9674 = vpop.permute.xlu0 %9673
        %9675 = vrot.lane.b32.xlu0 %v9660, 24
        %v9676 = vpop.permute.xlu0 %9675
        %9677 = vrot.lane.b32.xlu0 %v9662, 24
        %v9678 = vpop.permute.xlu0 %9677
        %9679 = vrot.lane.b32.xlu0 %v9664, 24
        %v9680 = vpop.permute.xlu0 %9679
        %9681 = vrot.lane.b32.xlu0 %v9666, 24
        %v9682 = vpop.permute.xlu0 %9681
        %9683 = vrot.lane.b32.xlu0 %v9668, 24
        %v9684 = vpop.permute.xlu0 %9683
        %9685 = vrot.lane.b32.xlu0 %v9670, 24
        %v9686 = vpop.permute.xlu0 %9685
        %9687 = vrot.lane.b32.xlu0 %v9672, 24
        %v9688 = vpop.permute.xlu0 %9687
        %9697 = vrot.lane.b32.xlu0 %v7246, 32
        %v9698 = vpop.permute.xlu0 %9697
        %9699 = vrot.lane.b32.xlu0 %v7247, 32
        %v9700 = vpop.permute.xlu0 %9699
        %9701 = vrot.lane.b32.xlu0 %v7248, 32
        %v9702 = vpop.permute.xlu0 %9701
        %9703 = vrot.lane.b32.xlu0 %v7249, 32
        %v9704 = vpop.permute.xlu0 %9703
        %9705 = vrot.lane.b32.xlu0 %v7250, 32
        %v9706 = vpop.permute.xlu0 %9705
        %9707 = vrot.lane.b32.xlu0 %v7251, 32
        %v9708 = vpop.permute.xlu0 %9707
        %9709 = vrot.lane.b32.xlu0 %v7252, 32
        %v9710 = vpop.permute.xlu0 %9709
        %9711 = vrot.lane.b32.xlu0 %v7253, 32
        %v9712 = vpop.permute.xlu0 %9711
        %v9721 = vsel %vm2978, %v7244, %v9587
        %v9722 = vsel %vm2978, %v7245, %v9589
        %v9723 = vsel %vm2978, %v7246, %v9591
        %v9724 = vsel %vm2978, %v7247, %v9593
        %v9725 = vsel %vm2978, %v7248, %v9595
        %v9726 = vsel %vm2978, %v7249, %v9597
        %v9727 = vsel %vm2978, %v7250, %v9599
        %v9728 = vsel %vm2978, %v7251, %v9601
        %v9729 = vsel %vm2978, %v7252, %v9603
        %v9730 = vsel %vm3204, %v9721, %v9630
        %v9731 = vsel %vm3204, %v9722, %v9632
        %v9732 = vsel %vm3204, %v9723, %v9634
        %v9733 = vsel %vm3204, %v9724, %v9636
        %v9734 = vsel %vm3204, %v9725, %v9638
        %v9735 = vsel %vm3204, %v9726, %v9640
        %v9736 = vsel %vm3204, %v9727, %v9642
        %v9737 = vsel %vm3204, %v9728, %v9644
        %v9738 = vsel %vm3204, %v9729, %v9646
        %v9739 = vsel %vm8829, %v9730, %v9494
        %v9740 = vsel %vm8829, %v9731, %v9674
        %v9741 = vsel %vm8829, %v9732, %v9676
        %v9742 = vsel %vm8829, %v9733, %v9678
        %v9743 = vsel %vm8829, %v9734, %v9680
        %v9744 = vsel %vm8829, %v9735, %v9682
        %v9745 = vsel %vm8829, %v9736, %v9684
        %v9746 = vsel %vm8829, %v9737, %v9686
        %v9747 = vsel %vm8829, %v9738, %v9688
        %v9748 = vsel %vm8905, %v9739, %v9518
        %v9749 = vsel %vm8905, %v9740, %v9698
        %v9750 = vsel %vm8905, %v9741, %v9700
        %v9751 = vsel %vm8905, %v9742, %v9702
        %v9752 = vsel %vm8905, %v9743, %v9704
        %v9753 = vsel %vm8905, %v9744, %v9706
        %v9754 = vsel %vm8905, %v9745, %v9708
        %v9755 = vsel %vm8905, %v9746, %v9710
        %v9756 = vsel %vm8905, %v9747, %v9712
        %9832 = vrot.lane.b32.xlu0 %v8914, 40
        %v9833 = vpop.permute.xlu0 %9832
        %9834 = vrot.lane.b32.xlu0 %v8915, 40
        %v9835 = vpop.permute.xlu0 %9834
        %9836 = vrot.lane.b32.xlu0 %v8916, 40
        %v9837 = vpop.permute.xlu0 %9836
        %9838 = vrot.lane.b32.xlu0 %v8917, 40
        %v9839 = vpop.permute.xlu0 %9838
        %9840 = vrot.lane.b32.xlu0 %v8918, 40
        %v9841 = vpop.permute.xlu0 %9840
        %9842 = vrot.lane.b32.xlu0 %v8919, 40
        %v9843 = vpop.permute.xlu0 %9842
        %9844 = vrot.lane.b32.xlu0 %v8920, 40
        %v9845 = vpop.permute.xlu0 %9844
        %9846 = vrot.lane.b32.xlu0 %v8921, 40
        %v9847 = vpop.permute.xlu0 %9846
        %9848 = vrot.lane.b32.xlu0 %v8922, 40
        %v9849 = vpop.permute.xlu0 %9848
        %9850 = vrot.lane.b32.xlu0 %v8923, 40
        %v9851 = vpop.permute.xlu0 %9850
        %9852 = vrot.lane.b32.xlu0 %v8924, 40
        %v9853 = vpop.permute.xlu0 %9852
        %9854 = vrot.lane.b32.xlu0 %v8925, 40
        %v9855 = vpop.permute.xlu0 %9854
        %9856 = vrot.lane.b32.xlu0 %v8926, 40
        %v9857 = vpop.permute.xlu0 %9856
        %9858 = vrot.lane.b32.xlu0 %v8927, 40
        %v9859 = vpop.permute.xlu0 %9858
        %9860 = vrot.lane.b32.xlu0 %v8928, 40
        %v9861 = vpop.permute.xlu0 %9860
        %9862 = vrot.lane.b32.xlu0 %v8929, 40
        %v9863 = vpop.permute.xlu0 %9862
        %9864 = vrot.lane.b32.xlu0 %v8930, 40
        %v9865 = vpop.permute.xlu0 %9864
        %9866 = vrot.lane.b32.xlu0 %v8931, 40
        %v9867 = vpop.permute.xlu0 %9866
        %9868 = vrot.lane.b32.xlu0 %v8932, 40
        %v9869 = vpop.permute.xlu0 %9868
        %9870 = vrot.lane.b32.xlu0 %v8933, 40
        %v9871 = vpop.permute.xlu0 %9870
        %9872 = vrot.lane.b32.xlu0 %v8934, 40
        %v9873 = vpop.permute.xlu0 %9872
        %9874 = vrot.lane.b32.xlu0 %v8935, 40
        %v9875 = vpop.permute.xlu0 %9874
        %9876 = vrot.lane.b32.xlu0 %v8936, 40
        %v9877 = vpop.permute.xlu0 %9876
        %9878 = vrot.lane.b32.xlu0 %v8937, 40
        %v9879 = vpop.permute.xlu0 %9878
        %9880 = vrot.lane.b32.xlu0 %v8938, 40
        %v9881 = vpop.permute.xlu0 %9880
        %9882 = vrot.lane.b32.xlu0 %v8939, 40
        %v9883 = vpop.permute.xlu0 %9882
        %9884 = vrot.lane.b32.xlu0 %v8940, 40
        %v9885 = vpop.permute.xlu0 %9884
        %9886 = vrot.lane.b32.xlu0 %v8941, 40
        %v9887 = vpop.permute.xlu0 %9886
        %9888 = vrot.lane.b32.xlu0 %v8942, 40
        %v9889 = vpop.permute.xlu0 %9888
        %9890 = vrot.lane.b32.xlu0 %v8943, 40
        %v9891 = vpop.permute.xlu0 %9890
        %9892 = vrot.lane.b32.xlu0 %v8944, 40
        %v9893 = vpop.permute.xlu0 %9892
        %9894 = vrot.lane.b32.xlu0 %v8945, 40
        %v9895 = vpop.permute.xlu0 %9894
        %9896 = vrot.lane.b32.xlu0 %v8946, 40
        %v9897 = vpop.permute.xlu0 %9896
        %9898 = vrot.lane.b32.xlu0 %v8947, 40
        %v9899 = vpop.permute.xlu0 %9898
        %9900 = vrot.lane.b32.xlu0 %v8948, 40
        %v9901 = vpop.permute.xlu0 %9900
        %9902 = vrot.lane.b32.xlu0 %v8949, 40
        %v9903 = vpop.permute.xlu0 %9902
        %9904 = vrot.lane.b32.xlu0 %v8950, 40
        %v9905 = vpop.permute.xlu0 %9904
        %9906 = vrot.lane.b32.xlu0 %v8951, 40
        %v9907 = vpop.permute.xlu0 %9906
        %9908 = vrot.lane.b32.xlu0 %v8952, 40
        %v9909 = vpop.permute.xlu0 %9908
        %9910 = vrot.lane.b32.xlu0 %v8953, 40
        %v9911 = vpop.permute.xlu0 %9910
        %9912 = vrot.lane.b32.xlu0 %v8954, 40
        %v9913 = vpop.permute.xlu0 %9912
        %9914 = vrot.lane.b32.xlu0 %v8955, 40
        %v9915 = vpop.permute.xlu0 %9914
        %9916 = vrot.lane.b32.xlu0 %v8956, 40
        %v9917 = vpop.permute.xlu0 %9916
        %9918 = vrot.lane.b32.xlu0 %v8957, 40
        %v9919 = vpop.permute.xlu0 %9918
        %9920 = vrot.lane.b32.xlu0 %v8958, 40
        %v9921 = vpop.permute.xlu0 %9920
        %9922 = vrot.lane.b32.xlu0 %v8959, 40
        %v9923 = vpop.permute.xlu0 %9922
        %9924 = vrot.lane.b32.xlu0 %v8960, 40
        %v9925 = vpop.permute.xlu0 %9924
        %9926 = vrot.lane.b32.xlu0 %v8961, 40
        %v9927 = vpop.permute.xlu0 %9926
        %9928 = vrot.lane.b32.xlu0 %v8962, 40
        %v9929 = vpop.permute.xlu0 %9928
        %9930 = vrot.lane.b32.xlu0 %v8963, 40
        %v9931 = vpop.permute.xlu0 %9930
        %9932 = vrot.lane.b32.xlu0 %v8964, 40
        %v9933 = vpop.permute.xlu0 %9932
        %9934 = vrot.lane.b32.xlu0 %v8965, 40
        %v9935 = vpop.permute.xlu0 %9934
        %9936 = vrot.lane.b32.xlu0 %v8966, 40
        %v9937 = vpop.permute.xlu0 %9936
        %9938 = vrot.lane.b32.xlu0 %v8967, 40
        %v9939 = vpop.permute.xlu0 %9938
        %9940 = vrot.lane.b32.xlu0 %v8968, 40
        %v9941 = vpop.permute.xlu0 %9940
        %9942 = vrot.lane.b32.xlu0 %v8969, 40
        %v9943 = vpop.permute.xlu0 %9942
        %9944 = vrot.lane.b32.xlu0 %v8970, 40
        %v9945 = vpop.permute.xlu0 %9944
        %9946 = vrot.lane.b32.xlu0 %v8971, 40
        %v9947 = vpop.permute.xlu0 %9946
        %9948 = vrot.lane.b32.xlu0 %v8972, 40
        %v9949 = vpop.permute.xlu0 %9948
        %9950 = vrot.lane.b32.xlu0 %v8973, 40
        %v9951 = vpop.permute.xlu0 %9950
        %9952 = vrot.lane.b32.xlu0 %v8974, 40
        %v9953 = vpop.permute.xlu0 %9952
        %9954 = vrot.lane.b32.xlu0 %v8975, 40
        %v9955 = vpop.permute.xlu0 %9954
        %9956 = vrot.lane.b32.xlu0 %v8976, 40
        %v9957 = vpop.permute.xlu0 %9956
        %9958 = vrot.lane.b32.xlu0 %v8977, 40
        %v9959 = vpop.permute.xlu0 %9958
        %9960 = vrot.lane.b32.xlu0 %v8978, 40
        %v9961 = vpop.permute.xlu0 %9960
        %9962 = vrot.lane.b32.xlu0 %v8979, 40
        %v9963 = vpop.permute.xlu0 %9962
        %9964 = vrot.lane.b32.xlu0 %v9166, 40
        %v9965 = vpop.permute.xlu0 %9964
        %9966 = vrot.lane.b32.xlu0 %v9167, 40
        %v9967 = vpop.permute.xlu0 %9966
        %9968 = vrot.lane.b32.xlu0 %v9168, 40
        %v9969 = vpop.permute.xlu0 %9968
        %9970 = vrot.lane.b32.xlu0 %v9169, 40
        %v9971 = vpop.permute.xlu0 %9970
        %9972 = vrot.lane.b32.xlu0 %v9170, 40
        %v9973 = vpop.permute.xlu0 %9972
        %9974 = vrot.lane.b32.xlu0 %v9171, 40
        %v9975 = vpop.permute.xlu0 %9974
        %9976 = vrot.lane.b32.xlu0 %v9172, 40
        %v9977 = vpop.permute.xlu0 %9976
        %9978 = vrot.lane.b32.xlu0 %v9173, 40
        %v9979 = vpop.permute.xlu0 %9978
        %9980 = vrot.lane.b32.xlu0 %v9174, 40
        %v9981 = vpop.permute.xlu0 %9980
        %10066 = vrot.lane.b32.xlu0 %v8922, 80
        %v10067 = vpop.permute.xlu0 %10066
        %10068 = vrot.lane.b32.xlu0 %v8923, 80
        %v10069 = vpop.permute.xlu0 %10068
        %10070 = vrot.lane.b32.xlu0 %v8924, 80
        %v10071 = vpop.permute.xlu0 %10070
        %10072 = vrot.lane.b32.xlu0 %v8925, 80
        %v10073 = vpop.permute.xlu0 %10072
        %10074 = vrot.lane.b32.xlu0 %v8926, 80
        %v10075 = vpop.permute.xlu0 %10074
        %10076 = vrot.lane.b32.xlu0 %v8927, 80
        %v10077 = vpop.permute.xlu0 %10076
        %10078 = vrot.lane.b32.xlu0 %v8928, 80
        %v10079 = vpop.permute.xlu0 %10078
        %10080 = vrot.lane.b32.xlu0 %v8929, 80
        %v10081 = vpop.permute.xlu0 %10080
        %10082 = vrot.lane.b32.xlu0 %v8930, 80
        %v10083 = vpop.permute.xlu0 %10082
        %10084 = vrot.lane.b32.xlu0 %v8931, 80
        %v10085 = vpop.permute.xlu0 %10084
        %10086 = vrot.lane.b32.xlu0 %v8932, 80
        %v10087 = vpop.permute.xlu0 %10086
        %10088 = vrot.lane.b32.xlu0 %v8933, 80
        %v10089 = vpop.permute.xlu0 %10088
        %10090 = vrot.lane.b32.xlu0 %v8934, 80
        %v10091 = vpop.permute.xlu0 %10090
        %10092 = vrot.lane.b32.xlu0 %v8935, 80
        %v10093 = vpop.permute.xlu0 %10092
        %10094 = vrot.lane.b32.xlu0 %v8936, 80
        %v10095 = vpop.permute.xlu0 %10094
        %10096 = vrot.lane.b32.xlu0 %v8937, 80
        %v10097 = vpop.permute.xlu0 %10096
        %10098 = vrot.lane.b32.xlu0 %v8938, 80
        %v10099 = vpop.permute.xlu0 %10098
        %10100 = vrot.lane.b32.xlu0 %v8939, 80
        %v10101 = vpop.permute.xlu0 %10100
        %10102 = vrot.lane.b32.xlu0 %v8940, 80
        %v10103 = vpop.permute.xlu0 %10102
        %10104 = vrot.lane.b32.xlu0 %v8941, 80
        %v10105 = vpop.permute.xlu0 %10104
        %10106 = vrot.lane.b32.xlu0 %v8942, 80
        %v10107 = vpop.permute.xlu0 %10106
        %10108 = vrot.lane.b32.xlu0 %v8943, 80
        %v10109 = vpop.permute.xlu0 %10108
        %10110 = vrot.lane.b32.xlu0 %v8944, 80
        %v10111 = vpop.permute.xlu0 %10110
        %10112 = vrot.lane.b32.xlu0 %v8945, 80
        %v10113 = vpop.permute.xlu0 %10112
        %10114 = vrot.lane.b32.xlu0 %v8946, 80
        %v10115 = vpop.permute.xlu0 %10114
        %10116 = vrot.lane.b32.xlu0 %v8947, 80
        %v10117 = vpop.permute.xlu0 %10116
        %10118 = vrot.lane.b32.xlu0 %v8948, 80
        %v10119 = vpop.permute.xlu0 %10118
        %10120 = vrot.lane.b32.xlu0 %v8949, 80
        %v10121 = vpop.permute.xlu0 %10120
        %10122 = vrot.lane.b32.xlu0 %v8950, 80
        %v10123 = vpop.permute.xlu0 %10122
        %10124 = vrot.lane.b32.xlu0 %v8951, 80
        %v10125 = vpop.permute.xlu0 %10124
        %10126 = vrot.lane.b32.xlu0 %v8952, 80
        %v10127 = vpop.permute.xlu0 %10126
        %10128 = vrot.lane.b32.xlu0 %v8953, 80
        %v10129 = vpop.permute.xlu0 %10128
        %10130 = vrot.lane.b32.xlu0 %v8954, 80
        %v10131 = vpop.permute.xlu0 %10130
        %10132 = vrot.lane.b32.xlu0 %v8955, 80
        %v10133 = vpop.permute.xlu0 %10132
        %10134 = vrot.lane.b32.xlu0 %v8956, 80
        %v10135 = vpop.permute.xlu0 %10134
        %10136 = vrot.lane.b32.xlu0 %v8957, 80
        %v10137 = vpop.permute.xlu0 %10136
        %10138 = vrot.lane.b32.xlu0 %v8958, 80
        %v10139 = vpop.permute.xlu0 %10138
        %10140 = vrot.lane.b32.xlu0 %v8959, 80
        %v10141 = vpop.permute.xlu0 %10140
        %10142 = vrot.lane.b32.xlu0 %v8960, 80
        %v10143 = vpop.permute.xlu0 %10142
        %10144 = vrot.lane.b32.xlu0 %v8961, 80
        %v10145 = vpop.permute.xlu0 %10144
        %10146 = vrot.lane.b32.xlu0 %v8962, 80
        %v10147 = vpop.permute.xlu0 %10146
        %10148 = vrot.lane.b32.xlu0 %v8963, 80
        %v10149 = vpop.permute.xlu0 %10148
        %10150 = vrot.lane.b32.xlu0 %v8964, 80
        %v10151 = vpop.permute.xlu0 %10150
        %10152 = vrot.lane.b32.xlu0 %v8965, 80
        %v10153 = vpop.permute.xlu0 %10152
        %10154 = vrot.lane.b32.xlu0 %v8966, 80
        %v10155 = vpop.permute.xlu0 %10154
        %10156 = vrot.lane.b32.xlu0 %v8967, 80
        %v10157 = vpop.permute.xlu0 %10156
        %10158 = vrot.lane.b32.xlu0 %v8968, 80
        %v10159 = vpop.permute.xlu0 %10158
        %10160 = vrot.lane.b32.xlu0 %v8969, 80
        %v10161 = vpop.permute.xlu0 %10160
        %10162 = vrot.lane.b32.xlu0 %v8970, 80
        %v10163 = vpop.permute.xlu0 %10162
        %10164 = vrot.lane.b32.xlu0 %v8971, 80
        %v10165 = vpop.permute.xlu0 %10164
        %10166 = vrot.lane.b32.xlu0 %v8972, 80
        %v10167 = vpop.permute.xlu0 %10166
        %10168 = vrot.lane.b32.xlu0 %v8973, 80
        %v10169 = vpop.permute.xlu0 %10168
        %10170 = vrot.lane.b32.xlu0 %v8974, 80
        %v10171 = vpop.permute.xlu0 %10170
        %10172 = vrot.lane.b32.xlu0 %v8975, 80
        %v10173 = vpop.permute.xlu0 %10172
        %10174 = vrot.lane.b32.xlu0 %v8976, 80
        %v10175 = vpop.permute.xlu0 %10174
        %10176 = vrot.lane.b32.xlu0 %v8977, 80
        %v10177 = vpop.permute.xlu0 %10176
        %10178 = vrot.lane.b32.xlu0 %v8978, 80
        %v10179 = vpop.permute.xlu0 %10178
        %10180 = vrot.lane.b32.xlu0 %v8979, 80
        %v10181 = vpop.permute.xlu0 %10180
        %10182 = vrot.lane.b32.xlu0 %v9166, 80
        %v10183 = vpop.permute.xlu0 %10182
        %10184 = vrot.lane.b32.xlu0 %v9167, 80
        %v10185 = vpop.permute.xlu0 %10184
        %10186 = vrot.lane.b32.xlu0 %v9168, 80
        %v10187 = vpop.permute.xlu0 %10186
        %10188 = vrot.lane.b32.xlu0 %v9169, 80
        %v10189 = vpop.permute.xlu0 %10188
        %10190 = vrot.lane.b32.xlu0 %v9170, 80
        %v10191 = vpop.permute.xlu0 %10190
        %10192 = vrot.lane.b32.xlu0 %v9171, 80
        %v10193 = vpop.permute.xlu0 %10192
        %10194 = vrot.lane.b32.xlu0 %v9172, 80
        %v10195 = vpop.permute.xlu0 %10194
        %10196 = vrot.lane.b32.xlu0 %v9173, 80
        %v10197 = vpop.permute.xlu0 %10196
        %10198 = vrot.lane.b32.xlu0 %v9360, 80
        %v10199 = vpop.permute.xlu0 %10198
        %10200 = vrot.lane.b32.xlu0 %v9361, 80
        %v10201 = vpop.permute.xlu0 %10200
        %10202 = vrot.lane.b32.xlu0 %v9362, 80
        %v10203 = vpop.permute.xlu0 %10202
        %10204 = vrot.lane.b32.xlu0 %v9363, 80
        %v10205 = vpop.permute.xlu0 %10204
        %10206 = vrot.lane.b32.xlu0 %v9364, 80
        %v10207 = vpop.permute.xlu0 %10206
        %10208 = vrot.lane.b32.xlu0 %v9365, 80
        %v10209 = vpop.permute.xlu0 %10208
        %10210 = vrot.lane.b32.xlu0 %v9366, 80
        %v10211 = vpop.permute.xlu0 %10210
        %10212 = vrot.lane.b32.xlu0 %v9367, 80
        %v10213 = vpop.permute.xlu0 %10212
        %10214 = vrot.lane.b32.xlu0 %v9368, 80
        %v10215 = vpop.permute.xlu0 %10214
        %10300 = vrot.lane.b32.xlu0 %v8930, 120
        %v10301 = vpop.permute.xlu0 %10300
        %10302 = vrot.lane.b32.xlu0 %v8931, 120
        %v10303 = vpop.permute.xlu0 %10302
        %10304 = vrot.lane.b32.xlu0 %v8932, 120
        %v10305 = vpop.permute.xlu0 %10304
        %10306 = vrot.lane.b32.xlu0 %v8933, 120
        %v10307 = vpop.permute.xlu0 %10306
        %10308 = vrot.lane.b32.xlu0 %v8934, 120
        %v10309 = vpop.permute.xlu0 %10308
        %10310 = vrot.lane.b32.xlu0 %v8935, 120
        %v10311 = vpop.permute.xlu0 %10310
        %10312 = vrot.lane.b32.xlu0 %v8936, 120
        %v10313 = vpop.permute.xlu0 %10312
        %10314 = vrot.lane.b32.xlu0 %v8937, 120
        %v10315 = vpop.permute.xlu0 %10314
        %10316 = vrot.lane.b32.xlu0 %v8938, 120
        %v10317 = vpop.permute.xlu0 %10316
        %10318 = vrot.lane.b32.xlu0 %v8939, 120
        %v10319 = vpop.permute.xlu0 %10318
        %10320 = vrot.lane.b32.xlu0 %v8940, 120
        %v10321 = vpop.permute.xlu0 %10320
        %10322 = vrot.lane.b32.xlu0 %v8941, 120
        %v10323 = vpop.permute.xlu0 %10322
        %10324 = vrot.lane.b32.xlu0 %v8942, 120
        %v10325 = vpop.permute.xlu0 %10324
        %10326 = vrot.lane.b32.xlu0 %v8943, 120
        %v10327 = vpop.permute.xlu0 %10326
        %10328 = vrot.lane.b32.xlu0 %v8944, 120
        %v10329 = vpop.permute.xlu0 %10328
        %10330 = vrot.lane.b32.xlu0 %v8945, 120
        %v10331 = vpop.permute.xlu0 %10330
        %10332 = vrot.lane.b32.xlu0 %v8946, 120
        %v10333 = vpop.permute.xlu0 %10332
        %10334 = vrot.lane.b32.xlu0 %v8947, 120
        %v10335 = vpop.permute.xlu0 %10334
        %10336 = vrot.lane.b32.xlu0 %v8948, 120
        %v10337 = vpop.permute.xlu0 %10336
        %10338 = vrot.lane.b32.xlu0 %v8949, 120
        %v10339 = vpop.permute.xlu0 %10338
        %10340 = vrot.lane.b32.xlu0 %v8950, 120
        %v10341 = vpop.permute.xlu0 %10340
        %10342 = vrot.lane.b32.xlu0 %v8951, 120
        %v10343 = vpop.permute.xlu0 %10342
        %10344 = vrot.lane.b32.xlu0 %v8952, 120
        %v10345 = vpop.permute.xlu0 %10344
        %10346 = vrot.lane.b32.xlu0 %v8953, 120
        %v10347 = vpop.permute.xlu0 %10346
        %10348 = vrot.lane.b32.xlu0 %v8954, 120
        %v10349 = vpop.permute.xlu0 %10348
        %10350 = vrot.lane.b32.xlu0 %v8955, 120
        %v10351 = vpop.permute.xlu0 %10350
        %10352 = vrot.lane.b32.xlu0 %v8956, 120
        %v10353 = vpop.permute.xlu0 %10352
        %10354 = vrot.lane.b32.xlu0 %v8957, 120
        %v10355 = vpop.permute.xlu0 %10354
        %10356 = vrot.lane.b32.xlu0 %v8958, 120
        %v10357 = vpop.permute.xlu0 %10356
        %10358 = vrot.lane.b32.xlu0 %v8959, 120
        %v10359 = vpop.permute.xlu0 %10358
        %10360 = vrot.lane.b32.xlu0 %v8960, 120
        %v10361 = vpop.permute.xlu0 %10360
        %10362 = vrot.lane.b32.xlu0 %v8961, 120
        %v10363 = vpop.permute.xlu0 %10362
        %10364 = vrot.lane.b32.xlu0 %v8962, 120
        %v10365 = vpop.permute.xlu0 %10364
        %10366 = vrot.lane.b32.xlu0 %v8963, 120
        %v10367 = vpop.permute.xlu0 %10366
        %10368 = vrot.lane.b32.xlu0 %v8964, 120
        %v10369 = vpop.permute.xlu0 %10368
        %10370 = vrot.lane.b32.xlu0 %v8965, 120
        %v10371 = vpop.permute.xlu0 %10370
        %10372 = vrot.lane.b32.xlu0 %v8966, 120
        %v10373 = vpop.permute.xlu0 %10372
        %10374 = vrot.lane.b32.xlu0 %v8967, 120
        %v10375 = vpop.permute.xlu0 %10374
        %10376 = vrot.lane.b32.xlu0 %v8968, 120
        %v10377 = vpop.permute.xlu0 %10376
        %10378 = vrot.lane.b32.xlu0 %v8969, 120
        %v10379 = vpop.permute.xlu0 %10378
        %10380 = vrot.lane.b32.xlu0 %v8970, 120
        %v10381 = vpop.permute.xlu0 %10380
        %10382 = vrot.lane.b32.xlu0 %v8971, 120
        %v10383 = vpop.permute.xlu0 %10382
        %10384 = vrot.lane.b32.xlu0 %v8972, 120
        %v10385 = vpop.permute.xlu0 %10384
        %10386 = vrot.lane.b32.xlu0 %v8973, 120
        %v10387 = vpop.permute.xlu0 %10386
        %10388 = vrot.lane.b32.xlu0 %v8974, 120
        %v10389 = vpop.permute.xlu0 %10388
        %10390 = vrot.lane.b32.xlu0 %v8975, 120
        %v10391 = vpop.permute.xlu0 %10390
        %10392 = vrot.lane.b32.xlu0 %v8976, 120
        %v10393 = vpop.permute.xlu0 %10392
        %10394 = vrot.lane.b32.xlu0 %v8977, 120
        %v10395 = vpop.permute.xlu0 %10394
        %10396 = vrot.lane.b32.xlu0 %v8978, 120
        %v10397 = vpop.permute.xlu0 %10396
        %10398 = vrot.lane.b32.xlu0 %v8979, 120
        %v10399 = vpop.permute.xlu0 %10398
        %10400 = vrot.lane.b32.xlu0 %v9166, 120
        %v10401 = vpop.permute.xlu0 %10400
        %10402 = vrot.lane.b32.xlu0 %v9167, 120
        %v10403 = vpop.permute.xlu0 %10402
        %10404 = vrot.lane.b32.xlu0 %v9168, 120
        %v10405 = vpop.permute.xlu0 %10404
        %10406 = vrot.lane.b32.xlu0 %v9169, 120
        %v10407 = vpop.permute.xlu0 %10406
        %10408 = vrot.lane.b32.xlu0 %v9170, 120
        %v10409 = vpop.permute.xlu0 %10408
        %10410 = vrot.lane.b32.xlu0 %v9171, 120
        %v10411 = vpop.permute.xlu0 %10410
        %10412 = vrot.lane.b32.xlu0 %v9172, 120
        %v10413 = vpop.permute.xlu0 %10412
        %10414 = vrot.lane.b32.xlu0 %v9173, 120
        %v10415 = vpop.permute.xlu0 %10414
        %10416 = vrot.lane.b32.xlu0 %v9360, 120
        %v10417 = vpop.permute.xlu0 %10416
        %10418 = vrot.lane.b32.xlu0 %v9361, 120
        %v10419 = vpop.permute.xlu0 %10418
        %10420 = vrot.lane.b32.xlu0 %v9362, 120
        %v10421 = vpop.permute.xlu0 %10420
        %10422 = vrot.lane.b32.xlu0 %v9363, 120
        %v10423 = vpop.permute.xlu0 %10422
        %10424 = vrot.lane.b32.xlu0 %v9364, 120
        %v10425 = vpop.permute.xlu0 %10424
        %10426 = vrot.lane.b32.xlu0 %v9365, 120
        %v10427 = vpop.permute.xlu0 %10426
        %10428 = vrot.lane.b32.xlu0 %v9366, 120
        %v10429 = vpop.permute.xlu0 %10428
        %10430 = vrot.lane.b32.xlu0 %v9367, 120
        %v10431 = vpop.permute.xlu0 %10430
        %10432 = vrot.lane.b32.xlu0 %v9554, 120
        %v10433 = vpop.permute.xlu0 %10432
        %10434 = vrot.lane.b32.xlu0 %v9555, 120
        %v10435 = vpop.permute.xlu0 %10434
        %10436 = vrot.lane.b32.xlu0 %v9556, 120
        %v10437 = vpop.permute.xlu0 %10436
        %10438 = vrot.lane.b32.xlu0 %v9557, 120
        %v10439 = vpop.permute.xlu0 %10438
        %10440 = vrot.lane.b32.xlu0 %v9558, 120
        %v10441 = vpop.permute.xlu0 %10440
        %10442 = vrot.lane.b32.xlu0 %v9559, 120
        %v10443 = vpop.permute.xlu0 %10442
        %10444 = vrot.lane.b32.xlu0 %v9560, 120
        %v10445 = vpop.permute.xlu0 %10444
        %10446 = vrot.lane.b32.xlu0 %v9561, 120
        %v10447 = vpop.permute.xlu0 %10446
        %10448 = vrot.lane.b32.xlu0 %v9562, 120
        %v10449 = vpop.permute.xlu0 %10448
        %10534 = vrot.lane.b32.xlu0 %v8938, 32
        %v10535 = vpop.permute.xlu0 %10534
        %10536 = vrot.lane.b32.xlu0 %v8939, 32
        %v10537 = vpop.permute.xlu0 %10536
        %10538 = vrot.lane.b32.xlu0 %v8940, 32
        %v10539 = vpop.permute.xlu0 %10538
        %10540 = vrot.lane.b32.xlu0 %v8941, 32
        %v10541 = vpop.permute.xlu0 %10540
        %10542 = vrot.lane.b32.xlu0 %v8942, 32
        %v10543 = vpop.permute.xlu0 %10542
        %10544 = vrot.lane.b32.xlu0 %v8943, 32
        %v10545 = vpop.permute.xlu0 %10544
        %10546 = vrot.lane.b32.xlu0 %v8944, 32
        %v10547 = vpop.permute.xlu0 %10546
        %10548 = vrot.lane.b32.xlu0 %v8945, 32
        %v10549 = vpop.permute.xlu0 %10548
        %10550 = vrot.lane.b32.xlu0 %v8946, 32
        %v10551 = vpop.permute.xlu0 %10550
        %10552 = vrot.lane.b32.xlu0 %v8947, 32
        %v10553 = vpop.permute.xlu0 %10552
        %10554 = vrot.lane.b32.xlu0 %v8948, 32
        %v10555 = vpop.permute.xlu0 %10554
        %10556 = vrot.lane.b32.xlu0 %v8949, 32
        %v10557 = vpop.permute.xlu0 %10556
        %10558 = vrot.lane.b32.xlu0 %v8950, 32
        %v10559 = vpop.permute.xlu0 %10558
        %10560 = vrot.lane.b32.xlu0 %v8951, 32
        %v10561 = vpop.permute.xlu0 %10560
        %10562 = vrot.lane.b32.xlu0 %v8952, 32
        %v10563 = vpop.permute.xlu0 %10562
        %10564 = vrot.lane.b32.xlu0 %v8953, 32
        %v10565 = vpop.permute.xlu0 %10564
        %10566 = vrot.lane.b32.xlu0 %v8954, 32
        %v10567 = vpop.permute.xlu0 %10566
        %10568 = vrot.lane.b32.xlu0 %v8955, 32
        %v10569 = vpop.permute.xlu0 %10568
        %10570 = vrot.lane.b32.xlu0 %v8956, 32
        %v10571 = vpop.permute.xlu0 %10570
        %10572 = vrot.lane.b32.xlu0 %v8957, 32
        %v10573 = vpop.permute.xlu0 %10572
        %10574 = vrot.lane.b32.xlu0 %v8958, 32
        %v10575 = vpop.permute.xlu0 %10574
        %10576 = vrot.lane.b32.xlu0 %v8959, 32
        %v10577 = vpop.permute.xlu0 %10576
        %10578 = vrot.lane.b32.xlu0 %v8960, 32
        %v10579 = vpop.permute.xlu0 %10578
        %10580 = vrot.lane.b32.xlu0 %v8961, 32
        %v10581 = vpop.permute.xlu0 %10580
        %10582 = vrot.lane.b32.xlu0 %v8962, 32
        %v10583 = vpop.permute.xlu0 %10582
        %10584 = vrot.lane.b32.xlu0 %v8963, 32
        %v10585 = vpop.permute.xlu0 %10584
        %10586 = vrot.lane.b32.xlu0 %v8964, 32
        %v10587 = vpop.permute.xlu0 %10586
        %10588 = vrot.lane.b32.xlu0 %v8965, 32
        %v10589 = vpop.permute.xlu0 %10588
        %10590 = vrot.lane.b32.xlu0 %v8966, 32
        %v10591 = vpop.permute.xlu0 %10590
        %10592 = vrot.lane.b32.xlu0 %v8967, 32
        %v10593 = vpop.permute.xlu0 %10592
        %10594 = vrot.lane.b32.xlu0 %v8968, 32
        %v10595 = vpop.permute.xlu0 %10594
        %10596 = vrot.lane.b32.xlu0 %v8969, 32
        %v10597 = vpop.permute.xlu0 %10596
        %10598 = vrot.lane.b32.xlu0 %v8970, 32
        %v10599 = vpop.permute.xlu0 %10598
        %10600 = vrot.lane.b32.xlu0 %v8971, 32
        %v10601 = vpop.permute.xlu0 %10600
        %10602 = vrot.lane.b32.xlu0 %v8972, 32
        %v10603 = vpop.permute.xlu0 %10602
        %10604 = vrot.lane.b32.xlu0 %v8973, 32
        %v10605 = vpop.permute.xlu0 %10604
        %10606 = vrot.lane.b32.xlu0 %v8974, 32
        %v10607 = vpop.permute.xlu0 %10606
        %10608 = vrot.lane.b32.xlu0 %v8975, 32
        %v10609 = vpop.permute.xlu0 %10608
        %10610 = vrot.lane.b32.xlu0 %v8976, 32
        %v10611 = vpop.permute.xlu0 %10610
        %10612 = vrot.lane.b32.xlu0 %v8977, 32
        %v10613 = vpop.permute.xlu0 %10612
        %10614 = vrot.lane.b32.xlu0 %v8978, 32
        %v10615 = vpop.permute.xlu0 %10614
        %10616 = vrot.lane.b32.xlu0 %v8979, 32
        %v10617 = vpop.permute.xlu0 %10616
        %10618 = vrot.lane.b32.xlu0 %v9166, 32
        %v10619 = vpop.permute.xlu0 %10618
        %10620 = vrot.lane.b32.xlu0 %v9167, 32
        %v10621 = vpop.permute.xlu0 %10620
        %10622 = vrot.lane.b32.xlu0 %v9168, 32
        %v10623 = vpop.permute.xlu0 %10622
        %10624 = vrot.lane.b32.xlu0 %v9169, 32
        %v10625 = vpop.permute.xlu0 %10624
        %10626 = vrot.lane.b32.xlu0 %v9170, 32
        %v10627 = vpop.permute.xlu0 %10626
        %10628 = vrot.lane.b32.xlu0 %v9171, 32
        %v10629 = vpop.permute.xlu0 %10628
        %10630 = vrot.lane.b32.xlu0 %v9172, 32
        %v10631 = vpop.permute.xlu0 %10630
        %10632 = vrot.lane.b32.xlu0 %v9173, 32
        %v10633 = vpop.permute.xlu0 %10632
        %10634 = vrot.lane.b32.xlu0 %v9360, 32
        %v10635 = vpop.permute.xlu0 %10634
        %10636 = vrot.lane.b32.xlu0 %v9361, 32
        %v10637 = vpop.permute.xlu0 %10636
        %10638 = vrot.lane.b32.xlu0 %v9362, 32
        %v10639 = vpop.permute.xlu0 %10638
        %10640 = vrot.lane.b32.xlu0 %v9363, 32
        %v10641 = vpop.permute.xlu0 %10640
        %10642 = vrot.lane.b32.xlu0 %v9364, 32
        %v10643 = vpop.permute.xlu0 %10642
        %10644 = vrot.lane.b32.xlu0 %v9365, 32
        %v10645 = vpop.permute.xlu0 %10644
        %10646 = vrot.lane.b32.xlu0 %v9366, 32
        %v10647 = vpop.permute.xlu0 %10646
        %10648 = vrot.lane.b32.xlu0 %v9367, 32
        %v10649 = vpop.permute.xlu0 %10648
        %10650 = vrot.lane.b32.xlu0 %v9554, 32
        %v10651 = vpop.permute.xlu0 %10650
        %10652 = vrot.lane.b32.xlu0 %v9555, 32
        %v10653 = vpop.permute.xlu0 %10652
        %10654 = vrot.lane.b32.xlu0 %v9556, 32
        %v10655 = vpop.permute.xlu0 %10654
        %10656 = vrot.lane.b32.xlu0 %v9557, 32
        %v10657 = vpop.permute.xlu0 %10656
        %10658 = vrot.lane.b32.xlu0 %v9558, 32
        %v10659 = vpop.permute.xlu0 %10658
        %10660 = vrot.lane.b32.xlu0 %v9559, 32
        %v10661 = vpop.permute.xlu0 %10660
        %10662 = vrot.lane.b32.xlu0 %v9560, 32
        %v10663 = vpop.permute.xlu0 %10662
        %10664 = vrot.lane.b32.xlu0 %v9561, 32
        %v10665 = vpop.permute.xlu0 %10664
        %10666 = vrot.lane.b32.xlu0 %v9748, 32
        %v10667 = vpop.permute.xlu0 %10666
        %10668 = vrot.lane.b32.xlu0 %v9749, 32
        %v10669 = vpop.permute.xlu0 %10668
        %10670 = vrot.lane.b32.xlu0 %v9750, 32
        %v10671 = vpop.permute.xlu0 %10670
        %10672 = vrot.lane.b32.xlu0 %v9751, 32
        %v10673 = vpop.permute.xlu0 %10672
        %10674 = vrot.lane.b32.xlu0 %v9752, 32
        %v10675 = vpop.permute.xlu0 %10674
        %10676 = vrot.lane.b32.xlu0 %v9753, 32
        %v10677 = vpop.permute.xlu0 %10676
        %10678 = vrot.lane.b32.xlu0 %v9754, 32
        %v10679 = vpop.permute.xlu0 %10678
        %10680 = vrot.lane.b32.xlu0 %v9755, 32
        %v10681 = vpop.permute.xlu0 %10680
        %10682 = vrot.lane.b32.xlu0 %v9756, 32
        %v10683 = vpop.permute.xlu0 %10682
        %v10759 = vsel %vm5365, %v8906, %v9833
        %v10760 = vsel %vm5365, %v8907, %v9835
        %v10761 = vsel %vm5365, %v8908, %v9837
        %v10762 = vsel %vm5365, %v8909, %v9839
        %v10763 = vsel %vm5365, %v8910, %v9841
        %v10764 = vsel %vm5365, %v8911, %v9843
        %v10765 = vsel %vm5365, %v8912, %v9845
        %v10766 = vsel %vm5365, %v8913, %v9847
        %v10767 = vsel %vm5365, %v8914, %v9849
        %v10768 = vsel %vm5365, %v8915, %v9851
        %v10769 = vsel %vm5365, %v8916, %v9853
        %v10770 = vsel %vm5365, %v8917, %v9855
        %v10771 = vsel %vm5365, %v8918, %v9857
        %v10772 = vsel %vm5365, %v8919, %v9859
        %v10773 = vsel %vm5365, %v8920, %v9861
        %v10774 = vsel %vm5365, %v8921, %v9863
        %v10775 = vsel %vm5365, %v8922, %v9865
        %v10776 = vsel %vm5365, %v8923, %v9867
        %v10777 = vsel %vm5365, %v8924, %v9869
        %v10778 = vsel %vm5365, %v8925, %v9871
        %v10779 = vsel %vm5365, %v8926, %v9873
        %v10780 = vsel %vm5365, %v8927, %v9875
        %v10781 = vsel %vm5365, %v8928, %v9877
        %v10782 = vsel %vm5365, %v8929, %v9879
        %v10783 = vsel %vm5365, %v8930, %v9881
        %v10784 = vsel %vm5365, %v8931, %v9883
        %v10785 = vsel %vm5365, %v8932, %v9885
        %v10786 = vsel %vm5365, %v8933, %v9887
        %v10787 = vsel %vm5365, %v8934, %v9889
        %v10788 = vsel %vm5365, %v8935, %v9891
        %v10789 = vsel %vm5365, %v8936, %v9893
        %v10790 = vsel %vm5365, %v8937, %v9895
        %v10791 = vsel %vm5365, %v8938, %v9897
        %v10792 = vsel %vm5365, %v8939, %v9899
        %v10793 = vsel %vm5365, %v8940, %v9901
        %v10794 = vsel %vm5365, %v8941, %v9903
        %v10795 = vsel %vm5365, %v8942, %v9905
        %v10796 = vsel %vm5365, %v8943, %v9907
        %v10797 = vsel %vm5365, %v8944, %v9909
        %v10798 = vsel %vm5365, %v8945, %v9911
        %v10799 = vsel %vm5365, %v8946, %v9913
        %v10800 = vsel %vm5365, %v8947, %v9915
        %v10801 = vsel %vm5365, %v8948, %v9917
        %v10802 = vsel %vm5365, %v8949, %v9919
        %v10803 = vsel %vm5365, %v8950, %v9921
        %v10804 = vsel %vm5365, %v8951, %v9923
        %v10805 = vsel %vm5365, %v8952, %v9925
        %v10806 = vsel %vm5365, %v8953, %v9927
        %v10807 = vsel %vm5365, %v8954, %v9929
        %v10808 = vsel %vm5365, %v8955, %v9931
        %v10809 = vsel %vm5365, %v8956, %v9933
        %v10810 = vsel %vm5365, %v8957, %v9935
        %v10811 = vsel %vm5365, %v8958, %v9937
        %v10812 = vsel %vm5365, %v8959, %v9939
        %v10813 = vsel %vm5365, %v8960, %v9941
        %v10814 = vsel %vm5365, %v8961, %v9943
        %v10815 = vsel %vm5365, %v8962, %v9945
        %v10816 = vsel %vm5365, %v8963, %v9947
        %v10817 = vsel %vm5365, %v8964, %v9949
        %v10818 = vsel %vm5365, %v8965, %v9951
        %v10819 = vsel %vm5365, %v8966, %v9953
        %v10820 = vsel %vm5365, %v8967, %v9955
        %v10821 = vsel %vm5365, %v8968, %v9957
        %v10822 = vsel %vm5365, %v8969, %v9959
        %v10823 = vsel %vm5365, %v8970, %v9961
        %v10824 = vsel %vm5365, %v8971, %v9963
        %v10825 = vsel %vm5365, %v8972, %v9965
        %v10826 = vsel %vm5365, %v8973, %v9967
        %v10827 = vsel %vm5365, %v8974, %v9969
        %v10828 = vsel %vm5365, %v8975, %v9971
        %v10829 = vsel %vm5365, %v8976, %v9973
        %v10830 = vsel %vm5365, %v8977, %v9975
        %v10831 = vsel %vm5365, %v8978, %v9977
        %v10832 = vsel %vm5365, %v8979, %v9979
        %v10833 = vsel %vm5365, %v8980, %v9981
        %v10834 = vsel %vm5591, %v10759, %v10067
        %v10835 = vsel %vm5591, %v10760, %v10069
        %v10836 = vsel %vm5591, %v10761, %v10071
        %v10837 = vsel %vm5591, %v10762, %v10073
        %v10838 = vsel %vm5591, %v10763, %v10075
        %v10839 = vsel %vm5591, %v10764, %v10077
        %v10840 = vsel %vm5591, %v10765, %v10079
        %v10841 = vsel %vm5591, %v10766, %v10081
        %v10842 = vsel %vm5591, %v10767, %v10083
        %v10843 = vsel %vm5591, %v10768, %v10085
        %v10844 = vsel %vm5591, %v10769, %v10087
        %v10845 = vsel %vm5591, %v10770, %v10089
        %v10846 = vsel %vm5591, %v10771, %v10091
        %v10847 = vsel %vm5591, %v10772, %v10093
        %v10848 = vsel %vm5591, %v10773, %v10095
        %v10849 = vsel %vm5591, %v10774, %v10097
        %v10850 = vsel %vm5591, %v10775, %v10099
        %v10851 = vsel %vm5591, %v10776, %v10101
        %v10852 = vsel %vm5591, %v10777, %v10103
        %v10853 = vsel %vm5591, %v10778, %v10105
        %v10854 = vsel %vm5591, %v10779, %v10107
        %v10855 = vsel %vm5591, %v10780, %v10109
        %v10856 = vsel %vm5591, %v10781, %v10111
        %v10857 = vsel %vm5591, %v10782, %v10113
        %v10858 = vsel %vm5591, %v10783, %v10115
        %v10859 = vsel %vm5591, %v10784, %v10117
        %v10860 = vsel %vm5591, %v10785, %v10119
        %v10861 = vsel %vm5591, %v10786, %v10121
        %v10862 = vsel %vm5591, %v10787, %v10123
        %v10863 = vsel %vm5591, %v10788, %v10125
        %v10864 = vsel %vm5591, %v10789, %v10127
        %v10865 = vsel %vm5591, %v10790, %v10129
        %v10866 = vsel %vm5591, %v10791, %v10131
        %v10867 = vsel %vm5591, %v10792, %v10133
        %v10868 = vsel %vm5591, %v10793, %v10135
        %v10869 = vsel %vm5591, %v10794, %v10137
        %v10870 = vsel %vm5591, %v10795, %v10139
        %v10871 = vsel %vm5591, %v10796, %v10141
        %v10872 = vsel %vm5591, %v10797, %v10143
        %v10873 = vsel %vm5591, %v10798, %v10145
        %v10874 = vsel %vm5591, %v10799, %v10147
        %v10875 = vsel %vm5591, %v10800, %v10149
        %v10876 = vsel %vm5591, %v10801, %v10151
        %v10877 = vsel %vm5591, %v10802, %v10153
        %v10878 = vsel %vm5591, %v10803, %v10155
        %v10879 = vsel %vm5591, %v10804, %v10157
        %v10880 = vsel %vm5591, %v10805, %v10159
        %v10881 = vsel %vm5591, %v10806, %v10161
        %v10882 = vsel %vm5591, %v10807, %v10163
        %v10883 = vsel %vm5591, %v10808, %v10165
        %v10884 = vsel %vm5591, %v10809, %v10167
        %v10885 = vsel %vm5591, %v10810, %v10169
        %v10886 = vsel %vm5591, %v10811, %v10171
        %v10887 = vsel %vm5591, %v10812, %v10173
        %v10888 = vsel %vm5591, %v10813, %v10175
        %v10889 = vsel %vm5591, %v10814, %v10177
        %v10890 = vsel %vm5591, %v10815, %v10179
        %v10891 = vsel %vm5591, %v10816, %v10181
        %v10892 = vsel %vm5591, %v10817, %v10183
        %v10893 = vsel %vm5591, %v10818, %v10185
        %v10894 = vsel %vm5591, %v10819, %v10187
        %v10895 = vsel %vm5591, %v10820, %v10189
        %v10896 = vsel %vm5591, %v10821, %v10191
        %v10897 = vsel %vm5591, %v10822, %v10193
        %v10898 = vsel %vm5591, %v10823, %v10195
        %v10899 = vsel %vm5591, %v10824, %v10197
        %v10900 = vsel %vm5591, %v10825, %v10199
        %v10901 = vsel %vm5591, %v10826, %v10201
        %v10902 = vsel %vm5591, %v10827, %v10203
        %v10903 = vsel %vm5591, %v10828, %v10205
        %v10904 = vsel %vm5591, %v10829, %v10207
        %v10905 = vsel %vm5591, %v10830, %v10209
        %v10906 = vsel %vm5591, %v10831, %v10211
        %v10907 = vsel %vm5591, %v10832, %v10213
        %v10908 = vsel %vm5591, %v10833, %v10215
        %vm10909 = vcmask 982016
        %v10910 = vsel %vm10909, %v10834, %v10301
        %v10911 = vsel %vm10909, %v10835, %v10303
        %v10912 = vsel %vm10909, %v10836, %v10305
        %v10913 = vsel %vm10909, %v10837, %v10307
        %v10914 = vsel %vm10909, %v10838, %v10309
        %v10915 = vsel %vm10909, %v10839, %v10311
        %v10916 = vsel %vm10909, %v10840, %v10313
        %v10917 = vsel %vm10909, %v10841, %v10315
        %v10918 = vsel %vm10909, %v10842, %v10317
        %v10919 = vsel %vm10909, %v10843, %v10319
        %v10920 = vsel %vm10909, %v10844, %v10321
        %v10921 = vsel %vm10909, %v10845, %v10323
        %v10922 = vsel %vm10909, %v10846, %v10325
        %v10923 = vsel %vm10909, %v10847, %v10327
        %v10924 = vsel %vm10909, %v10848, %v10329
        %v10925 = vsel %vm10909, %v10849, %v10331
        %v10926 = vsel %vm10909, %v10850, %v10333
        %v10927 = vsel %vm10909, %v10851, %v10335
        %v10928 = vsel %vm10909, %v10852, %v10337
        %v10929 = vsel %vm10909, %v10853, %v10339
        %v10930 = vsel %vm10909, %v10854, %v10341
        %v10931 = vsel %vm10909, %v10855, %v10343
        %v10932 = vsel %vm10909, %v10856, %v10345
        %v10933 = vsel %vm10909, %v10857, %v10347
        %v10934 = vsel %vm10909, %v10858, %v10349
        %v10935 = vsel %vm10909, %v10859, %v10351
        %v10936 = vsel %vm10909, %v10860, %v10353
        %v10937 = vsel %vm10909, %v10861, %v10355
        %v10938 = vsel %vm10909, %v10862, %v10357
        %v10939 = vsel %vm10909, %v10863, %v10359
        %v10940 = vsel %vm10909, %v10864, %v10361
        %v10941 = vsel %vm10909, %v10865, %v10363
        %v10942 = vsel %vm10909, %v10866, %v10365
        %v10943 = vsel %vm10909, %v10867, %v10367
        %v10944 = vsel %vm10909, %v10868, %v10369
        %v10945 = vsel %vm10909, %v10869, %v10371
        %v10946 = vsel %vm10909, %v10870, %v10373
        %v10947 = vsel %vm10909, %v10871, %v10375
        %v10948 = vsel %vm10909, %v10872, %v10377
        %v10949 = vsel %vm10909, %v10873, %v10379
        %v10950 = vsel %vm10909, %v10874, %v10381
        %v10951 = vsel %vm10909, %v10875, %v10383
        %v10952 = vsel %vm10909, %v10876, %v10385
        %v10953 = vsel %vm10909, %v10877, %v10387
        %v10954 = vsel %vm10909, %v10878, %v10389
        %v10955 = vsel %vm10909, %v10879, %v10391
        %v10956 = vsel %vm10909, %v10880, %v10393
        %v10957 = vsel %vm10909, %v10881, %v10395
        %v10958 = vsel %vm10909, %v10882, %v10397
        %v10959 = vsel %vm10909, %v10883, %v10399
        %v10960 = vsel %vm10909, %v10884, %v10401
        %v10961 = vsel %vm10909, %v10885, %v10403
        %v10962 = vsel %vm10909, %v10886, %v10405
        %v10963 = vsel %vm10909, %v10887, %v10407
        %v10964 = vsel %vm10909, %v10888, %v10409
        %v10965 = vsel %vm10909, %v10889, %v10411
        %v10966 = vsel %vm10909, %v10890, %v10413
        %v10967 = vsel %vm10909, %v10891, %v10415
        %v10968 = vsel %vm10909, %v10892, %v10417
        %v10969 = vsel %vm10909, %v10893, %v10419
        %v10970 = vsel %vm10909, %v10894, %v10421
        %v10971 = vsel %vm10909, %v10895, %v10423
        %v10972 = vsel %vm10909, %v10896, %v10425
        %v10973 = vsel %vm10909, %v10897, %v10427
        %v10974 = vsel %vm10909, %v10898, %v10429
        %v10975 = vsel %vm10909, %v10899, %v10431
        %v10976 = vsel %vm10909, %v10900, %v10433
        %v10977 = vsel %vm10909, %v10901, %v10435
        %v10978 = vsel %vm10909, %v10902, %v10437
        %v10979 = vsel %vm10909, %v10903, %v10439
        %v10980 = vsel %vm10909, %v10904, %v10441
        %v10981 = vsel %vm10909, %v10905, %v10443
        %v10982 = vsel %vm10909, %v10906, %v10445
        %v10983 = vsel %vm10909, %v10907, %v10447
        %v10984 = vsel %vm10909, %v10908, %v10449
        %v10985 = vsel %vm8905, %v10301, %v10535
        %v10986 = vsel %vm8905, %v10303, %v10537
        %v10987 = vsel %vm8905, %v10305, %v10539
        %v10988 = vsel %vm8905, %v10307, %v10541
        %v10989 = vsel %vm8905, %v10309, %v10543
        %v10990 = vsel %vm8905, %v10311, %v10545
        %v10991 = vsel %vm8905, %v10313, %v10547
        %v10992 = vsel %vm8905, %v10315, %v10549
        %v10993 = vsel %vm8905, %v10317, %v10551
        %v10994 = vsel %vm8905, %v10319, %v10553
        %v10995 = vsel %vm8905, %v10321, %v10555
        %v10996 = vsel %vm8905, %v10323, %v10557
        %v10997 = vsel %vm8905, %v10325, %v10559
        %v10998 = vsel %vm8905, %v10327, %v10561
        %v10999 = vsel %vm8905, %v10329, %v10563
        %v11000 = vsel %vm8905, %v10331, %v10565
        %v11001 = vsel %vm8905, %v10333, %v10567
        %v11002 = vsel %vm8905, %v10335, %v10569
        %v11003 = vsel %vm8905, %v10337, %v10571
        %v11004 = vsel %vm8905, %v10339, %v10573
        %v11005 = vsel %vm8905, %v10341, %v10575
        %v11006 = vsel %vm8905, %v10343, %v10577
        %v11007 = vsel %vm8905, %v10345, %v10579
        %v11008 = vsel %vm8905, %v10347, %v10581
        %v11009 = vsel %vm8905, %v10349, %v10583
        %v11010 = vsel %vm8905, %v10351, %v10585
        %v11011 = vsel %vm8905, %v10353, %v10587
        %v11012 = vsel %vm8905, %v10355, %v10589
        %v11013 = vsel %vm8905, %v10357, %v10591
        %v11014 = vsel %vm8905, %v10359, %v10593
        %v11015 = vsel %vm8905, %v10361, %v10595
        %v11016 = vsel %vm8905, %v10363, %v10597
        %v11017 = vsel %vm8905, %v10365, %v10599
        %v11018 = vsel %vm8905, %v10367, %v10601
        %v11019 = vsel %vm8905, %v10369, %v10603
        %v11020 = vsel %vm8905, %v10371, %v10605
        %v11021 = vsel %vm8905, %v10373, %v10607
        %v11022 = vsel %vm8905, %v10375, %v10609
        %v11023 = vsel %vm8905, %v10377, %v10611
        %v11024 = vsel %vm8905, %v10379, %v10613
        %v11025 = vsel %vm8905, %v10381, %v10615
        %v11026 = vsel %vm8905, %v10383, %v10617
        %v11027 = vsel %vm8905, %v10385, %v10619
        %v11028 = vsel %vm8905, %v10387, %v10621
        %v11029 = vsel %vm8905, %v10389, %v10623
        %v11030 = vsel %vm8905, %v10391, %v10625
        %v11031 = vsel %vm8905, %v10393, %v10627
        %v11032 = vsel %vm8905, %v10395, %v10629
        %v11033 = vsel %vm8905, %v10397, %v10631
        %v11034 = vsel %vm8905, %v10399, %v10633
        %v11035 = vsel %vm8905, %v10401, %v10635
        %v11036 = vsel %vm8905, %v10403, %v10637
        %v11037 = vsel %vm8905, %v10405, %v10639
        %v11038 = vsel %vm8905, %v10407, %v10641
        %v11039 = vsel %vm8905, %v10409, %v10643
        %v11040 = vsel %vm8905, %v10411, %v10645
        %v11041 = vsel %vm8905, %v10413, %v10647
        %v11042 = vsel %vm8905, %v10415, %v10649
        %v11043 = vsel %vm8905, %v10417, %v10651
        %v11044 = vsel %vm8905, %v10419, %v10653
        %v11045 = vsel %vm8905, %v10421, %v10655
        %v11046 = vsel %vm8905, %v10423, %v10657
        %v11047 = vsel %vm8905, %v10425, %v10659
        %v11048 = vsel %vm8905, %v10427, %v10661
        %v11049 = vsel %vm8905, %v10429, %v10663
        %v11050 = vsel %vm8905, %v10431, %v10665
        %v11051 = vsel %vm8905, %v10433, %v10667
        %v11052 = vsel %vm8905, %v10435, %v10669
        %v11053 = vsel %vm8905, %v10437, %v10671
        %v11054 = vsel %vm8905, %v10439, %v10673
        %v11055 = vsel %vm8905, %v10441, %v10675
        %v11056 = vsel %vm8905, %v10443, %v10677
        %v11057 = vsel %vm8905, %v10445, %v10679
        %v11058 = vsel %vm8905, %v10447, %v10681
        %v11059 = vsel %vm8905, %v10449, %v10683
        %v11060 = vld [vmem:[%s3] sm:$0xf]
        %v11061 = vld [vmem:[%s3 + $0x4] sm:$0xf]
        %v11062 = vld [vmem:[%s3 + $0x8] sm:$0xf]
        %v11063 = vld [vmem:[%s3 + $0xc] sm:$0xf]
        %v11064 = vld [vmem:[%s3 + $0x10] sm:$0xf]
        %v11065 = vld [vmem:[%s3 + $0x14] sm:$0xf]
        %v11066 = vld [vmem:[%s3 + $0x18] sm:$0xf]
        %v11067 = vld [vmem:[%s3 + $0x1c] sm:$0xf]
        %v11068 = vld [vmem:[%s3 + $0x20] sm:$0xf]
        %v11069 = vld [vmem:[%s3 + $0x24] sm:$0xf]
        %v11070 = vld [vmem:[%s3 + $0x28] sm:$0xf]
        %v11071 = vld [vmem:[%s3 + $0x2c] sm:$0xf]
        %v11072 = vld [vmem:[%s3 + $0x30] sm:$0xf]
        %v11073 = vld [vmem:[%s3 + $0x34] sm:$0xf]
        %v11074 = vld [vmem:[%s3 + $0x38] sm:$0xf]
        %v11075 = vld [vmem:[%s3 + $0x3c] sm:$0xf]
        %v11076 = vld [vmem:[%s3 + $0x40] sm:$0xf]
        %v11077 = vld [vmem:[%s3 + $0x44] sm:$0xf]
        %v11078 = vld [vmem:[%s3 + $0x48] sm:$0xf]
        %v11079 = vld [vmem:[%s3 + $0x4c] sm:$0xf]
        %v11080 = vld [vmem:[%s3 + $0x50] sm:$0xf]
        %v11081 = vld [vmem:[%s3 + $0x54] sm:$0xf]
        %v11082 = vld [vmem:[%s3 + $0x58] sm:$0xf]
        %v11083 = vld [vmem:[%s3 + $0x5c] sm:$0xf]
        %v11084 = vld [vmem:[%s3 + $0x60] sm:$0xf]
        %v11085 = vpack.c.bf16 %v10911, %v10910
        %v11086 = vpack.c.bf16 %v10986, %v10985
        %v11087 = vpack.c.bf16 %v10913, %v10912
        %v11088 = vpack.c.bf16 %v10988, %v10987
        %v11089 = vpack.c.bf16 %v10915, %v10914
        %v11090 = vpack.c.bf16 %v10990, %v10989
        %v11091 = vpack.c.bf16 %v10917, %v10916
        %v11092 = vpack.c.bf16 %v10992, %v10991
        %v11093 = vpack.c.bf16 %v10919, %v10918
        %v11094 = vpack.c.bf16 %v10994, %v10993
        %v11095 = vpack.c.bf16 %v10921, %v10920
        %v11096 = vpack.c.bf16 %v10996, %v10995
        %v11097 = vpack.c.bf16 %v10923, %v10922
        %v11098 = vpack.c.bf16 %v10998, %v10997
        %v11099 = vpack.c.bf16 %v10925, %v10924
        %v11100 = vpack.c.bf16 %v11000, %v10999
        %v11101 = vpack.c.bf16 %v10927, %v10926
        %v11102 = vpack.c.bf16 %v11002, %v11001
        %v11103 = vpack.c.bf16 %v10929, %v10928
        %v11104 = vpack.c.bf16 %v11004, %v11003
        %v11105 = vpack.c.bf16 %v10931, %v10930
        %v11106 = vpack.c.bf16 %v11006, %v11005
        %v11107 = vpack.c.bf16 %v10933, %v10932
        %v11108 = vpack.c.bf16 %v11008, %v11007
        %v11109 = vpack.c.bf16 %v10935, %v10934
        %v11110 = vpack.c.bf16 %v11010, %v11009
        %v11111 = vpack.c.bf16 %v10937, %v10936
        %v11112 = vpack.c.bf16 %v11012, %v11011
        %v11113 = vpack.c.bf16 %v10939, %v10938
        %v11114 = vpack.c.bf16 %v11014, %v11013
        %v11115 = vpack.c.bf16 %v10941, %v10940
        %v11116 = vpack.c.bf16 %v11016, %v11015
        %v11117 = vpack.c.bf16 %v10943, %v10942
        %v11118 = vpack.c.bf16 %v11018, %v11017
        %v11119 = vpack.c.bf16 %v10945, %v10944
        %v11120 = vpack.c.bf16 %v11020, %v11019
        %v11121 = vpack.c.bf16 %v10947, %v10946
        %v11122 = vpack.c.bf16 %v11022, %v11021
        %v11123 = vpack.c.bf16 %v10949, %v10948
        %v11124 = vpack.c.bf16 %v11024, %v11023
        %v11125 = vpack.c.bf16 %v10951, %v10950
        %v11126 = vpack.c.bf16 %v11026, %v11025
        %v11127 = vpack.c.bf16 %v10953, %v10952
        %v11128 = vpack.c.bf16 %v11028, %v11027
        %v11129 = vpack.c.bf16 %v10955, %v10954
        %v11130 = vpack.c.bf16 %v11030, %v11029
        %v11131 = vpack.c.bf16 %v10957, %v10956
        %v11132 = vpack.c.bf16 %v11032, %v11031
        %v11133 = vpack.c.bf16 %v10959, %v10958
        %v11134 = vpack.c.bf16 %v11034, %v11033
        %v11135 = vpack.c.bf16 %v10961, %v10960
        %v11136 = vpack.c.bf16 %v11036, %v11035
        %v11137 = vpack.c.bf16 %v10963, %v10962
        %v11138 = vpack.c.bf16 %v11038, %v11037
        %v11139 = vpack.c.bf16 %v10965, %v10964
        %v11140 = vpack.c.bf16 %v11040, %v11039
        %v11141 = vpack.c.bf16 %v10967, %v10966
        %v11142 = vpack.c.bf16 %v11042, %v11041
        %v11143 = vpack.c.bf16 %v10969, %v10968
        %v11144 = vpack.c.bf16 %v11044, %v11043
        %v11145 = vpack.c.bf16 %v10971, %v10970
        %v11146 = vpack.c.bf16 %v11046, %v11045
        %v11147 = vpack.c.bf16 %v10973, %v10972
        %v11148 = vpack.c.bf16 %v11048, %v11047
        %v11149 = vpack.c.bf16 %v10975, %v10974
        %v11150 = vpack.c.bf16 %v11050, %v11049
        %v11151 = vpack.c.bf16 %v10977, %v10976
        %v11152 = vpack.c.bf16 %v11052, %v11051
        %v11153 = vpack.c.bf16 %v10979, %v10978
        %v11154 = vpack.c.bf16 %v11054, %v11053
        %v11155 = vpack.c.bf16 %v10981, %v10980
        %v11156 = vpack.c.bf16 %v11056, %v11055
        %v11157 = vpack.c.bf16 %v10983, %v10982
        %v11158 = vpack.c.bf16 %v11058, %v11057
        %v11159 = vpack.c.bf16 %v10984, %v10984
        %v11160 = vpack.c.bf16 %v11059, %v11059
        %v11161 = vld [vmem:[%s4] sm:$0x1]
        %v11163 = vlaneseq
        %v11164 = vshrl.u32 %v11163, 7
        %v11165 = vsub.s32 0, %v11164
        %v11166 = vrot.slane %v11161, %v11165
        %v11193 = vunpack.c.l.b16 %v11060
        %v11194 = vunpack.c.l.b16 %v11061
        %v11195 = vunpack.c.l.b16 %v11062
        %v11196 = vunpack.c.l.b16 %v11063
        %v11197 = vunpack.c.l.b16 %v11064
        %v11198 = vunpack.c.l.b16 %v11065
        %v11199 = vunpack.c.l.b16 %v11066
        %v11200 = vunpack.c.l.b16 %v11067
        %v11201 = vunpack.c.l.b16 %v11068
        %v11202 = vunpack.c.l.b16 %v11069
        %v11203 = vunpack.c.l.b16 %v11070
        %v11204 = vunpack.c.l.b16 %v11071
        %v11205 = vunpack.c.l.b16 %v11072
        %v11206 = vunpack.c.l.b16 %v11073
        %v11207 = vunpack.c.l.b16 %v11074
        %v11208 = vunpack.c.l.b16 %v11075
        %v11209 = vunpack.c.l.b16 %v11076
        %v11210 = vunpack.c.l.b16 %v11077
        %v11211 = vunpack.c.l.b16 %v11078
        %v11212 = vunpack.c.l.b16 %v11079
        %v11213 = vunpack.c.l.b16 %v11080
        %v11214 = vunpack.c.l.b16 %v11081
        %v11215 = vunpack.c.l.b16 %v11082
        %v11216 = vunpack.c.l.b16 %v11083
        %v11217 = vunpack.c.l.b16 %v11084
        %v11218 = vpack.c.b16 %v11194, %v11193
        %v11219 = vpack.c.b16 %v11196, %v11195
        %v11220 = vpack.c.b16 %v11198, %v11197
        %v11221 = vpack.c.b16 %v11200, %v11199
        %v11222 = vpack.c.b16 %v11202, %v11201
        %v11223 = vpack.c.b16 %v11204, %v11203
        %v11224 = vpack.c.b16 %v11206, %v11205
        %v11225 = vpack.c.b16 %v11208, %v11207
        %v11226 = vpack.c.b16 %v11210, %v11209
        %v11227 = vpack.c.b16 %v11212, %v11211
        %v11228 = vpack.c.b16 %v11214, %v11213
        %v11229 = vpack.c.b16 %v11216, %v11215
        %v11230 = vpack.c.b16 %v11217, %v11217
        %vm11243 = vcmask 588800
        %v11245 = vsel %vm11243, %v11086, 0
        %v11248 = vsel %vm11243, %v11088, 0
        %v11251 = vsel %vm11243, %v11090, 0
        %v11254 = vsel %vm11243, %v11092, 0
        %v11257 = vsel %vm11243, %v11094, 0
        %v11260 = vsel %vm11243, %v11096, 0
        %v11263 = vsel %vm11243, %v11098, 0
        %v11266 = vsel %vm11243, %v11100, 0
        %v11269 = vsel %vm11243, %v11102, 0
        %v11272 = vsel %vm11243, %v11104, 0
        %v11275 = vsel %vm11243, %v11106, 0
        %v11278 = vsel %vm11243, %v11108, 0
        %v11281 = vsel %vm11243, %v11110, 0
        %v11284 = vsel %vm11243, %v11112, 0
        %v11287 = vsel %vm11243, %v11114, 0
        %v11290 = vsel %vm11243, %v11116, 0
        %v11293 = vsel %vm11243, %v11118, 0
        %v11296 = vsel %vm11243, %v11120, 0
        %v11299 = vsel %vm11243, %v11122, 0
        %v11302 = vsel %vm11243, %v11124, 0
        %v11305 = vsel %vm11243, %v11126, 0
        %v11308 = vsel %vm11243, %v11128, 0
        %v11311 = vsel %vm11243, %v11130, 0
        %v11314 = vsel %vm11243, %v11132, 0
        %v11317 = vsel %vm11243, %v11134, 0
        %v11320 = vsel %vm11243, %v11136, 0
        %v11323 = vsel %vm11243, %v11138, 0
        %v11326 = vsel %vm11243, %v11140, 0
        %v11329 = vsel %vm11243, %v11142, 0
        %v11332 = vsel %vm11243, %v11144, 0
        %v11335 = vsel %vm11243, %v11146, 0
        %v11338 = vsel %vm11243, %v11148, 0
        %v11341 = vsel %vm11243, %v11150, 0
        %v11344 = vsel %vm11243, %v11152, 0
        %v11347 = vsel %vm11243, %v11154, 0
        %v11350 = vsel %vm11243, %v11156, 0
        %v11353 = vsel %vm11243, %v11158, 0
        %v11356 = vsel %vm11243, %v11160, 0
        %v11359 = vsel %vm2305, %v11230, 0
        %11361 = vmatprep.subr.bf16.mxu0 0
        %11362 = vmatpush1.bf16.msra.mxu0 %v11225
        %11363 = vmatprep.subr.bf16.mxu0 0
        %11364 = vmatpush1.bf16.msra.mxu0 %v11224
        %11365 = vmatprep.subr.bf16.mxu0 0
        %11366 = vmatpush1.bf16.msra.mxu0 %v11223
        %11367 = vmatprep.subr.bf16.mxu0 0
        %11368 = vmatpush1.bf16.msra.mxu0 %v11222
        %11369 = vmatprep.subr.bf16.mxu0 0
        %11370 = vmatpush1.bf16.msra.mxu0 %v11221
        %11371 = vmatprep.subr.bf16.mxu0 0
        %11372 = vmatpush1.bf16.msra.mxu0 %v11220
        %11373 = vmatprep.subr.bf16.mxu0 0
        %11374 = vmatpush1.bf16.msra.mxu0 %v11219
        %11375 = vmatprep.subr.bf16.mxu0 0
        %11376 = vmatpush1.bf16.msra.mxu0 %v11218
        %11377 = vmatprep.subr.bf16.mxu0 0
        %11378 = vmatpush2.bf16.msra.mxu0 0
        %11379 = vmatprep.subr.bf16.mxu0 0
        %11380 = vmatpush2.bf16.msra.mxu0 0
        %11381 = vmatprep.subr.bf16.mxu0 0
        %11382 = vmatpush2.bf16.msra.mxu0 0
        %11383 = vmatprep.subr.bf16.mxu0 0
        %11384 = vmatpush2.bf16.msra.mxu0 %v11359
        %11385 = vmatprep.subr.bf16.mxu0 0
        %11386 = vmatpush2.bf16.msra.mxu0 %v11229
        %11387 = vmatprep.subr.bf16.mxu0 0
        %11388 = vmatpush2.bf16.msra.mxu0 %v11228
        %11389 = vmatprep.subr.bf16.mxu0 0
        %11390 = vmatpush2.bf16.msra.mxu0 %v11227
        %11391 = vmatprep.subr.bf16.mxu0 0
        %11392 = vmatpush2.bf16.msra.mxu0 %v11226
        %11393 = vmatprep.mubr.bf16.mxu0 %v11245
        %11394 = vmatmul.mubr.bf16.gmra.mxu0 %v11085
        %v11395 = vpop.f32.mrf.mxu0
        %v11396 = vadd.f32 %v11166, %v11395
        %v11397 = vpop.f32.mrf.mxu0
        %v11398 = vpop.f32.mrf.mxu0
        %v11399 = vadd.f32 %v11166, %v11398
        %v11400 = vpop.f32.mrf.mxu0
        %11401 = vmatprep.mubr.bf16.mxu0 %v11248
        %11402 = vmatmul.mubr.bf16.gmra.mxu0 %v11087
        %v11403 = vpop.f32.mrf.mxu0
        %v11404 = vadd.f32 %v11166, %v11403
        %v11405 = vpop.f32.mrf.mxu0
        %v11406 = vpop.f32.mrf.mxu0
        %v11407 = vadd.f32 %v11166, %v11406
        %v11408 = vpop.f32.mrf.mxu0
        %11409 = vmatprep.mubr.bf16.mxu0 %v11251
        %11410 = vmatmul.mubr.bf16.gmra.mxu0 %v11089
        %v11411 = vpop.f32.mrf.mxu0
        %v11412 = vpop.f32.mrf.mxu0
        %v11413 = vpop.f32.mrf.mxu0
        %v11414 = vpop.f32.mrf.mxu0
        %11415 = vmatprep.mubr.bf16.mxu0 %v11254
        %11416 = vmatmul.mubr.bf16.gmra.mxu0 %v11091
        %v11417 = vpop.f32.mrf.mxu0
        %v11418 = vpop.f32.mrf.mxu0
        %v11419 = vpop.f32.mrf.mxu0
        %v11420 = vpop.f32.mrf.mxu0
        %11421 = vmatprep.mubr.bf16.mxu0 %v11257
        %11422 = vmatmul.mubr.bf16.gmra.mxu0 %v11093
        %v11423 = vpop.f32.mrf.mxu0
        %v11424 = vadd.f32 %v11166, %v11423
        %v11425 = vpop.f32.mrf.mxu0
        %v11426 = vpop.f32.mrf.mxu0
        %v11427 = vadd.f32 %v11166, %v11426
        %v11428 = vpop.f32.mrf.mxu0
        %11429 = vmatprep.mubr.bf16.mxu0 %v11260
        %11430 = vmatmul.mubr.bf16.gmra.mxu0 %v11095
        %v11431 = vpop.f32.mrf.mxu0
        %v11432 = vadd.f32 %v11166, %v11431
        %v11433 = vpop.f32.mrf.mxu0
        %v11434 = vpop.f32.mrf.mxu0
        %v11435 = vadd.f32 %v11166, %v11434
        %v11436 = vpop.f32.mrf.mxu0
        %11437 = vmatprep.mubr.bf16.mxu0 %v11263
        %11438 = vmatmul.mubr.bf16.gmra.mxu0 %v11097
        %v11439 = vpop.f32.mrf.mxu0
        %v11440 = vpop.f32.mrf.mxu0
        %v11441 = vpop.f32.mrf.mxu0
        %v11442 = vpop.f32.mrf.mxu0
        %11443 = vmatprep.mubr.bf16.mxu0 %v11266
        %11444 = vmatmul.mubr.bf16.gmra.mxu0 %v11099
        %v11445 = vpop.f32.mrf.mxu0
        %v11446 = vpop.f32.mrf.mxu0
        %v11447 = vpop.f32.mrf.mxu0
        %v11448 = vpop.f32.mrf.mxu0
        %11449 = vmatprep.mubr.bf16.mxu0 %v11269
        %11450 = vmatmul.mubr.bf16.gmra.mxu0 %v11101
        %v11451 = vpop.f32.mrf.mxu0
        %v11452 = vadd.f32 %v11166, %v11451
        %v11453 = vpop.f32.mrf.mxu0
        %v11454 = vpop.f32.mrf.mxu0
        %v11455 = vadd.f32 %v11166, %v11454
        %v11456 = vpop.f32.mrf.mxu0
        %11457 = vmatprep.mubr.bf16.mxu0 %v11272
        %11458 = vmatmul.mubr.bf16.gmra.mxu0 %v11103
        %v11459 = vpop.f32.mrf.mxu0
        %v11460 = vadd.f32 %v11166, %v11459
        %v11461 = vpop.f32.mrf.mxu0
        %v11462 = vpop.f32.mrf.mxu0
        %v11463 = vadd.f32 %v11166, %v11462
        %v11464 = vpop.f32.mrf.mxu0
        %11465 = vmatprep.mubr.bf16.mxu0 %v11275
        %11466 = vmatmul.mubr.bf16.gmra.mxu0 %v11105
        %v11467 = vpop.f32.mrf.mxu0
        %v11468 = vpop.f32.mrf.mxu0
        %v11469 = vpop.f32.mrf.mxu0
        %v11470 = vpop.f32.mrf.mxu0
        %11471 = vmatprep.mubr.bf16.mxu0 %v11278
        %11472 = vmatmul.mubr.bf16.gmra.mxu0 %v11107
        %v11473 = vpop.f32.mrf.mxu0
        %v11474 = vpop.f32.mrf.mxu0
        %v11475 = vpop.f32.mrf.mxu0
        %v11476 = vpop.f32.mrf.mxu0
        %11477 = vmatprep.mubr.bf16.mxu0 %v11281
        %11478 = vmatmul.mubr.bf16.gmra.mxu0 %v11109
        %v11479 = vpop.f32.mrf.mxu0
        %v11480 = vadd.f32 %v11166, %v11479
        %v11481 = vpop.f32.mrf.mxu0
        %v11482 = vpop.f32.mrf.mxu0
        %v11483 = vadd.f32 %v11166, %v11482
        %v11484 = vpop.f32.mrf.mxu0
        %11485 = vmatprep.mubr.bf16.mxu0 %v11284
        %11486 = vmatmul.mubr.bf16.gmra.mxu0 %v11111
        %v11487 = vpop.f32.mrf.mxu0
        %v11488 = vadd.f32 %v11166, %v11487
        %v11489 = vpop.f32.mrf.mxu0
        %v11490 = vpop.f32.mrf.mxu0
        %v11491 = vadd.f32 %v11166, %v11490
        %v11492 = vpop.f32.mrf.mxu0
        %11493 = vmatprep.mubr.bf16.mxu0 %v11287
        %11494 = vmatmul.mubr.bf16.gmra.mxu0 %v11113
        %v11495 = vpop.f32.mrf.mxu0
        %v11496 = vpop.f32.mrf.mxu0
        %v11497 = vpop.f32.mrf.mxu0
        %v11498 = vpop.f32.mrf.mxu0
        %11499 = vmatprep.mubr.bf16.mxu0 %v11290
        %11500 = vmatmul.mubr.bf16.gmra.mxu0 %v11115
        %v11501 = vpop.f32.mrf.mxu0
        %v11502 = vpop.f32.mrf.mxu0
        %v11503 = vpop.f32.mrf.mxu0
        %v11504 = vpop.f32.mrf.mxu0
        %11505 = vmatprep.mubr.bf16.mxu0 %v11293
        %11506 = vmatmul.mubr.bf16.gmra.mxu0 %v11117
        %v11507 = vpop.f32.mrf.mxu0
        %v11508 = vadd.f32 %v11166, %v11507
        %v11509 = vpop.f32.mrf.mxu0
        %v11510 = vpop.f32.mrf.mxu0
        %v11511 = vadd.f32 %v11166, %v11510
        %v11512 = vpop.f32.mrf.mxu0
        %11513 = vmatprep.mubr.bf16.mxu0 %v11296
        %11514 = vmatmul.mubr.bf16.gmra.mxu0 %v11119
        %v11515 = vpop.f32.mrf.mxu0
        %v11516 = vadd.f32 %v11166, %v11515
        %v11517 = vpop.f32.mrf.mxu0
        %v11518 = vpop.f32.mrf.mxu0
        %v11519 = vadd.f32 %v11166, %v11518
        %v11520 = vpop.f32.mrf.mxu0
        %11521 = vmatprep.mubr.bf16.mxu0 %v11299
        %11522 = vmatmul.mubr.bf16.gmra.mxu0 %v11121
        %v11523 = vpop.f32.mrf.mxu0
        %v11524 = vpop.f32.mrf.mxu0
        %v11525 = vpop.f32.mrf.mxu0
        %v11526 = vpop.f32.mrf.mxu0
        %11527 = vmatprep.mubr.bf16.mxu0 %v11302
        %11528 = vmatmul.mubr.bf16.gmra.mxu0 %v11123
        %v11529 = vpop.f32.mrf.mxu0
        %v11530 = vpop.f32.mrf.mxu0
        %v11531 = vpop.f32.mrf.mxu0
        %v11532 = vpop.f32.mrf.mxu0
        %11533 = vmatprep.mubr.bf16.mxu0 %v11305
        %11534 = vmatmul.mubr.bf16.gmra.mxu0 %v11125
        %v11535 = vpop.f32.mrf.mxu0
        %v11536 = vadd.f32 %v11166, %v11535
        %v11537 = vpop.f32.mrf.mxu0
        %v11538 = vpop.f32.mrf.mxu0
        %v11539 = vadd.f32 %v11166, %v11538
        %v11540 = vpop.f32.mrf.mxu0
        %11541 = vmatprep.mubr.bf16.mxu0 %v11308
        %11542 = vmatmul.mubr.bf16.gmra.mxu0 %v11127
        %v11543 = vpop.f32.mrf.mxu0
        %v11544 = vadd.f32 %v11166, %v11543
        %v11545 = vpop.f32.mrf.mxu0
        %v11546 = vpop.f32.mrf.mxu0
        %v11547 = vadd.f32 %v11166, %v11546
        %v11548 = vpop.f32.mrf.mxu0
        %11549 = vmatprep.mubr.bf16.mxu0 %v11311
        %11550 = vmatmul.mubr.bf16.gmra.mxu0 %v11129
        %v11551 = vpop.f32.mrf.mxu0
        %v11552 = vpop.f32.mrf.mxu0
        %v11553 = vpop.f32.mrf.mxu0
        %v11554 = vpop.f32.mrf.mxu0
        %11555 = vmatprep.mubr.bf16.mxu0 %v11314
        %11556 = vmatmul.mubr.bf16.gmra.mxu0 %v11131
        %v11557 = vpop.f32.mrf.mxu0
        %v11558 = vpop.f32.mrf.mxu0
        %v11559 = vpop.f32.mrf.mxu0
        %v11560 = vpop.f32.mrf.mxu0
        %11561 = vmatprep.mubr.bf16.mxu0 %v11317
        %11562 = vmatmul.mubr.bf16.gmra.mxu0 %v11133
        %v11563 = vpop.f32.mrf.mxu0
        %v11564 = vadd.f32 %v11166, %v11563
        %v11565 = vpop.f32.mrf.mxu0
        %v11566 = vpop.f32.mrf.mxu0
        %v11567 = vadd.f32 %v11166, %v11566
        %v11568 = vpop.f32.mrf.mxu0
        %11569 = vmatprep.mubr.bf16.mxu0 %v11320
        %11570 = vmatmul.mubr.bf16.gmra.mxu0 %v11135
        %v11571 = vpop.f32.mrf.mxu0
        %v11572 = vadd.f32 %v11166, %v11571
        %v11573 = vpop.f32.mrf.mxu0
        %v11574 = vpop.f32.mrf.mxu0
        %v11575 = vadd.f32 %v11166, %v11574
        %v11576 = vpop.f32.mrf.mxu0
        %11577 = vmatprep.mubr.bf16.mxu0 %v11323
        %11578 = vmatmul.mubr.bf16.gmra.mxu0 %v11137
        %v11579 = vpop.f32.mrf.mxu0
        %v11580 = vpop.f32.mrf.mxu0
        %v11581 = vpop.f32.mrf.mxu0
        %v11582 = vpop.f32.mrf.mxu0
        %11583 = vmatprep.mubr.bf16.mxu0 %v11326
        %11584 = vmatmul.mubr.bf16.gmra.mxu0 %v11139
        %v11585 = vpop.f32.mrf.mxu0
        %v11586 = vpop.f32.mrf.mxu0
        %v11587 = vpop.f32.mrf.mxu0
        %v11588 = vpop.f32.mrf.mxu0
        %11589 = vmatprep.mubr.bf16.mxu0 %v11329
        %11590 = vmatmul.mubr.bf16.gmra.mxu0 %v11141
        %v11591 = vpop.f32.mrf.mxu0
        %v11592 = vadd.f32 %v11166, %v11591
        %v11593 = vpop.f32.mrf.mxu0
        %v11594 = vpop.f32.mrf.mxu0
        %v11595 = vadd.f32 %v11166, %v11594
        %v11596 = vpop.f32.mrf.mxu0
        %11597 = vmatprep.mubr.bf16.mxu0 %v11332
        %11598 = vmatmul.mubr.bf16.gmra.mxu0 %v11143
        %v11599 = vpop.f32.mrf.mxu0
        %v11600 = vadd.f32 %v11166, %v11599
        %v11601 = vpop.f32.mrf.mxu0
        %v11602 = vpop.f32.mrf.mxu0
        %v11603 = vadd.f32 %v11166, %v11602
        %v11604 = vpop.f32.mrf.mxu0
        %11605 = vmatprep.mubr.bf16.mxu0 %v11335
        %11606 = vmatmul.mubr.bf16.gmra.mxu0 %v11145
        %v11607 = vpop.f32.mrf.mxu0
        %v11608 = vpop.f32.mrf.mxu0
        %v11609 = vpop.f32.mrf.mxu0
        %v11610 = vpop.f32.mrf.mxu0
        %11611 = vmatprep.mubr.bf16.mxu0 %v11338
        %11612 = vmatmul.mubr.bf16.gmra.mxu0 %v11147
        %v11613 = vpop.f32.mrf.mxu0
        %v11614 = vpop.f32.mrf.mxu0
        %v11615 = vpop.f32.mrf.mxu0
        %v11616 = vpop.f32.mrf.mxu0
        %11617 = vmatprep.mubr.bf16.mxu0 %v11341
        %11618 = vmatmul.mubr.bf16.gmra.mxu0 %v11149
        %v11619 = vpop.f32.mrf.mxu0
        %v11620 = vadd.f32 %v11166, %v11619
        %v11621 = vpop.f32.mrf.mxu0
        %v11622 = vpop.f32.mrf.mxu0
        %v11623 = vadd.f32 %v11166, %v11622
        %v11624 = vpop.f32.mrf.mxu0
        %11625 = vmatprep.mubr.bf16.mxu0 %v11344
        %11626 = vmatmul.mubr.bf16.gmra.mxu0 %v11151
        %v11627 = vpop.f32.mrf.mxu0
        %v11628 = vadd.f32 %v11166, %v11627
        %v11629 = vpop.f32.mrf.mxu0
        %v11630 = vpop.f32.mrf.mxu0
        %v11631 = vpop.f32.mrf.mxu0
        %11632 = vmatprep.mubr.bf16.mxu0 %v11347
        %11633 = vmatmul.mubr.bf16.gmra.mxu0 %v11153
        %v11634 = vpop.f32.mrf.mxu0
        %v11635 = vpop.f32.mrf.mxu0
        %v11636 = vpop.f32.mrf.mxu0
        %v11637 = vpop.f32.mrf.mxu0
        %11638 = vmatprep.mubr.bf16.mxu0 %v11350
        %11639 = vmatmul.mubr.bf16.gmra.mxu0 %v11155
        %v11640 = vpop.f32.mrf.mxu0
        %v11641 = vpop.f32.mrf.mxu0
        %v11642 = vpop.f32.mrf.mxu0
        %v11643 = vpop.f32.mrf.mxu0
        %11644 = vmatprep.mubr.bf16.mxu0 %v11353
        %11645 = vmatmul.mubr.bf16.gmra.mxu0 %v11157
        %v11646 = vpop.f32.mrf.mxu0
        %v11647 = vadd.f32 %v11166, %v11646
        %v11648 = vpop.f32.mrf.mxu0
        %v11649 = vpop.f32.mrf.mxu0
        %v11650 = vadd.f32 %v11166, %v11649
        %v11651 = vpop.f32.mrf.mxu0
        %11652 = vmatprep.mubr.bf16.mxu0 %v11356
        %11653 = vmatmul.mubr.bf16.gmra.mxu0 %v11159
        %v11654 = vpop.f32.mrf.mxu0
        %v11655 = vadd.f32 %v11166, %v11654
        %v11656 = vpop.f32.mrf.mxu0
        %v11657 = vpop.f32.mrf.mxu0
        %v11658 = vpop.f32.mrf.mxu0
        %11659 = vdwg.mxu0
        %v11660 = vmax.f32 %v11396, 0.0
        %v11661 = vmax.f32 %v11399, 0.0
        %v11662 = vmax.f32 %v11404, 0.0
        %v11663 = vmax.f32 %v11407, 0.0
        %v11664 = vmax.f32 %v11424, 0.0
        %v11665 = vmax.f32 %v11427, 0.0
        %v11666 = vmax.f32 %v11432, 0.0
        %v11667 = vmax.f32 %v11435, 0.0
        %v11668 = vmax.f32 %v11452, 0.0
        %v11669 = vmax.f32 %v11455, 0.0
        %v11670 = vmax.f32 %v11460, 0.0
        %v11671 = vmax.f32 %v11463, 0.0
        %v11672 = vmax.f32 %v11480, 0.0
        %v11673 = vmax.f32 %v11483, 0.0
        %v11674 = vmax.f32 %v11488, 0.0
        %v11675 = vmax.f32 %v11491, 0.0
        %v11676 = vmax.f32 %v11508, 0.0
        %v11677 = vmax.f32 %v11511, 0.0
        %v11678 = vmax.f32 %v11516, 0.0
        %v11679 = vmax.f32 %v11519, 0.0
        %v11680 = vmax.f32 %v11536, 0.0
        %v11681 = vmax.f32 %v11539, 0.0
        %v11682 = vmax.f32 %v11544, 0.0
        %v11683 = vmax.f32 %v11547, 0.0
        %v11684 = vmax.f32 %v11564, 0.0
        %v11685 = vmax.f32 %v11567, 0.0
        %v11686 = vmax.f32 %v11572, 0.0
        %v11687 = vmax.f32 %v11575, 0.0
        %v11688 = vmax.f32 %v11592, 0.0
        %v11689 = vmax.f32 %v11595, 0.0
        %v11690 = vmax.f32 %v11600, 0.0
        %v11691 = vmax.f32 %v11603, 0.0
        %v11692 = vmax.f32 %v11620, 0.0
        %v11693 = vmax.f32 %v11623, 0.0
        %v11694 = vmax.f32 %v11628, 0.0
        %v11695 = vmax.f32 %v11647, 0.0
        %v11696 = vmax.f32 %v11650, 0.0
        %v11697 = vmax.f32 %v11655, 0.0
        %v11717 = vrot.slane %v11660, 2
        %v11718 = vrot.slane %v11661, 2
        %v11719 = vsel %vm1185, %v11717, %v11718
        %v11720 = vrot.slane %v11662, 2
        %v11721 = vsel %vm1185, %v11718, %v11720
        %v11722 = vrot.slane %v11663, 2
        %v11723 = vsel %vm1185, %v11720, %v11722
        %v11724 = vrot.slane %v11668, 2
        %v11725 = vrot.slane %v11669, 2
        %v11726 = vsel %vm1185, %v11724, %v11725
        %v11727 = vrot.slane %v11670, 2
        %v11728 = vsel %vm1185, %v11725, %v11727
        %v11729 = vrot.slane %v11671, 2
        %v11730 = vsel %vm1185, %v11727, %v11729
        %v11731 = vrot.slane %v11676, 2
        %v11732 = vrot.slane %v11677, 2
        %v11733 = vsel %vm1185, %v11731, %v11732
        %v11734 = vrot.slane %v11678, 2
        %v11735 = vsel %vm1185, %v11732, %v11734
        %v11736 = vrot.slane %v11679, 2
        %v11737 = vsel %vm1185, %v11734, %v11736
        %v11738 = vrot.slane %v11684, 2
        %v11739 = vrot.slane %v11685, 2
        %v11740 = vsel %vm1185, %v11738, %v11739
        %v11741 = vrot.slane %v11686, 2
        %v11742 = vsel %vm1185, %v11739, %v11741
        %v11743 = vrot.slane %v11687, 2
        %v11744 = vsel %vm1185, %v11741, %v11743
        %v11745 = vrot.slane %v11692, 2
        %v11746 = vrot.slane %v11693, 2
        %v11747 = vsel %vm1185, %v11745, %v11746
        %v11748 = vrot.slane %v11694, 2
        %v11749 = vsel %vm1185, %v11746, %v11748
        %v11765 = vmax.f32 %v11660, %v11719
        %v11766 = vmax.f32 %v11661, %v11721
        %v11767 = vmax.f32 %v11662, %v11723
        %v11768 = vmax.f32 %v11668, %v11726
        %v11769 = vmax.f32 %v11669, %v11728
        %v11770 = vmax.f32 %v11670, %v11730
        %v11771 = vmax.f32 %v11676, %v11733
        %v11772 = vmax.f32 %v11677, %v11735
        %v11773 = vmax.f32 %v11678, %v11737
        %v11774 = vmax.f32 %v11684, %v11740
        %v11775 = vmax.f32 %v11685, %v11742
        %v11776 = vmax.f32 %v11686, %v11744
        %v11777 = vmax.f32 %v11692, %v11747
        %v11778 = vmax.f32 %v11693, %v11749
        %v11779 = vmax.f32 %v11694, %v11748
        %v11799 = vrot.slane %v11664, 2
        %v11800 = vrot.slane %v11665, 2
        %v11801 = vsel %vm1185, %v11799, %v11800
        %v11802 = vrot.slane %v11666, 2
        %v11803 = vsel %vm1185, %v11800, %v11802
        %v11804 = vrot.slane %v11667, 2
        %v11805 = vsel %vm1185, %v11802, %v11804
        %v11806 = vrot.slane %v11672, 2
        %v11807 = vrot.slane %v11673, 2
        %v11808 = vsel %vm1185, %v11806, %v11807
        %v11809 = vrot.slane %v11674, 2
        %v11810 = vsel %vm1185, %v11807, %v11809
        %v11811 = vrot.slane %v11675, 2
        %v11812 = vsel %vm1185, %v11809, %v11811
        %v11813 = vrot.slane %v11680, 2
        %v11814 = vrot.slane %v11681, 2
        %v11815 = vsel %vm1185, %v11813, %v11814
        %v11816 = vrot.slane %v11682, 2
        %v11817 = vsel %vm1185, %v11814, %v11816
        %v11818 = vrot.slane %v11683, 2
        %v11819 = vsel %vm1185, %v11816, %v11818
        %v11820 = vrot.slane %v11688, 2
        %v11821 = vrot.slane %v11689, 2
        %v11822 = vsel %vm1185, %v11820, %v11821
        %v11823 = vrot.slane %v11690, 2
        %v11824 = vsel %vm1185, %v11821, %v11823
        %v11825 = vrot.slane %v11691, 2
        %v11826 = vsel %vm1185, %v11823, %v11825
        %v11827 = vrot.slane %v11695, 2
        %v11828 = vrot.slane %v11696, 2
        %v11829 = vsel %vm1185, %v11827, %v11828
        %v11830 = vrot.slane %v11697, 2
        %v11831 = vsel %vm1185, %v11828, %v11830
        %v11847 = vmax.f32 %v11664, %v11801
        %v11848 = vmax.f32 %v11665, %v11803
        %v11849 = vmax.f32 %v11666, %v11805
        %v11850 = vmax.f32 %v11672, %v11808
        %v11851 = vmax.f32 %v11673, %v11810
        %v11852 = vmax.f32 %v11674, %v11812
        %v11853 = vmax.f32 %v11680, %v11815
        %v11854 = vmax.f32 %v11681, %v11817
        %v11855 = vmax.f32 %v11682, %v11819
        %v11856 = vmax.f32 %v11688, %v11822
        %v11857 = vmax.f32 %v11689, %v11824
        %v11858 = vmax.f32 %v11690, %v11826
        %v11859 = vmax.f32 %v11695, %v11829
        %v11860 = vmax.f32 %v11696, %v11831
        %v11861 = vmax.f32 %v11697, %v11830
        %v11862 = vmax.f32 %v11765, %v11847
        %v11863 = vmax.f32 %v11766, %v11848
        %v11864 = vmax.f32 %v11767, %v11849
        %v11865 = vmax.f32 %v11768, %v11850
        %v11866 = vmax.f32 %v11769, %v11851
        %v11867 = vmax.f32 %v11770, %v11852
        %v11868 = vmax.f32 %v11771, %v11853
        %v11869 = vmax.f32 %v11772, %v11854
        %v11870 = vmax.f32 %v11773, %v11855
        %v11871 = vmax.f32 %v11774, %v11856
        %v11872 = vmax.f32 %v11775, %v11857
        %v11873 = vmax.f32 %v11776, %v11858
        %v11874 = vmax.f32 %v11777, %v11859
        %v11875 = vmax.f32 %v11778, %v11860
        %v11876 = vmax.f32 %v11779, %v11861
        %v11878 = vrot.slane %v11862, 4
        %11879 = vrot.lane.b32.xlu0 %v11878, 16
        %v11880 = vpop.permute.xlu0 %11879
        %11883 = vrot.lane.b32.xlu0 %v11863, 32
        %v11884 = vpop.permute.xlu0 %11883
        %v11886 = vrot.slane %v11863, 4
        %11887 = vrot.lane.b32.xlu0 %v11886, 48
        %v11888 = vpop.permute.xlu0 %11887
        %11891 = vrot.lane.b32.xlu0 %v11864, 64
        %v11892 = vpop.permute.xlu0 %11891
        %11895 = vrot.lane.b32.xlu0 %v11865, 80
        %v11896 = vpop.permute.xlu0 %11895
        %v11898 = vrot.slane %v11865, 4
        %11899 = vrot.lane.b32.xlu0 %v11898, 96
        %v11900 = vpop.permute.xlu0 %11899
        %11903 = vrot.lane.b32.xlu0 %v11866, 112
        %v11904 = vpop.permute.xlu0 %11903
        %v11906 = vrot.slane %v11866, 4
        %11909 = vrot.lane.b32.xlu0 %v11867, 16
        %v11910 = vpop.permute.xlu0 %11909
        %11913 = vrot.lane.b32.xlu0 %v11868, 32
        %v11914 = vpop.permute.xlu0 %11913
        %v11916 = vrot.slane %v11868, 4
        %11917 = vrot.lane.b32.xlu0 %v11916, 48
        %v11918 = vpop.permute.xlu0 %11917
        %11921 = vrot.lane.b32.xlu0 %v11869, 64
        %v11922 = vpop.permute.xlu0 %11921
        %v11924 = vrot.slane %v11869, 4
        %11925 = vrot.lane.b32.xlu0 %v11924, 80
        %v11926 = vpop.permute.xlu0 %11925
        %11929 = vrot.lane.b32.xlu0 %v11870, 96
        %v11930 = vpop.permute.xlu0 %11929
        %11933 = vrot.lane.b32.xlu0 %v11871, 112
        %v11934 = vpop.permute.xlu0 %11933
        %v11936 = vsel %vm3204, %v11862, %v11880
        %v11937 = vsel %vm8905, %v11936, %v11884
        %vm11938 = vcmask 392192
        %v11939 = vsel %vm11938, %v11937, %v11888
        %vm11940 = vcmask 523264
        %v11941 = vsel %vm11940, %v11939, %v11892
        %v11942 = vsel %vm5591, %v11941, %v11896
        %vm11943 = vcmask 785408
        %v11944 = vsel %vm11943, %v11942, %v11900
        %vm11945 = vcmask 916480
        %v11946 = vsel %vm11945, %v11944, %v11904
        %v11947 = vsel %vm3204, %v11906, %v11910
        %v11948 = vsel %vm8905, %v11947, %v11914
        %v11949 = vsel %vm11938, %v11948, %v11918
        %v11950 = vsel %vm11940, %v11949, %v11922
        %v11951 = vsel %vm5591, %v11950, %v11926
        %v11952 = vsel %vm11943, %v11951, %v11930
        %v11953 = vsel %vm11945, %v11952, %v11934
        %v11955 = vrot.slane %v11872, 4
        %11956 = vrot.lane.b32.xlu0 %v11955, 16
        %v11957 = vpop.permute.xlu0 %11956
        %11959 = vrot.lane.b32.xlu0 %v11872, 32
        %v11960 = vpop.permute.xlu0 %11959
        %v11963 = vrot.slane %v11873, 4
        %11964 = vrot.lane.b32.xlu0 %v11963, 48
        %v11965 = vpop.permute.xlu0 %11964
        %v11968 = vrot.slane %v11874, 4
        %11969 = vrot.lane.b32.xlu0 %v11968, 64
        %v11970 = vpop.permute.xlu0 %11969
        %11972 = vrot.lane.b32.xlu0 %v11874, 80
        %v11973 = vpop.permute.xlu0 %11972
        %v11976 = vrot.slane %v11875, 4
        %11977 = vrot.lane.b32.xlu0 %v11976, 96
        %v11978 = vpop.permute.xlu0 %11977
        %11980 = vrot.lane.b32.xlu0 %v11875, 112
        %v11981 = vpop.permute.xlu0 %11980
        %v11984 = vrot.slane %v11876, 4
        %v11985 = vsel %vm3204, %v11871, %v11957
        %v11986 = vsel %vm8905, %v11985, %v11960
        %v11987 = vsel %vm11938, %v11986, %v11965
        %v11988 = vsel %vm11940, %v11987, %v11970
        %v11989 = vsel %vm5591, %v11988, %v11973
        %v11990 = vsel %vm11943, %v11989, %v11978
        %v11991 = vsel %vm11945, %v11990, %v11981
        %v11993 = vrot.slane %v11991, 4
        %v11994 = vrot.slane %v11984, 4
        %v11997 = vld [vmem:[%s5] sm:$0xf]
        %v11998 = vld [vmem:[%s5 + $0x4] sm:$0xf]
        %v11999 = vld [vmem:[%s5 + $0x8] sm:$0xf]
        %v12000 = vld [vmem:[%s5 + $0xc] sm:$0xf]
        %v12001 = vld [vmem:[%s5 + $0x10] sm:$0xf]
        %v12002 = vld [vmem:[%s5 + $0x14] sm:$0xf]
        %v12003 = vld [vmem:[%s5 + $0x18] sm:$0xf]
        %v12004 = vld [vmem:[%s5 + $0x1c] sm:$0xf]
        %v12005 = vld [vmem:[%s5 + $0x20] sm:$0xf]
        %v12006 = vld [vmem:[%s5 + $0x24] sm:$0xf]
        %v12007 = vld [vmem:[%s5 + $0x28] sm:$0xf]
        %v12008 = vld [vmem:[%s5 + $0x2c] sm:$0xf]
        %v12009 = vld [vmem:[%s5 + $0x30] sm:$0xf]
        %v12010 = vld [vmem:[%s5 + $0x34] sm:$0xf]
        %v12011 = vld [vmem:[%s5 + $0x38] sm:$0xf]
        %v12012 = vld [vmem:[%s5 + $0x3c] sm:$0xf]
        %v12013 = vld [vmem:[%s5 + $0x40] sm:$0xf]
        %v12014 = vld [vmem:[%s5 + $0x44] sm:$0xf]
        %v12015 = vld [vmem:[%s5 + $0x48] sm:$0xf]
        %v12016 = vld [vmem:[%s5 + $0x4c] sm:$0xf]
        %v12017 = vld [vmem:[%s5 + $0x50] sm:$0xf]
        %v12018 = vld [vmem:[%s5 + $0x54] sm:$0xf]
        %v12019 = vld [vmem:[%s5 + $0x58] sm:$0xf]
        %v12020 = vld [vmem:[%s5 + $0x5c] sm:$0xf]
        %v12021 = vld [vmem:[%s5 + $0x60] sm:$0xf]
        %v12022 = vld [vmem:[%s5 + $0x64] sm:$0xf]
        %v12023 = vld [vmem:[%s5 + $0x68] sm:$0xf]
        %v12024 = vld [vmem:[%s5 + $0x6c] sm:$0xf]
        %v12025 = vld [vmem:[%s5 + $0x70] sm:$0xf]
        %v12026 = vld [vmem:[%s5 + $0x74] sm:$0xf]
        %v12027 = vld [vmem:[%s5 + $0x78] sm:$0xf]
        %v12028 = vld [vmem:[%s5 + $0x7c] sm:$0xf]
        %v12029 = vld [vmem:[%s5 + $0x80] sm:$0xf]
        %v12030 = vld [vmem:[%s5 + $0x84] sm:$0xf]
        %v12031 = vld [vmem:[%s5 + $0x88] sm:$0xf]
        %v12032 = vld [vmem:[%s5 + $0x8c] sm:$0xf]
        %v12033 = vld [vmem:[%s5 + $0x90] sm:$0xf]
        %v12034 = vld [vmem:[%s5 + $0x94] sm:$0xf]
        %v12035 = vld [vmem:[%s5 + $0x98] sm:$0xf]
        %v12036 = vld [vmem:[%s5 + $0x9c] sm:$0xf]
        %v12037 = vld [vmem:[%s5 + $0xa0] sm:$0xf]
        %v12038 = vld [vmem:[%s5 + $0xa4] sm:$0xf]
        %v12039 = vld [vmem:[%s5 + $0xa8] sm:$0xf]
        %v12040 = vld [vmem:[%s5 + $0xac] sm:$0xf]
        %v12041 = vld [vmem:[%s5 + $0xb0] sm:$0xf]
        %v12042 = vld [vmem:[%s5 + $0xb4] sm:$0xf]
        %v12043 = vld [vmem:[%s5 + $0xb8] sm:$0xf]
        %v12044 = vld [vmem:[%s5 + $0xbc] sm:$0xf]
        %v12045 = vld [vmem:[%s5 + $0xc0] sm:$0xf]
        %v12046 = vld [vmem:[%s5 + $0xc4] sm:$0xf]
        %v12047 = vpack.c.bf16 %v11946, %v11946
        %v12048 = vpack.c.bf16 %v11953, %v11953
        %v12049 = vpack.c.bf16 %v11993, %v11993
        %v12050 = vpack.c.bf16 %v11994, %v11994
        %v12051 = vld [vmem:[%s6] sm:$0x1]
        %v12102 = vunpack.c.l.b16 %v11997
        %v12103 = vunpack.c.l.b16 %v11998
        %v12104 = vunpack.c.l.b16 %v11999
        %v12105 = vunpack.c.l.b16 %v12000
        %v12106 = vunpack.c.l.b16 %v12001
        %v12107 = vunpack.c.l.b16 %v12002
        %v12108 = vunpack.c.l.b16 %v12003
        %v12109 = vunpack.c.l.b16 %v12004
        %v12110 = vunpack.c.l.b16 %v12005
        %v12111 = vunpack.c.l.b16 %v12006
        %v12112 = vunpack.c.l.b16 %v12007
        %v12113 = vunpack.c.l.b16 %v12008
        %v12114 = vunpack.c.l.b16 %v12009
        %v12115 = vunpack.c.l.b16 %v12010
        %v12116 = vunpack.c.l.b16 %v12011
        %v12117 = vunpack.c.l.b16 %v12012
        %v12118 = vunpack.c.l.b16 %v12013
        %v12119 = vunpack.c.l.b16 %v12014
        %v12120 = vunpack.c.l.b16 %v12015
        %v12121 = vunpack.c.l.b16 %v12016
        %v12122 = vunpack.c.l.b16 %v12017
        %v12123 = vunpack.c.l.b16 %v12018
        %v12124 = vunpack.c.l.b16 %v12019
        %v12125 = vunpack.c.l.b16 %v12020
        %v12126 = vunpack.c.l.b16 %v12021
        %v12127 = vunpack.c.l.b16 %v12022
        %v12128 = vunpack.c.l.b16 %v12023
        %v12129 = vunpack.c.l.b16 %v12024
        %v12130 = vunpack.c.l.b16 %v12025
        %v12131 = vunpack.c.l.b16 %v12026
        %v12132 = vunpack.c.l.b16 %v12027
        %v12133 = vunpack.c.l.b16 %v12028
        %v12134 = vunpack.c.l.b16 %v12029
        %v12135 = vunpack.c.l.b16 %v12030
        %v12136 = vunpack.c.l.b16 %v12031
        %v12137 = vunpack.c.l.b16 %v12032
        %v12138 = vunpack.c.l.b16 %v12033
        %v12139 = vunpack.c.l.b16 %v12034
        %v12140 = vunpack.c.l.b16 %v12035
        %v12141 = vunpack.c.l.b16 %v12036
        %v12142 = vunpack.c.l.b16 %v12037
        %v12143 = vunpack.c.l.b16 %v12038
        %v12144 = vunpack.c.l.b16 %v12039
        %v12145 = vunpack.c.l.b16 %v12040
        %v12146 = vunpack.c.l.b16 %v12041
        %v12147 = vunpack.c.l.b16 %v12042
        %v12148 = vunpack.c.l.b16 %v12043
        %v12149 = vunpack.c.l.b16 %v12044
        %v12150 = vunpack.c.l.b16 %v12045
        %v12151 = vunpack.c.l.b16 %v12046
        %v12152 = vpack.c.b16 %v12103, %v12102
        %v12153 = vpack.c.b16 %v12105, %v12104
        %v12154 = vpack.c.b16 %v12107, %v12106
        %v12155 = vpack.c.b16 %v12109, %v12108
        %v12156 = vpack.c.b16 %v12111, %v12110
        %v12157 = vpack.c.b16 %v12113, %v12112
        %v12158 = vpack.c.b16 %v12115, %v12114
        %v12159 = vpack.c.b16 %v12117, %v12116
        %v12160 = vpack.c.b16 %v12119, %v12118
        %v12161 = vpack.c.b16 %v12121, %v12120
        %v12162 = vpack.c.b16 %v12123, %v12122
        %v12163 = vpack.c.b16 %v12125, %v12124
        %v12164 = vpack.c.b16 %v12127, %v12126
        %v12165 = vpack.c.b16 %v12129, %v12128
        %v12166 = vpack.c.b16 %v12131, %v12130
        %v12167 = vpack.c.b16 %v12133, %v12132
        %v12168 = vpack.c.b16 %v12135, %v12134
        %v12169 = vpack.c.b16 %v12137, %v12136
        %v12170 = vpack.c.b16 %v12139, %v12138
        %v12171 = vpack.c.b16 %v12141, %v12140
        %v12172 = vpack.c.b16 %v12143, %v12142
        %v12173 = vpack.c.b16 %v12145, %v12144
        %v12174 = vpack.c.b16 %v12147, %v12146
        %v12175 = vpack.c.b16 %v12149, %v12148
        %v12176 = vpack.c.b16 %v12151, %v12150
        %v12203 = vsel %vm3204, %v12050, 0
        %12205 = vmatprep.subr.bf16.mxu0 0
        %12206 = vmatpush1.bf16.msra.mxu0 %v12159
        %12207 = vmatprep.subr.bf16.mxu0 0
        %12208 = vmatpush1.bf16.msra.mxu0 %v12158
        %12209 = vmatprep.subr.bf16.mxu0 0
        %12210 = vmatpush1.bf16.msra.mxu0 %v12157
        %12211 = vmatprep.subr.bf16.mxu0 0
        %12212 = vmatpush1.bf16.msra.mxu0 %v12156
        %12213 = vmatprep.subr.bf16.mxu0 0
        %12214 = vmatpush1.bf16.msra.mxu0 %v12155
        %12215 = vmatprep.subr.bf16.mxu0 0
        %12216 = vmatpush1.bf16.msra.mxu0 %v12154
        %12217 = vmatprep.subr.bf16.mxu0 0
        %12218 = vmatpush1.bf16.msra.mxu0 %v12153
        %12219 = vmatprep.subr.bf16.mxu0 0
        %12220 = vmatpush1.bf16.msra.mxu0 %v12152
        %12221 = vmatprep.subr.bf16.mxu0 0
        %12222 = vmatpush2.bf16.msra.mxu0 %v12167
        %12223 = vmatprep.subr.bf16.mxu0 0
        %12224 = vmatpush2.bf16.msra.mxu0 %v12166
        %12225 = vmatprep.subr.bf16.mxu0 0
        %12226 = vmatpush2.bf16.msra.mxu0 %v12165
        %12227 = vmatprep.subr.bf16.mxu0 0
        %12228 = vmatpush2.bf16.msra.mxu0 %v12164
        %12229 = vmatprep.subr.bf16.mxu0 0
        %12230 = vmatpush2.bf16.msra.mxu0 %v12163
        %12231 = vmatprep.subr.bf16.mxu0 0
        %12232 = vmatpush2.bf16.msra.mxu0 %v12162
        %12233 = vmatprep.subr.bf16.mxu0 0
        %12234 = vmatpush2.bf16.msra.mxu0 %v12161
        %12235 = vmatprep.subr.bf16.mxu0 0
        %12236 = vmatpush2.bf16.msra.mxu0 %v12160
        %12237 = vmatprep.mubr.bf16.mxu0 %v12048
        %12238 = vmatmul.mubr.bf16.gmra.mxu0 %v12047
        %v12239 = vpop.f32.mrf.mxu0
        %v12240 = vadd.f32 %v12051, %v12239
        %v12241 = vpop.f32.mrf.mxu0
        %v12242 = vpop.f32.mrf.mxu0
        %v12243 = vpop.f32.mrf.mxu0
        %12244 = vdwg.mxu0
        %12245 = vmatprep.subr.bf16.mxu0 0
        %12246 = vmatpush1.bf16.msra.mxu0 %v12175
        %12247 = vmatprep.subr.bf16.mxu0 0
        %12248 = vmatpush1.bf16.msra.mxu0 %v12174
        %12249 = vmatprep.subr.bf16.mxu0 0
        %12250 = vmatpush1.bf16.msra.mxu0 %v12173
        %12251 = vmatprep.subr.bf16.mxu0 0
        %12252 = vmatpush1.bf16.msra.mxu0 %v12172
        %12253 = vmatprep.subr.bf16.mxu0 0
        %12254 = vmatpush1.bf16.msra.mxu0 %v12171
        %12255 = vmatprep.subr.bf16.mxu0 0
        %12256 = vmatpush1.bf16.msra.mxu0 %v12170
        %12257 = vmatprep.subr.bf16.mxu0 0
        %12258 = vmatpush1.bf16.msra.mxu0 %v12169
        %12259 = vmatprep.subr.bf16.mxu0 0
        %12260 = vmatpush1.bf16.msra.mxu0 %v12168
        %12261 = vmatprep.subr.bf16.mxu0 0
        %12262 = vmatpush2.bf16.msra.mxu0 0
        %12263 = vmatprep.subr.bf16.mxu0 0
        %12264 = vmatpush2.bf16.msra.mxu0 0
        %12265 = vmatprep.subr.bf16.mxu0 0
        %12266 = vmatpush2.bf16.msra.mxu0 0
        %12267 = vmatprep.subr.bf16.mxu0 0
        %12268 = vmatpush2.bf16.msra.mxu0 0
        %12269 = vmatprep.subr.bf16.mxu0 0
        %12270 = vmatpush2.bf16.msra.mxu0 0
        %12271 = vmatprep.subr.bf16.mxu0 0
        %12272 = vmatpush2.bf16.msra.mxu0 0
        %12273 = vmatprep.subr.bf16.mxu0 0
        %12274 = vmatpush2.bf16.msra.mxu0 0
        %12275 = vmatprep.subr.bf16.mxu0 0
        %12276 = vmatpush2.bf16.msra.mxu0 %v12176
        %12277 = vmatprep.mubr.bf16.mxu0 %v12203
        %12278 = vmatmul.mubr.bf16.gmra.mxu0 %v12049
        %v12279 = vpop.f32.mrf.mxu0
        %v12280 = vadd.f32 %v12240, %v12279
        %v12281 = vpop.f32.mrf.mxu0
        %v12282 = vpop.f32.mrf.mxu0
        %v12283 = vpop.f32.mrf.mxu0
        %12284 = vdwg.mxu0
        %v12285 = vmax.f32 %v12280, 0.0
        %v12286 = vld [vmem:[%s7] sm:$0xf]
        %v12287 = vld [vmem:[%s7 + $0x4] sm:$0xf]
        %v12288 = vld [vmem:[%s7 + $0x8] sm:$0xf]
        %v12289 = vld [vmem:[%s7 + $0xc] sm:$0xf]
        %v12290 = vld [vmem:[%s7 + $0x10] sm:$0xf]
        %v12291 = vld [vmem:[%s7 + $0x14] sm:$0xf]
        %v12292 = vld [vmem:[%s7 + $0x18] sm:$0xf]
        %v12293 = vld [vmem:[%s7 + $0x1c] sm:$0xf]
        %v12294 = vld [vmem:[%s7 + $0x20] sm:$0xf]
        %v12295 = vld [vmem:[%s7 + $0x24] sm:$0xf]
        %v12296 = vld [vmem:[%s7 + $0x28] sm:$0xf]
        %v12297 = vld [vmem:[%s7 + $0x2c] sm:$0xf]
        %v12298 = vld [vmem:[%s7 + $0x30] sm:$0xf]
        %v12299 = vld [vmem:[%s7 + $0x34] sm:$0xf]
        %v12300 = vld [vmem:[%s7 + $0x38] sm:$0xf]
        %v12301 = vld [vmem:[%s7 + $0x3c] sm:$0xf]
        %v12302 = vpack.c.bf16 %v12285, %v12285
        %v12303 = vld [vmem:[%s8] sm:$0x1]
        %v12320 = vunpack.c.l.b16 %v12286
        %v12321 = vunpack.c.l.b16 %v12287
        %v12322 = vunpack.c.l.b16 %v12288
        %v12323 = vunpack.c.l.b16 %v12289
        %v12324 = vunpack.c.l.b16 %v12290
        %v12325 = vunpack.c.l.b16 %v12291
        %v12326 = vunpack.c.l.b16 %v12292
        %v12327 = vunpack.c.l.b16 %v12293
        %v12328 = vunpack.c.l.b16 %v12294
        %v12329 = vunpack.c.l.b16 %v12295
        %v12330 = vunpack.c.l.b16 %v12296
        %v12331 = vunpack.c.l.b16 %v12297
        %v12332 = vunpack.c.l.b16 %v12298
        %v12333 = vunpack.c.l.b16 %v12299
        %v12334 = vunpack.c.l.b16 %v12300
        %v12335 = vunpack.c.l.b16 %v12301
        %v12336 = vpack.c.b16 %v12321, %v12320
        %v12337 = vpack.c.b16 %v12323, %v12322
        %v12338 = vpack.c.b16 %v12325, %v12324
        %v12339 = vpack.c.b16 %v12327, %v12326
        %v12340 = vpack.c.b16 %v12329, %v12328
        %v12341 = vpack.c.b16 %v12331, %v12330
        %v12342 = vpack.c.b16 %v12333, %v12332
        %v12343 = vpack.c.b16 %v12335, %v12334
        %12352 = vmatprep.subr.bf16.mxu0 0
        %12353 = vmatpush1.bf16.msra.mxu0 %v12343
        %12354 = vmatprep.subr.bf16.mxu0 0
        %12355 = vmatpush1.bf16.msra.mxu0 %v12342
        %12356 = vmatprep.subr.bf16.mxu0 0
        %12357 = vmatpush1.bf16.msra.mxu0 %v12341
        %12358 = vmatprep.subr.bf16.mxu0 0
        %12359 = vmatpush1.bf16.msra.mxu0 %v12340
        %12360 = vmatprep.subr.bf16.mxu0 0
        %12361 = vmatpush1.bf16.msra.mxu0 %v12339
        %12362 = vmatprep.subr.bf16.mxu0 0
        %12363 = vmatpush1.bf16.msra.mxu0 %v12338
        %12364 = vmatprep.subr.bf16.mxu0 0
        %12365 = vmatpush1.bf16.msra.mxu0 %v12337
        %12366 = vmatprep.subr.bf16.mxu0 0
        %12367 = vmatpush1.bf16.msra.mxu0 %v12336
        %12368 = vmatprep.subr.bf16.mxu0 0
        %12369 = vmatpush2.bf16.msra.mxu0 0
        %12370 = vmatprep.subr.bf16.mxu0 0
        %12371 = vmatpush2.bf16.msra.mxu0 0
        %12372 = vmatprep.subr.bf16.mxu0 0
        %12373 = vmatpush2.bf16.msra.mxu0 0
        %12374 = vmatprep.subr.bf16.mxu0 0
        %12375 = vmatpush2.bf16.msra.mxu0 0
        %12376 = vmatprep.subr.bf16.mxu0 0
        %12377 = vmatpush2.bf16.msra.mxu0 0
        %12378 = vmatprep.subr.bf16.mxu0 0
        %12379 = vmatpush2.bf16.msra.mxu0 0
        %12380 = vmatprep.subr.bf16.mxu0 0
        %12381 = vmatpush2.bf16.msra.mxu0 0
        %12382 = vmatprep.subr.bf16.mxu0 0
        %12383 = vmatpush2.bf16.msra.mxu0 0
        %12384 = vmatprep.mubr.bf16.mxu0 0
        %12385 = vmatmul.mubr.bf16.gmra.mxu0 %v12302
        %v12386 = vpop.f32.mrf.mxu0
        %v12387 = vadd.f32 %v12303, %v12386
        %v12388 = vpop.f32.mrf.mxu0
        %v12389 = vpop.f32.mrf.mxu0
        %v12390 = vpop.f32.mrf.mxu0
        %12391 = vdwg.mxu0
        %v12392 = vmax.f32 %v12387, 0.0
        %v12393 = vld [vmem:[%s9] sm:$0xf]
        %v12394 = vld [vmem:[%s9 + $0x4] sm:$0xf]
        %v12395 = vld [vmem:[%s9 + $0x8] sm:$0xf]
        %v12396 = vld [vmem:[%s9 + $0xc] sm:$0xf]
        %v12397 = vld [vmem:[%s9 + $0x10] sm:$0xf]
        %v12398 = vld [vmem:[%s9 + $0x14] sm:$0xf]
        %v12399 = vld [vmem:[%s9 + $0x18] sm:$0xf]
        %v12400 = vld [vmem:[%s9 + $0x1c] sm:$0xf]
        %v12401 = vld [vmem:[%s9 + $0x20] sm:$0xf]
        %v12402 = vld [vmem:[%s9 + $0x24] sm:$0xf]
        %v12403 = vld [vmem:[%s9 + $0x28] sm:$0xf]
        %v12404 = vld [vmem:[%s9 + $0x2c] sm:$0xf]
        %v12405 = vld [vmem:[%s9 + $0x30] sm:$0xf]
        %v12406 = vld [vmem:[%s9 + $0x34] sm:$0xf]
        %v12407 = vld [vmem:[%s9 + $0x38] sm:$0xf]
        %v12408 = vld [vmem:[%s9 + $0x3c] sm:$0xf]
        %v12409 = vpack.c.bf16 %v12392, %v12392
        %v12410 = vld [vmem:[%s10] sm:$0x1]
        %v12427 = vunpack.c.l.b16 %v12393
        %v12428 = vunpack.c.l.b16 %v12394
        %v12429 = vunpack.c.l.b16 %v12395
        %v12430 = vunpack.c.l.b16 %v12396
        %v12431 = vunpack.c.l.b16 %v12397
        %v12432 = vunpack.c.l.b16 %v12398
        %v12433 = vunpack.c.l.b16 %v12399
        %v12434 = vunpack.c.l.b16 %v12400
        %v12435 = vunpack.c.l.b16 %v12401
        %v12436 = vunpack.c.l.b16 %v12402
        %v12437 = vunpack.c.l.b16 %v12403
        %v12438 = vunpack.c.l.b16 %v12404
        %v12439 = vunpack.c.l.b16 %v12405
        %v12440 = vunpack.c.l.b16 %v12406
        %v12441 = vunpack.c.l.b16 %v12407
        %v12442 = vunpack.c.l.b16 %v12408
        %v12443 = vpack.c.b16 %v12428, %v12427
        %v12444 = vpack.c.b16 %v12430, %v12429
        %v12445 = vpack.c.b16 %v12432, %v12431
        %v12446 = vpack.c.b16 %v12434, %v12433
        %v12447 = vpack.c.b16 %v12436, %v12435
        %v12448 = vpack.c.b16 %v12438, %v12437
        %v12449 = vpack.c.b16 %v12440, %v12439
        %v12450 = vpack.c.b16 %v12442, %v12441
        %12459 = vmatprep.subr.bf16.mxu0 0
        %12460 = vmatpush1.bf16.msra.mxu0 %v12450
        %12461 = vmatprep.subr.bf16.mxu0 0
        %12462 = vmatpush1.bf16.msra.mxu0 %v12449
        %12463 = vmatprep.subr.bf16.mxu0 0
        %12464 = vmatpush1.bf16.msra.mxu0 %v12448
        %12465 = vmatprep.subr.bf16.mxu0 0
        %12466 = vmatpush1.bf16.msra.mxu0 %v12447
        %12467 = vmatprep.subr.bf16.mxu0 0
        %12468 = vmatpush1.bf16.msra.mxu0 %v12446
        %12469 = vmatprep.subr.bf16.mxu0 0
        %12470 = vmatpush1.bf16.msra.mxu0 %v12445
        %12471 = vmatprep.subr.bf16.mxu0 0
        %12472 = vmatpush1.bf16.msra.mxu0 %v12444
        %12473 = vmatprep.subr.bf16.mxu0 0
        %12474 = vmatpush1.bf16.msra.mxu0 %v12443
        %12475 = vmatprep.subr.bf16.mxu0 0
        %12476 = vmatpush2.bf16.msra.mxu0 0
        %12477 = vmatprep.subr.bf16.mxu0 0
        %12478 = vmatpush2.bf16.msra.mxu0 0
        %12479 = vmatprep.subr.bf16.mxu0 0
        %12480 = vmatpush2.bf16.msra.mxu0 0
        %12481 = vmatprep.subr.bf16.mxu0 0
        %12482 = vmatpush2.bf16.msra.mxu0 0
        %12483 = vmatprep.subr.bf16.mxu0 0
        %12484 = vmatpush2.bf16.msra.mxu0 0
        %12485 = vmatprep.subr.bf16.mxu0 0
        %12486 = vmatpush2.bf16.msra.mxu0 0
        %12487 = vmatprep.subr.bf16.mxu0 0
        %12488 = vmatpush2.bf16.msra.mxu0 0
        %12489 = vmatprep.subr.bf16.mxu0 0
        %12490 = vmatpush2.bf16.msra.mxu0 0
        %12491 = vmatprep.mubr.bf16.mxu0 0
        %12492 = vmatmul.mubr.bf16.gmra.mxu0 %v12409
        %v12493 = vpop.f32.mrf.mxu0
        %v12494 = vadd.f32 %v12410, %v12493
        %v12495 = vpop.f32.mrf.mxu0
        %v12496 = vpop.f32.mrf.mxu0
        %v12497 = vpop.f32.mrf.mxu0
        %12498 = vdwg.mxu0
        %12499 = vst [vmem:[%s378] sm:$0x1] %v12494
        %s12500 = sand.u32 %s269, 1
        %s12501 = scalar_lea.sflag [#allocation3], %s12500
        %s12502 = sand.u32 %s269, 1
        %s12503 = scalar_lea.vmem [#allocation2], %s12502
        // Predicated region
        $region65: #{lenet5_forward.1} parent=63 // pred_check
          %p12504 = pneg %p279
        $region66: #{lenet5_forward.1} parent=63 // pred_check_branch
          %12506 = sbr.rel (%p12504) target = $region68
        $region67: #{lenet5_forward.1} parent=63 // pred_region
          %s12508 = ssub.s32 16, 16
          %12509 = vsyncadd %s12501, %s12508
          %s12510 = smul.addr %s25, 16
          %s12511 = scalar_lea.hbm %s11, %s12510
          %s12513 = sshll.u32 %s12503, 4
          %s12514 = int_to_ptr.vmem [resolvable:$true] %s12513
          %12516 = dma.vmem_to_hbm [thread:$0]  %s12514, 16, %s12511, %s12501
        $region68: #{lenet5_forward.1} parent=63 // pred_fallthru
          _
      $region64: #{lenet5_forward.1} parent=5 // pred_fallthru
        _
      %p12517 = scmp.le.s32.totalorder 2, %s20
      // Predicated region
      $region69: #{lenet5_forward.1} parent=5 // pred_check
        %p12518 = pneg %p12517
      $region70: #{lenet5_forward.1} parent=5 // pred_check_branch
        %12520 = sbr.rel (%p12518) target = $region72
      $region71: #{lenet5_forward.1} parent=5 // pred_region
        %s12521 = ssub.s32 %s20, 2
        // Predicated region
        $region73: #{lenet5_forward.1} parent=71 // pred_check
          %p12522 = pneg %p285
        $region74: #{lenet5_forward.1} parent=71 // pred_check_branch
          %12524 = sbr.rel (%p12522) target = $region76
        $region75: #{lenet5_forward.1} parent=71 // pred_region
          %s12525 = sand.u32 %s270, 1
          %s12526 = scalar_lea.sflag [#allocation3], %s12525
          %s12527 = sand.u32 %s270, 1
          %s12528 = scalar_lea.vmem [#allocation2], %s12527
          %12529 = dma.done %s12526, 16
        $region76: #{lenet5_forward.1} parent=71 // pred_fallthru
          _
      $region72: #{lenet5_forward.1} parent=5 // pred_fallthru
        _
    $region6: #{lenet5_forward.1} parent=1 // loop_footer
      %s24 = sadd.s32 1, %s20
    $region7: #{lenet5_forward.1} parent=1 // loop_footer_branch
      %19 = sbr.rel target = $region3
    $region8: #{lenet5_forward.1} parent=1 // loop_exit
      _
    %12530 = vsyncpa [#allocation3], 1
    %s12531 = scalar_lea.sflag [#allocation3], 1
    %12532 = vsyncpa %s12531, 1

</llo_original>
